<compile_context>
chip_gen: v7x
topology: tpu7x:2x2x1
jax: 0.10.0
libtpu: 0.0.40
codegen_flags: <defaults>
</compile_context>

<pallas_src>
import functools

import jax
import jax.numpy as jnp
import numpy as np
from jax.experimental import pallas as pl
from jax.experimental.pallas import tpu as pltpu

# name, real cin, padded cin (bf16 sublane multiple), cout
_LAYERS = (
    ("conv1", 3, 16, 32),
    ("conv2", 32, 32, 64),
    ("conv3", 64, 64, 128),
)


def _round_up(x, m):
    return (x + m - 1) // m * m


def _plan(H, W):
    """Row counts for the 'full-width rows' fused conv chain.

    Layer l consumes a flattened (rows, cin) activation and produces m_l rows.
    A 3x3 tap (kh, kw) is the row slice [kh*W + kw : kh*W + kw + m_l], so each
    layer's input needs at least 2*W + 2 + m_l rows; round to multiples of 16
    (bf16 packs 16 rows per vreg).
    """
    m3 = _round_up((H - 6) * W, 16)
    m2 = _round_up(max((H - 4) * W, 2 * W + 2 + m3), 16)
    m1 = _round_up(max((H - 2) * W, 2 * W + 2 + m2), 16)
    m0 = _round_up(max(H * W, 2 * W + 2 + m1), 16)
    return m0, m1, m2, m3


def _encoder_kernel(x_ref, w1_ref, b1_ref, w2_ref, b2_ref, w3_ref, b3_ref,
                    o1_ref, o2_ref, o3_ref, *, w, m1, m2, m3):
    """Fused conv1 -> conv2 -> conv3 for one batch element.

    x_ref  : (m0, 16)        bf16  flattened, channel-/row-padded input
    wX_ref : (9*cinX, coutX) bf16  per-tap stacked weights (tight K, tight N)
    bX_ref : (1, coutX)      f32   bias
    o1_ref : (m1, 32)  bf16 | o2_ref : (m2, 64) bf16 | o3_ref : (m3, 128) f32
    o1/o2 double as the next layer's activation source (read back in VMEM).
    """

    def layer(act_ref, m_out, w_ref, b_ref):
        cin = w_ref.shape[0] // 9
        acc = None
        for kh in range(3):
            for kw in range(3):
                t = kh * 3 + kw
                s = kh * w + kw  # row shift of tap (kh, kw), static
                part = jnp.dot(act_ref[s:s + m_out, :],
                               w_ref[t * cin:(t + 1) * cin, :],
                               preferred_element_type=jnp.float32)
                acc = part if acc is None else acc + part
        return acc + b_ref[...]

    # conv1 taps slice the input ref directly.
    o1_ref[...] = layer(x_ref, m1, w1_ref, b1_ref).astype(o1_ref.dtype)
    # conv2 / conv3 taps slice the previous layer's (bf16) output ref.
    o2_ref[...] = layer(o1_ref, m2, w2_ref, b2_ref).astype(o2_ref.dtype)
    o3_ref[...] = layer(o2_ref, m3, w3_ref, b3_ref).astype(o3_ref.dtype)


def init_encoder_params(key, dtype=jnp.float32):
    """Synthetic params matching nn.Conv2d(cin, cout, 3) default init.

    Weights are stored HWIO (3, 3, cin, cout) and pre-rounded to
    bf16-representable values so the kernel's bf16 MXU path is exact in the
    weights (only intermediate-activation rounding remains vs. the f32 ref).
    """
    params = {}
    for name, cin, _, cout in _LAYERS:
        key, kw, kb = jax.random.split(key, 3)
        bound = 1.0 / np.sqrt(cin * 3 * 3)
        wgt = jax.random.uniform(kw, (3, 3, cin, cout), dtype, -bound, bound)
        wgt = wgt.astype(jnp.bfloat16).astype(dtype)
        b = jax.random.uniform(kb, (cout,), dtype, -bound, bound)
        params[name] = (wgt, b)
    return params


def pack_params(params):
    """One-time packing: pad cin to 16/32/64, stack the 9 taps along K, bf16."""
    packed = {}
    for i, (name, cin, cin_pad, cout) in enumerate(_LAYERS, start=1):
        wgt, b = params[name]  # (3, 3, cin, cout), (cout,)
        wp = jnp.zeros((3, 3, cin_pad, cout), jnp.float32)
        wp = wp.at[:, :, :cin, :].set(wgt.astype(jnp.float32))
        packed[f"w{i}"] = wp.reshape(9 * cin_pad, cout).astype(jnp.bfloat16)
        packed[f"b{i}"] = b.astype(jnp.float32).reshape(1, cout)
    return packed


@jax.jit
def encoder_forward(packed, x_nchw):
    """Mirrors Encoder.forward. Input/outputs are NCHW like PyTorch."""
    N, cin, H, W = x_nchw.shape
    cin_pad = _LAYERS[0][2]
    co1, co2, co3 = (l[3] for l in _LAYERS)
    m0, m1, m2, m3 = _plan(H, W)

    # NCHW -> NHWC -> pad channels 3->16 -> flatten rows -> pad rows -> bf16.
    x = jnp.transpose(x_nchw, (0, 2, 3, 1))
    x = jnp.pad(x, ((0, 0), (0, 0), (0, 0), (0, cin_pad - cin)))
    x = x.reshape(N, H * W, cin_pad)
    x = jnp.pad(x, ((0, 0), (0, m0 - H * W), (0, 0))).astype(jnp.bfloat16)

    kernel = functools.partial(_encoder_kernel, w=W, m1=m1, m2=m2, m3=m3)

    flops = 2 * N * 9 * (m1 * 16 * co1 + m2 * 32 * co2 + m3 * 64 * co3)
    bytes_accessed = (
        x.size * x.dtype.itemsize
        + sum(int(v.size) * v.dtype.itemsize for v in packed.values())
        + N * (m1 * co1 * 2 + m2 * co2 * 2 + m3 * co3 * 4))

    o1, o2, o3 = pl.pallas_call(
        kernel,
        out_shape=(
            jax.ShapeDtypeStruct((N, m1, co1), jnp.bfloat16),
            jax.ShapeDtypeStruct((N, m2, co2), jnp.bfloat16),
            jax.ShapeDtypeStruct((N, m3, co3), jnp.float32),
        ),
        grid_spec=pltpu.PrefetchScalarGridSpec(
            num_scalar_prefetch=0,
            grid=(N,),
            in_specs=[
                pl.BlockSpec((None, m0, cin_pad), lambda n: (n, 0, 0)),
                pl.BlockSpec((9 * 16, co1), lambda n: (0, 0)),
                pl.BlockSpec((1, co1), lambda n: (0, 0)),
                pl.BlockSpec((9 * 32, co2), lambda n: (0, 0)),
                pl.BlockSpec((1, co2), lambda n: (0, 0)),
                pl.BlockSpec((9 * 64, co3), lambda n: (0, 0)),
                pl.BlockSpec((1, co3), lambda n: (0, 0)),
            ],
            out_specs=[
                pl.BlockSpec((None, m1, co1), lambda n: (n, 0, 0)),
                pl.BlockSpec((None, m2, co2), lambda n: (n, 0, 0)),
                pl.BlockSpec((None, m3, co3), lambda n: (n, 0, 0)),
            ],
        ),
        compiler_params=pltpu.CompilerParams(
            dimension_semantics=("parallel",),
        ),
        cost_estimate=pl.CostEstimate(
            flops=flops, transcendentals=0, bytes_accessed=bytes_accessed),
    )(x, packed["w1"], packed["b1"], packed["w2"], packed["b2"],
      packed["w3"], packed["b3"])

    def crop(o, layer_idx, cout):
        ho, wo = H - 2 * layer_idx, W - 2 * layer_idx
        t = o[:, :ho * W, :].reshape(N, ho, W, cout)[:, :, :wo, :]
        return jnp.transpose(t, (0, 3, 1, 2)).astype(jnp.float32)  # -> NCHW

    x1 = crop(o1, 1, co1)
    x2 = crop(o2, 2, co2)
    x3 = crop(o3, 3, co3)
    return x3, [x1, x2]


def _reference_forward(params, x_nchw):
    """Pure-JAX f32 reference using lax.conv_general_dilated (NCHW, OIHW)."""
    x = x_nchw
    outs = []
    for name, _, _, _ in _LAYERS:
        wgt, b = params[name]
        w_oihw = jnp.transpose(wgt, (3, 2, 0, 1)).astype(jnp.float32)
        x = jax.lax.conv_general_dilated(
            x, w_oihw, window_strides=(1, 1), padding="VALID",
            dimension_numbers=("NCHW", "OIHW", "NCHW"),
        ) + b[None, :, None, None]
        outs.append(x)
    return outs[2], [outs[0], outs[1]]


if __name__ == "__main__":
    key = jax.random.PRNGKey(0)
    key, kx = jax.random.split(key)

    # Small input consistent with the module: batch=2, channels=3, 16x16 spatial.
    x = jax.random.normal(kx, (2, 3, 16, 16), dtype=jnp.float32)
    x = x.astype(jnp.bfloat16).astype(jnp.float32)  # bf16-representable test input

    params = init_encoder_params(key)
    packed = pack_params(params)

    out, partials = encoder_forward(packed, x)
    out = jax.block_until_ready(out)
    partials = [jax.block_until_ready(p) for p in partials]

    assert out.shape == (2, 128, 10, 10), out.shape
    assert partials[0].shape == (2, 32, 14, 14), partials[0].shape
    assert partials[1].shape == (2, 64, 12, 12), partials[1].shape

    # Check against a pure-JAX f32 reference conv.  The kernel intentionally
    # uses bf16 MXU inputs / bf16 inter-layer activations with f32 accumulation,
    # so tolerances are loosened accordingly (documented precision trade-off).
    ref_out, ref_partials = _reference_forward(params, x)
    np.testing.assert_allclose(np.asarray(partials[0]), np.asarray(ref_partials[0]),
                               atol=2e-2, rtol=2e-2)
    np.testing.assert_allclose(np.asarray(partials[1]), np.asarray(ref_partials[1]),
                               atol=2e-2, rtol=2e-2)
    np.testing.assert_allclose(np.asarray(out), np.asarray(ref_out),
                               atol=2e-2, rtol=2e-2)

    print("KERNEL_OK")
</pallas_src>

<mosaic_0001>
module attributes {stable_mosaic.version = 11 : i64} {
  func.func @_encoder_kernel(%arg0: i32, %arg1: memref<1x304x16xbf16, #tpu.memory_space<vmem>>, %arg2: memref<144x32xbf16, #tpu.memory_space<vmem>>, %arg3: memref<1x32xf32, #tpu.memory_space<vmem>>, %arg4: memref<288x64xbf16, #tpu.memory_space<vmem>>, %arg5: memref<1x64xf32, #tpu.memory_space<vmem>>, %arg6: memref<576x128xbf16, #tpu.memory_space<vmem>>, %arg7: memref<1x128xf32, #tpu.memory_space<vmem>>, %arg8: memref<1x256x32xbf16, #tpu.memory_space<vmem>>, %arg9: memref<1x208x64xbf16, #tpu.memory_space<vmem>>, %arg10: memref<1x160x128xf32, #tpu.memory_space<vmem>>) attributes {dimension_semantics = [#tpu.dimension_semantics<parallel>], iteration_bounds = array<i64: 2>, scalar_prefetch = 0 : i64, scratch_operands = 0 : i64, tpu.core_type = #tpu.core_type<tc>, window_params = [{transform_indices = @transform_0, window_bounds = array<i64: 1, 304, 16>}, {pipeline_mode = #tpu.pipeline_mode<synchronous>, transform_indices = @transform_1, window_bounds = array<i64: 144, 32>}, {pipeline_mode = #tpu.pipeline_mode<synchronous>, transform_indices = @transform_2, window_bounds = array<i64: 1, 32>}, {pipeline_mode = #tpu.pipeline_mode<synchronous>, transform_indices = @transform_3, window_bounds = array<i64: 288, 64>}, {pipeline_mode = #tpu.pipeline_mode<synchronous>, transform_indices = @transform_4, window_bounds = array<i64: 1, 64>}, {pipeline_mode = #tpu.pipeline_mode<synchronous>, transform_indices = @transform_5, window_bounds = array<i64: 576, 128>}, {pipeline_mode = #tpu.pipeline_mode<synchronous>, transform_indices = @transform_6, window_bounds = array<i64: 1, 128>}, {transform_indices = @transform_7, window_bounds = array<i64: 1, 256, 32>}, {transform_indices = @transform_8, window_bounds = array<i64: 1, 208, 64>}, {transform_indices = @transform_9, window_bounds = array<i64: 1, 160, 128>}]} {
    %c0 = arith.constant 0 : index
    %c0_0 = arith.constant 0 : index
    %c0_1 = arith.constant 0 : index
    %0 = vector.load %arg1[%c0, %c0_0, %c0_1] : memref<1x304x16xbf16, #tpu.memory_space<vmem>>, vector<1x256x16xbf16>
    %1 = vector.shape_cast %0 : vector<1x256x16xbf16> to vector<256x16xbf16>
    %c0_2 = arith.constant 0 : index
    %c0_3 = arith.constant 0 : index
    %2 = vector.load %arg2[%c0_2, %c0_3] : memref<144x32xbf16, #tpu.memory_space<vmem>>, vector<16x32xbf16>
    %cst = arith.constant dense<0.000000e+00> : vector<256x32xf32>
    %3 = tpu.matmul %1, %2, %cst {dimension_numbers = #tpu.dot_dimension_numbers<[1], [0], [0], [1], [0, 0, 1, 1], [], []>} : vector<256x16xbf16>, vector<16x32xbf16>, vector<256x32xf32> -> vector<256x32xf32>
    %c0_4 = arith.constant 0 : index
    %c1 = arith.constant 1 : index
    %c0_5 = arith.constant 0 : index
    %4 = vector.load %arg1[%c0_4, %c1, %c0_5] : memref<1x304x16xbf16, #tpu.memory_space<vmem>>, vector<1x256x16xbf16>
    %5 = vector.shape_cast %4 : vector<1x256x16xbf16> to vector<256x16xbf16>
    %c16 = arith.constant 16 : index
    %c0_6 = arith.constant 0 : index
    %6 = vector.load %arg2[%c16, %c0_6] : memref<144x32xbf16, #tpu.memory_space<vmem>>, vector<16x32xbf16>
    %cst_7 = arith.constant dense<0.000000e+00> : vector<256x32xf32>
    %7 = tpu.matmul %5, %6, %cst_7 {dimension_numbers = #tpu.dot_dimension_numbers<[1], [0], [0], [1], [0, 0, 1, 1], [], []>} : vector<256x16xbf16>, vector<16x32xbf16>, vector<256x32xf32> -> vector<256x32xf32>
    %8 = arith.addf %3, %7 : vector<256x32xf32>
    %c0_8 = arith.constant 0 : index
    %c2 = arith.constant 2 : index
    %c0_9 = arith.constant 0 : index
    %9 = vector.load %arg1[%c0_8, %c2, %c0_9] : memref<1x304x16xbf16, #tpu.memory_space<vmem>>, vector<1x256x16xbf16>
    %10 = vector.shape_cast %9 : vector<1x256x16xbf16> to vector<256x16xbf16>
    %c32 = arith.constant 32 : index
    %c0_10 = arith.constant 0 : index
    %11 = vector.load %arg2[%c32, %c0_10] : memref<144x32xbf16, #tpu.memory_space<vmem>>, vector<16x32xbf16>
    %cst_11 = arith.constant dense<0.000000e+00> : vector<256x32xf32>
    %12 = tpu.matmul %10, %11, %cst_11 {dimension_numbers = #tpu.dot_dimension_numbers<[1], [0], [0], [1], [0, 0, 1, 1], [], []>} : vector<256x16xbf16>, vector<16x32xbf16>, vector<256x32xf32> -> vector<256x32xf32>
    %13 = arith.addf %8, %12 : vector<256x32xf32>
    %c0_12 = arith.constant 0 : index
    %c16_13 = arith.constant 16 : index
    %c0_14 = arith.constant 0 : index
    %14 = vector.load %arg1[%c0_12, %c16_13, %c0_14] : memref<1x304x16xbf16, #tpu.memory_space<vmem>>, vector<1x256x16xbf16>
    %15 = vector.shape_cast %14 : vector<1x256x16xbf16> to vector<256x16xbf16>
    %c48 = arith.constant 48 : index
    %c0_15 = arith.constant 0 : index
    %16 = vector.load %arg2[%c48, %c0_15] : memref<144x32xbf16, #tpu.memory_space<vmem>>, vector<16x32xbf16>
    %cst_16 = arith.constant dense<0.000000e+00> : vector<256x32xf32>
    %17 = tpu.matmul %15, %16, %cst_16 {dimension_numbers = #tpu.dot_dimension_numbers<[1], [0], [0], [1], [0, 0, 1, 1], [], []>} : vector<256x16xbf16>, vector<16x32xbf16>, vector<256x32xf32> -> vector<256x32xf32>
    %18 = arith.addf %13, %17 : vector<256x32xf32>
    %c0_17 = arith.constant 0 : index
    %c17 = arith.constant 17 : index
    %c0_18 = arith.constant 0 : index
    %19 = vector.load %arg1[%c0_17, %c17, %c0_18] : memref<1x304x16xbf16, #tpu.memory_space<vmem>>, vector<1x256x16xbf16>
    %20 = vector.shape_cast %19 : vector<1x256x16xbf16> to vector<256x16xbf16>
    %c64 = arith.constant 64 : index
    %c0_19 = arith.constant 0 : index
    %21 = vector.load %arg2[%c64, %c0_19] : memref<144x32xbf16, #tpu.memory_space<vmem>>, vector<16x32xbf16>
    %cst_20 = arith.constant dense<0.000000e+00> : vector<256x32xf32>
    %22 = tpu.matmul %20, %21, %cst_20 {dimension_numbers = #tpu.dot_dimension_numbers<[1], [0], [0], [1], [0, 0, 1, 1], [], []>} : vector<256x16xbf16>, vector<16x32xbf16>, vector<256x32xf32> -> vector<256x32xf32>
    %23 = arith.addf %18, %22 : vector<256x32xf32>
    %c0_21 = arith.constant 0 : index
    %c18 = arith.constant 18 : index
    %c0_22 = arith.constant 0 : index
    %24 = vector.load %arg1[%c0_21, %c18, %c0_22] : memref<1x304x16xbf16, #tpu.memory_space<vmem>>, vector<1x256x16xbf16>
    %25 = vector.shape_cast %24 : vector<1x256x16xbf16> to vector<256x16xbf16>
    %c80 = arith.constant 80 : index
    %c0_23 = arith.constant 0 : index
    %26 = vector.load %arg2[%c80, %c0_23] : memref<144x32xbf16, #tpu.memory_space<vmem>>, vector<16x32xbf16>
    %cst_24 = arith.constant dense<0.000000e+00> : vector<256x32xf32>
    %27 = tpu.matmul %25, %26, %cst_24 {dimension_numbers = #tpu.dot_dimension_numbers<[1], [0], [0], [1], [0, 0, 1, 1], [], []>} : vector<256x16xbf16>, vector<16x32xbf16>, vector<256x32xf32> -> vector<256x32xf32>
    %28 = arith.addf %23, %27 : vector<256x32xf32>
    %c0_25 = arith.constant 0 : index
    %c32_26 = arith.constant 32 : index
    %c0_27 = arith.constant 0 : index
    %29 = vector.load %arg1[%c0_25, %c32_26, %c0_27] : memref<1x304x16xbf16, #tpu.memory_space<vmem>>, vector<1x256x16xbf16>
    %30 = vector.shape_cast %29 : vector<1x256x16xbf16> to vector<256x16xbf16>
    %c96 = arith.constant 96 : index
    %c0_28 = arith.constant 0 : index
    %31 = vector.load %arg2[%c96, %c0_28] : memref<144x32xbf16, #tpu.memory_space<vmem>>, vector<16x32xbf16>
    %cst_29 = arith.constant dense<0.000000e+00> : vector<256x32xf32>
    %32 = tpu.matmul %30, %31, %cst_29 {dimension_numbers = #tpu.dot_dimension_numbers<[1], [0], [0], [1], [0, 0, 1, 1], [], []>} : vector<256x16xbf16>, vector<16x32xbf16>, vector<256x32xf32> -> vector<256x32xf32>
    %33 = arith.addf %28, %32 : vector<256x32xf32>
    %c0_30 = arith.constant 0 : index
    %c33 = arith.constant 33 : index
    %c0_31 = arith.constant 0 : index
    %34 = vector.load %arg1[%c0_30, %c33, %c0_31] : memref<1x304x16xbf16, #tpu.memory_space<vmem>>, vector<1x256x16xbf16>
    %35 = vector.shape_cast %34 : vector<1x256x16xbf16> to vector<256x16xbf16>
    %c112 = arith.constant 112 : index
    %c0_32 = arith.constant 0 : index
    %36 = vector.load %arg2[%c112, %c0_32] : memref<144x32xbf16, #tpu.memory_space<vmem>>, vector<16x32xbf16>
    %cst_33 = arith.constant dense<0.000000e+00> : vector<256x32xf32>
    %37 = tpu.matmul %35, %36, %cst_33 {dimension_numbers = #tpu.dot_dimension_numbers<[1], [0], [0], [1], [0, 0, 1, 1], [], []>} : vector<256x16xbf16>, vector<16x32xbf16>, vector<256x32xf32> -> vector<256x32xf32>
    %38 = arith.addf %33, %37 : vector<256x32xf32>
    %c0_34 = arith.constant 0 : index
    %c34 = arith.constant 34 : index
    %c0_35 = arith.constant 0 : index
    %39 = vector.load %arg1[%c0_34, %c34, %c0_35] : memref<1x304x16xbf16, #tpu.memory_space<vmem>>, vector<1x256x16xbf16>
    %40 = vector.shape_cast %39 : vector<1x256x16xbf16> to vector<256x16xbf16>
    %c128 = arith.constant 128 : index
    %c0_36 = arith.constant 0 : index
    %41 = vector.load %arg2[%c128, %c0_36] : memref<144x32xbf16, #tpu.memory_space<vmem>>, vector<16x32xbf16>
    %cst_37 = arith.constant dense<0.000000e+00> : vector<256x32xf32>
    %42 = tpu.matmul %40, %41, %cst_37 {dimension_numbers = #tpu.dot_dimension_numbers<[1], [0], [0], [1], [0, 0, 1, 1], [], []>} : vector<256x16xbf16>, vector<16x32xbf16>, vector<256x32xf32> -> vector<256x32xf32>
    %43 = arith.addf %38, %42 : vector<256x32xf32>
    %c0_38 = arith.constant 0 : index
    %c0_39 = arith.constant 0 : index
    %44 = vector.load %arg3[%c0_38, %c0_39] : memref<1x32xf32, #tpu.memory_space<vmem>>, vector<1x32xf32>
    %45 = vector.broadcast %44 : vector<1x32xf32> to vector<256x32xf32>
    %46 = arith.addf %43, %45 : vector<256x32xf32>
    %47 = arith.truncf %46 : vector<256x32xf32> to vector<256x32xbf16>
    %c0_40 = arith.constant 0 : index
    %c0_41 = arith.constant 0 : index
    %c0_42 = arith.constant 0 : index
    %48 = vector.load %arg8[%c0_40, %c0_41, %c0_42] : memref<1x256x32xbf16, #tpu.memory_space<vmem>>, vector<1x256x32xbf16>
    %49 = vector.shape_cast %48 : vector<1x256x32xbf16> to vector<256x32xbf16>
    %50 = vector.shape_cast %47 : vector<256x32xbf16> to vector<1x256x32xbf16>
    tpu.vector_store %arg8[%c0_40, %c0_41, %c0_42], %50 {strides = array<i32>} : memref<1x256x32xbf16, #tpu.memory_space<vmem>>, vector<1x256x32xbf16>,
    %c0_43 = arith.constant 0 : index
    %c0_44 = arith.constant 0 : index
    %c0_45 = arith.constant 0 : index
    %51 = vector.load %arg8[%c0_43, %c0_44, %c0_45] : memref<1x256x32xbf16, #tpu.memory_space<vmem>>, vector<1x208x32xbf16>
    %52 = vector.shape_cast %51 : vector<1x208x32xbf16> to vector<208x32xbf16>
    %c0_46 = arith.constant 0 : index
    %c0_47 = arith.constant 0 : index
    %53 = vector.load %arg4[%c0_46, %c0_47] : memref<288x64xbf16, #tpu.memory_space<vmem>>, vector<32x64xbf16>
    %cst_48 = arith.constant dense<0.000000e+00> : vector<208x64xf32>
    %54 = tpu.matmul %52, %53, %cst_48 {dimension_numbers = #tpu.dot_dimension_numbers<[1], [0], [0], [1], [0, 0, 1, 1], [], []>} : vector<208x32xbf16>, vector<32x64xbf16>, vector<208x64xf32> -> vector<208x64xf32>
    %c0_49 = arith.constant 0 : index
    %c1_50 = arith.constant 1 : index
    %c0_51 = arith.constant 0 : index
    %55 = vector.load %arg8[%c0_49, %c1_50, %c0_51] : memref<1x256x32xbf16, #tpu.memory_space<vmem>>, vector<1x208x32xbf16>
    %56 = vector.shape_cast %55 : vector<1x208x32xbf16> to vector<208x32xbf16>
    %c32_52 = arith.constant 32 : index
    %c0_53 = arith.constant 0 : index
    %57 = vector.load %arg4[%c32_52, %c0_53] : memref<288x64xbf16, #tpu.memory_space<vmem>>, vector<32x64xbf16>
    %cst_54 = arith.constant dense<0.000000e+00> : vector<208x64xf32>
    %58 = tpu.matmul %56, %57, %cst_54 {dimension_numbers = #tpu.dot_dimension_numbers<[1], [0], [0], [1], [0, 0, 1, 1], [], []>} : vector<208x32xbf16>, vector<32x64xbf16>, vector<208x64xf32> -> vector<208x64xf32>
    %59 = arith.addf %54, %58 : vector<208x64xf32>
    %c0_55 = arith.constant 0 : index
    %c2_56 = arith.constant 2 : index
    %c0_57 = arith.constant 0 : index
    %60 = vector.load %arg8[%c0_55, %c2_56, %c0_57] : memref<1x256x32xbf16, #tpu.memory_space<vmem>>, vector<1x208x32xbf16>
    %61 = vector.shape_cast %60 : vector<1x208x32xbf16> to vector<208x32xbf16>
    %c64_58 = arith.constant 64 : index
    %c0_59 = arith.constant 0 : index
    %62 = vector.load %arg4[%c64_58, %c0_59] : memref<288x64xbf16, #tpu.memory_space<vmem>>, vector<32x64xbf16>
    %cst_60 = arith.constant dense<0.000000e+00> : vector<208x64xf32>
    %63 = tpu.matmul %61, %62, %cst_60 {dimension_numbers = #tpu.dot_dimension_numbers<[1], [0], [0], [1], [0, 0, 1, 1], [], []>} : vector<208x32xbf16>, vector<32x64xbf16>, vector<208x64xf32> -> vector<208x64xf32>
    %64 = arith.addf %59, %63 : vector<208x64xf32>
    %c0_61 = arith.constant 0 : index
    %c16_62 = arith.constant 16 : index
    %c0_63 = arith.constant 0 : index
    %65 = vector.load %arg8[%c0_61, %c16_62, %c0_63] : memref<1x256x32xbf16, #tpu.memory_space<vmem>>, vector<1x208x32xbf16>
    %66 = vector.shape_cast %65 : vector<1x208x32xbf16> to vector<208x32xbf16>
    %c96_64 = arith.constant 96 : index
    %c0_65 = arith.constant 0 : index
    %67 = vector.load %arg4[%c96_64, %c0_65] : memref<288x64xbf16, #tpu.memory_space<vmem>>, vector<32x64xbf16>
    %cst_66 = arith.constant dense<0.000000e+00> : vector<208x64xf32>
    %68 = tpu.matmul %66, %67, %cst_66 {dimension_numbers = #tpu.dot_dimension_numbers<[1], [0], [0], [1], [0, 0, 1, 1], [], []>} : vector<208x32xbf16>, vector<32x64xbf16>, vector<208x64xf32> -> vector<208x64xf32>
    %69 = arith.addf %64, %68 : vector<208x64xf32>
    %c0_67 = arith.constant 0 : index
    %c17_68 = arith.constant 17 : index
    %c0_69 = arith.constant 0 : index
    %70 = vector.load %arg8[%c0_67, %c17_68, %c0_69] : memref<1x256x32xbf16, #tpu.memory_space<vmem>>, vector<1x208x32xbf16>
    %71 = vector.shape_cast %70 : vector<1x208x32xbf16> to vector<208x32xbf16>
    %c128_70 = arith.constant 128 : index
    %c0_71 = arith.constant 0 : index
    %72 = vector.load %arg4[%c128_70, %c0_71] : memref<288x64xbf16, #tpu.memory_space<vmem>>, vector<32x64xbf16>
    %cst_72 = arith.constant dense<0.000000e+00> : vector<208x64xf32>
    %73 = tpu.matmul %71, %72, %cst_72 {dimension_numbers = #tpu.dot_dimension_numbers<[1], [0], [0], [1], [0, 0, 1, 1], [], []>} : vector<208x32xbf16>, vector<32x64xbf16>, vector<208x64xf32> -> vector<208x64xf32>
    %74 = arith.addf %69, %73 : vector<208x64xf32>
    %c0_73 = arith.constant 0 : index
    %c18_74 = arith.constant 18 : index
    %c0_75 = arith.constant 0 : index
    %75 = vector.load %arg8[%c0_73, %c18_74, %c0_75] : memref<1x256x32xbf16, #tpu.memory_space<vmem>>, vector<1x208x32xbf16>
    %76 = vector.shape_cast %75 : vector<1x208x32xbf16> to vector<208x32xbf16>
    %c160 = arith.constant 160 : index
    %c0_76 = arith.constant 0 : index
    %77 = vector.load %arg4[%c160, %c0_76] : memref<288x64xbf16, #tpu.memory_space<vmem>>, vector<32x64xbf16>
    %cst_77 = arith.constant dense<0.000000e+00> : vector<208x64xf32>
    %78 = tpu.matmul %76, %77, %cst_77 {dimension_numbers = #tpu.dot_dimension_numbers<[1], [0], [0], [1], [0, 0, 1, 1], [], []>} : vector<208x32xbf16>, vector<32x64xbf16>, vector<208x64xf32> -> vector<208x64xf32>
    %79 = arith.addf %74, %78 : vector<208x64xf32>
    %c0_78 = arith.constant 0 : index
    %c32_79 = arith.constant 32 : index
    %c0_80 = arith.constant 0 : index
    %80 = vector.load %arg8[%c0_78, %c32_79, %c0_80] : memref<1x256x32xbf16, #tpu.memory_space<vmem>>, vector<1x208x32xbf16>
    %81 = vector.shape_cast %80 : vector<1x208x32xbf16> to vector<208x32xbf16>
    %c192 = arith.constant 192 : index
    %c0_81 = arith.constant 0 : index
    %82 = vector.load %arg4[%c192, %c0_81] : memref<288x64xbf16, #tpu.memory_space<vmem>>, vector<32x64xbf16>
    %cst_82 = arith.constant dense<0.000000e+00> : vector<208x64xf32>
    %83 = tpu.matmul %81, %82, %cst_82 {dimension_numbers = #tpu.dot_dimension_numbers<[1], [0], [0], [1], [0, 0, 1, 1], [], []>} : vector<208x32xbf16>, vector<32x64xbf16>, vector<208x64xf32> -> vector<208x64xf32>
    %84 = arith.addf %79, %83 : vector<208x64xf32>
    %c0_83 = arith.constant 0 : index
    %c33_84 = arith.constant 33 : index
    %c0_85 = arith.constant 0 : index
    %85 = vector.load %arg8[%c0_83, %c33_84, %c0_85] : memref<1x256x32xbf16, #tpu.memory_space<vmem>>, vector<1x208x32xbf16>
    %86 = vector.shape_cast %85 : vector<1x208x32xbf16> to vector<208x32xbf16>
    %c224 = arith.constant 224 : index
    %c0_86 = arith.constant 0 : index
    %87 = vector.load %arg4[%c224, %c0_86] : memref<288x64xbf16, #tpu.memory_space<vmem>>, vector<32x64xbf16>
    %cst_87 = arith.constant dense<0.000000e+00> : vector<208x64xf32>
    %88 = tpu.matmul %86, %87, %cst_87 {dimension_numbers = #tpu.dot_dimension_numbers<[1], [0], [0], [1], [0, 0, 1, 1], [], []>} : vector<208x32xbf16>, vector<32x64xbf16>, vector<208x64xf32> -> vector<208x64xf32>
    %89 = arith.addf %84, %88 : vector<208x64xf32>
    %c0_88 = arith.constant 0 : index
    %c34_89 = arith.constant 34 : index
    %c0_90 = arith.constant 0 : index
    %90 = vector.load %arg8[%c0_88, %c34_89, %c0_90] : memref<1x256x32xbf16, #tpu.memory_space<vmem>>, vector<1x208x32xbf16>
    %91 = vector.shape_cast %90 : vector<1x208x32xbf16> to vector<208x32xbf16>
    %c256 = arith.constant 256 : index
    %c0_91 = arith.constant 0 : index
    %92 = vector.load %arg4[%c256, %c0_91] : memref<288x64xbf16, #tpu.memory_space<vmem>>, vector<32x64xbf16>
    %cst_92 = arith.constant dense<0.000000e+00> : vector<208x64xf32>
    %93 = tpu.matmul %91, %92, %cst_92 {dimension_numbers = #tpu.dot_dimension_numbers<[1], [0], [0], [1], [0, 0, 1, 1], [], []>} : vector<208x32xbf16>, vector<32x64xbf16>, vector<208x64xf32> -> vector<208x64xf32>
    %94 = arith.addf %89, %93 : vector<208x64xf32>
    %c0_93 = arith.constant 0 : index
    %c0_94 = arith.constant 0 : index
    %95 = vector.load %arg5[%c0_93, %c0_94] : memref<1x64xf32, #tpu.memory_space<vmem>>, vector<1x64xf32>
    %96 = vector.broadcast %95 : vector<1x64xf32> to vector<208x64xf32>
    %97 = arith.addf %94, %96 : vector<208x64xf32>
    %98 = arith.truncf %97 : vector<208x64xf32> to vector<208x64xbf16>
    %c0_95 = arith.constant 0 : index
    %c0_96 = arith.constant 0 : index
    %c0_97 = arith.constant 0 : index
    %99 = vector.load %arg9[%c0_95, %c0_96, %c0_97] : memref<1x208x64xbf16, #tpu.memory_space<vmem>>, vector<1x208x64xbf16>
    %100 = vector.shape_cast %99 : vector<1x208x64xbf16> to vector<208x64xbf16>
    %101 = vector.shape_cast %98 : vector<208x64xbf16> to vector<1x208x64xbf16>
    tpu.vector_store %arg9[%c0_95, %c0_96, %c0_97], %101 {strides = array<i32>} : memref<1x208x64xbf16, #tpu.memory_space<vmem>>, vector<1x208x64xbf16>,
    %c0_98 = arith.constant 0 : index
    %c0_99 = arith.constant 0 : index
    %c0_100 = arith.constant 0 : index
    %102 = vector.load %arg9[%c0_98, %c0_99, %c0_100] : memref<1x208x64xbf16, #tpu.memory_space<vmem>>, vector<1x160x64xbf16>
    %103 = vector.shape_cast %102 : vector<1x160x64xbf16> to vector<160x64xbf16>
    %c0_101 = arith.constant 0 : index
    %c0_102 = arith.constant 0 : index
    %104 = vector.load %arg6[%c0_101, %c0_102] : memref<576x128xbf16, #tpu.memory_space<vmem>>, vector<64x128xbf16>
    %cst_103 = arith.constant dense<0.000000e+00> : vector<160x128xf32>
    %105 = tpu.matmul %103, %104, %cst_103 {dimension_numbers = #tpu.dot_dimension_numbers<[1], [0], [0], [1], [0, 0, 1, 1], [], []>} : vector<160x64xbf16>, vector<64x128xbf16>, vector<160x128xf32> -> vector<160x128xf32>
    %c0_104 = arith.constant 0 : index
    %c1_105 = arith.constant 1 : index
    %c0_106 = arith.constant 0 : index
    %106 = vector.load %arg9[%c0_104, %c1_105, %c0_106] : memref<1x208x64xbf16, #tpu.memory_space<vmem>>, vector<1x160x64xbf16>
    %107 = vector.shape_cast %106 : vector<1x160x64xbf16> to vector<160x64xbf16>
    %c64_107 = arith.constant 64 : index
    %c0_108 = arith.constant 0 : index
    %108 = vector.load %arg6[%c64_107, %c0_108] : memref<576x128xbf16, #tpu.memory_space<vmem>>, vector<64x128xbf16>
    %cst_109 = arith.constant dense<0.000000e+00> : vector<160x128xf32>
    %109 = tpu.matmul %107, %108, %cst_109 {dimension_numbers = #tpu.dot_dimension_numbers<[1], [0], [0], [1], [0, 0, 1, 1], [], []>} : vector<160x64xbf16>, vector<64x128xbf16>, vector<160x128xf32> -> vector<160x128xf32>
    %110 = arith.addf %105, %109 : vector<160x128xf32>
    %c0_110 = arith.constant 0 : index
    %c2_111 = arith.constant 2 : index
    %c0_112 = arith.constant 0 : index
    %111 = vector.load %arg9[%c0_110, %c2_111, %c0_112] : memref<1x208x64xbf16, #tpu.memory_space<vmem>>, vector<1x160x64xbf16>
    %112 = vector.shape_cast %111 : vector<1x160x64xbf16> to vector<160x64xbf16>
    %c128_113 = arith.constant 128 : index
    %c0_114 = arith.constant 0 : index
    %113 = vector.load %arg6[%c128_113, %c0_114] : memref<576x128xbf16, #tpu.memory_space<vmem>>, vector<64x128xbf16>
    %cst_115 = arith.constant dense<0.000000e+00> : vector<160x128xf32>
    %114 = tpu.matmul %112, %113, %cst_115 {dimension_numbers = #tpu.dot_dimension_numbers<[1], [0], [0], [1], [0, 0, 1, 1], [], []>} : vector<160x64xbf16>, vector<64x128xbf16>, vector<160x128xf32> -> vector<160x128xf32>
    %115 = arith.addf %110, %114 : vector<160x128xf32>
    %c0_116 = arith.constant 0 : index
    %c16_117 = arith.constant 16 : index
    %c0_118 = arith.constant 0 : index
    %116 = vector.load %arg9[%c0_116, %c16_117, %c0_118] : memref<1x208x64xbf16, #tpu.memory_space<vmem>>, vector<1x160x64xbf16>
    %117 = vector.shape_cast %116 : vector<1x160x64xbf16> to vector<160x64xbf16>
    %c192_119 = arith.constant 192 : index
    %c0_120 = arith.constant 0 : index
    %118 = vector.load %arg6[%c192_119, %c0_120] : memref<576x128xbf16, #tpu.memory_space<vmem>>, vector<64x128xbf16>
    %cst_121 = arith.constant dense<0.000000e+00> : vector<160x128xf32>
    %119 = tpu.matmul %117, %118, %cst_121 {dimension_numbers = #tpu.dot_dimension_numbers<[1], [0], [0], [1], [0, 0, 1, 1], [], []>} : vector<160x64xbf16>, vector<64x128xbf16>, vector<160x128xf32> -> vector<160x128xf32>
    %120 = arith.addf %115, %119 : vector<160x128xf32>
    %c0_122 = arith.constant 0 : index
    %c17_123 = arith.constant 17 : index
    %c0_124 = arith.constant 0 : index
    %121 = vector.load %arg9[%c0_122, %c17_123, %c0_124] : memref<1x208x64xbf16, #tpu.memory_space<vmem>>, vector<1x160x64xbf16>
    %122 = vector.shape_cast %121 : vector<1x160x64xbf16> to vector<160x64xbf16>
    %c256_125 = arith.constant 256 : index
    %c0_126 = arith.constant 0 : index
    %123 = vector.load %arg6[%c256_125, %c0_126] : memref<576x128xbf16, #tpu.memory_space<vmem>>, vector<64x128xbf16>
    %cst_127 = arith.constant dense<0.000000e+00> : vector<160x128xf32>
    %124 = tpu.matmul %122, %123, %cst_127 {dimension_numbers = #tpu.dot_dimension_numbers<[1], [0], [0], [1], [0, 0, 1, 1], [], []>} : vector<160x64xbf16>, vector<64x128xbf16>, vector<160x128xf32> -> vector<160x128xf32>
    %125 = arith.addf %120, %124 : vector<160x128xf32>
    %c0_128 = arith.constant 0 : index
    %c18_129 = arith.constant 18 : index
    %c0_130 = arith.constant 0 : index
    %126 = vector.load %arg9[%c0_128, %c18_129, %c0_130] : memref<1x208x64xbf16, #tpu.memory_space<vmem>>, vector<1x160x64xbf16>
    %127 = vector.shape_cast %126 : vector<1x160x64xbf16> to vector<160x64xbf16>
    %c320 = arith.constant 320 : index
    %c0_131 = arith.constant 0 : index
    %128 = vector.load %arg6[%c320, %c0_131] : memref<576x128xbf16, #tpu.memory_space<vmem>>, vector<64x128xbf16>
    %cst_132 = arith.constant dense<0.000000e+00> : vector<160x128xf32>
    %129 = tpu.matmul %127, %128, %cst_132 {dimension_numbers = #tpu.dot_dimension_numbers<[1], [0], [0], [1], [0, 0, 1, 1], [], []>} : vector<160x64xbf16>, vector<64x128xbf16>, vector<160x128xf32> -> vector<160x128xf32>
    %130 = arith.addf %125, %129 : vector<160x128xf32>
    %c0_133 = arith.constant 0 : index
    %c32_134 = arith.constant 32 : index
    %c0_135 = arith.constant 0 : index
    %131 = vector.load %arg9[%c0_133, %c32_134, %c0_135] : memref<1x208x64xbf16, #tpu.memory_space<vmem>>, vector<1x160x64xbf16>
    %132 = vector.shape_cast %131 : vector<1x160x64xbf16> to vector<160x64xbf16>
    %c384 = arith.constant 384 : index
    %c0_136 = arith.constant 0 : index
    %133 = vector.load %arg6[%c384, %c0_136] : memref<576x128xbf16, #tpu.memory_space<vmem>>, vector<64x128xbf16>
    %cst_137 = arith.constant dense<0.000000e+00> : vector<160x128xf32>
    %134 = tpu.matmul %132, %133, %cst_137 {dimension_numbers = #tpu.dot_dimension_numbers<[1], [0], [0], [1], [0, 0, 1, 1], [], []>} : vector<160x64xbf16>, vector<64x128xbf16>, vector<160x128xf32> -> vector<160x128xf32>
    %135 = arith.addf %130, %134 : vector<160x128xf32>
    %c0_138 = arith.constant 0 : index
    %c33_139 = arith.constant 33 : index
    %c0_140 = arith.constant 0 : index
    %136 = vector.load %arg9[%c0_138, %c33_139, %c0_140] : memref<1x208x64xbf16, #tpu.memory_space<vmem>>, vector<1x160x64xbf16>
    %137 = vector.shape_cast %136 : vector<1x160x64xbf16> to vector<160x64xbf16>
    %c448 = arith.constant 448 : index
    %c0_141 = arith.constant 0 : index
    %138 = vector.load %arg6[%c448, %c0_141] : memref<576x128xbf16, #tpu.memory_space<vmem>>, vector<64x128xbf16>
    %cst_142 = arith.constant dense<0.000000e+00> : vector<160x128xf32>
    %139 = tpu.matmul %137, %138, %cst_142 {dimension_numbers = #tpu.dot_dimension_numbers<[1], [0], [0], [1], [0, 0, 1, 1], [], []>} : vector<160x64xbf16>, vector<64x128xbf16>, vector<160x128xf32> -> vector<160x128xf32>
    %140 = arith.addf %135, %139 : vector<160x128xf32>
    %c0_143 = arith.constant 0 : index
    %c34_144 = arith.constant 34 : index
    %c0_145 = arith.constant 0 : index
    %141 = vector.load %arg9[%c0_143, %c34_144, %c0_145] : memref<1x208x64xbf16, #tpu.memory_space<vmem>>, vector<1x160x64xbf16>
    %142 = vector.shape_cast %141 : vector<1x160x64xbf16> to vector<160x64xbf16>
    %c512 = arith.constant 512 : index
    %c0_146 = arith.constant 0 : index
    %143 = vector.load %arg6[%c512, %c0_146] : memref<576x128xbf16, #tpu.memory_space<vmem>>, vector<64x128xbf16>
    %cst_147 = arith.constant dense<0.000000e+00> : vector<160x128xf32>
    %144 = tpu.matmul %142, %143, %cst_147 {dimension_numbers = #tpu.dot_dimension_numbers<[1], [0], [0], [1], [0, 0, 1, 1], [], []>} : vector<160x64xbf16>, vector<64x128xbf16>, vector<160x128xf32> -> vector<160x128xf32>
    %145 = arith.addf %140, %144 : vector<160x128xf32>
    %c0_148 = arith.constant 0 : index
    %c0_149 = arith.constant 0 : index
    %146 = vector.load %arg7[%c0_148, %c0_149] : memref<1x128xf32, #tpu.memory_space<vmem>>, vector<1x128xf32>
    %147 = vector.broadcast %146 : vector<1x128xf32> to vector<160x128xf32>
    %148 = arith.addf %145, %147 : vector<160x128xf32>
    %c0_150 = arith.constant 0 : index
    %c0_151 = arith.constant 0 : index
    %c0_152 = arith.constant 0 : index
    %149 = vector.load %arg10[%c0_150, %c0_151, %c0_152] : memref<1x160x128xf32, #tpu.memory_space<vmem>>, vector<1x160x128xf32>
    %150 = vector.shape_cast %149 : vector<1x160x128xf32> to vector<160x128xf32>
    %151 = vector.shape_cast %148 : vector<160x128xf32> to vector<1x160x128xf32>
    tpu.vector_store %arg10[%c0_150, %c0_151, %c0_152], %151 {strides = array<i32>} : memref<1x160x128xf32, #tpu.memory_space<vmem>>, vector<1x160x128xf32>,
    return
  }
  func.func @transform_0(%arg0: i32) -> (i32, i32, i32) {
    %c0_i32 = arith.constant 0 : i32
    %c0_i32_0 = arith.constant 0 : i32
    %c0_i32_1 = arith.constant 0 : i32
    return %arg0, %c0_i32, %c0_i32_0 : i32, i32, i32
  }
  func.func @transform_1(%arg0: i32) -> (i32, i32) {
    %c0_i32 = arith.constant 0 : i32
    %c0_i32_0 = arith.constant 0 : i32
    %c0_i32_1 = arith.constant 0 : i32
    return %c0_i32, %c0_i32_0 : i32, i32
  }
  func.func @transform_2(%arg0: i32) -> (i32, i32) {
    %c0_i32 = arith.constant 0 : i32
    %c0_i32_0 = arith.constant 0 : i32
    %c0_i32_1 = arith.constant 0 : i32
    return %c0_i32, %c0_i32_0 : i32, i32
  }
  func.func @transform_3(%arg0: i32) -> (i32, i32) {
    %c0_i32 = arith.constant 0 : i32
    %c0_i32_0 = arith.constant 0 : i32
    %c0_i32_1 = arith.constant 0 : i32
    return %c0_i32, %c0_i32_0 : i32, i32
  }
  func.func @transform_4(%arg0: i32) -> (i32, i32) {
    %c0_i32 = arith.constant 0 : i32
    %c0_i32_0 = arith.constant 0 : i32
    %c0_i32_1 = arith.constant 0 : i32
    return %c0_i32, %c0_i32_0 : i32, i32
  }
  func.func @transform_5(%arg0: i32) -> (i32, i32) {
    %c0_i32 = arith.constant 0 : i32
    %c0_i32_0 = arith.constant 0 : i32
    %c0_i32_1 = arith.constant 0 : i32
    return %c0_i32, %c0_i32_0 : i32, i32
  }
  func.func @transform_6(%arg0: i32) -> (i32, i32) {
    %c0_i32 = arith.constant 0 : i32
    %c0_i32_0 = arith.constant 0 : i32
    %c0_i32_1 = arith.constant 0 : i32
    return %c0_i32, %c0_i32_0 : i32, i32
  }
  func.func @transform_7(%arg0: i32) -> (i32, i32, i32) {
    %c0_i32 = arith.constant 0 : i32
    %c0_i32_0 = arith.constant 0 : i32
    %c0_i32_1 = arith.constant 0 : i32
    return %arg0, %c0_i32, %c0_i32_0 : i32, i32, i32
  }
  func.func @transform_8(%arg0: i32) -> (i32, i32, i32) {
    %c0_i32 = arith.constant 0 : i32
    %c0_i32_0 = arith.constant 0 : i32
    %c0_i32_1 = arith.constant 0 : i32
    return %arg0, %c0_i32, %c0_i32_0 : i32, i32, i32
  }
  func.func @transform_9(%arg0: i32) -> (i32, i32, i32) {
    %c0_i32 = arith.constant 0 : i32
    %c0_i32_0 = arith.constant 0 : i32
    %c0_i32_1 = arith.constant 0 : i32
    return %arg0, %c0_i32, %c0_i32_0 : i32, i32, i32
  }
}

</mosaic_0001>

<llo_original>
// kernel: encoder_forward.1
$region0: #{encoder_forward.1}
  #allocation0 [shape = 'u32[]', space=smem, size = 0x4, offset = 0x4, fixed_abs, tag = 'smem constant byte address 0x4 - core index']
  #allocation1 [shape = 'u32[144,128]{1,0:T(1,128)}', space=vmem, size = 0x12000, scoped, tag = 'internal scratch']
  %s0 = inlined_call_operand.vmem [shape: bf16[2,304,16], index: 0, kind: input, shape index: {}]
  %s1 = inlined_call_operand.vmem [shape: bf16[144,32], index: 1, kind: input, shape index: {}]
  %s2 = inlined_call_operand.vmem [shape: f32[1,32], index: 2, kind: input, shape index: {}]
  %s3 = inlined_call_operand.vmem [shape: bf16[288,64], index: 3, kind: input, shape index: {}]
  %s4 = inlined_call_operand.vmem [shape: f32[1,64], index: 4, kind: input, shape index: {}]
  %s5 = inlined_call_operand.vmem [shape: bf16[576,128], index: 5, kind: input, shape index: {}]
  %s6 = inlined_call_operand.vmem [shape: f32[1,128], index: 6, kind: input, shape index: {}]
  %s7 = inlined_call_operand.vmem [shape: bf16[2,256,32], index: 7, kind: output, shape index: {0}]
  %s8 = inlined_call_operand.vmem [shape: bf16[2,208,64], index: 8, kind: output, shape index: {1}]
  %s9 = inlined_call_operand.vmem [shape: f32[2,160,128], index: 9, kind: output, shape index: {2}]
  %10 = xla_tuple %s7, %s8, %s9
  %s11 = sld [smem:[#allocation0]]
  $region77: #{encoder_forward.1} parent=0
    _
  %s13 = ssub.s32 1, %s11
  %s14 = scalar_select 0, %s13, %s11
  loop: start=0, step=1, limit=4
  $region2: #{encoder_forward.1} parent=0 // loop_pre_header
    _
  $region3: #{encoder_forward.1} parent=0 // loop_header
    %s16 = sphi 0, %s20
    %p17 = scmp.ge.s32.totalorder %s16, 4
    %s26 = sphi 0, %s28
    %s29 = sphi 0, %s26
    %s30 = sphi 0, %s29
    %s46 = sphi 0, %s30
    %s50 = sphi 0, %s50
    %s52 = sphi 0, %s50
    %s53 = sphi 0, %s52
    %s67 = sphi 0, %s53
    %s71 = sphi 0, %s71
    %s73 = sphi 0, %s71
    %s74 = sphi 0, %s73
    %s88 = sphi 0, %s74
    %s92 = sphi 0, %s92
    %s94 = sphi 0, %s92
    %s95 = sphi 0, %s94
    %s109 = sphi 0, %s95
    %s113 = sphi 0, %s113
    %s115 = sphi 0, %s113
    %s116 = sphi 0, %s115
    %s130 = sphi 0, %s116
    %s134 = sphi 0, %s134
    %s136 = sphi 0, %s134
    %s137 = sphi 0, %s136
    %s151 = sphi 0, %s137
    %s155 = sphi 0, %s155
    %s157 = sphi 0, %s155
    %s158 = sphi 0, %s157
    %s172 = sphi 0, %s158
    %s178 = sphi 0, %s180
    %s181 = sphi 0, %s178
    %s182 = sphi 0, %s181
    %s198 = sphi 0, %s182
    %s204 = sphi 0, %s206
    %s207 = sphi 0, %s204
    %s208 = sphi 0, %s207
    %s224 = sphi 0, %s208
    %s230 = sphi 0, %s232
    %s233 = sphi 0, %s230
    %s234 = sphi 0, %s233
    %s250 = sphi 0, %s234
  $region4: #{encoder_forward.1} parent=0 // loop_header_branch
    %19 = sbr.rel (%p17) target = $region8
  $region5: #{encoder_forward.1} parent=0 // loop_body
    %s21 = ssub.s32 %s16, 1
    %s22 = ssub.s32 %s16, 2
    %s23 = sadd.s32 %s16, 1
    %s24 = ssub.s32 %s16, %s23
    %p25 = scmp.eq.s32.totalorder %s24, 0
    %s27 = sadd.s32 %s26, 1
    %s28 = scalar_select %p25, %s26, %s27
    %p31 = pneg %p25
    %p32 = scmp.eq.s32.totalorder %s16, 1
    %p33 = por %p31, %p32
    %p34 = scmp.ne.s32.totalorder %s26, %s29
    %p35 = scmp.eq.s32.totalorder %s16, 0
    %p36 = por %p34, %p35
    %p37 = scmp.ne.s32.totalorder %s26, %s29
    %p38 = scmp.eq.s32.totalorder %s21, 1
    %p39 = por %p37, %p38
    %p40 = scmp.ne.s32.totalorder %s29, %s30
    %p41 = scmp.eq.s32.totalorder %s21, 0
    %p42 = por %p40, %p41
    %p43 = scmp.ne.s32.totalorder %s29, %s30
    %p44 = scmp.eq.s32.totalorder %s22, 1
    %p45 = por %p43, %p44
    %p47 = scmp.ne.s32.totalorder %s30, %s46
    %p48 = scmp.eq.s32.totalorder %s22, 0
    %p49 = por %p47, %p48
    %s51 = sadd.s32 %s50, 1
    %p54 = scmp.eq.s32.totalorder %s16, 1
    %p55 = scmp.ne.s32.totalorder %s50, %s52
    %p56 = scmp.eq.s32.totalorder %s16, 0
    %p57 = por %p55, %p56
    %p58 = scmp.ne.s32.totalorder %s50, %s52
    %p59 = scmp.eq.s32.totalorder %s21, 1
    %p60 = por %p58, %p59
    %p61 = scmp.ne.s32.totalorder %s52, %s53
    %p62 = scmp.eq.s32.totalorder %s21, 0
    %p63 = por %p61, %p62
    %p64 = scmp.ne.s32.totalorder %s52, %s53
    %p65 = scmp.eq.s32.totalorder %s22, 1
    %p66 = por %p64, %p65
    %p68 = scmp.ne.s32.totalorder %s53, %s67
    %p69 = scmp.eq.s32.totalorder %s22, 0
    %p70 = por %p68, %p69
    %s72 = sadd.s32 %s71, 1
    %p75 = scmp.eq.s32.totalorder %s16, 1
    %p76 = scmp.ne.s32.totalorder %s71, %s73
    %p77 = scmp.eq.s32.totalorder %s16, 0
    %p78 = por %p76, %p77
    %p79 = scmp.ne.s32.totalorder %s71, %s73
    %p80 = scmp.eq.s32.totalorder %s21, 1
    %p81 = por %p79, %p80
    %p82 = scmp.ne.s32.totalorder %s73, %s74
    %p83 = scmp.eq.s32.totalorder %s21, 0
    %p84 = por %p82, %p83
    %p85 = scmp.ne.s32.totalorder %s73, %s74
    %p86 = scmp.eq.s32.totalorder %s22, 1
    %p87 = por %p85, %p86
    %p89 = scmp.ne.s32.totalorder %s74, %s88
    %p90 = scmp.eq.s32.totalorder %s22, 0
    %p91 = por %p89, %p90
    %s93 = sadd.s32 %s92, 1
    %p96 = scmp.eq.s32.totalorder %s16, 1
    %p97 = scmp.ne.s32.totalorder %s92, %s94
    %p98 = scmp.eq.s32.totalorder %s16, 0
    %p99 = por %p97, %p98
    %p100 = scmp.ne.s32.totalorder %s92, %s94
    %p101 = scmp.eq.s32.totalorder %s21, 1
    %p102 = por %p100, %p101
    %p103 = scmp.ne.s32.totalorder %s94, %s95
    %p104 = scmp.eq.s32.totalorder %s21, 0
    %p105 = por %p103, %p104
    %p106 = scmp.ne.s32.totalorder %s94, %s95
    %p107 = scmp.eq.s32.totalorder %s22, 1
    %p108 = por %p106, %p107
    %p110 = scmp.ne.s32.totalorder %s95, %s109
    %p111 = scmp.eq.s32.totalorder %s22, 0
    %p112 = por %p110, %p111
    %s114 = sadd.s32 %s113, 1
    %p117 = scmp.eq.s32.totalorder %s16, 1
    %p118 = scmp.ne.s32.totalorder %s113, %s115
    %p119 = scmp.eq.s32.totalorder %s16, 0
    %p120 = por %p118, %p119
    %p121 = scmp.ne.s32.totalorder %s113, %s115
    %p122 = scmp.eq.s32.totalorder %s21, 1
    %p123 = por %p121, %p122
    %p124 = scmp.ne.s32.totalorder %s115, %s116
    %p125 = scmp.eq.s32.totalorder %s21, 0
    %p126 = por %p124, %p125
    %p127 = scmp.ne.s32.totalorder %s115, %s116
    %p128 = scmp.eq.s32.totalorder %s22, 1
    %p129 = por %p127, %p128
    %p131 = scmp.ne.s32.totalorder %s116, %s130
    %p132 = scmp.eq.s32.totalorder %s22, 0
    %p133 = por %p131, %p132
    %s135 = sadd.s32 %s134, 1
    %p138 = scmp.eq.s32.totalorder %s16, 1
    %p139 = scmp.ne.s32.totalorder %s134, %s136
    %p140 = scmp.eq.s32.totalorder %s16, 0
    %p141 = por %p139, %p140
    %p142 = scmp.ne.s32.totalorder %s134, %s136
    %p143 = scmp.eq.s32.totalorder %s21, 1
    %p144 = por %p142, %p143
    %p145 = scmp.ne.s32.totalorder %s136, %s137
    %p146 = scmp.eq.s32.totalorder %s21, 0
    %p147 = por %p145, %p146
    %p148 = scmp.ne.s32.totalorder %s136, %s137
    %p149 = scmp.eq.s32.totalorder %s22, 1
    %p150 = por %p148, %p149
    %p152 = scmp.ne.s32.totalorder %s137, %s151
    %p153 = scmp.eq.s32.totalorder %s22, 0
    %p154 = por %p152, %p153
    %s156 = sadd.s32 %s155, 1
    %p159 = scmp.eq.s32.totalorder %s16, 1
    %p160 = scmp.ne.s32.totalorder %s155, %s157
    %p161 = scmp.eq.s32.totalorder %s16, 0
    %p162 = por %p160, %p161
    %p163 = scmp.ne.s32.totalorder %s155, %s157
    %p164 = scmp.eq.s32.totalorder %s21, 1
    %p165 = por %p163, %p164
    %p166 = scmp.ne.s32.totalorder %s157, %s158
    %p167 = scmp.eq.s32.totalorder %s21, 0
    %p168 = por %p166, %p167
    %p169 = scmp.ne.s32.totalorder %s157, %s158
    %p170 = scmp.eq.s32.totalorder %s22, 1
    %p171 = por %p169, %p170
    %p173 = scmp.ne.s32.totalorder %s158, %s172
    %p174 = scmp.eq.s32.totalorder %s22, 0
    %p175 = por %p173, %p174
    %s176 = ssub.s32 %s16, %s23
    %p177 = scmp.eq.s32.totalorder %s176, 0
    %s179 = sadd.s32 %s178, 1
    %s180 = scalar_select %p177, %s178, %s179
    %p183 = pneg %p177
    %p184 = scmp.eq.s32.totalorder %s16, 1
    %p185 = por %p183, %p184
    %p186 = scmp.ne.s32.totalorder %s178, %s181
    %p187 = scmp.eq.s32.totalorder %s16, 0
    %p188 = por %p186, %p187
    %p189 = scmp.ne.s32.totalorder %s178, %s181
    %p190 = scmp.eq.s32.totalorder %s21, 1
    %p191 = por %p189, %p190
    %p192 = scmp.ne.s32.totalorder %s181, %s182
    %p193 = scmp.eq.s32.totalorder %s21, 0
    %p194 = por %p192, %p193
    %p195 = scmp.ne.s32.totalorder %s181, %s182
    %p196 = scmp.eq.s32.totalorder %s22, 1
    %p197 = por %p195, %p196
    %p199 = scmp.ne.s32.totalorder %s182, %s198
    %p200 = scmp.eq.s32.totalorder %s22, 0
    %p201 = por %p199, %p200
    %s202 = ssub.s32 %s16, %s23
    %p203 = scmp.eq.s32.totalorder %s202, 0
    %s205 = sadd.s32 %s204, 1
    %s206 = scalar_select %p203, %s204, %s205
    %p209 = pneg %p203
    %p210 = scmp.eq.s32.totalorder %s16, 1
    %p211 = por %p209, %p210
    %p212 = scmp.ne.s32.totalorder %s204, %s207
    %p213 = scmp.eq.s32.totalorder %s16, 0
    %p214 = por %p212, %p213
    %p215 = scmp.ne.s32.totalorder %s204, %s207
    %p216 = scmp.eq.s32.totalorder %s21, 1
    %p217 = por %p215, %p216
    %p218 = scmp.ne.s32.totalorder %s207, %s208
    %p219 = scmp.eq.s32.totalorder %s21, 0
    %p220 = por %p218, %p219
    %p221 = scmp.ne.s32.totalorder %s207, %s208
    %p222 = scmp.eq.s32.totalorder %s22, 1
    %p223 = por %p221, %p222
    %p225 = scmp.ne.s32.totalorder %s208, %s224
    %p226 = scmp.eq.s32.totalorder %s22, 0
    %p227 = por %p225, %p226
    %s228 = ssub.s32 %s16, %s23
    %p229 = scmp.eq.s32.totalorder %s228, 0
    %s231 = sadd.s32 %s230, 1
    %s232 = scalar_select %p229, %s230, %s231
    %p235 = pneg %p229
    %p236 = scmp.eq.s32.totalorder %s16, 1
    %p237 = por %p235, %p236
    %p238 = scmp.ne.s32.totalorder %s230, %s233
    %p239 = scmp.eq.s32.totalorder %s16, 0
    %p240 = por %p238, %p239
    %p241 = scmp.ne.s32.totalorder %s230, %s233
    %p242 = scmp.eq.s32.totalorder %s21, 1
    %p243 = por %p241, %p242
    %p244 = scmp.ne.s32.totalorder %s233, %s234
    %p245 = scmp.eq.s32.totalorder %s21, 0
    %p246 = por %p244, %p245
    %p247 = scmp.ne.s32.totalorder %s233, %s234
    %p248 = scmp.eq.s32.totalorder %s22, 1
    %p249 = por %p247, %p248
    %p251 = scmp.ne.s32.totalorder %s234, %s250
    %p252 = scmp.eq.s32.totalorder %s22, 0
    %p253 = por %p251, %p252
    %p254 = scmp.le.s32.totalorder 1, %s16
    %p255 = scmp.lt.s32.totalorder %s16, 3
    %p256 = pnand %p254, %p255
    %p257 = pneg %p256
    // Predicated region
    $region9: #{encoder_forward.1} parent=5 // pred_check
      _
    $region10: #{encoder_forward.1} parent=5 // pred_check_branch
      %259 = sbr.rel (%p256) target = $region12
    $region11: #{encoder_forward.1} parent=5 // pred_region
      %s260 = ssub.s32 %s16, 1
      // Predicated region
      $region13: #{encoder_forward.1} parent=11 // pred_check
        %p261 = pneg %p63
      $region14: #{encoder_forward.1} parent=11 // pred_check_branch
        %263 = sbr.rel (%p261) target = $region16
      $region15: #{encoder_forward.1} parent=11 // pred_region
        _
      $region16: #{encoder_forward.1} parent=11 // pred_fallthru
        _
      // Predicated region
      $region17: #{encoder_forward.1} parent=11 // pred_check
        %p264 = pneg %p84
      $region18: #{encoder_forward.1} parent=11 // pred_check_branch
        %266 = sbr.rel (%p264) target = $region20
      $region19: #{encoder_forward.1} parent=11 // pred_region
        _
      $region20: #{encoder_forward.1} parent=11 // pred_fallthru
        _
      // Predicated region
      $region21: #{encoder_forward.1} parent=11 // pred_check
        %p267 = pneg %p105
      $region22: #{encoder_forward.1} parent=11 // pred_check_branch
        %269 = sbr.rel (%p267) target = $region24
      $region23: #{encoder_forward.1} parent=11 // pred_region
        _
      $region24: #{encoder_forward.1} parent=11 // pred_fallthru
        _
      // Predicated region
      $region25: #{encoder_forward.1} parent=11 // pred_check
        %p270 = pneg %p126
      $region26: #{encoder_forward.1} parent=11 // pred_check_branch
        %272 = sbr.rel (%p270) target = $region28
      $region27: #{encoder_forward.1} parent=11 // pred_region
        _
      $region28: #{encoder_forward.1} parent=11 // pred_fallthru
        _
      // Predicated region
      $region29: #{encoder_forward.1} parent=11 // pred_check
        %p273 = pneg %p147
      $region30: #{encoder_forward.1} parent=11 // pred_check_branch
        %275 = sbr.rel (%p273) target = $region32
      $region31: #{encoder_forward.1} parent=11 // pred_region
        _
      $region32: #{encoder_forward.1} parent=11 // pred_fallthru
        _
      // Predicated region
      $region33: #{encoder_forward.1} parent=11 // pred_check
        %p276 = pneg %p168
      $region34: #{encoder_forward.1} parent=11 // pred_check_branch
        %278 = sbr.rel (%p276) target = $region36
      $region35: #{encoder_forward.1} parent=11 // pred_region
        _
      $region36: #{encoder_forward.1} parent=11 // pred_fallthru
        _
    $region12: #{encoder_forward.1} parent=5 // pred_fallthru
      _
    %p279 = scmp.lt.s32.totalorder %s16, 2
    // Predicated region
    $region37: #{encoder_forward.1} parent=5 // pred_check
      %p280 = pneg %p279
    $region38: #{encoder_forward.1} parent=5 // pred_check_branch
      %282 = sbr.rel (%p280) target = $region40
    $region39: #{encoder_forward.1} parent=5 // pred_region
      // Predicated region
      $region41: #{encoder_forward.1} parent=39 // pred_check
        %p283 = pneg %p36
      $region42: #{encoder_forward.1} parent=39 // pred_check_branch
        %285 = sbr.rel (%p283) target = $region44
      $region43: #{encoder_forward.1} parent=39 // pred_region
        %p286 = scmp.lt.s32.totalorder %s16, 1
        %s287 = scalar_select %p286, %s16, 1
        %s288 = smul.addr %s287, 38
        %s289 = smul.addr %s288, 4
        %s290 = scalar_lea.vmem %s0, %s289
      $region44: #{encoder_forward.1} parent=39 // pred_fallthru
        _
    $region40: #{encoder_forward.1} parent=5 // pred_fallthru
      _
    %p291 = scmp.le.s32.totalorder 1, %s16
    %p292 = scmp.lt.s32.totalorder %s16, 3
    %p293 = pnand %p291, %p292
    %p294 = pneg %p293
    // Predicated region
    $region45: #{encoder_forward.1} parent=5 // pred_check
      _
    $region46: #{encoder_forward.1} parent=5 // pred_check_branch
      %296 = sbr.rel (%p293) target = $region48
    $region47: #{encoder_forward.1} parent=5 // pred_region
      %s297 = ssub.s32 %s16, 1
      %p298 = scmp.lt.s32.totalorder %s21, 1
      %s299 = scalar_select %p298, %s21, 1
      %s300 = smul.addr %s299, 38
      %s301 = smul.addr %s300, 4
      %s302 = scalar_lea.vmem %s0, %s301
      %p303 = pneg %p42
      %p304 = pneg %p39
      %p305 = pneg %p63
      %p306 = pneg %p60
      %p307 = pneg %p84
      %p308 = pneg %p81
      %p309 = pneg %p105
      %p310 = pneg %p102
      %p311 = pneg %p126
      %p312 = pneg %p123
      %p313 = pneg %p147
      %p314 = pneg %p144
      %p315 = pneg %p168
      %p316 = pneg %p165
      %p317 = pneg %p194
      %p318 = pneg %p191
      %p319 = scmp.lt.s32.totalorder %s21, 1
      %s320 = scalar_select %p319, %s21, 1
      %s321 = smul.addr %s320, 32
      %s322 = smul.addr %s321, 4
      %s323 = scalar_lea.vmem %s7, %s322
      %p324 = pneg %p220
      %p325 = pneg %p217
      %p326 = scmp.lt.s32.totalorder %s21, 1
      %s327 = scalar_select %p326, %s21, 1
      %s328 = smul.addr %s327, 26
      %s329 = smul.addr %s328, 4
      %s330 = scalar_lea.vmem %s8, %s329
      %p331 = pneg %p246
      %p332 = pneg %p243
      %p333 = scmp.lt.s32.totalorder %s21, 1
      %s334 = scalar_select %p333, %s21, 1
      %s335 = smul.addr %s334, 20
      %s336 = smul.addr %s335, 8
      %s337 = scalar_lea.vmem %s9, %s336
      %p338 = scmp.lt.s32.totalorder %s21, 1
      %s339 = scalar_select %p338, %s21, 1
      %s340 = smul.addr %s339, 38
      %s341 = smul.addr %s340, 4
      %s342 = scalar_lea.vmem %s0, %s341
      %p343 = scmp.lt.s32.totalorder %s21, 1
      %s344 = scalar_select %p343, %s21, 1
      %s345 = smul.addr %s344, 32
      %s346 = smul.addr %s345, 4
      %s347 = scalar_lea.vmem %s7, %s346
      %p348 = scmp.lt.s32.totalorder %s21, 1
      %s349 = scalar_select %p348, %s21, 1
      %s350 = smul.addr %s349, 26
      %s351 = smul.addr %s350, 4
      %s352 = scalar_lea.vmem %s8, %s351
      %p353 = scmp.lt.s32.totalorder %s21, 1
      %s354 = scalar_select %p353, %s21, 1
      %s355 = smul.addr %s354, 20
      %s356 = smul.addr %s355, 8
      %s357 = scalar_lea.vmem %s9, %s356
      %v359 = vld [vmem:[%s342] sm:$0xf]
      %v360 = vld [vmem:[%s342 + $0x4] sm:$0xf]
      %v361 = vld [vmem:[%s342 + $0x8] sm:$0xf]
      %v362 = vld [vmem:[%s342 + $0xc] sm:$0xf]
      %v363 = vld [vmem:[%s342 + $0x10] sm:$0xf]
      %v364 = vld [vmem:[%s342 + $0x14] sm:$0xf]
      %v365 = vld [vmem:[%s342 + $0x18] sm:$0xf]
      %v366 = vld [vmem:[%s342 + $0x1c] sm:$0xf]
      %v367 = vld [vmem:[%s342 + $0x20] sm:$0xf]
      %v368 = vld [vmem:[%s342 + $0x24] sm:$0xf]
      %v369 = vld [vmem:[%s342 + $0x28] sm:$0xf]
      %v370 = vld [vmem:[%s342 + $0x2c] sm:$0xf]
      %v371 = vld [vmem:[%s342 + $0x30] sm:$0xf]
      %v372 = vld [vmem:[%s342 + $0x34] sm:$0xf]
      %v373 = vld [vmem:[%s342 + $0x38] sm:$0xf]
      %v374 = vld [vmem:[%s342 + $0x3c] sm:$0xf]
      %v375 = vld [vmem:[%s342 + $0x40] sm:$0xf]
      %v376 = vld [vmem:[%s342 + $0x44] sm:$0xf]
      %v377 = vld [vmem:[%s342 + $0x48] sm:$0xf]
      %v378 = vld [vmem:[%s342 + $0x4c] sm:$0xf]
      %v379 = vld [vmem:[%s342 + $0x50] sm:$0xf]
      %v380 = vld [vmem:[%s342 + $0x54] sm:$0xf]
      %v381 = vld [vmem:[%s342 + $0x58] sm:$0xf]
      %v382 = vld [vmem:[%s342 + $0x5c] sm:$0xf]
      %v383 = vld [vmem:[%s342 + $0x60] sm:$0xf]
      %v384 = vld [vmem:[%s342 + $0x64] sm:$0xf]
      %v385 = vld [vmem:[%s342 + $0x68] sm:$0xf]
      %v386 = vld [vmem:[%s342 + $0x6c] sm:$0xf]
      %v387 = vld [vmem:[%s342 + $0x70] sm:$0xf]
      %v388 = vld [vmem:[%s342 + $0x74] sm:$0xf]
      %v389 = vld [vmem:[%s342 + $0x78] sm:$0xf]
      %v390 = vld [vmem:[%s342 + $0x7c] sm:$0xf]
      %v391 = vld [vmem:[%s1] sm:$0xf]
      %v392 = vld [vmem:[%s1 + $0x4] sm:$0xf]
      %v393 = vld [vmem:[%s342 + $0x80] sm:$0x1]
      %v394 = vld [vmem:[%s1 + $0x8] sm:$0xf]
      %v395 = vld [vmem:[%s1 + $0xc] sm:$0xf]
      %v429 = vunpack.c.l.b16 %v359
      %v430 = vunpack.c.l.b16 %v360
      %v431 = vunpack.c.l.b16 %v361
      %v432 = vunpack.c.l.b16 %v362
      %v433 = vunpack.c.l.b16 %v363
      %v434 = vunpack.c.l.b16 %v364
      %v435 = vunpack.c.l.b16 %v365
      %v436 = vunpack.c.l.b16 %v366
      %v437 = vunpack.c.l.b16 %v367
      %v438 = vunpack.c.l.b16 %v368
      %v439 = vunpack.c.l.b16 %v369
      %v440 = vunpack.c.l.b16 %v370
      %v441 = vunpack.c.l.b16 %v371
      %v442 = vunpack.c.l.b16 %v372
      %v443 = vunpack.c.l.b16 %v373
      %v444 = vunpack.c.l.b16 %v374
      %v445 = vunpack.c.l.b16 %v375
      %v446 = vunpack.c.l.b16 %v376
      %v447 = vunpack.c.l.b16 %v377
      %v448 = vunpack.c.l.b16 %v378
      %v449 = vunpack.c.l.b16 %v379
      %v450 = vunpack.c.l.b16 %v380
      %v451 = vunpack.c.l.b16 %v381
      %v452 = vunpack.c.l.b16 %v382
      %v453 = vunpack.c.l.b16 %v383
      %v454 = vunpack.c.l.b16 %v384
      %v455 = vunpack.c.l.b16 %v385
      %v456 = vunpack.c.l.b16 %v386
      %v457 = vunpack.c.l.b16 %v387
      %v458 = vunpack.c.l.b16 %v388
      %v459 = vunpack.c.l.b16 %v389
      %v460 = vunpack.c.l.b16 %v390
      %v461 = vunpack.c.l.b16 %v393
      %v462 = vpack.c.b16 %v430, %v429
      %v463 = vpack.c.b16 %v432, %v431
      %v464 = vpack.c.b16 %v434, %v433
      %v465 = vpack.c.b16 %v436, %v435
      %v466 = vpack.c.b16 %v438, %v437
      %v467 = vpack.c.b16 %v440, %v439
      %v468 = vpack.c.b16 %v442, %v441
      %v469 = vpack.c.b16 %v444, %v443
      %v470 = vpack.c.b16 %v446, %v445
      %v471 = vpack.c.b16 %v448, %v447
      %v472 = vpack.c.b16 %v450, %v449
      %v473 = vpack.c.b16 %v452, %v451
      %v474 = vpack.c.b16 %v454, %v453
      %v475 = vpack.c.b16 %v456, %v455
      %v476 = vpack.c.b16 %v458, %v457
      %v477 = vpack.c.b16 %v460, %v459
      %v478 = vpack.c.b16 %v461, %v461
      %vm479 = vsmask.f32 7424
      %v481 = vshrl.u32 %v462, 16
      %v483 = vshll.u32 %v462, 16
      %v485 = vrot.slane %v483, 1
      %v486 = vor.u32 %v481, %v485
      %v488 = vshll.u32 %v463, 16
      %v490 = vrot.slane %v488, 1
      %v491 = vsel %vm479, %v486, %v490
      %v492 = vshrl.u32 %v463, 16
      %v494 = vor.u32 %v492, %v490
      %v496 = vshll.u32 %v464, 16
      %v498 = vrot.slane %v496, 1
      %v499 = vsel %vm479, %v494, %v498
      %v500 = vshrl.u32 %v464, 16
      %v502 = vor.u32 %v500, %v498
      %v504 = vshll.u32 %v465, 16
      %v506 = vrot.slane %v504, 1
      %v507 = vsel %vm479, %v502, %v506
      %v508 = vshrl.u32 %v465, 16
      %v510 = vor.u32 %v508, %v506
      %v512 = vshll.u32 %v466, 16
      %v514 = vrot.slane %v512, 1
      %v515 = vsel %vm479, %v510, %v514
      %v516 = vshrl.u32 %v466, 16
      %v518 = vor.u32 %v516, %v514
      %v520 = vshll.u32 %v467, 16
      %v522 = vrot.slane %v520, 1
      %v523 = vsel %vm479, %v518, %v522
      %v524 = vshrl.u32 %v467, 16
      %v526 = vor.u32 %v524, %v522
      %v528 = vshll.u32 %v468, 16
      %v530 = vrot.slane %v528, 1
      %v531 = vsel %vm479, %v526, %v530
      %v532 = vshrl.u32 %v468, 16
      %v534 = vor.u32 %v532, %v530
      %v536 = vshll.u32 %v469, 16
      %v538 = vrot.slane %v536, 1
      %v539 = vsel %vm479, %v534, %v538
      %v540 = vshrl.u32 %v469, 16
      %v542 = vor.u32 %v540, %v538
      %v544 = vshll.u32 %v470, 16
      %v546 = vrot.slane %v544, 1
      %v547 = vsel %vm479, %v542, %v546
      %v548 = vshrl.u32 %v470, 16
      %v550 = vor.u32 %v548, %v546
      %v552 = vshll.u32 %v471, 16
      %v554 = vrot.slane %v552, 1
      %v555 = vsel %vm479, %v550, %v554
      %v556 = vshrl.u32 %v471, 16
      %v558 = vor.u32 %v556, %v554
      %v560 = vshll.u32 %v472, 16
      %v562 = vrot.slane %v560, 1
      %v563 = vsel %vm479, %v558, %v562
      %v564 = vshrl.u32 %v472, 16
      %v566 = vor.u32 %v564, %v562
      %v568 = vshll.u32 %v473, 16
      %v570 = vrot.slane %v568, 1
      %v571 = vsel %vm479, %v566, %v570
      %v572 = vshrl.u32 %v473, 16
      %v574 = vor.u32 %v572, %v570
      %v576 = vshll.u32 %v474, 16
      %v578 = vrot.slane %v576, 1
      %v579 = vsel %vm479, %v574, %v578
      %v580 = vshrl.u32 %v474, 16
      %v582 = vor.u32 %v580, %v578
      %v584 = vshll.u32 %v475, 16
      %v586 = vrot.slane %v584, 1
      %v587 = vsel %vm479, %v582, %v586
      %v588 = vshrl.u32 %v475, 16
      %v590 = vor.u32 %v588, %v586
      %v592 = vshll.u32 %v476, 16
      %v594 = vrot.slane %v592, 1
      %v595 = vsel %vm479, %v590, %v594
      %v596 = vshrl.u32 %v476, 16
      %v598 = vor.u32 %v596, %v594
      %v600 = vshll.u32 %v477, 16
      %v602 = vrot.slane %v600, 1
      %v603 = vsel %vm479, %v598, %v602
      %v604 = vshrl.u32 %v477, 16
      %v606 = vor.u32 %v604, %v602
      %v608 = vshll.u32 %v478, 16
      %v610 = vrot.slane %v608, 1
      %v611 = vsel %vm479, %v606, %v610
      %v614 = vunpack.c.l.b16 %v394
      %v615 = vunpack.c.l.b16 %v395
      %v616 = vpack.c.b16 %v615, %v614
      %vm618 = vcmask 130048
      %v620 = vsel %vm618, %v491, 0
      %v623 = vsel %vm618, %v499, 0
      %v626 = vsel %vm618, %v507, 0
      %v629 = vsel %vm618, %v515, 0
      %v632 = vsel %vm618, %v523, 0
      %v635 = vsel %vm618, %v531, 0
      %v638 = vsel %vm618, %v539, 0
      %v641 = vsel %vm618, %v547, 0
      %v644 = vsel %vm618, %v555, 0
      %v647 = vsel %vm618, %v563, 0
      %v650 = vsel %vm618, %v571, 0
      %v653 = vsel %vm618, %v579, 0
      %v656 = vsel %vm618, %v587, 0
      %v659 = vsel %vm618, %v595, 0
      %v662 = vsel %vm618, %v603, 0
      %v665 = vsel %vm618, %v611, 0
      %667 = vmatprep.subr.bf16.mxu0 0
      %668 = vmatpush1.bf16.msra.mxu0 %v616
      %669 = vmatprep.subr.bf16.mxu0 0
      %670 = vmatpush1.bf16.msra.mxu0 0
      %671 = vmatprep.subr.bf16.mxu0 0
      %672 = vmatpush1.bf16.msra.mxu0 0
      %673 = vmatprep.subr.bf16.mxu0 0
      %674 = vmatpush1.bf16.msra.mxu0 0
      %675 = vmatprep.subr.bf16.mxu0 0
      %676 = vmatpush1.bf16.msra.mxu0 0
      %677 = vmatprep.subr.bf16.mxu0 0
      %678 = vmatpush1.bf16.msra.mxu0 0
      %679 = vmatprep.subr.bf16.mxu0 0
      %680 = vmatpush1.bf16.msra.mxu0 0
      %681 = vmatprep.subr.bf16.mxu0 0
      %682 = vmatpush1.bf16.msra.mxu0 0
      %683 = vmatprep.subr.bf16.mxu0 0
      %684 = vmatpush1.bf16.msra.mxu0 0
      %685 = vmatprep.subr.bf16.mxu0 0
      %686 = vmatpush1.bf16.msra.mxu0 0
      %687 = vmatprep.subr.bf16.mxu0 0
      %688 = vmatpush1.bf16.msra.mxu0 0
      %689 = vmatprep.subr.bf16.mxu0 0
      %690 = vmatpush1.bf16.msra.mxu0 0
      %691 = vmatprep.subr.bf16.mxu0 0
      %692 = vmatpush1.bf16.msra.mxu0 0
      %693 = vmatprep.subr.bf16.mxu0 0
      %694 = vmatpush1.bf16.msra.mxu0 0
      %695 = vmatprep.subr.bf16.mxu0 0
      %696 = vmatpush1.bf16.msra.mxu0 0
      %697 = vmatprep.subr.bf16.mxu0 0
      %698 = vmatpush1.bf16.msra.mxu0 0
      %699 = vmatprep.mubr.bf16.mxu0 0
      %700 = vmatmul.mubr.bf16.gmra.mrb[0].mxu0 %v620
      %v701 = vpop.f32.mrb[0].mxu0
      %v702 = vadd.f32 0.0, %v701
      %v703 = vpop.f32.mrb[0].mxu0
      %v704 = vpop.f32.mrb[0].mxu0
      %v705 = vadd.f32 0.0, %v704
      %v706 = vpop.f32.mrb[0].mxu0
      %707 = vmatprep.mubr.bf16.mxu0 0
      %708 = vmatmul.mubr.bf16.gmra.mrb[0].mxu0 %v623
      %v709 = vpop.f32.mrb[0].mxu0
      %v710 = vadd.f32 0.0, %v709
      %v711 = vpop.f32.mrb[0].mxu0
      %v712 = vpop.f32.mrb[0].mxu0
      %v713 = vadd.f32 0.0, %v712
      %v714 = vpop.f32.mrb[0].mxu0
      %715 = vmatprep.mubr.bf16.mxu0 0
      %716 = vmatmul.mubr.bf16.gmra.mrb[0].mxu0 %v626
      %v717 = vpop.f32.mrb[0].mxu0
      %v718 = vadd.f32 0.0, %v717
      %v719 = vpop.f32.mrb[0].mxu0
      %v720 = vpop.f32.mrb[0].mxu0
      %v721 = vadd.f32 0.0, %v720
      %v722 = vpop.f32.mrb[0].mxu0
      %723 = vmatprep.mubr.bf16.mxu0 0
      %724 = vmatmul.mubr.bf16.gmra.mrb[0].mxu0 %v629
      %v725 = vpop.f32.mrb[0].mxu0
      %v726 = vadd.f32 0.0, %v725
      %v727 = vpop.f32.mrb[0].mxu0
      %v728 = vpop.f32.mrb[0].mxu0
      %v729 = vadd.f32 0.0, %v728
      %v730 = vpop.f32.mrb[0].mxu0
      %731 = vmatprep.mubr.bf16.mxu0 0
      %732 = vmatmul.mubr.bf16.gmra.mrb[0].mxu0 %v632
      %v733 = vpop.f32.mrb[0].mxu0
      %v734 = vadd.f32 0.0, %v733
      %v735 = vpop.f32.mrb[0].mxu0
      %v736 = vpop.f32.mrb[0].mxu0
      %v737 = vadd.f32 0.0, %v736
      %v738 = vpop.f32.mrb[0].mxu0
      %739 = vmatprep.mubr.bf16.mxu0 0
      %740 = vmatmul.mubr.bf16.gmra.mrb[0].mxu0 %v635
      %v741 = vpop.f32.mrb[0].mxu0
      %v742 = vadd.f32 0.0, %v741
      %v743 = vpop.f32.mrb[0].mxu0
      %v744 = vpop.f32.mrb[0].mxu0
      %v745 = vadd.f32 0.0, %v744
      %v746 = vpop.f32.mrb[0].mxu0
      %747 = vmatprep.mubr.bf16.mxu0 0
      %748 = vmatmul.mubr.bf16.gmra.mrb[0].mxu0 %v638
      %v749 = vpop.f32.mrb[0].mxu0
      %v750 = vadd.f32 0.0, %v749
      %v751 = vpop.f32.mrb[0].mxu0
      %v752 = vpop.f32.mrb[0].mxu0
      %v753 = vadd.f32 0.0, %v752
      %v754 = vpop.f32.mrb[0].mxu0
      %755 = vmatprep.mubr.bf16.mxu0 0
      %756 = vmatmul.mubr.bf16.gmra.mrb[0].mxu0 %v641
      %v757 = vpop.f32.mrb[0].mxu0
      %v758 = vadd.f32 0.0, %v757
      %v759 = vpop.f32.mrb[0].mxu0
      %v760 = vpop.f32.mrb[0].mxu0
      %v761 = vadd.f32 0.0, %v760
      %v762 = vpop.f32.mrb[0].mxu0
      %763 = vmatprep.mubr.bf16.mxu0 0
      %764 = vmatmul.mubr.bf16.gmra.mrb[0].mxu0 %v644
      %v765 = vpop.f32.mrb[0].mxu0
      %v766 = vadd.f32 0.0, %v765
      %v767 = vpop.f32.mrb[0].mxu0
      %v768 = vpop.f32.mrb[0].mxu0
      %v769 = vadd.f32 0.0, %v768
      %v770 = vpop.f32.mrb[0].mxu0
      %771 = vmatprep.mubr.bf16.mxu0 0
      %772 = vmatmul.mubr.bf16.gmra.mrb[0].mxu0 %v647
      %v773 = vpop.f32.mrb[0].mxu0
      %v774 = vadd.f32 0.0, %v773
      %v775 = vpop.f32.mrb[0].mxu0
      %v776 = vpop.f32.mrb[0].mxu0
      %v777 = vadd.f32 0.0, %v776
      %v778 = vpop.f32.mrb[0].mxu0
      %779 = vmatprep.mubr.bf16.mxu0 0
      %780 = vmatmul.mubr.bf16.gmra.mrb[0].mxu0 %v650
      %v781 = vpop.f32.mrb[0].mxu0
      %v782 = vadd.f32 0.0, %v781
      %v783 = vpop.f32.mrb[0].mxu0
      %v784 = vpop.f32.mrb[0].mxu0
      %v785 = vadd.f32 0.0, %v784
      %v786 = vpop.f32.mrb[0].mxu0
      %787 = vmatprep.mubr.bf16.mxu0 0
      %788 = vmatmul.mubr.bf16.gmra.mrb[0].mxu0 %v653
      %v789 = vpop.f32.mrb[0].mxu0
      %v790 = vadd.f32 0.0, %v789
      %v791 = vpop.f32.mrb[0].mxu0
      %v792 = vpop.f32.mrb[0].mxu0
      %v793 = vadd.f32 0.0, %v792
      %v794 = vpop.f32.mrb[0].mxu0
      %795 = vmatprep.mubr.bf16.mxu0 0
      %796 = vmatmul.mubr.bf16.gmra.mrb[0].mxu0 %v656
      %v797 = vpop.f32.mrb[0].mxu0
      %v798 = vadd.f32 0.0, %v797
      %v799 = vpop.f32.mrb[0].mxu0
      %v800 = vpop.f32.mrb[0].mxu0
      %v801 = vadd.f32 0.0, %v800
      %v802 = vpop.f32.mrb[0].mxu0
      %803 = vmatprep.mubr.bf16.mxu0 0
      %804 = vmatmul.mubr.bf16.gmra.mrb[0].mxu0 %v659
      %v805 = vpop.f32.mrb[0].mxu0
      %v806 = vadd.f32 0.0, %v805
      %v807 = vpop.f32.mrb[0].mxu0
      %v808 = vpop.f32.mrb[0].mxu0
      %v809 = vadd.f32 0.0, %v808
      %v810 = vpop.f32.mrb[0].mxu0
      %811 = vmatprep.mubr.bf16.mxu0 0
      %812 = vmatmul.mubr.bf16.gmra.mrb[0].mxu0 %v662
      %v813 = vpop.f32.mrb[0].mxu0
      %v814 = vadd.f32 0.0, %v813
      %v815 = vpop.f32.mrb[0].mxu0
      %v816 = vpop.f32.mrb[0].mxu0
      %v817 = vadd.f32 0.0, %v816
      %v818 = vpop.f32.mrb[0].mxu0
      %819 = vmatprep.mubr.bf16.mxu0 0
      %820 = vmatmul.mubr.bf16.gmra.mrb[0].mxu0 %v665
      %v821 = vpop.f32.mrb[0].mxu0
      %v822 = vadd.f32 0.0, %v821
      %v823 = vpop.f32.mrb[0].mxu0
      %v824 = vpop.f32.mrb[0].mxu0
      %v825 = vadd.f32 0.0, %v824
      %v826 = vpop.f32.mrb[0].mxu0
      %827 = vdwg.mxu0
      %v830 = vunpack.c.l.b16 %v391
      %v831 = vunpack.c.l.b16 %v392
      %v832 = vpack.c.b16 %v831, %v830
      %v834 = vsel %vm618, %v462, 0
      %v836 = vsel %vm618, %v463, 0
      %v838 = vsel %vm618, %v464, 0
      %v840 = vsel %vm618, %v465, 0
      %v842 = vsel %vm618, %v466, 0
      %v844 = vsel %vm618, %v467, 0
      %v846 = vsel %vm618, %v468, 0
      %v848 = vsel %vm618, %v469, 0
      %v850 = vsel %vm618, %v470, 0
      %v852 = vsel %vm618, %v471, 0
      %v854 = vsel %vm618, %v472, 0
      %v856 = vsel %vm618, %v473, 0
      %v858 = vsel %vm618, %v474, 0
      %v860 = vsel %vm618, %v475, 0
      %v862 = vsel %vm618, %v476, 0
      %v864 = vsel %vm618, %v477, 0
      %866 = vmatprep.subr.bf16.mxu0 0
      %867 = vmatpush1.bf16.msra.mxu0 %v832
      %868 = vmatprep.subr.bf16.mxu0 0
      %869 = vmatpush1.bf16.msra.mxu0 0
      %870 = vmatprep.subr.bf16.mxu0 0
      %871 = vmatpush1.bf16.msra.mxu0 0
      %872 = vmatprep.subr.bf16.mxu0 0
      %873 = vmatpush1.bf16.msra.mxu0 0
      %874 = vmatprep.subr.bf16.mxu0 0
      %875 = vmatpush1.bf16.msra.mxu0 0
      %876 = vmatprep.subr.bf16.mxu0 0
      %877 = vmatpush1.bf16.msra.mxu0 0
      %878 = vmatprep.subr.bf16.mxu0 0
      %879 = vmatpush1.bf16.msra.mxu0 0
      %880 = vmatprep.subr.bf16.mxu0 0
      %881 = vmatpush1.bf16.msra.mxu0 0
      %882 = vmatprep.subr.bf16.mxu0 0
      %883 = vmatpush1.bf16.msra.mxu0 0
      %884 = vmatprep.subr.bf16.mxu0 0
      %885 = vmatpush1.bf16.msra.mxu0 0
      %886 = vmatprep.subr.bf16.mxu0 0
      %887 = vmatpush1.bf16.msra.mxu0 0
      %888 = vmatprep.subr.bf16.mxu0 0
      %889 = vmatpush1.bf16.msra.mxu0 0
      %890 = vmatprep.subr.bf16.mxu0 0
      %891 = vmatpush1.bf16.msra.mxu0 0
      %892 = vmatprep.subr.bf16.mxu0 0
      %893 = vmatpush1.bf16.msra.mxu0 0
      %894 = vmatprep.subr.bf16.mxu0 0
      %895 = vmatpush1.bf16.msra.mxu0 0
      %896 = vmatprep.subr.bf16.mxu0 0
      %897 = vmatpush1.bf16.msra.mxu0 0
      %898 = vmatprep.mubr.bf16.mxu0 0
      %899 = vmatmul.mubr.bf16.gmra.mrb[0].mxu0 %v834
      %v900 = vpop.f32.mrb[0].mxu0
      %v901 = vadd.f32 %v702, %v900
      %v902 = vpop.f32.mrb[0].mxu0
      %v903 = vpop.f32.mrb[0].mxu0
      %v904 = vadd.f32 %v705, %v903
      %v905 = vpop.f32.mrb[0].mxu0
      %906 = vmatprep.mubr.bf16.mxu0 0
      %907 = vmatmul.mubr.bf16.gmra.mrb[0].mxu0 %v836
      %v908 = vpop.f32.mrb[0].mxu0
      %v909 = vadd.f32 %v710, %v908
      %v910 = vpop.f32.mrb[0].mxu0
      %v911 = vpop.f32.mrb[0].mxu0
      %v912 = vadd.f32 %v713, %v911
      %v913 = vpop.f32.mrb[0].mxu0
      %914 = vmatprep.mubr.bf16.mxu0 0
      %915 = vmatmul.mubr.bf16.gmra.mrb[0].mxu0 %v838
      %v916 = vpop.f32.mrb[0].mxu0
      %v917 = vadd.f32 %v718, %v916
      %v918 = vpop.f32.mrb[0].mxu0
      %v919 = vpop.f32.mrb[0].mxu0
      %v920 = vadd.f32 %v721, %v919
      %v921 = vpop.f32.mrb[0].mxu0
      %922 = vmatprep.mubr.bf16.mxu0 0
      %923 = vmatmul.mubr.bf16.gmra.mrb[0].mxu0 %v840
      %v924 = vpop.f32.mrb[0].mxu0
      %v925 = vadd.f32 %v726, %v924
      %v926 = vpop.f32.mrb[0].mxu0
      %v927 = vpop.f32.mrb[0].mxu0
      %v928 = vadd.f32 %v729, %v927
      %v929 = vpop.f32.mrb[0].mxu0
      %930 = vmatprep.mubr.bf16.mxu0 0
      %931 = vmatmul.mubr.bf16.gmra.mrb[0].mxu0 %v842
      %v932 = vpop.f32.mrb[0].mxu0
      %v933 = vadd.f32 %v734, %v932
      %v934 = vpop.f32.mrb[0].mxu0
      %v935 = vpop.f32.mrb[0].mxu0
      %v936 = vadd.f32 %v737, %v935
      %v937 = vpop.f32.mrb[0].mxu0
      %938 = vmatprep.mubr.bf16.mxu0 0
      %939 = vmatmul.mubr.bf16.gmra.mrb[0].mxu0 %v844
      %v940 = vpop.f32.mrb[0].mxu0
      %v941 = vadd.f32 %v742, %v940
      %v942 = vpop.f32.mrb[0].mxu0
      %v943 = vpop.f32.mrb[0].mxu0
      %v944 = vadd.f32 %v745, %v943
      %v945 = vpop.f32.mrb[0].mxu0
      %946 = vmatprep.mubr.bf16.mxu0 0
      %947 = vmatmul.mubr.bf16.gmra.mrb[0].mxu0 %v846
      %v948 = vpop.f32.mrb[0].mxu0
      %v949 = vadd.f32 %v750, %v948
      %v950 = vpop.f32.mrb[0].mxu0
      %v951 = vpop.f32.mrb[0].mxu0
      %v952 = vadd.f32 %v753, %v951
      %v953 = vpop.f32.mrb[0].mxu0
      %954 = vmatprep.mubr.bf16.mxu0 0
      %955 = vmatmul.mubr.bf16.gmra.mrb[0].mxu0 %v848
      %v956 = vpop.f32.mrb[0].mxu0
      %v957 = vadd.f32 %v758, %v956
      %v958 = vpop.f32.mrb[0].mxu0
      %v959 = vpop.f32.mrb[0].mxu0
      %v960 = vadd.f32 %v761, %v959
      %v961 = vpop.f32.mrb[0].mxu0
      %962 = vmatprep.mubr.bf16.mxu0 0
      %963 = vmatmul.mubr.bf16.gmra.mrb[0].mxu0 %v850
      %v964 = vpop.f32.mrb[0].mxu0
      %v965 = vadd.f32 %v766, %v964
      %v966 = vpop.f32.mrb[0].mxu0
      %v967 = vpop.f32.mrb[0].mxu0
      %v968 = vadd.f32 %v769, %v967
      %v969 = vpop.f32.mrb[0].mxu0
      %970 = vmatprep.mubr.bf16.mxu0 0
      %971 = vmatmul.mubr.bf16.gmra.mrb[0].mxu0 %v852
      %v972 = vpop.f32.mrb[0].mxu0
      %v973 = vadd.f32 %v774, %v972
      %v974 = vpop.f32.mrb[0].mxu0
      %v975 = vpop.f32.mrb[0].mxu0
      %v976 = vadd.f32 %v777, %v975
      %v977 = vpop.f32.mrb[0].mxu0
      %978 = vmatprep.mubr.bf16.mxu0 0
      %979 = vmatmul.mubr.bf16.gmra.mrb[0].mxu0 %v854
      %v980 = vpop.f32.mrb[0].mxu0
      %v981 = vadd.f32 %v782, %v980
      %v982 = vpop.f32.mrb[0].mxu0
      %v983 = vpop.f32.mrb[0].mxu0
      %v984 = vadd.f32 %v785, %v983
      %v985 = vpop.f32.mrb[0].mxu0
      %986 = vmatprep.mubr.bf16.mxu0 0
      %987 = vmatmul.mubr.bf16.gmra.mrb[0].mxu0 %v856
      %v988 = vpop.f32.mrb[0].mxu0
      %v989 = vadd.f32 %v790, %v988
      %v990 = vpop.f32.mrb[0].mxu0
      %v991 = vpop.f32.mrb[0].mxu0
      %v992 = vadd.f32 %v793, %v991
      %v993 = vpop.f32.mrb[0].mxu0
      %994 = vmatprep.mubr.bf16.mxu0 0
      %995 = vmatmul.mubr.bf16.gmra.mrb[0].mxu0 %v858
      %v996 = vpop.f32.mrb[0].mxu0
      %v997 = vadd.f32 %v798, %v996
      %v998 = vpop.f32.mrb[0].mxu0
      %v999 = vpop.f32.mrb[0].mxu0
      %v1000 = vadd.f32 %v801, %v999
      %v1001 = vpop.f32.mrb[0].mxu0
      %1002 = vmatprep.mubr.bf16.mxu0 0
      %1003 = vmatmul.mubr.bf16.gmra.mrb[0].mxu0 %v860
      %v1004 = vpop.f32.mrb[0].mxu0
      %v1005 = vadd.f32 %v806, %v1004
      %v1006 = vpop.f32.mrb[0].mxu0
      %v1007 = vpop.f32.mrb[0].mxu0
      %v1008 = vadd.f32 %v809, %v1007
      %v1009 = vpop.f32.mrb[0].mxu0
      %1010 = vmatprep.mubr.bf16.mxu0 0
      %1011 = vmatmul.mubr.bf16.gmra.mrb[0].mxu0 %v862
      %v1012 = vpop.f32.mrb[0].mxu0
      %v1013 = vadd.f32 %v814, %v1012
      %v1014 = vpop.f32.mrb[0].mxu0
      %v1015 = vpop.f32.mrb[0].mxu0
      %v1016 = vadd.f32 %v817, %v1015
      %v1017 = vpop.f32.mrb[0].mxu0
      %1018 = vmatprep.mubr.bf16.mxu0 0
      %1019 = vmatmul.mubr.bf16.gmra.mrb[0].mxu0 %v864
      %v1020 = vpop.f32.mrb[0].mxu0
      %v1021 = vadd.f32 %v822, %v1020
      %v1022 = vpop.f32.mrb[0].mxu0
      %v1023 = vpop.f32.mrb[0].mxu0
      %v1024 = vadd.f32 %v825, %v1023
      %v1025 = vpop.f32.mrb[0].mxu0
      %1026 = vdwg.mxu0
      %v1027 = vld [vmem:[%s342] sm:$0xe]
      %v1028 = vld [vmem:[%s1 + $0x10] sm:$0xf]
      %v1029 = vld [vmem:[%s1 + $0x14] sm:$0xf]
      %v1031 = vunpack.c.l.b16 %v1027
      %v1032 = vpack.c.b16 %v430, %v1031
      %vm1033 = vcmask 1046528
      %v1034 = vrot.slane %v1032, 1
      %v1035 = vrot.slane %v463, 1
      %v1036 = vsel %vm1033, %v1034, %v1035
      %v1037 = vrot.slane %v464, 1
      %v1038 = vsel %vm1033, %v1035, %v1037
      %v1039 = vrot.slane %v465, 1
      %v1040 = vsel %vm1033, %v1037, %v1039
      %v1041 = vrot.slane %v466, 1
      %v1042 = vsel %vm1033, %v1039, %v1041
      %v1043 = vrot.slane %v467, 1
      %v1044 = vsel %vm1033, %v1041, %v1043
      %v1045 = vrot.slane %v468, 1
      %v1046 = vsel %vm1033, %v1043, %v1045
      %v1047 = vrot.slane %v469, 1
      %v1048 = vsel %vm1033, %v1045, %v1047
      %v1049 = vrot.slane %v470, 1
      %v1050 = vsel %vm1033, %v1047, %v1049
      %v1051 = vrot.slane %v471, 1
      %v1052 = vsel %vm1033, %v1049, %v1051
      %v1053 = vrot.slane %v472, 1
      %v1054 = vsel %vm1033, %v1051, %v1053
      %v1055 = vrot.slane %v473, 1
      %v1056 = vsel %vm1033, %v1053, %v1055
      %v1057 = vrot.slane %v474, 1
      %v1058 = vsel %vm1033, %v1055, %v1057
      %v1059 = vrot.slane %v475, 1
      %v1060 = vsel %vm1033, %v1057, %v1059
      %v1061 = vrot.slane %v476, 1
      %v1062 = vsel %vm1033, %v1059, %v1061
      %v1063 = vrot.slane %v477, 1
      %v1064 = vsel %vm1033, %v1061, %v1063
      %v1065 = vrot.slane %v478, 1
      %v1066 = vsel %vm1033, %v1063, %v1065
      %v1069 = vunpack.c.l.b16 %v1028
      %v1070 = vunpack.c.l.b16 %v1029
      %v1071 = vpack.c.b16 %v1070, %v1069
      %v1074 = vsel %vm618, %v1036, 0
      %v1077 = vsel %vm618, %v1038, 0
      %v1080 = vsel %vm618, %v1040, 0
      %v1083 = vsel %vm618, %v1042, 0
      %v1086 = vsel %vm618, %v1044, 0
      %v1089 = vsel %vm618, %v1046, 0
      %v1092 = vsel %vm618, %v1048, 0
      %v1095 = vsel %vm618, %v1050, 0
      %v1098 = vsel %vm618, %v1052, 0
      %v1101 = vsel %vm618, %v1054, 0
      %v1104 = vsel %vm618, %v1056, 0
      %v1107 = vsel %vm618, %v1058, 0
      %v1110 = vsel %vm618, %v1060, 0
      %v1113 = vsel %vm618, %v1062, 0
      %v1116 = vsel %vm618, %v1064, 0
      %v1119 = vsel %vm618, %v1066, 0
      %1121 = vmatprep.subr.bf16.mxu0 0
      %1122 = vmatpush1.bf16.msra.mxu0 %v1071
      %1123 = vmatprep.subr.bf16.mxu0 0
      %1124 = vmatpush1.bf16.msra.mxu0 0
      %1125 = vmatprep.subr.bf16.mxu0 0
      %1126 = vmatpush1.bf16.msra.mxu0 0
      %1127 = vmatprep.subr.bf16.mxu0 0
      %1128 = vmatpush1.bf16.msra.mxu0 0
      %1129 = vmatprep.subr.bf16.mxu0 0
      %1130 = vmatpush1.bf16.msra.mxu0 0
      %1131 = vmatprep.subr.bf16.mxu0 0
      %1132 = vmatpush1.bf16.msra.mxu0 0
      %1133 = vmatprep.subr.bf16.mxu0 0
      %1134 = vmatpush1.bf16.msra.mxu0 0
      %1135 = vmatprep.subr.bf16.mxu0 0
      %1136 = vmatpush1.bf16.msra.mxu0 0
      %1137 = vmatprep.subr.bf16.mxu0 0
      %1138 = vmatpush1.bf16.msra.mxu0 0
      %1139 = vmatprep.subr.bf16.mxu0 0
      %1140 = vmatpush1.bf16.msra.mxu0 0
      %1141 = vmatprep.subr.bf16.mxu0 0
      %1142 = vmatpush1.bf16.msra.mxu0 0
      %1143 = vmatprep.subr.bf16.mxu0 0
      %1144 = vmatpush1.bf16.msra.mxu0 0
      %1145 = vmatprep.subr.bf16.mxu0 0
      %1146 = vmatpush1.bf16.msra.mxu0 0
      %1147 = vmatprep.subr.bf16.mxu0 0
      %1148 = vmatpush1.bf16.msra.mxu0 0
      %1149 = vmatprep.subr.bf16.mxu0 0
      %1150 = vmatpush1.bf16.msra.mxu0 0
      %1151 = vmatprep.subr.bf16.mxu0 0
      %1152 = vmatpush1.bf16.msra.mxu0 0
      %1153 = vmatprep.mubr.bf16.mxu0 0
      %1154 = vmatmul.mubr.bf16.gmra.mrb[0].mxu0 %v1074
      %v1155 = vpop.f32.mrb[0].mxu0
      %v1156 = vadd.f32 0.0, %v1155
      %v1157 = vpop.f32.mrb[0].mxu0
      %v1158 = vpop.f32.mrb[0].mxu0
      %v1159 = vadd.f32 0.0, %v1158
      %v1160 = vpop.f32.mrb[0].mxu0
      %1161 = vmatprep.mubr.bf16.mxu0 0
      %1162 = vmatmul.mubr.bf16.gmra.mrb[0].mxu0 %v1077
      %v1163 = vpop.f32.mrb[0].mxu0
      %v1164 = vadd.f32 0.0, %v1163
      %v1165 = vpop.f32.mrb[0].mxu0
      %v1166 = vpop.f32.mrb[0].mxu0
      %v1167 = vadd.f32 0.0, %v1166
      %v1168 = vpop.f32.mrb[0].mxu0
      %1169 = vmatprep.mubr.bf16.mxu0 0
      %1170 = vmatmul.mubr.bf16.gmra.mrb[0].mxu0 %v1080
      %v1171 = vpop.f32.mrb[0].mxu0
      %v1172 = vadd.f32 0.0, %v1171
      %v1173 = vpop.f32.mrb[0].mxu0
      %v1174 = vpop.f32.mrb[0].mxu0
      %v1175 = vadd.f32 0.0, %v1174
      %v1176 = vpop.f32.mrb[0].mxu0
      %1177 = vmatprep.mubr.bf16.mxu0 0
      %1178 = vmatmul.mubr.bf16.gmra.mrb[0].mxu0 %v1083
      %v1179 = vpop.f32.mrb[0].mxu0
      %v1180 = vadd.f32 0.0, %v1179
      %v1181 = vpop.f32.mrb[0].mxu0
      %v1182 = vpop.f32.mrb[0].mxu0
      %v1183 = vadd.f32 0.0, %v1182
      %v1184 = vpop.f32.mrb[0].mxu0
      %1185 = vmatprep.mubr.bf16.mxu0 0
      %1186 = vmatmul.mubr.bf16.gmra.mrb[0].mxu0 %v1086
      %v1187 = vpop.f32.mrb[0].mxu0
      %v1188 = vadd.f32 0.0, %v1187
      %v1189 = vpop.f32.mrb[0].mxu0
      %v1190 = vpop.f32.mrb[0].mxu0
      %v1191 = vadd.f32 0.0, %v1190
      %v1192 = vpop.f32.mrb[0].mxu0
      %1193 = vmatprep.mubr.bf16.mxu0 0
      %1194 = vmatmul.mubr.bf16.gmra.mrb[0].mxu0 %v1089
      %v1195 = vpop.f32.mrb[0].mxu0
      %v1196 = vadd.f32 0.0, %v1195
      %v1197 = vpop.f32.mrb[0].mxu0
      %v1198 = vpop.f32.mrb[0].mxu0
      %v1199 = vadd.f32 0.0, %v1198
      %v1200 = vpop.f32.mrb[0].mxu0
      %1201 = vmatprep.mubr.bf16.mxu0 0
      %1202 = vmatmul.mubr.bf16.gmra.mrb[0].mxu0 %v1092
      %v1203 = vpop.f32.mrb[0].mxu0
      %v1204 = vadd.f32 0.0, %v1203
      %v1205 = vpop.f32.mrb[0].mxu0
      %v1206 = vpop.f32.mrb[0].mxu0
      %v1207 = vadd.f32 0.0, %v1206
      %v1208 = vpop.f32.mrb[0].mxu0
      %1209 = vmatprep.mubr.bf16.mxu0 0
      %1210 = vmatmul.mubr.bf16.gmra.mrb[0].mxu0 %v1095
      %v1211 = vpop.f32.mrb[0].mxu0
      %v1212 = vadd.f32 0.0, %v1211
      %v1213 = vpop.f32.mrb[0].mxu0
      %v1214 = vpop.f32.mrb[0].mxu0
      %v1215 = vadd.f32 0.0, %v1214
      %v1216 = vpop.f32.mrb[0].mxu0
      %1217 = vmatprep.mubr.bf16.mxu0 0
      %1218 = vmatmul.mubr.bf16.gmra.mrb[0].mxu0 %v1098
      %v1219 = vpop.f32.mrb[0].mxu0
      %v1220 = vadd.f32 0.0, %v1219
      %v1221 = vpop.f32.mrb[0].mxu0
      %v1222 = vpop.f32.mrb[0].mxu0
      %v1223 = vadd.f32 0.0, %v1222
      %v1224 = vpop.f32.mrb[0].mxu0
      %1225 = vmatprep.mubr.bf16.mxu0 0
      %1226 = vmatmul.mubr.bf16.gmra.mrb[0].mxu0 %v1101
      %v1227 = vpop.f32.mrb[0].mxu0
      %v1228 = vadd.f32 0.0, %v1227
      %v1229 = vpop.f32.mrb[0].mxu0
      %v1230 = vpop.f32.mrb[0].mxu0
      %v1231 = vadd.f32 0.0, %v1230
      %v1232 = vpop.f32.mrb[0].mxu0
      %1233 = vmatprep.mubr.bf16.mxu0 0
      %1234 = vmatmul.mubr.bf16.gmra.mrb[0].mxu0 %v1104
      %v1235 = vpop.f32.mrb[0].mxu0
      %v1236 = vadd.f32 0.0, %v1235
      %v1237 = vpop.f32.mrb[0].mxu0
      %v1238 = vpop.f32.mrb[0].mxu0
      %v1239 = vadd.f32 0.0, %v1238
      %v1240 = vpop.f32.mrb[0].mxu0
      %1241 = vmatprep.mubr.bf16.mxu0 0
      %1242 = vmatmul.mubr.bf16.gmra.mrb[0].mxu0 %v1107
      %v1243 = vpop.f32.mrb[0].mxu0
      %v1244 = vadd.f32 0.0, %v1243
      %v1245 = vpop.f32.mrb[0].mxu0
      %v1246 = vpop.f32.mrb[0].mxu0
      %v1247 = vadd.f32 0.0, %v1246
      %v1248 = vpop.f32.mrb[0].mxu0
      %1249 = vmatprep.mubr.bf16.mxu0 0
      %1250 = vmatmul.mubr.bf16.gmra.mrb[0].mxu0 %v1110
      %v1251 = vpop.f32.mrb[0].mxu0
      %v1252 = vadd.f32 0.0, %v1251
      %v1253 = vpop.f32.mrb[0].mxu0
      %v1254 = vpop.f32.mrb[0].mxu0
      %v1255 = vadd.f32 0.0, %v1254
      %v1256 = vpop.f32.mrb[0].mxu0
      %1257 = vmatprep.mubr.bf16.mxu0 0
      %1258 = vmatmul.mubr.bf16.gmra.mrb[0].mxu0 %v1113
      %v1259 = vpop.f32.mrb[0].mxu0
      %v1260 = vadd.f32 0.0, %v1259
      %v1261 = vpop.f32.mrb[0].mxu0
      %v1262 = vpop.f32.mrb[0].mxu0
      %v1263 = vadd.f32 0.0, %v1262
      %v1264 = vpop.f32.mrb[0].mxu0
      %1265 = vmatprep.mubr.bf16.mxu0 0
      %1266 = vmatmul.mubr.bf16.gmra.mrb[0].mxu0 %v1116
      %v1267 = vpop.f32.mrb[0].mxu0
      %v1268 = vadd.f32 0.0, %v1267
      %v1269 = vpop.f32.mrb[0].mxu0
      %v1270 = vpop.f32.mrb[0].mxu0
      %v1271 = vadd.f32 0.0, %v1270
      %v1272 = vpop.f32.mrb[0].mxu0
      %1273 = vmatprep.mubr.bf16.mxu0 0
      %1274 = vmatmul.mubr.bf16.gmra.mrb[0].mxu0 %v1119
      %v1275 = vpop.f32.mrb[0].mxu0
      %v1276 = vadd.f32 0.0, %v1275
      %v1277 = vpop.f32.mrb[0].mxu0
      %v1278 = vpop.f32.mrb[0].mxu0
      %v1279 = vadd.f32 0.0, %v1278
      %v1280 = vpop.f32.mrb[0].mxu0
      %1281 = vdwg.mxu0
      %v1282 = vadd.f32 %v901, %v1156
      %v1283 = vadd.f32 %v904, %v1159
      %v1284 = vadd.f32 %v909, %v1164
      %v1285 = vadd.f32 %v912, %v1167
      %v1286 = vadd.f32 %v917, %v1172
      %v1287 = vadd.f32 %v920, %v1175
      %v1288 = vadd.f32 %v925, %v1180
      %v1289 = vadd.f32 %v928, %v1183
      %v1290 = vadd.f32 %v933, %v1188
      %v1291 = vadd.f32 %v936, %v1191
      %v1292 = vadd.f32 %v941, %v1196
      %v1293 = vadd.f32 %v944, %v1199
      %v1294 = vadd.f32 %v949, %v1204
      %v1295 = vadd.f32 %v952, %v1207
      %v1296 = vadd.f32 %v957, %v1212
      %v1297 = vadd.f32 %v960, %v1215
      %v1298 = vadd.f32 %v965, %v1220
      %v1299 = vadd.f32 %v968, %v1223
      %v1300 = vadd.f32 %v973, %v1228
      %v1301 = vadd.f32 %v976, %v1231
      %v1302 = vadd.f32 %v981, %v1236
      %v1303 = vadd.f32 %v984, %v1239
      %v1304 = vadd.f32 %v989, %v1244
      %v1305 = vadd.f32 %v992, %v1247
      %v1306 = vadd.f32 %v997, %v1252
      %v1307 = vadd.f32 %v1000, %v1255
      %v1308 = vadd.f32 %v1005, %v1260
      %v1309 = vadd.f32 %v1008, %v1263
      %v1310 = vadd.f32 %v1013, %v1268
      %v1311 = vadd.f32 %v1016, %v1271
      %v1312 = vadd.f32 %v1021, %v1276
      %v1313 = vadd.f32 %v1024, %v1279
      %v1314 = vld [vmem:[%s342 + $0x8] sm:$0xf]
      %v1315 = vld [vmem:[%s342 + $0xc] sm:$0xf]
      %v1316 = vld [vmem:[%s342 + $0x10] sm:$0xf]
      %v1317 = vld [vmem:[%s342 + $0x14] sm:$0xf]
      %v1318 = vld [vmem:[%s342 + $0x18] sm:$0xf]
      %v1319 = vld [vmem:[%s342 + $0x1c] sm:$0xf]
      %v1320 = vld [vmem:[%s342 + $0x20] sm:$0xf]
      %v1321 = vld [vmem:[%s342 + $0x24] sm:$0xf]
      %v1322 = vld [vmem:[%s342 + $0x28] sm:$0xf]
      %v1323 = vld [vmem:[%s342 + $0x2c] sm:$0xf]
      %v1324 = vld [vmem:[%s342 + $0x30] sm:$0xf]
      %v1325 = vld [vmem:[%s342 + $0x34] sm:$0xf]
      %v1326 = vld [vmem:[%s342 + $0x38] sm:$0xf]
      %v1327 = vld [vmem:[%s342 + $0x3c] sm:$0xf]
      %v1328 = vld [vmem:[%s342 + $0x40] sm:$0xf]
      %v1329 = vld [vmem:[%s342 + $0x44] sm:$0xf]
      %v1330 = vld [vmem:[%s342 + $0x48] sm:$0xf]
      %v1331 = vld [vmem:[%s342 + $0x4c] sm:$0xf]
      %v1332 = vld [vmem:[%s342 + $0x50] sm:$0xf]
      %v1333 = vld [vmem:[%s342 + $0x54] sm:$0xf]
      %v1334 = vld [vmem:[%s342 + $0x58] sm:$0xf]
      %v1335 = vld [vmem:[%s342 + $0x5c] sm:$0xf]
      %v1336 = vld [vmem:[%s342 + $0x60] sm:$0xf]
      %v1337 = vld [vmem:[%s342 + $0x64] sm:$0xf]
      %v1338 = vld [vmem:[%s342 + $0x68] sm:$0xf]
      %v1339 = vld [vmem:[%s342 + $0x6c] sm:$0xf]
      %v1340 = vld [vmem:[%s342 + $0x70] sm:$0xf]
      %v1341 = vld [vmem:[%s342 + $0x74] sm:$0xf]
      %v1342 = vld [vmem:[%s342 + $0x78] sm:$0xf]
      %v1343 = vld [vmem:[%s342 + $0x7c] sm:$0xf]
      %v1344 = vld [vmem:[%s342 + $0x80] sm:$0xf]
      %v1345 = vld [vmem:[%s342 + $0x84] sm:$0xf]
      %v1346 = vld [vmem:[%s1 + $0x18] sm:$0xf]
      %v1347 = vld [vmem:[%s1 + $0x1c] sm:$0xf]
      %v1380 = vunpack.c.l.b16 %v1314
      %v1381 = vunpack.c.l.b16 %v1315
      %v1382 = vunpack.c.l.b16 %v1316
      %v1383 = vunpack.c.l.b16 %v1317
      %v1384 = vunpack.c.l.b16 %v1318
      %v1385 = vunpack.c.l.b16 %v1319
      %v1386 = vunpack.c.l.b16 %v1320
      %v1387 = vunpack.c.l.b16 %v1321
      %v1388 = vunpack.c.l.b16 %v1322
      %v1389 = vunpack.c.l.b16 %v1323
      %v1390 = vunpack.c.l.b16 %v1324
      %v1391 = vunpack.c.l.b16 %v1325
      %v1392 = vunpack.c.l.b16 %v1326
      %v1393 = vunpack.c.l.b16 %v1327
      %v1394 = vunpack.c.l.b16 %v1328
      %v1395 = vunpack.c.l.b16 %v1329
      %v1396 = vunpack.c.l.b16 %v1330
      %v1397 = vunpack.c.l.b16 %v1331
      %v1398 = vunpack.c.l.b16 %v1332
      %v1399 = vunpack.c.l.b16 %v1333
      %v1400 = vunpack.c.l.b16 %v1334
      %v1401 = vunpack.c.l.b16 %v1335
      %v1402 = vunpack.c.l.b16 %v1336
      %v1403 = vunpack.c.l.b16 %v1337
      %v1404 = vunpack.c.l.b16 %v1338
      %v1405 = vunpack.c.l.b16 %v1339
      %v1406 = vunpack.c.l.b16 %v1340
      %v1407 = vunpack.c.l.b16 %v1341
      %v1408 = vunpack.c.l.b16 %v1342
      %v1409 = vunpack.c.l.b16 %v1343
      %v1410 = vunpack.c.l.b16 %v1344
      %v1411 = vunpack.c.l.b16 %v1345
      %v1412 = vpack.c.b16 %v1381, %v1380
      %v1413 = vpack.c.b16 %v1383, %v1382
      %v1414 = vpack.c.b16 %v1385, %v1384
      %v1415 = vpack.c.b16 %v1387, %v1386
      %v1416 = vpack.c.b16 %v1389, %v1388
      %v1417 = vpack.c.b16 %v1391, %v1390
      %v1418 = vpack.c.b16 %v1393, %v1392
      %v1419 = vpack.c.b16 %v1395, %v1394
      %v1420 = vpack.c.b16 %v1397, %v1396
      %v1421 = vpack.c.b16 %v1399, %v1398
      %v1422 = vpack.c.b16 %v1401, %v1400
      %v1423 = vpack.c.b16 %v1403, %v1402
      %v1424 = vpack.c.b16 %v1405, %v1404
      %v1425 = vpack.c.b16 %v1407, %v1406
      %v1426 = vpack.c.b16 %v1409, %v1408
      %v1427 = vpack.c.b16 %v1411, %v1410
      %v1430 = vunpack.c.l.b16 %v1346
      %v1431 = vunpack.c.l.b16 %v1347
      %v1432 = vpack.c.b16 %v1431, %v1430
      %v1435 = vsel %vm618, %v1412, 0
      %v1438 = vsel %vm618, %v1413, 0
      %v1441 = vsel %vm618, %v1414, 0
      %v1444 = vsel %vm618, %v1415, 0
      %v1447 = vsel %vm618, %v1416, 0
      %v1450 = vsel %vm618, %v1417, 0
      %v1453 = vsel %vm618, %v1418, 0
      %v1456 = vsel %vm618, %v1419, 0
      %v1459 = vsel %vm618, %v1420, 0
      %v1462 = vsel %vm618, %v1421, 0
      %v1465 = vsel %vm618, %v1422, 0
      %v1468 = vsel %vm618, %v1423, 0
      %v1471 = vsel %vm618, %v1424, 0
      %v1474 = vsel %vm618, %v1425, 0
      %v1477 = vsel %vm618, %v1426, 0
      %v1480 = vsel %vm618, %v1427, 0
      %1482 = vmatprep.subr.bf16.mxu0 0
      %1483 = vmatpush1.bf16.msra.mxu0 %v1432
      %1484 = vmatprep.subr.bf16.mxu0 0
      %1485 = vmatpush1.bf16.msra.mxu0 0
      %1486 = vmatprep.subr.bf16.mxu0 0
      %1487 = vmatpush1.bf16.msra.mxu0 0
      %1488 = vmatprep.subr.bf16.mxu0 0
      %1489 = vmatpush1.bf16.msra.mxu0 0
      %1490 = vmatprep.subr.bf16.mxu0 0
      %1491 = vmatpush1.bf16.msra.mxu0 0
      %1492 = vmatprep.subr.bf16.mxu0 0
      %1493 = vmatpush1.bf16.msra.mxu0 0
      %1494 = vmatprep.subr.bf16.mxu0 0
      %1495 = vmatpush1.bf16.msra.mxu0 0
      %1496 = vmatprep.subr.bf16.mxu0 0
      %1497 = vmatpush1.bf16.msra.mxu0 0
      %1498 = vmatprep.subr.bf16.mxu0 0
      %1499 = vmatpush1.bf16.msra.mxu0 0
      %1500 = vmatprep.subr.bf16.mxu0 0
      %1501 = vmatpush1.bf16.msra.mxu0 0
      %1502 = vmatprep.subr.bf16.mxu0 0
      %1503 = vmatpush1.bf16.msra.mxu0 0
      %1504 = vmatprep.subr.bf16.mxu0 0
      %1505 = vmatpush1.bf16.msra.mxu0 0
      %1506 = vmatprep.subr.bf16.mxu0 0
      %1507 = vmatpush1.bf16.msra.mxu0 0
      %1508 = vmatprep.subr.bf16.mxu0 0
      %1509 = vmatpush1.bf16.msra.mxu0 0
      %1510 = vmatprep.subr.bf16.mxu0 0
      %1511 = vmatpush1.bf16.msra.mxu0 0
      %1512 = vmatprep.subr.bf16.mxu0 0
      %1513 = vmatpush1.bf16.msra.mxu0 0
      %1514 = vmatprep.mubr.bf16.mxu0 0
      %1515 = vmatmul.mubr.bf16.gmra.mrb[0].mxu0 %v1435
      %v1516 = vpop.f32.mrb[0].mxu0
      %v1517 = vadd.f32 0.0, %v1516
      %v1518 = vpop.f32.mrb[0].mxu0
      %v1519 = vpop.f32.mrb[0].mxu0
      %v1520 = vadd.f32 0.0, %v1519
      %v1521 = vpop.f32.mrb[0].mxu0
      %1522 = vmatprep.mubr.bf16.mxu0 0
      %1523 = vmatmul.mubr.bf16.gmra.mrb[0].mxu0 %v1438
      %v1524 = vpop.f32.mrb[0].mxu0
      %v1525 = vadd.f32 0.0, %v1524
      %v1526 = vpop.f32.mrb[0].mxu0
      %v1527 = vpop.f32.mrb[0].mxu0
      %v1528 = vadd.f32 0.0, %v1527
      %v1529 = vpop.f32.mrb[0].mxu0
      %1530 = vmatprep.mubr.bf16.mxu0 0
      %1531 = vmatmul.mubr.bf16.gmra.mrb[0].mxu0 %v1441
      %v1532 = vpop.f32.mrb[0].mxu0
      %v1533 = vadd.f32 0.0, %v1532
      %v1534 = vpop.f32.mrb[0].mxu0
      %v1535 = vpop.f32.mrb[0].mxu0
      %v1536 = vadd.f32 0.0, %v1535
      %v1537 = vpop.f32.mrb[0].mxu0
      %1538 = vmatprep.mubr.bf16.mxu0 0
      %1539 = vmatmul.mubr.bf16.gmra.mrb[0].mxu0 %v1444
      %v1540 = vpop.f32.mrb[0].mxu0
      %v1541 = vadd.f32 0.0, %v1540
      %v1542 = vpop.f32.mrb[0].mxu0
      %v1543 = vpop.f32.mrb[0].mxu0
      %v1544 = vadd.f32 0.0, %v1543
      %v1545 = vpop.f32.mrb[0].mxu0
      %1546 = vmatprep.mubr.bf16.mxu0 0
      %1547 = vmatmul.mubr.bf16.gmra.mrb[0].mxu0 %v1447
      %v1548 = vpop.f32.mrb[0].mxu0
      %v1549 = vadd.f32 0.0, %v1548
      %v1550 = vpop.f32.mrb[0].mxu0
      %v1551 = vpop.f32.mrb[0].mxu0
      %v1552 = vadd.f32 0.0, %v1551
      %v1553 = vpop.f32.mrb[0].mxu0
      %1554 = vmatprep.mubr.bf16.mxu0 0
      %1555 = vmatmul.mubr.bf16.gmra.mrb[0].mxu0 %v1450
      %v1556 = vpop.f32.mrb[0].mxu0
      %v1557 = vadd.f32 0.0, %v1556
      %v1558 = vpop.f32.mrb[0].mxu0
      %v1559 = vpop.f32.mrb[0].mxu0
      %v1560 = vadd.f32 0.0, %v1559
      %v1561 = vpop.f32.mrb[0].mxu0
      %1562 = vmatprep.mubr.bf16.mxu0 0
      %1563 = vmatmul.mubr.bf16.gmra.mrb[0].mxu0 %v1453
      %v1564 = vpop.f32.mrb[0].mxu0
      %v1565 = vadd.f32 0.0, %v1564
      %v1566 = vpop.f32.mrb[0].mxu0
      %v1567 = vpop.f32.mrb[0].mxu0
      %v1568 = vadd.f32 0.0, %v1567
      %v1569 = vpop.f32.mrb[0].mxu0
      %1570 = vmatprep.mubr.bf16.mxu0 0
      %1571 = vmatmul.mubr.bf16.gmra.mrb[0].mxu0 %v1456
      %v1572 = vpop.f32.mrb[0].mxu0
      %v1573 = vadd.f32 0.0, %v1572
      %v1574 = vpop.f32.mrb[0].mxu0
      %v1575 = vpop.f32.mrb[0].mxu0
      %v1576 = vadd.f32 0.0, %v1575
      %v1577 = vpop.f32.mrb[0].mxu0
      %1578 = vmatprep.mubr.bf16.mxu0 0
      %1579 = vmatmul.mubr.bf16.gmra.mrb[0].mxu0 %v1459
      %v1580 = vpop.f32.mrb[0].mxu0
      %v1581 = vadd.f32 0.0, %v1580
      %v1582 = vpop.f32.mrb[0].mxu0
      %v1583 = vpop.f32.mrb[0].mxu0
      %v1584 = vadd.f32 0.0, %v1583
      %v1585 = vpop.f32.mrb[0].mxu0
      %1586 = vmatprep.mubr.bf16.mxu0 0
      %1587 = vmatmul.mubr.bf16.gmra.mrb[0].mxu0 %v1462
      %v1588 = vpop.f32.mrb[0].mxu0
      %v1589 = vadd.f32 0.0, %v1588
      %v1590 = vpop.f32.mrb[0].mxu0
      %v1591 = vpop.f32.mrb[0].mxu0
      %v1592 = vadd.f32 0.0, %v1591
      %v1593 = vpop.f32.mrb[0].mxu0
      %1594 = vmatprep.mubr.bf16.mxu0 0
      %1595 = vmatmul.mubr.bf16.gmra.mrb[0].mxu0 %v1465
      %v1596 = vpop.f32.mrb[0].mxu0
      %v1597 = vadd.f32 0.0, %v1596
      %v1598 = vpop.f32.mrb[0].mxu0
      %v1599 = vpop.f32.mrb[0].mxu0
      %v1600 = vadd.f32 0.0, %v1599
      %v1601 = vpop.f32.mrb[0].mxu0
      %1602 = vmatprep.mubr.bf16.mxu0 0
      %1603 = vmatmul.mubr.bf16.gmra.mrb[0].mxu0 %v1468
      %v1604 = vpop.f32.mrb[0].mxu0
      %v1605 = vadd.f32 0.0, %v1604
      %v1606 = vpop.f32.mrb[0].mxu0
      %v1607 = vpop.f32.mrb[0].mxu0
      %v1608 = vadd.f32 0.0, %v1607
      %v1609 = vpop.f32.mrb[0].mxu0
      %1610 = vmatprep.mubr.bf16.mxu0 0
      %1611 = vmatmul.mubr.bf16.gmra.mrb[0].mxu0 %v1471
      %v1612 = vpop.f32.mrb[0].mxu0
      %v1613 = vadd.f32 0.0, %v1612
      %v1614 = vpop.f32.mrb[0].mxu0
      %v1615 = vpop.f32.mrb[0].mxu0
      %v1616 = vadd.f32 0.0, %v1615
      %v1617 = vpop.f32.mrb[0].mxu0
      %1618 = vmatprep.mubr.bf16.mxu0 0
      %1619 = vmatmul.mubr.bf16.gmra.mrb[0].mxu0 %v1474
      %v1620 = vpop.f32.mrb[0].mxu0
      %v1621 = vadd.f32 0.0, %v1620
      %v1622 = vpop.f32.mrb[0].mxu0
      %v1623 = vpop.f32.mrb[0].mxu0
      %v1624 = vadd.f32 0.0, %v1623
      %v1625 = vpop.f32.mrb[0].mxu0
      %1626 = vmatprep.mubr.bf16.mxu0 0
      %1627 = vmatmul.mubr.bf16.gmra.mrb[0].mxu0 %v1477
      %v1628 = vpop.f32.mrb[0].mxu0
      %v1629 = vadd.f32 0.0, %v1628
      %v1630 = vpop.f32.mrb[0].mxu0
      %v1631 = vpop.f32.mrb[0].mxu0
      %v1632 = vadd.f32 0.0, %v1631
      %v1633 = vpop.f32.mrb[0].mxu0
      %1634 = vmatprep.mubr.bf16.mxu0 0
      %1635 = vmatmul.mubr.bf16.gmra.mrb[0].mxu0 %v1480
      %v1636 = vpop.f32.mrb[0].mxu0
      %v1637 = vadd.f32 0.0, %v1636
      %v1638 = vpop.f32.mrb[0].mxu0
      %v1639 = vpop.f32.mrb[0].mxu0
      %v1640 = vadd.f32 0.0, %v1639
      %v1641 = vpop.f32.mrb[0].mxu0
      %1642 = vdwg.mxu0
      %v1643 = vadd.f32 %v1282, %v1517
      %v1644 = vadd.f32 %v1283, %v1520
      %v1645 = vadd.f32 %v1284, %v1525
      %v1646 = vadd.f32 %v1285, %v1528
      %v1647 = vadd.f32 %v1286, %v1533
      %v1648 = vadd.f32 %v1287, %v1536
      %v1649 = vadd.f32 %v1288, %v1541
      %v1650 = vadd.f32 %v1289, %v1544
      %v1651 = vadd.f32 %v1290, %v1549
      %v1652 = vadd.f32 %v1291, %v1552
      %v1653 = vadd.f32 %v1292, %v1557
      %v1654 = vadd.f32 %v1293, %v1560
      %v1655 = vadd.f32 %v1294, %v1565
      %v1656 = vadd.f32 %v1295, %v1568
      %v1657 = vadd.f32 %v1296, %v1573
      %v1658 = vadd.f32 %v1297, %v1576
      %v1659 = vadd.f32 %v1298, %v1581
      %v1660 = vadd.f32 %v1299, %v1584
      %v1661 = vadd.f32 %v1300, %v1589
      %v1662 = vadd.f32 %v1301, %v1592
      %v1663 = vadd.f32 %v1302, %v1597
      %v1664 = vadd.f32 %v1303, %v1600
      %v1665 = vadd.f32 %v1304, %v1605
      %v1666 = vadd.f32 %v1305, %v1608
      %v1667 = vadd.f32 %v1306, %v1613
      %v1668 = vadd.f32 %v1307, %v1616
      %v1669 = vadd.f32 %v1308, %v1621
      %v1670 = vadd.f32 %v1309, %v1624
      %v1671 = vadd.f32 %v1310, %v1629
      %v1672 = vadd.f32 %v1311, %v1632
      %v1673 = vadd.f32 %v1312, %v1637
      %v1674 = vadd.f32 %v1313, %v1640
      %v1675 = vld [vmem:[%s342 + $0x8] sm:$0xf]
      %v1676 = vld [vmem:[%s342 + $0xc] sm:$0xf]
      %v1677 = vld [vmem:[%s342 + $0x10] sm:$0xf]
      %v1678 = vld [vmem:[%s342 + $0x14] sm:$0xf]
      %v1679 = vld [vmem:[%s342 + $0x18] sm:$0xf]
      %v1680 = vld [vmem:[%s342 + $0x1c] sm:$0xf]
      %v1681 = vld [vmem:[%s342 + $0x20] sm:$0xf]
      %v1682 = vld [vmem:[%s342 + $0x24] sm:$0xf]
      %v1683 = vld [vmem:[%s342 + $0x28] sm:$0xf]
      %v1684 = vld [vmem:[%s342 + $0x2c] sm:$0xf]
      %v1685 = vld [vmem:[%s342 + $0x30] sm:$0xf]
      %v1686 = vld [vmem:[%s342 + $0x34] sm:$0xf]
      %v1687 = vld [vmem:[%s342 + $0x38] sm:$0xf]
      %v1688 = vld [vmem:[%s342 + $0x3c] sm:$0xf]
      %v1689 = vld [vmem:[%s342 + $0x40] sm:$0xf]
      %v1690 = vld [vmem:[%s342 + $0x44] sm:$0xf]
      %v1691 = vld [vmem:[%s342 + $0x48] sm:$0xf]
      %v1692 = vld [vmem:[%s342 + $0x4c] sm:$0xf]
      %v1693 = vld [vmem:[%s342 + $0x50] sm:$0xf]
      %v1694 = vld [vmem:[%s342 + $0x54] sm:$0xf]
      %v1695 = vld [vmem:[%s342 + $0x58] sm:$0xf]
      %v1696 = vld [vmem:[%s342 + $0x5c] sm:$0xf]
      %v1697 = vld [vmem:[%s342 + $0x60] sm:$0xf]
      %v1698 = vld [vmem:[%s342 + $0x64] sm:$0xf]
      %v1699 = vld [vmem:[%s342 + $0x68] sm:$0xf]
      %v1700 = vld [vmem:[%s342 + $0x6c] sm:$0xf]
      %v1701 = vld [vmem:[%s342 + $0x70] sm:$0xf]
      %v1702 = vld [vmem:[%s342 + $0x74] sm:$0xf]
      %v1703 = vld [vmem:[%s342 + $0x78] sm:$0xf]
      %v1704 = vld [vmem:[%s342 + $0x7c] sm:$0xf]
      %v1705 = vld [vmem:[%s342 + $0x80] sm:$0xf]
      %v1706 = vld [vmem:[%s342 + $0x84] sm:$0xf]
      %v1707 = vld [vmem:[%s342 + $0x88] sm:$0x1]
      %v1708 = vld [vmem:[%s1 + $0x20] sm:$0xf]
      %v1709 = vld [vmem:[%s1 + $0x24] sm:$0xf]
      %v1743 = vunpack.c.l.b16 %v1675
      %v1744 = vunpack.c.l.b16 %v1676
      %v1745 = vunpack.c.l.b16 %v1677
      %v1746 = vunpack.c.l.b16 %v1678
      %v1747 = vunpack.c.l.b16 %v1679
      %v1748 = vunpack.c.l.b16 %v1680
      %v1749 = vunpack.c.l.b16 %v1681
      %v1750 = vunpack.c.l.b16 %v1682
      %v1751 = vunpack.c.l.b16 %v1683
      %v1752 = vunpack.c.l.b16 %v1684
      %v1753 = vunpack.c.l.b16 %v1685
      %v1754 = vunpack.c.l.b16 %v1686
      %v1755 = vunpack.c.l.b16 %v1687
      %v1756 = vunpack.c.l.b16 %v1688
      %v1757 = vunpack.c.l.b16 %v1689
      %v1758 = vunpack.c.l.b16 %v1690
      %v1759 = vunpack.c.l.b16 %v1691
      %v1760 = vunpack.c.l.b16 %v1692
      %v1761 = vunpack.c.l.b16 %v1693
      %v1762 = vunpack.c.l.b16 %v1694
      %v1763 = vunpack.c.l.b16 %v1695
      %v1764 = vunpack.c.l.b16 %v1696
      %v1765 = vunpack.c.l.b16 %v1697
      %v1766 = vunpack.c.l.b16 %v1698
      %v1767 = vunpack.c.l.b16 %v1699
      %v1768 = vunpack.c.l.b16 %v1700
      %v1769 = vunpack.c.l.b16 %v1701
      %v1770 = vunpack.c.l.b16 %v1702
      %v1771 = vunpack.c.l.b16 %v1703
      %v1772 = vunpack.c.l.b16 %v1704
      %v1773 = vunpack.c.l.b16 %v1705
      %v1774 = vunpack.c.l.b16 %v1706
      %v1775 = vunpack.c.l.b16 %v1707
      %v1776 = vpack.c.b16 %v1744, %v1743
      %v1777 = vpack.c.b16 %v1746, %v1745
      %v1778 = vpack.c.b16 %v1748, %v1747
      %v1779 = vpack.c.b16 %v1750, %v1749
      %v1780 = vpack.c.b16 %v1752, %v1751
      %v1781 = vpack.c.b16 %v1754, %v1753
      %v1782 = vpack.c.b16 %v1756, %v1755
      %v1783 = vpack.c.b16 %v1758, %v1757
      %v1784 = vpack.c.b16 %v1760, %v1759
      %v1785 = vpack.c.b16 %v1762, %v1761
      %v1786 = vpack.c.b16 %v1764, %v1763
      %v1787 = vpack.c.b16 %v1766, %v1765
      %v1788 = vpack.c.b16 %v1768, %v1767
      %v1789 = vpack.c.b16 %v1770, %v1769
      %v1790 = vpack.c.b16 %v1772, %v1771
      %v1791 = vpack.c.b16 %v1774, %v1773
      %v1792 = vpack.c.b16 %v1775, %v1775
      %v1794 = vshrl.u32 %v1776, 16
      %v1796 = vshll.u32 %v1776, 16
      %v1798 = vrot.slane %v1796, 1
      %v1799 = vor.u32 %v1794, %v1798
      %v1801 = vshll.u32 %v1777, 16
      %v1803 = vrot.slane %v1801, 1
      %v1804 = vsel %vm479, %v1799, %v1803
      %v1805 = vshrl.u32 %v1777, 16
      %v1807 = vor.u32 %v1805, %v1803
      %v1809 = vshll.u32 %v1778, 16
      %v1811 = vrot.slane %v1809, 1
      %v1812 = vsel %vm479, %v1807, %v1811
      %v1813 = vshrl.u32 %v1778, 16
      %v1815 = vor.u32 %v1813, %v1811
      %v1817 = vshll.u32 %v1779, 16
      %v1819 = vrot.slane %v1817, 1
      %v1820 = vsel %vm479, %v1815, %v1819
      %v1821 = vshrl.u32 %v1779, 16
      %v1823 = vor.u32 %v1821, %v1819
      %v1825 = vshll.u32 %v1780, 16
      %v1827 = vrot.slane %v1825, 1
      %v1828 = vsel %vm479, %v1823, %v1827
      %v1829 = vshrl.u32 %v1780, 16
      %v1831 = vor.u32 %v1829, %v1827
      %v1833 = vshll.u32 %v1781, 16
      %v1835 = vrot.slane %v1833, 1
      %v1836 = vsel %vm479, %v1831, %v1835
      %v1837 = vshrl.u32 %v1781, 16
      %v1839 = vor.u32 %v1837, %v1835
      %v1841 = vshll.u32 %v1782, 16
      %v1843 = vrot.slane %v1841, 1
      %v1844 = vsel %vm479, %v1839, %v1843
      %v1845 = vshrl.u32 %v1782, 16
      %v1847 = vor.u32 %v1845, %v1843
      %v1849 = vshll.u32 %v1783, 16
      %v1851 = vrot.slane %v1849, 1
      %v1852 = vsel %vm479, %v1847, %v1851
      %v1853 = vshrl.u32 %v1783, 16
      %v1855 = vor.u32 %v1853, %v1851
      %v1857 = vshll.u32 %v1784, 16
      %v1859 = vrot.slane %v1857, 1
      %v1860 = vsel %vm479, %v1855, %v1859
      %v1861 = vshrl.u32 %v1784, 16
      %v1863 = vor.u32 %v1861, %v1859
      %v1865 = vshll.u32 %v1785, 16
      %v1867 = vrot.slane %v1865, 1
      %v1868 = vsel %vm479, %v1863, %v1867
      %v1869 = vshrl.u32 %v1785, 16
      %v1871 = vor.u32 %v1869, %v1867
      %v1873 = vshll.u32 %v1786, 16
      %v1875 = vrot.slane %v1873, 1
      %v1876 = vsel %vm479, %v1871, %v1875
      %v1877 = vshrl.u32 %v1786, 16
      %v1879 = vor.u32 %v1877, %v1875
      %v1881 = vshll.u32 %v1787, 16
      %v1883 = vrot.slane %v1881, 1
      %v1884 = vsel %vm479, %v1879, %v1883
      %v1885 = vshrl.u32 %v1787, 16
      %v1887 = vor.u32 %v1885, %v1883
      %v1889 = vshll.u32 %v1788, 16
      %v1891 = vrot.slane %v1889, 1
      %v1892 = vsel %vm479, %v1887, %v1891
      %v1893 = vshrl.u32 %v1788, 16
      %v1895 = vor.u32 %v1893, %v1891
      %v1897 = vshll.u32 %v1789, 16
      %v1899 = vrot.slane %v1897, 1
      %v1900 = vsel %vm479, %v1895, %v1899
      %v1901 = vshrl.u32 %v1789, 16
      %v1903 = vor.u32 %v1901, %v1899
      %v1905 = vshll.u32 %v1790, 16
      %v1907 = vrot.slane %v1905, 1
      %v1908 = vsel %vm479, %v1903, %v1907
      %v1909 = vshrl.u32 %v1790, 16
      %v1911 = vor.u32 %v1909, %v1907
      %v1913 = vshll.u32 %v1791, 16
      %v1915 = vrot.slane %v1913, 1
      %v1916 = vsel %vm479, %v1911, %v1915
      %v1917 = vshrl.u32 %v1791, 16
      %v1919 = vor.u32 %v1917, %v1915
      %v1921 = vshll.u32 %v1792, 16
      %v1923 = vrot.slane %v1921, 1
      %v1924 = vsel %vm479, %v1919, %v1923
      %v1927 = vunpack.c.l.b16 %v1708
      %v1928 = vunpack.c.l.b16 %v1709
      %v1929 = vpack.c.b16 %v1928, %v1927
      %v1932 = vsel %vm618, %v1804, 0
      %v1935 = vsel %vm618, %v1812, 0
      %v1938 = vsel %vm618, %v1820, 0
      %v1941 = vsel %vm618, %v1828, 0
      %v1944 = vsel %vm618, %v1836, 0
      %v1947 = vsel %vm618, %v1844, 0
      %v1950 = vsel %vm618, %v1852, 0
      %v1953 = vsel %vm618, %v1860, 0
      %v1956 = vsel %vm618, %v1868, 0
      %v1959 = vsel %vm618, %v1876, 0
      %v1962 = vsel %vm618, %v1884, 0
      %v1965 = vsel %vm618, %v1892, 0
      %v1968 = vsel %vm618, %v1900, 0
      %v1971 = vsel %vm618, %v1908, 0
      %v1974 = vsel %vm618, %v1916, 0
      %v1977 = vsel %vm618, %v1924, 0
      %1979 = vmatprep.subr.bf16.mxu0 0
      %1980 = vmatpush1.bf16.msra.mxu0 %v1929
      %1981 = vmatprep.subr.bf16.mxu0 0
      %1982 = vmatpush1.bf16.msra.mxu0 0
      %1983 = vmatprep.subr.bf16.mxu0 0
      %1984 = vmatpush1.bf16.msra.mxu0 0
      %1985 = vmatprep.subr.bf16.mxu0 0
      %1986 = vmatpush1.bf16.msra.mxu0 0
      %1987 = vmatprep.subr.bf16.mxu0 0
      %1988 = vmatpush1.bf16.msra.mxu0 0
      %1989 = vmatprep.subr.bf16.mxu0 0
      %1990 = vmatpush1.bf16.msra.mxu0 0
      %1991 = vmatprep.subr.bf16.mxu0 0
      %1992 = vmatpush1.bf16.msra.mxu0 0
      %1993 = vmatprep.subr.bf16.mxu0 0
      %1994 = vmatpush1.bf16.msra.mxu0 0
      %1995 = vmatprep.subr.bf16.mxu0 0
      %1996 = vmatpush1.bf16.msra.mxu0 0
      %1997 = vmatprep.subr.bf16.mxu0 0
      %1998 = vmatpush1.bf16.msra.mxu0 0
      %1999 = vmatprep.subr.bf16.mxu0 0
      %2000 = vmatpush1.bf16.msra.mxu0 0
      %2001 = vmatprep.subr.bf16.mxu0 0
      %2002 = vmatpush1.bf16.msra.mxu0 0
      %2003 = vmatprep.subr.bf16.mxu0 0
      %2004 = vmatpush1.bf16.msra.mxu0 0
      %2005 = vmatprep.subr.bf16.mxu0 0
      %2006 = vmatpush1.bf16.msra.mxu0 0
      %2007 = vmatprep.subr.bf16.mxu0 0
      %2008 = vmatpush1.bf16.msra.mxu0 0
      %2009 = vmatprep.subr.bf16.mxu0 0
      %2010 = vmatpush1.bf16.msra.mxu0 0
      %2011 = vmatprep.mubr.bf16.mxu0 0
      %2012 = vmatmul.mubr.bf16.gmra.mrb[0].mxu0 %v1932
      %v2013 = vpop.f32.mrb[0].mxu0
      %v2014 = vadd.f32 0.0, %v2013
      %v2015 = vpop.f32.mrb[0].mxu0
      %v2016 = vpop.f32.mrb[0].mxu0
      %v2017 = vadd.f32 0.0, %v2016
      %v2018 = vpop.f32.mrb[0].mxu0
      %2019 = vmatprep.mubr.bf16.mxu0 0
      %2020 = vmatmul.mubr.bf16.gmra.mrb[0].mxu0 %v1935
      %v2021 = vpop.f32.mrb[0].mxu0
      %v2022 = vadd.f32 0.0, %v2021
      %v2023 = vpop.f32.mrb[0].mxu0
      %v2024 = vpop.f32.mrb[0].mxu0
      %v2025 = vadd.f32 0.0, %v2024
      %v2026 = vpop.f32.mrb[0].mxu0
      %2027 = vmatprep.mubr.bf16.mxu0 0
      %2028 = vmatmul.mubr.bf16.gmra.mrb[0].mxu0 %v1938
      %v2029 = vpop.f32.mrb[0].mxu0
      %v2030 = vadd.f32 0.0, %v2029
      %v2031 = vpop.f32.mrb[0].mxu0
      %v2032 = vpop.f32.mrb[0].mxu0
      %v2033 = vadd.f32 0.0, %v2032
      %v2034 = vpop.f32.mrb[0].mxu0
      %2035 = vmatprep.mubr.bf16.mxu0 0
      %2036 = vmatmul.mubr.bf16.gmra.mrb[0].mxu0 %v1941
      %v2037 = vpop.f32.mrb[0].mxu0
      %v2038 = vadd.f32 0.0, %v2037
      %v2039 = vpop.f32.mrb[0].mxu0
      %v2040 = vpop.f32.mrb[0].mxu0
      %v2041 = vadd.f32 0.0, %v2040
      %v2042 = vpop.f32.mrb[0].mxu0
      %2043 = vmatprep.mubr.bf16.mxu0 0
      %2044 = vmatmul.mubr.bf16.gmra.mrb[0].mxu0 %v1944
      %v2045 = vpop.f32.mrb[0].mxu0
      %v2046 = vadd.f32 0.0, %v2045
      %v2047 = vpop.f32.mrb[0].mxu0
      %v2048 = vpop.f32.mrb[0].mxu0
      %v2049 = vadd.f32 0.0, %v2048
      %v2050 = vpop.f32.mrb[0].mxu0
      %2051 = vmatprep.mubr.bf16.mxu0 0
      %2052 = vmatmul.mubr.bf16.gmra.mrb[0].mxu0 %v1947
      %v2053 = vpop.f32.mrb[0].mxu0
      %v2054 = vadd.f32 0.0, %v2053
      %v2055 = vpop.f32.mrb[0].mxu0
      %v2056 = vpop.f32.mrb[0].mxu0
      %v2057 = vadd.f32 0.0, %v2056
      %v2058 = vpop.f32.mrb[0].mxu0
      %2059 = vmatprep.mubr.bf16.mxu0 0
      %2060 = vmatmul.mubr.bf16.gmra.mrb[0].mxu0 %v1950
      %v2061 = vpop.f32.mrb[0].mxu0
      %v2062 = vadd.f32 0.0, %v2061
      %v2063 = vpop.f32.mrb[0].mxu0
      %v2064 = vpop.f32.mrb[0].mxu0
      %v2065 = vadd.f32 0.0, %v2064
      %v2066 = vpop.f32.mrb[0].mxu0
      %2067 = vmatprep.mubr.bf16.mxu0 0
      %2068 = vmatmul.mubr.bf16.gmra.mrb[0].mxu0 %v1953
      %v2069 = vpop.f32.mrb[0].mxu0
      %v2070 = vadd.f32 0.0, %v2069
      %v2071 = vpop.f32.mrb[0].mxu0
      %v2072 = vpop.f32.mrb[0].mxu0
      %v2073 = vadd.f32 0.0, %v2072
      %v2074 = vpop.f32.mrb[0].mxu0
      %2075 = vmatprep.mubr.bf16.mxu0 0
      %2076 = vmatmul.mubr.bf16.gmra.mrb[0].mxu0 %v1956
      %v2077 = vpop.f32.mrb[0].mxu0
      %v2078 = vadd.f32 0.0, %v2077
      %v2079 = vpop.f32.mrb[0].mxu0
      %v2080 = vpop.f32.mrb[0].mxu0
      %v2081 = vadd.f32 0.0, %v2080
      %v2082 = vpop.f32.mrb[0].mxu0
      %2083 = vmatprep.mubr.bf16.mxu0 0
      %2084 = vmatmul.mubr.bf16.gmra.mrb[0].mxu0 %v1959
      %v2085 = vpop.f32.mrb[0].mxu0
      %v2086 = vadd.f32 0.0, %v2085
      %v2087 = vpop.f32.mrb[0].mxu0
      %v2088 = vpop.f32.mrb[0].mxu0
      %v2089 = vadd.f32 0.0, %v2088
      %v2090 = vpop.f32.mrb[0].mxu0
      %2091 = vmatprep.mubr.bf16.mxu0 0
      %2092 = vmatmul.mubr.bf16.gmra.mrb[0].mxu0 %v1962
      %v2093 = vpop.f32.mrb[0].mxu0
      %v2094 = vadd.f32 0.0, %v2093
      %v2095 = vpop.f32.mrb[0].mxu0
      %v2096 = vpop.f32.mrb[0].mxu0
      %v2097 = vadd.f32 0.0, %v2096
      %v2098 = vpop.f32.mrb[0].mxu0
      %2099 = vmatprep.mubr.bf16.mxu0 0
      %2100 = vmatmul.mubr.bf16.gmra.mrb[0].mxu0 %v1965
      %v2101 = vpop.f32.mrb[0].mxu0
      %v2102 = vadd.f32 0.0, %v2101
      %v2103 = vpop.f32.mrb[0].mxu0
      %v2104 = vpop.f32.mrb[0].mxu0
      %v2105 = vadd.f32 0.0, %v2104
      %v2106 = vpop.f32.mrb[0].mxu0
      %2107 = vmatprep.mubr.bf16.mxu0 0
      %2108 = vmatmul.mubr.bf16.gmra.mrb[0].mxu0 %v1968
      %v2109 = vpop.f32.mrb[0].mxu0
      %v2110 = vadd.f32 0.0, %v2109
      %v2111 = vpop.f32.mrb[0].mxu0
      %v2112 = vpop.f32.mrb[0].mxu0
      %v2113 = vadd.f32 0.0, %v2112
      %v2114 = vpop.f32.mrb[0].mxu0
      %2115 = vmatprep.mubr.bf16.mxu0 0
      %2116 = vmatmul.mubr.bf16.gmra.mrb[0].mxu0 %v1971
      %v2117 = vpop.f32.mrb[0].mxu0
      %v2118 = vadd.f32 0.0, %v2117
      %v2119 = vpop.f32.mrb[0].mxu0
      %v2120 = vpop.f32.mrb[0].mxu0
      %v2121 = vadd.f32 0.0, %v2120
      %v2122 = vpop.f32.mrb[0].mxu0
      %2123 = vmatprep.mubr.bf16.mxu0 0
      %2124 = vmatmul.mubr.bf16.gmra.mrb[0].mxu0 %v1974
      %v2125 = vpop.f32.mrb[0].mxu0
      %v2126 = vadd.f32 0.0, %v2125
      %v2127 = vpop.f32.mrb[0].mxu0
      %v2128 = vpop.f32.mrb[0].mxu0
      %v2129 = vadd.f32 0.0, %v2128
      %v2130 = vpop.f32.mrb[0].mxu0
      %2131 = vmatprep.mubr.bf16.mxu0 0
      %2132 = vmatmul.mubr.bf16.gmra.mrb[0].mxu0 %v1977
      %v2133 = vpop.f32.mrb[0].mxu0
      %v2134 = vadd.f32 0.0, %v2133
      %v2135 = vpop.f32.mrb[0].mxu0
      %v2136 = vpop.f32.mrb[0].mxu0
      %v2137 = vadd.f32 0.0, %v2136
      %v2138 = vpop.f32.mrb[0].mxu0
      %2139 = vdwg.mxu0
      %v2140 = vadd.f32 %v1643, %v2014
      %v2141 = vadd.f32 %v1644, %v2017
      %v2142 = vadd.f32 %v1645, %v2022
      %v2143 = vadd.f32 %v1646, %v2025
      %v2144 = vadd.f32 %v1647, %v2030
      %v2145 = vadd.f32 %v1648, %v2033
      %v2146 = vadd.f32 %v1649, %v2038
      %v2147 = vadd.f32 %v1650, %v2041
      %v2148 = vadd.f32 %v1651, %v2046
      %v2149 = vadd.f32 %v1652, %v2049
      %v2150 = vadd.f32 %v1653, %v2054
      %v2151 = vadd.f32 %v1654, %v2057
      %v2152 = vadd.f32 %v1655, %v2062
      %v2153 = vadd.f32 %v1656, %v2065
      %v2154 = vadd.f32 %v1657, %v2070
      %v2155 = vadd.f32 %v1658, %v2073
      %v2156 = vadd.f32 %v1659, %v2078
      %v2157 = vadd.f32 %v1660, %v2081
      %v2158 = vadd.f32 %v1661, %v2086
      %v2159 = vadd.f32 %v1662, %v2089
      %v2160 = vadd.f32 %v1663, %v2094
      %v2161 = vadd.f32 %v1664, %v2097
      %v2162 = vadd.f32 %v1665, %v2102
      %v2163 = vadd.f32 %v1666, %v2105
      %v2164 = vadd.f32 %v1667, %v2110
      %v2165 = vadd.f32 %v1668, %v2113
      %v2166 = vadd.f32 %v1669, %v2118
      %v2167 = vadd.f32 %v1670, %v2121
      %v2168 = vadd.f32 %v1671, %v2126
      %v2169 = vadd.f32 %v1672, %v2129
      %v2170 = vadd.f32 %v1673, %v2134
      %v2171 = vadd.f32 %v1674, %v2137
      %v2172 = vld [vmem:[%s342 + $0x8] sm:$0xe]
      %v2173 = vld [vmem:[%s1 + $0x28] sm:$0xf]
      %v2174 = vld [vmem:[%s1 + $0x2c] sm:$0xf]
      %v2176 = vunpack.c.l.b16 %v2172
      %v2177 = vpack.c.b16 %v1744, %v2176
      %v2178 = vrot.slane %v2177, 1
      %v2179 = vrot.slane %v1777, 1
      %v2180 = vsel %vm1033, %v2178, %v2179
      %v2181 = vrot.slane %v1778, 1
      %v2182 = vsel %vm1033, %v2179, %v2181
      %v2183 = vrot.slane %v1779, 1
      %v2184 = vsel %vm1033, %v2181, %v2183
      %v2185 = vrot.slane %v1780, 1
      %v2186 = vsel %vm1033, %v2183, %v2185
      %v2187 = vrot.slane %v1781, 1
      %v2188 = vsel %vm1033, %v2185, %v2187
      %v2189 = vrot.slane %v1782, 1
      %v2190 = vsel %vm1033, %v2187, %v2189
      %v2191 = vrot.slane %v1783, 1
      %v2192 = vsel %vm1033, %v2189, %v2191
      %v2193 = vrot.slane %v1784, 1
      %v2194 = vsel %vm1033, %v2191, %v2193
      %v2195 = vrot.slane %v1785, 1
      %v2196 = vsel %vm1033, %v2193, %v2195
      %v2197 = vrot.slane %v1786, 1
      %v2198 = vsel %vm1033, %v2195, %v2197
      %v2199 = vrot.slane %v1787, 1
      %v2200 = vsel %vm1033, %v2197, %v2199
      %v2201 = vrot.slane %v1788, 1
      %v2202 = vsel %vm1033, %v2199, %v2201
      %v2203 = vrot.slane %v1789, 1
      %v2204 = vsel %vm1033, %v2201, %v2203
      %v2205 = vrot.slane %v1790, 1
      %v2206 = vsel %vm1033, %v2203, %v2205
      %v2207 = vrot.slane %v1791, 1
      %v2208 = vsel %vm1033, %v2205, %v2207
      %v2209 = vrot.slane %v1792, 1
      %v2210 = vsel %vm1033, %v2207, %v2209
      %v2213 = vunpack.c.l.b16 %v2173
      %v2214 = vunpack.c.l.b16 %v2174
      %v2215 = vpack.c.b16 %v2214, %v2213
      %v2218 = vsel %vm618, %v2180, 0
      %v2221 = vsel %vm618, %v2182, 0
      %v2224 = vsel %vm618, %v2184, 0
      %v2227 = vsel %vm618, %v2186, 0
      %v2230 = vsel %vm618, %v2188, 0
      %v2233 = vsel %vm618, %v2190, 0
      %v2236 = vsel %vm618, %v2192, 0
      %v2239 = vsel %vm618, %v2194, 0
      %v2242 = vsel %vm618, %v2196, 0
      %v2245 = vsel %vm618, %v2198, 0
      %v2248 = vsel %vm618, %v2200, 0
      %v2251 = vsel %vm618, %v2202, 0
      %v2254 = vsel %vm618, %v2204, 0
      %v2257 = vsel %vm618, %v2206, 0
      %v2260 = vsel %vm618, %v2208, 0
      %v2263 = vsel %vm618, %v2210, 0
      %2265 = vmatprep.subr.bf16.mxu0 0
      %2266 = vmatpush1.bf16.msra.mxu0 %v2215
      %2267 = vmatprep.subr.bf16.mxu0 0
      %2268 = vmatpush1.bf16.msra.mxu0 0
      %2269 = vmatprep.subr.bf16.mxu0 0
      %2270 = vmatpush1.bf16.msra.mxu0 0
      %2271 = vmatprep.subr.bf16.mxu0 0
      %2272 = vmatpush1.bf16.msra.mxu0 0
      %2273 = vmatprep.subr.bf16.mxu0 0
      %2274 = vmatpush1.bf16.msra.mxu0 0
      %2275 = vmatprep.subr.bf16.mxu0 0
      %2276 = vmatpush1.bf16.msra.mxu0 0
      %2277 = vmatprep.subr.bf16.mxu0 0
      %2278 = vmatpush1.bf16.msra.mxu0 0
      %2279 = vmatprep.subr.bf16.mxu0 0
      %2280 = vmatpush1.bf16.msra.mxu0 0
      %2281 = vmatprep.subr.bf16.mxu0 0
      %2282 = vmatpush1.bf16.msra.mxu0 0
      %2283 = vmatprep.subr.bf16.mxu0 0
      %2284 = vmatpush1.bf16.msra.mxu0 0
      %2285 = vmatprep.subr.bf16.mxu0 0
      %2286 = vmatpush1.bf16.msra.mxu0 0
      %2287 = vmatprep.subr.bf16.mxu0 0
      %2288 = vmatpush1.bf16.msra.mxu0 0
      %2289 = vmatprep.subr.bf16.mxu0 0
      %2290 = vmatpush1.bf16.msra.mxu0 0
      %2291 = vmatprep.subr.bf16.mxu0 0
      %2292 = vmatpush1.bf16.msra.mxu0 0
      %2293 = vmatprep.subr.bf16.mxu0 0
      %2294 = vmatpush1.bf16.msra.mxu0 0
      %2295 = vmatprep.subr.bf16.mxu0 0
      %2296 = vmatpush1.bf16.msra.mxu0 0
      %2297 = vmatprep.mubr.bf16.mxu0 0
      %2298 = vmatmul.mubr.bf16.gmra.mrb[0].mxu0 %v2218
      %v2299 = vpop.f32.mrb[0].mxu0
      %v2300 = vadd.f32 0.0, %v2299
      %v2301 = vpop.f32.mrb[0].mxu0
      %v2302 = vpop.f32.mrb[0].mxu0
      %v2303 = vadd.f32 0.0, %v2302
      %v2304 = vpop.f32.mrb[0].mxu0
      %2305 = vmatprep.mubr.bf16.mxu0 0
      %2306 = vmatmul.mubr.bf16.gmra.mrb[0].mxu0 %v2221
      %v2307 = vpop.f32.mrb[0].mxu0
      %v2308 = vadd.f32 0.0, %v2307
      %v2309 = vpop.f32.mrb[0].mxu0
      %v2310 = vpop.f32.mrb[0].mxu0
      %v2311 = vadd.f32 0.0, %v2310
      %v2312 = vpop.f32.mrb[0].mxu0
      %2313 = vmatprep.mubr.bf16.mxu0 0
      %2314 = vmatmul.mubr.bf16.gmra.mrb[0].mxu0 %v2224
      %v2315 = vpop.f32.mrb[0].mxu0
      %v2316 = vadd.f32 0.0, %v2315
      %v2317 = vpop.f32.mrb[0].mxu0
      %v2318 = vpop.f32.mrb[0].mxu0
      %v2319 = vadd.f32 0.0, %v2318
      %v2320 = vpop.f32.mrb[0].mxu0
      %2321 = vmatprep.mubr.bf16.mxu0 0
      %2322 = vmatmul.mubr.bf16.gmra.mrb[0].mxu0 %v2227
      %v2323 = vpop.f32.mrb[0].mxu0
      %v2324 = vadd.f32 0.0, %v2323
      %v2325 = vpop.f32.mrb[0].mxu0
      %v2326 = vpop.f32.mrb[0].mxu0
      %v2327 = vadd.f32 0.0, %v2326
      %v2328 = vpop.f32.mrb[0].mxu0
      %2329 = vmatprep.mubr.bf16.mxu0 0
      %2330 = vmatmul.mubr.bf16.gmra.mrb[0].mxu0 %v2230
      %v2331 = vpop.f32.mrb[0].mxu0
      %v2332 = vadd.f32 0.0, %v2331
      %v2333 = vpop.f32.mrb[0].mxu0
      %v2334 = vpop.f32.mrb[0].mxu0
      %v2335 = vadd.f32 0.0, %v2334
      %v2336 = vpop.f32.mrb[0].mxu0
      %2337 = vmatprep.mubr.bf16.mxu0 0
      %2338 = vmatmul.mubr.bf16.gmra.mrb[0].mxu0 %v2233
      %v2339 = vpop.f32.mrb[0].mxu0
      %v2340 = vadd.f32 0.0, %v2339
      %v2341 = vpop.f32.mrb[0].mxu0
      %v2342 = vpop.f32.mrb[0].mxu0
      %v2343 = vadd.f32 0.0, %v2342
      %v2344 = vpop.f32.mrb[0].mxu0
      %2345 = vmatprep.mubr.bf16.mxu0 0
      %2346 = vmatmul.mubr.bf16.gmra.mrb[0].mxu0 %v2236
      %v2347 = vpop.f32.mrb[0].mxu0
      %v2348 = vadd.f32 0.0, %v2347
      %v2349 = vpop.f32.mrb[0].mxu0
      %v2350 = vpop.f32.mrb[0].mxu0
      %v2351 = vadd.f32 0.0, %v2350
      %v2352 = vpop.f32.mrb[0].mxu0
      %2353 = vmatprep.mubr.bf16.mxu0 0
      %2354 = vmatmul.mubr.bf16.gmra.mrb[0].mxu0 %v2239
      %v2355 = vpop.f32.mrb[0].mxu0
      %v2356 = vadd.f32 0.0, %v2355
      %v2357 = vpop.f32.mrb[0].mxu0
      %v2358 = vpop.f32.mrb[0].mxu0
      %v2359 = vadd.f32 0.0, %v2358
      %v2360 = vpop.f32.mrb[0].mxu0
      %2361 = vmatprep.mubr.bf16.mxu0 0
      %2362 = vmatmul.mubr.bf16.gmra.mrb[0].mxu0 %v2242
      %v2363 = vpop.f32.mrb[0].mxu0
      %v2364 = vadd.f32 0.0, %v2363
      %v2365 = vpop.f32.mrb[0].mxu0
      %v2366 = vpop.f32.mrb[0].mxu0
      %v2367 = vadd.f32 0.0, %v2366
      %v2368 = vpop.f32.mrb[0].mxu0
      %2369 = vmatprep.mubr.bf16.mxu0 0
      %2370 = vmatmul.mubr.bf16.gmra.mrb[0].mxu0 %v2245
      %v2371 = vpop.f32.mrb[0].mxu0
      %v2372 = vadd.f32 0.0, %v2371
      %v2373 = vpop.f32.mrb[0].mxu0
      %v2374 = vpop.f32.mrb[0].mxu0
      %v2375 = vadd.f32 0.0, %v2374
      %v2376 = vpop.f32.mrb[0].mxu0
      %2377 = vmatprep.mubr.bf16.mxu0 0
      %2378 = vmatmul.mubr.bf16.gmra.mrb[0].mxu0 %v2248
      %v2379 = vpop.f32.mrb[0].mxu0
      %v2380 = vadd.f32 0.0, %v2379
      %v2381 = vpop.f32.mrb[0].mxu0
      %v2382 = vpop.f32.mrb[0].mxu0
      %v2383 = vadd.f32 0.0, %v2382
      %v2384 = vpop.f32.mrb[0].mxu0
      %2385 = vmatprep.mubr.bf16.mxu0 0
      %2386 = vmatmul.mubr.bf16.gmra.mrb[0].mxu0 %v2251
      %v2387 = vpop.f32.mrb[0].mxu0
      %v2388 = vadd.f32 0.0, %v2387
      %v2389 = vpop.f32.mrb[0].mxu0
      %v2390 = vpop.f32.mrb[0].mxu0
      %v2391 = vadd.f32 0.0, %v2390
      %v2392 = vpop.f32.mrb[0].mxu0
      %2393 = vmatprep.mubr.bf16.mxu0 0
      %2394 = vmatmul.mubr.bf16.gmra.mrb[0].mxu0 %v2254
      %v2395 = vpop.f32.mrb[0].mxu0
      %v2396 = vadd.f32 0.0, %v2395
      %v2397 = vpop.f32.mrb[0].mxu0
      %v2398 = vpop.f32.mrb[0].mxu0
      %v2399 = vadd.f32 0.0, %v2398
      %v2400 = vpop.f32.mrb[0].mxu0
      %2401 = vmatprep.mubr.bf16.mxu0 0
      %2402 = vmatmul.mubr.bf16.gmra.mrb[0].mxu0 %v2257
      %v2403 = vpop.f32.mrb[0].mxu0
      %v2404 = vadd.f32 0.0, %v2403
      %v2405 = vpop.f32.mrb[0].mxu0
      %v2406 = vpop.f32.mrb[0].mxu0
      %v2407 = vadd.f32 0.0, %v2406
      %v2408 = vpop.f32.mrb[0].mxu0
      %2409 = vmatprep.mubr.bf16.mxu0 0
      %2410 = vmatmul.mubr.bf16.gmra.mrb[0].mxu0 %v2260
      %v2411 = vpop.f32.mrb[0].mxu0
      %v2412 = vadd.f32 0.0, %v2411
      %v2413 = vpop.f32.mrb[0].mxu0
      %v2414 = vpop.f32.mrb[0].mxu0
      %v2415 = vadd.f32 0.0, %v2414
      %v2416 = vpop.f32.mrb[0].mxu0
      %2417 = vmatprep.mubr.bf16.mxu0 0
      %2418 = vmatmul.mubr.bf16.gmra.mrb[0].mxu0 %v2263
      %v2419 = vpop.f32.mrb[0].mxu0
      %v2420 = vadd.f32 0.0, %v2419
      %v2421 = vpop.f32.mrb[0].mxu0
      %v2422 = vpop.f32.mrb[0].mxu0
      %v2423 = vadd.f32 0.0, %v2422
      %v2424 = vpop.f32.mrb[0].mxu0
      %2425 = vdwg.mxu0
      %v2426 = vadd.f32 %v2140, %v2300
      %v2427 = vadd.f32 %v2141, %v2303
      %v2428 = vadd.f32 %v2142, %v2308
      %v2429 = vadd.f32 %v2143, %v2311
      %v2430 = vadd.f32 %v2144, %v2316
      %v2431 = vadd.f32 %v2145, %v2319
      %v2432 = vadd.f32 %v2146, %v2324
      %v2433 = vadd.f32 %v2147, %v2327
      %v2434 = vadd.f32 %v2148, %v2332
      %v2435 = vadd.f32 %v2149, %v2335
      %v2436 = vadd.f32 %v2150, %v2340
      %v2437 = vadd.f32 %v2151, %v2343
      %v2438 = vadd.f32 %v2152, %v2348
      %v2439 = vadd.f32 %v2153, %v2351
      %v2440 = vadd.f32 %v2154, %v2356
      %v2441 = vadd.f32 %v2155, %v2359
      %v2442 = vadd.f32 %v2156, %v2364
      %v2443 = vadd.f32 %v2157, %v2367
      %v2444 = vadd.f32 %v2158, %v2372
      %v2445 = vadd.f32 %v2159, %v2375
      %v2446 = vadd.f32 %v2160, %v2380
      %v2447 = vadd.f32 %v2161, %v2383
      %v2448 = vadd.f32 %v2162, %v2388
      %v2449 = vadd.f32 %v2163, %v2391
      %v2450 = vadd.f32 %v2164, %v2396
      %v2451 = vadd.f32 %v2165, %v2399
      %v2452 = vadd.f32 %v2166, %v2404
      %v2453 = vadd.f32 %v2167, %v2407
      %v2454 = vadd.f32 %v2168, %v2412
      %v2455 = vadd.f32 %v2169, %v2415
      %v2456 = vadd.f32 %v2170, %v2420
      %v2457 = vadd.f32 %v2171, %v2423
      %v2458 = vld [vmem:[%s342 + $0x10] sm:$0xf]
      %v2459 = vld [vmem:[%s342 + $0x14] sm:$0xf]
      %v2460 = vld [vmem:[%s342 + $0x18] sm:$0xf]
      %v2461 = vld [vmem:[%s342 + $0x1c] sm:$0xf]
      %v2462 = vld [vmem:[%s342 + $0x20] sm:$0xf]
      %v2463 = vld [vmem:[%s342 + $0x24] sm:$0xf]
      %v2464 = vld [vmem:[%s342 + $0x28] sm:$0xf]
      %v2465 = vld [vmem:[%s342 + $0x2c] sm:$0xf]
      %v2466 = vld [vmem:[%s342 + $0x30] sm:$0xf]
      %v2467 = vld [vmem:[%s342 + $0x34] sm:$0xf]
      %v2468 = vld [vmem:[%s342 + $0x38] sm:$0xf]
      %v2469 = vld [vmem:[%s342 + $0x3c] sm:$0xf]
      %v2470 = vld [vmem:[%s342 + $0x40] sm:$0xf]
      %v2471 = vld [vmem:[%s342 + $0x44] sm:$0xf]
      %v2472 = vld [vmem:[%s342 + $0x48] sm:$0xf]
      %v2473 = vld [vmem:[%s342 + $0x4c] sm:$0xf]
      %v2474 = vld [vmem:[%s342 + $0x50] sm:$0xf]
      %v2475 = vld [vmem:[%s342 + $0x54] sm:$0xf]
      %v2476 = vld [vmem:[%s342 + $0x58] sm:$0xf]
      %v2477 = vld [vmem:[%s342 + $0x5c] sm:$0xf]
      %v2478 = vld [vmem:[%s342 + $0x60] sm:$0xf]
      %v2479 = vld [vmem:[%s342 + $0x64] sm:$0xf]
      %v2480 = vld [vmem:[%s342 + $0x68] sm:$0xf]
      %v2481 = vld [vmem:[%s342 + $0x6c] sm:$0xf]
      %v2482 = vld [vmem:[%s342 + $0x70] sm:$0xf]
      %v2483 = vld [vmem:[%s342 + $0x74] sm:$0xf]
      %v2484 = vld [vmem:[%s342 + $0x78] sm:$0xf]
      %v2485 = vld [vmem:[%s342 + $0x7c] sm:$0xf]
      %v2486 = vld [vmem:[%s342 + $0x80] sm:$0xf]
      %v2487 = vld [vmem:[%s342 + $0x84] sm:$0xf]
      %v2488 = vld [vmem:[%s342 + $0x88] sm:$0xf]
      %v2489 = vld [vmem:[%s342 + $0x8c] sm:$0xf]
      %v2490 = vld [vmem:[%s1 + $0x30] sm:$0xf]
      %v2491 = vld [vmem:[%s1 + $0x34] sm:$0xf]
      %v2524 = vunpack.c.l.b16 %v2458
      %v2525 = vunpack.c.l.b16 %v2459
      %v2526 = vunpack.c.l.b16 %v2460
      %v2527 = vunpack.c.l.b16 %v2461
      %v2528 = vunpack.c.l.b16 %v2462
      %v2529 = vunpack.c.l.b16 %v2463
      %v2530 = vunpack.c.l.b16 %v2464
      %v2531 = vunpack.c.l.b16 %v2465
      %v2532 = vunpack.c.l.b16 %v2466
      %v2533 = vunpack.c.l.b16 %v2467
      %v2534 = vunpack.c.l.b16 %v2468
      %v2535 = vunpack.c.l.b16 %v2469
      %v2536 = vunpack.c.l.b16 %v2470
      %v2537 = vunpack.c.l.b16 %v2471
      %v2538 = vunpack.c.l.b16 %v2472
      %v2539 = vunpack.c.l.b16 %v2473
      %v2540 = vunpack.c.l.b16 %v2474
      %v2541 = vunpack.c.l.b16 %v2475
      %v2542 = vunpack.c.l.b16 %v2476
      %v2543 = vunpack.c.l.b16 %v2477
      %v2544 = vunpack.c.l.b16 %v2478
      %v2545 = vunpack.c.l.b16 %v2479
      %v2546 = vunpack.c.l.b16 %v2480
      %v2547 = vunpack.c.l.b16 %v2481
      %v2548 = vunpack.c.l.b16 %v2482
      %v2549 = vunpack.c.l.b16 %v2483
      %v2550 = vunpack.c.l.b16 %v2484
      %v2551 = vunpack.c.l.b16 %v2485
      %v2552 = vunpack.c.l.b16 %v2486
      %v2553 = vunpack.c.l.b16 %v2487
      %v2554 = vunpack.c.l.b16 %v2488
      %v2555 = vunpack.c.l.b16 %v2489
      %v2556 = vpack.c.b16 %v2525, %v2524
      %v2557 = vpack.c.b16 %v2527, %v2526
      %v2558 = vpack.c.b16 %v2529, %v2528
      %v2559 = vpack.c.b16 %v2531, %v2530
      %v2560 = vpack.c.b16 %v2533, %v2532
      %v2561 = vpack.c.b16 %v2535, %v2534
      %v2562 = vpack.c.b16 %v2537, %v2536
      %v2563 = vpack.c.b16 %v2539, %v2538
      %v2564 = vpack.c.b16 %v2541, %v2540
      %v2565 = vpack.c.b16 %v2543, %v2542
      %v2566 = vpack.c.b16 %v2545, %v2544
      %v2567 = vpack.c.b16 %v2547, %v2546
      %v2568 = vpack.c.b16 %v2549, %v2548
      %v2569 = vpack.c.b16 %v2551, %v2550
      %v2570 = vpack.c.b16 %v2553, %v2552
      %v2571 = vpack.c.b16 %v2555, %v2554
      %v2574 = vunpack.c.l.b16 %v2490
      %v2575 = vunpack.c.l.b16 %v2491
      %v2576 = vpack.c.b16 %v2575, %v2574
      %v2579 = vsel %vm618, %v2556, 0
      %v2582 = vsel %vm618, %v2557, 0
      %v2585 = vsel %vm618, %v2558, 0
      %v2588 = vsel %vm618, %v2559, 0
      %v2591 = vsel %vm618, %v2560, 0
      %v2594 = vsel %vm618, %v2561, 0
      %v2597 = vsel %vm618, %v2562, 0
      %v2600 = vsel %vm618, %v2563, 0
      %v2603 = vsel %vm618, %v2564, 0
      %v2606 = vsel %vm618, %v2565, 0
      %v2609 = vsel %vm618, %v2566, 0
      %v2612 = vsel %vm618, %v2567, 0
      %v2615 = vsel %vm618, %v2568, 0
      %v2618 = vsel %vm618, %v2569, 0
      %v2621 = vsel %vm618, %v2570, 0
      %v2624 = vsel %vm618, %v2571, 0
      %2626 = vmatprep.subr.bf16.mxu0 0
      %2627 = vmatpush1.bf16.msra.mxu0 %v2576
      %2628 = vmatprep.subr.bf16.mxu0 0
      %2629 = vmatpush1.bf16.msra.mxu0 0
      %2630 = vmatprep.subr.bf16.mxu0 0
      %2631 = vmatpush1.bf16.msra.mxu0 0
      %2632 = vmatprep.subr.bf16.mxu0 0
      %2633 = vmatpush1.bf16.msra.mxu0 0
      %2634 = vmatprep.subr.bf16.mxu0 0
      %2635 = vmatpush1.bf16.msra.mxu0 0
      %2636 = vmatprep.subr.bf16.mxu0 0
      %2637 = vmatpush1.bf16.msra.mxu0 0
      %2638 = vmatprep.subr.bf16.mxu0 0
      %2639 = vmatpush1.bf16.msra.mxu0 0
      %2640 = vmatprep.subr.bf16.mxu0 0
      %2641 = vmatpush1.bf16.msra.mxu0 0
      %2642 = vmatprep.subr.bf16.mxu0 0
      %2643 = vmatpush1.bf16.msra.mxu0 0
      %2644 = vmatprep.subr.bf16.mxu0 0
      %2645 = vmatpush1.bf16.msra.mxu0 0
      %2646 = vmatprep.subr.bf16.mxu0 0
      %2647 = vmatpush1.bf16.msra.mxu0 0
      %2648 = vmatprep.subr.bf16.mxu0 0
      %2649 = vmatpush1.bf16.msra.mxu0 0
      %2650 = vmatprep.subr.bf16.mxu0 0
      %2651 = vmatpush1.bf16.msra.mxu0 0
      %2652 = vmatprep.subr.bf16.mxu0 0
      %2653 = vmatpush1.bf16.msra.mxu0 0
      %2654 = vmatprep.subr.bf16.mxu0 0
      %2655 = vmatpush1.bf16.msra.mxu0 0
      %2656 = vmatprep.subr.bf16.mxu0 0
      %2657 = vmatpush1.bf16.msra.mxu0 0
      %2658 = vmatprep.mubr.bf16.mxu0 0
      %2659 = vmatmul.mubr.bf16.gmra.mrb[0].mxu0 %v2579
      %v2660 = vpop.f32.mrb[0].mxu0
      %v2661 = vadd.f32 0.0, %v2660
      %v2662 = vpop.f32.mrb[0].mxu0
      %v2663 = vpop.f32.mrb[0].mxu0
      %v2664 = vadd.f32 0.0, %v2663
      %v2665 = vpop.f32.mrb[0].mxu0
      %2666 = vmatprep.mubr.bf16.mxu0 0
      %2667 = vmatmul.mubr.bf16.gmra.mrb[0].mxu0 %v2582
      %v2668 = vpop.f32.mrb[0].mxu0
      %v2669 = vadd.f32 0.0, %v2668
      %v2670 = vpop.f32.mrb[0].mxu0
      %v2671 = vpop.f32.mrb[0].mxu0
      %v2672 = vadd.f32 0.0, %v2671
      %v2673 = vpop.f32.mrb[0].mxu0
      %2674 = vmatprep.mubr.bf16.mxu0 0
      %2675 = vmatmul.mubr.bf16.gmra.mrb[0].mxu0 %v2585
      %v2676 = vpop.f32.mrb[0].mxu0
      %v2677 = vadd.f32 0.0, %v2676
      %v2678 = vpop.f32.mrb[0].mxu0
      %v2679 = vpop.f32.mrb[0].mxu0
      %v2680 = vadd.f32 0.0, %v2679
      %v2681 = vpop.f32.mrb[0].mxu0
      %2682 = vmatprep.mubr.bf16.mxu0 0
      %2683 = vmatmul.mubr.bf16.gmra.mrb[0].mxu0 %v2588
      %v2684 = vpop.f32.mrb[0].mxu0
      %v2685 = vadd.f32 0.0, %v2684
      %v2686 = vpop.f32.mrb[0].mxu0
      %v2687 = vpop.f32.mrb[0].mxu0
      %v2688 = vadd.f32 0.0, %v2687
      %v2689 = vpop.f32.mrb[0].mxu0
      %2690 = vmatprep.mubr.bf16.mxu0 0
      %2691 = vmatmul.mubr.bf16.gmra.mrb[0].mxu0 %v2591
      %v2692 = vpop.f32.mrb[0].mxu0
      %v2693 = vadd.f32 0.0, %v2692
      %v2694 = vpop.f32.mrb[0].mxu0
      %v2695 = vpop.f32.mrb[0].mxu0
      %v2696 = vadd.f32 0.0, %v2695
      %v2697 = vpop.f32.mrb[0].mxu0
      %2698 = vmatprep.mubr.bf16.mxu0 0
      %2699 = vmatmul.mubr.bf16.gmra.mrb[0].mxu0 %v2594
      %v2700 = vpop.f32.mrb[0].mxu0
      %v2701 = vadd.f32 0.0, %v2700
      %v2702 = vpop.f32.mrb[0].mxu0
      %v2703 = vpop.f32.mrb[0].mxu0
      %v2704 = vadd.f32 0.0, %v2703
      %v2705 = vpop.f32.mrb[0].mxu0
      %2706 = vmatprep.mubr.bf16.mxu0 0
      %2707 = vmatmul.mubr.bf16.gmra.mrb[0].mxu0 %v2597
      %v2708 = vpop.f32.mrb[0].mxu0
      %v2709 = vadd.f32 0.0, %v2708
      %v2710 = vpop.f32.mrb[0].mxu0
      %v2711 = vpop.f32.mrb[0].mxu0
      %v2712 = vadd.f32 0.0, %v2711
      %v2713 = vpop.f32.mrb[0].mxu0
      %2714 = vmatprep.mubr.bf16.mxu0 0
      %2715 = vmatmul.mubr.bf16.gmra.mrb[0].mxu0 %v2600
      %v2716 = vpop.f32.mrb[0].mxu0
      %v2717 = vadd.f32 0.0, %v2716
      %v2718 = vpop.f32.mrb[0].mxu0
      %v2719 = vpop.f32.mrb[0].mxu0
      %v2720 = vadd.f32 0.0, %v2719
      %v2721 = vpop.f32.mrb[0].mxu0
      %2722 = vmatprep.mubr.bf16.mxu0 0
      %2723 = vmatmul.mubr.bf16.gmra.mrb[0].mxu0 %v2603
      %v2724 = vpop.f32.mrb[0].mxu0
      %v2725 = vadd.f32 0.0, %v2724
      %v2726 = vpop.f32.mrb[0].mxu0
      %v2727 = vpop.f32.mrb[0].mxu0
      %v2728 = vadd.f32 0.0, %v2727
      %v2729 = vpop.f32.mrb[0].mxu0
      %2730 = vmatprep.mubr.bf16.mxu0 0
      %2731 = vmatmul.mubr.bf16.gmra.mrb[0].mxu0 %v2606
      %v2732 = vpop.f32.mrb[0].mxu0
      %v2733 = vadd.f32 0.0, %v2732
      %v2734 = vpop.f32.mrb[0].mxu0
      %v2735 = vpop.f32.mrb[0].mxu0
      %v2736 = vadd.f32 0.0, %v2735
      %v2737 = vpop.f32.mrb[0].mxu0
      %2738 = vmatprep.mubr.bf16.mxu0 0
      %2739 = vmatmul.mubr.bf16.gmra.mrb[0].mxu0 %v2609
      %v2740 = vpop.f32.mrb[0].mxu0
      %v2741 = vadd.f32 0.0, %v2740
      %v2742 = vpop.f32.mrb[0].mxu0
      %v2743 = vpop.f32.mrb[0].mxu0
      %v2744 = vadd.f32 0.0, %v2743
      %v2745 = vpop.f32.mrb[0].mxu0
      %2746 = vmatprep.mubr.bf16.mxu0 0
      %2747 = vmatmul.mubr.bf16.gmra.mrb[0].mxu0 %v2612
      %v2748 = vpop.f32.mrb[0].mxu0
      %v2749 = vadd.f32 0.0, %v2748
      %v2750 = vpop.f32.mrb[0].mxu0
      %v2751 = vpop.f32.mrb[0].mxu0
      %v2752 = vadd.f32 0.0, %v2751
      %v2753 = vpop.f32.mrb[0].mxu0
      %2754 = vmatprep.mubr.bf16.mxu0 0
      %2755 = vmatmul.mubr.bf16.gmra.mrb[0].mxu0 %v2615
      %v2756 = vpop.f32.mrb[0].mxu0
      %v2757 = vadd.f32 0.0, %v2756
      %v2758 = vpop.f32.mrb[0].mxu0
      %v2759 = vpop.f32.mrb[0].mxu0
      %v2760 = vadd.f32 0.0, %v2759
      %v2761 = vpop.f32.mrb[0].mxu0
      %2762 = vmatprep.mubr.bf16.mxu0 0
      %2763 = vmatmul.mubr.bf16.gmra.mrb[0].mxu0 %v2618
      %v2764 = vpop.f32.mrb[0].mxu0
      %v2765 = vadd.f32 0.0, %v2764
      %v2766 = vpop.f32.mrb[0].mxu0
      %v2767 = vpop.f32.mrb[0].mxu0
      %v2768 = vadd.f32 0.0, %v2767
      %v2769 = vpop.f32.mrb[0].mxu0
      %2770 = vmatprep.mubr.bf16.mxu0 0
      %2771 = vmatmul.mubr.bf16.gmra.mrb[0].mxu0 %v2621
      %v2772 = vpop.f32.mrb[0].mxu0
      %v2773 = vadd.f32 0.0, %v2772
      %v2774 = vpop.f32.mrb[0].mxu0
      %v2775 = vpop.f32.mrb[0].mxu0
      %v2776 = vadd.f32 0.0, %v2775
      %v2777 = vpop.f32.mrb[0].mxu0
      %2778 = vmatprep.mubr.bf16.mxu0 0
      %2779 = vmatmul.mubr.bf16.gmra.mrb[0].mxu0 %v2624
      %v2780 = vpop.f32.mrb[0].mxu0
      %v2781 = vadd.f32 0.0, %v2780
      %v2782 = vpop.f32.mrb[0].mxu0
      %v2783 = vpop.f32.mrb[0].mxu0
      %v2784 = vadd.f32 0.0, %v2783
      %v2785 = vpop.f32.mrb[0].mxu0
      %2786 = vdwg.mxu0
      %v2787 = vadd.f32 %v2426, %v2661
      %v2788 = vadd.f32 %v2427, %v2664
      %v2789 = vadd.f32 %v2428, %v2669
      %v2790 = vadd.f32 %v2429, %v2672
      %v2791 = vadd.f32 %v2430, %v2677
      %v2792 = vadd.f32 %v2431, %v2680
      %v2793 = vadd.f32 %v2432, %v2685
      %v2794 = vadd.f32 %v2433, %v2688
      %v2795 = vadd.f32 %v2434, %v2693
      %v2796 = vadd.f32 %v2435, %v2696
      %v2797 = vadd.f32 %v2436, %v2701
      %v2798 = vadd.f32 %v2437, %v2704
      %v2799 = vadd.f32 %v2438, %v2709
      %v2800 = vadd.f32 %v2439, %v2712
      %v2801 = vadd.f32 %v2440, %v2717
      %v2802 = vadd.f32 %v2441, %v2720
      %v2803 = vadd.f32 %v2442, %v2725
      %v2804 = vadd.f32 %v2443, %v2728
      %v2805 = vadd.f32 %v2444, %v2733
      %v2806 = vadd.f32 %v2445, %v2736
      %v2807 = vadd.f32 %v2446, %v2741
      %v2808 = vadd.f32 %v2447, %v2744
      %v2809 = vadd.f32 %v2448, %v2749
      %v2810 = vadd.f32 %v2449, %v2752
      %v2811 = vadd.f32 %v2450, %v2757
      %v2812 = vadd.f32 %v2451, %v2760
      %v2813 = vadd.f32 %v2452, %v2765
      %v2814 = vadd.f32 %v2453, %v2768
      %v2815 = vadd.f32 %v2454, %v2773
      %v2816 = vadd.f32 %v2455, %v2776
      %v2817 = vadd.f32 %v2456, %v2781
      %v2818 = vadd.f32 %v2457, %v2784
      %v2819 = vld [vmem:[%s342 + $0x10] sm:$0xf]
      %v2820 = vld [vmem:[%s342 + $0x14] sm:$0xf]
      %v2821 = vld [vmem:[%s342 + $0x18] sm:$0xf]
      %v2822 = vld [vmem:[%s342 + $0x1c] sm:$0xf]
      %v2823 = vld [vmem:[%s342 + $0x20] sm:$0xf]
      %v2824 = vld [vmem:[%s342 + $0x24] sm:$0xf]
      %v2825 = vld [vmem:[%s342 + $0x28] sm:$0xf]
      %v2826 = vld [vmem:[%s342 + $0x2c] sm:$0xf]
      %v2827 = vld [vmem:[%s342 + $0x30] sm:$0xf]
      %v2828 = vld [vmem:[%s342 + $0x34] sm:$0xf]
      %v2829 = vld [vmem:[%s342 + $0x38] sm:$0xf]
      %v2830 = vld [vmem:[%s342 + $0x3c] sm:$0xf]
      %v2831 = vld [vmem:[%s342 + $0x40] sm:$0xf]
      %v2832 = vld [vmem:[%s342 + $0x44] sm:$0xf]
      %v2833 = vld [vmem:[%s342 + $0x48] sm:$0xf]
      %v2834 = vld [vmem:[%s342 + $0x4c] sm:$0xf]
      %v2835 = vld [vmem:[%s342 + $0x50] sm:$0xf]
      %v2836 = vld [vmem:[%s342 + $0x54] sm:$0xf]
      %v2837 = vld [vmem:[%s342 + $0x58] sm:$0xf]
      %v2838 = vld [vmem:[%s342 + $0x5c] sm:$0xf]
      %v2839 = vld [vmem:[%s342 + $0x60] sm:$0xf]
      %v2840 = vld [vmem:[%s342 + $0x64] sm:$0xf]
      %v2841 = vld [vmem:[%s342 + $0x68] sm:$0xf]
      %v2842 = vld [vmem:[%s342 + $0x6c] sm:$0xf]
      %v2843 = vld [vmem:[%s342 + $0x70] sm:$0xf]
      %v2844 = vld [vmem:[%s342 + $0x74] sm:$0xf]
      %v2845 = vld [vmem:[%s342 + $0x78] sm:$0xf]
      %v2846 = vld [vmem:[%s342 + $0x7c] sm:$0xf]
      %v2847 = vld [vmem:[%s342 + $0x80] sm:$0xf]
      %v2848 = vld [vmem:[%s342 + $0x84] sm:$0xf]
      %v2849 = vld [vmem:[%s342 + $0x88] sm:$0xf]
      %v2850 = vld [vmem:[%s342 + $0x8c] sm:$0xf]
      %v2851 = vld [vmem:[%s342 + $0x90] sm:$0x1]
      %v2852 = vld [vmem:[%s1 + $0x38] sm:$0xf]
      %v2853 = vld [vmem:[%s1 + $0x3c] sm:$0xf]
      %v2887 = vunpack.c.l.b16 %v2819
      %v2888 = vunpack.c.l.b16 %v2820
      %v2889 = vunpack.c.l.b16 %v2821
      %v2890 = vunpack.c.l.b16 %v2822
      %v2891 = vunpack.c.l.b16 %v2823
      %v2892 = vunpack.c.l.b16 %v2824
      %v2893 = vunpack.c.l.b16 %v2825
      %v2894 = vunpack.c.l.b16 %v2826
      %v2895 = vunpack.c.l.b16 %v2827
      %v2896 = vunpack.c.l.b16 %v2828
      %v2897 = vunpack.c.l.b16 %v2829
      %v2898 = vunpack.c.l.b16 %v2830
      %v2899 = vunpack.c.l.b16 %v2831
      %v2900 = vunpack.c.l.b16 %v2832
      %v2901 = vunpack.c.l.b16 %v2833
      %v2902 = vunpack.c.l.b16 %v2834
      %v2903 = vunpack.c.l.b16 %v2835
      %v2904 = vunpack.c.l.b16 %v2836
      %v2905 = vunpack.c.l.b16 %v2837
      %v2906 = vunpack.c.l.b16 %v2838
      %v2907 = vunpack.c.l.b16 %v2839
      %v2908 = vunpack.c.l.b16 %v2840
      %v2909 = vunpack.c.l.b16 %v2841
      %v2910 = vunpack.c.l.b16 %v2842
      %v2911 = vunpack.c.l.b16 %v2843
      %v2912 = vunpack.c.l.b16 %v2844
      %v2913 = vunpack.c.l.b16 %v2845
      %v2914 = vunpack.c.l.b16 %v2846
      %v2915 = vunpack.c.l.b16 %v2847
      %v2916 = vunpack.c.l.b16 %v2848
      %v2917 = vunpack.c.l.b16 %v2849
      %v2918 = vunpack.c.l.b16 %v2850
      %v2919 = vunpack.c.l.b16 %v2851
      %v2920 = vpack.c.b16 %v2888, %v2887
      %v2921 = vpack.c.b16 %v2890, %v2889
      %v2922 = vpack.c.b16 %v2892, %v2891
      %v2923 = vpack.c.b16 %v2894, %v2893
      %v2924 = vpack.c.b16 %v2896, %v2895
      %v2925 = vpack.c.b16 %v2898, %v2897
      %v2926 = vpack.c.b16 %v2900, %v2899
      %v2927 = vpack.c.b16 %v2902, %v2901
      %v2928 = vpack.c.b16 %v2904, %v2903
      %v2929 = vpack.c.b16 %v2906, %v2905
      %v2930 = vpack.c.b16 %v2908, %v2907
      %v2931 = vpack.c.b16 %v2910, %v2909
      %v2932 = vpack.c.b16 %v2912, %v2911
      %v2933 = vpack.c.b16 %v2914, %v2913
      %v2934 = vpack.c.b16 %v2916, %v2915
      %v2935 = vpack.c.b16 %v2918, %v2917
      %v2936 = vpack.c.b16 %v2919, %v2919
      %v2938 = vshrl.u32 %v2920, 16
      %v2940 = vshll.u32 %v2920, 16
      %v2942 = vrot.slane %v2940, 1
      %v2943 = vor.u32 %v2938, %v2942
      %v2945 = vshll.u32 %v2921, 16
      %v2947 = vrot.slane %v2945, 1
      %v2948 = vsel %vm479, %v2943, %v2947
      %v2949 = vshrl.u32 %v2921, 16
      %v2951 = vor.u32 %v2949, %v2947
      %v2953 = vshll.u32 %v2922, 16
      %v2955 = vrot.slane %v2953, 1
      %v2956 = vsel %vm479, %v2951, %v2955
      %v2957 = vshrl.u32 %v2922, 16
      %v2959 = vor.u32 %v2957, %v2955
      %v2961 = vshll.u32 %v2923, 16
      %v2963 = vrot.slane %v2961, 1
      %v2964 = vsel %vm479, %v2959, %v2963
      %v2965 = vshrl.u32 %v2923, 16
      %v2967 = vor.u32 %v2965, %v2963
      %v2969 = vshll.u32 %v2924, 16
      %v2971 = vrot.slane %v2969, 1
      %v2972 = vsel %vm479, %v2967, %v2971
      %v2973 = vshrl.u32 %v2924, 16
      %v2975 = vor.u32 %v2973, %v2971
      %v2977 = vshll.u32 %v2925, 16
      %v2979 = vrot.slane %v2977, 1
      %v2980 = vsel %vm479, %v2975, %v2979
      %v2981 = vshrl.u32 %v2925, 16
      %v2983 = vor.u32 %v2981, %v2979
      %v2985 = vshll.u32 %v2926, 16
      %v2987 = vrot.slane %v2985, 1
      %v2988 = vsel %vm479, %v2983, %v2987
      %v2989 = vshrl.u32 %v2926, 16
      %v2991 = vor.u32 %v2989, %v2987
      %v2993 = vshll.u32 %v2927, 16
      %v2995 = vrot.slane %v2993, 1
      %v2996 = vsel %vm479, %v2991, %v2995
      %v2997 = vshrl.u32 %v2927, 16
      %v2999 = vor.u32 %v2997, %v2995
      %v3001 = vshll.u32 %v2928, 16
      %v3003 = vrot.slane %v3001, 1
      %v3004 = vsel %vm479, %v2999, %v3003
      %v3005 = vshrl.u32 %v2928, 16
      %v3007 = vor.u32 %v3005, %v3003
      %v3009 = vshll.u32 %v2929, 16
      %v3011 = vrot.slane %v3009, 1
      %v3012 = vsel %vm479, %v3007, %v3011
      %v3013 = vshrl.u32 %v2929, 16
      %v3015 = vor.u32 %v3013, %v3011
      %v3017 = vshll.u32 %v2930, 16
      %v3019 = vrot.slane %v3017, 1
      %v3020 = vsel %vm479, %v3015, %v3019
      %v3021 = vshrl.u32 %v2930, 16
      %v3023 = vor.u32 %v3021, %v3019
      %v3025 = vshll.u32 %v2931, 16
      %v3027 = vrot.slane %v3025, 1
      %v3028 = vsel %vm479, %v3023, %v3027
      %v3029 = vshrl.u32 %v2931, 16
      %v3031 = vor.u32 %v3029, %v3027
      %v3033 = vshll.u32 %v2932, 16
      %v3035 = vrot.slane %v3033, 1
      %v3036 = vsel %vm479, %v3031, %v3035
      %v3037 = vshrl.u32 %v2932, 16
      %v3039 = vor.u32 %v3037, %v3035
      %v3041 = vshll.u32 %v2933, 16
      %v3043 = vrot.slane %v3041, 1
      %v3044 = vsel %vm479, %v3039, %v3043
      %v3045 = vshrl.u32 %v2933, 16
      %v3047 = vor.u32 %v3045, %v3043
      %v3049 = vshll.u32 %v2934, 16
      %v3051 = vrot.slane %v3049, 1
      %v3052 = vsel %vm479, %v3047, %v3051
      %v3053 = vshrl.u32 %v2934, 16
      %v3055 = vor.u32 %v3053, %v3051
      %v3057 = vshll.u32 %v2935, 16
      %v3059 = vrot.slane %v3057, 1
      %v3060 = vsel %vm479, %v3055, %v3059
      %v3061 = vshrl.u32 %v2935, 16
      %v3063 = vor.u32 %v3061, %v3059
      %v3065 = vshll.u32 %v2936, 16
      %v3067 = vrot.slane %v3065, 1
      %v3068 = vsel %vm479, %v3063, %v3067
      %v3071 = vunpack.c.l.b16 %v2852
      %v3072 = vunpack.c.l.b16 %v2853
      %v3073 = vpack.c.b16 %v3072, %v3071
      %v3076 = vsel %vm618, %v2948, 0
      %v3079 = vsel %vm618, %v2956, 0
      %v3082 = vsel %vm618, %v2964, 0
      %v3085 = vsel %vm618, %v2972, 0
      %v3088 = vsel %vm618, %v2980, 0
      %v3091 = vsel %vm618, %v2988, 0
      %v3094 = vsel %vm618, %v2996, 0
      %v3097 = vsel %vm618, %v3004, 0
      %v3100 = vsel %vm618, %v3012, 0
      %v3103 = vsel %vm618, %v3020, 0
      %v3106 = vsel %vm618, %v3028, 0
      %v3109 = vsel %vm618, %v3036, 0
      %v3112 = vsel %vm618, %v3044, 0
      %v3115 = vsel %vm618, %v3052, 0
      %v3118 = vsel %vm618, %v3060, 0
      %v3121 = vsel %vm618, %v3068, 0
      %3123 = vmatprep.subr.bf16.mxu0 0
      %3124 = vmatpush1.bf16.msra.mxu0 %v3073
      %3125 = vmatprep.subr.bf16.mxu0 0
      %3126 = vmatpush1.bf16.msra.mxu0 0
      %3127 = vmatprep.subr.bf16.mxu0 0
      %3128 = vmatpush1.bf16.msra.mxu0 0
      %3129 = vmatprep.subr.bf16.mxu0 0
      %3130 = vmatpush1.bf16.msra.mxu0 0
      %3131 = vmatprep.subr.bf16.mxu0 0
      %3132 = vmatpush1.bf16.msra.mxu0 0
      %3133 = vmatprep.subr.bf16.mxu0 0
      %3134 = vmatpush1.bf16.msra.mxu0 0
      %3135 = vmatprep.subr.bf16.mxu0 0
      %3136 = vmatpush1.bf16.msra.mxu0 0
      %3137 = vmatprep.subr.bf16.mxu0 0
      %3138 = vmatpush1.bf16.msra.mxu0 0
      %3139 = vmatprep.subr.bf16.mxu0 0
      %3140 = vmatpush1.bf16.msra.mxu0 0
      %3141 = vmatprep.subr.bf16.mxu0 0
      %3142 = vmatpush1.bf16.msra.mxu0 0
      %3143 = vmatprep.subr.bf16.mxu0 0
      %3144 = vmatpush1.bf16.msra.mxu0 0
      %3145 = vmatprep.subr.bf16.mxu0 0
      %3146 = vmatpush1.bf16.msra.mxu0 0
      %3147 = vmatprep.subr.bf16.mxu0 0
      %3148 = vmatpush1.bf16.msra.mxu0 0
      %3149 = vmatprep.subr.bf16.mxu0 0
      %3150 = vmatpush1.bf16.msra.mxu0 0
      %3151 = vmatprep.subr.bf16.mxu0 0
      %3152 = vmatpush1.bf16.msra.mxu0 0
      %3153 = vmatprep.subr.bf16.mxu0 0
      %3154 = vmatpush1.bf16.msra.mxu0 0
      %3155 = vmatprep.mubr.bf16.mxu0 0
      %3156 = vmatmul.mubr.bf16.gmra.mrb[0].mxu0 %v3076
      %v3157 = vpop.f32.mrb[0].mxu0
      %v3158 = vadd.f32 0.0, %v3157
      %v3159 = vpop.f32.mrb[0].mxu0
      %v3160 = vpop.f32.mrb[0].mxu0
      %v3161 = vadd.f32 0.0, %v3160
      %v3162 = vpop.f32.mrb[0].mxu0
      %3163 = vmatprep.mubr.bf16.mxu0 0
      %3164 = vmatmul.mubr.bf16.gmra.mrb[0].mxu0 %v3079
      %v3165 = vpop.f32.mrb[0].mxu0
      %v3166 = vadd.f32 0.0, %v3165
      %v3167 = vpop.f32.mrb[0].mxu0
      %v3168 = vpop.f32.mrb[0].mxu0
      %v3169 = vadd.f32 0.0, %v3168
      %v3170 = vpop.f32.mrb[0].mxu0
      %3171 = vmatprep.mubr.bf16.mxu0 0
      %3172 = vmatmul.mubr.bf16.gmra.mrb[0].mxu0 %v3082
      %v3173 = vpop.f32.mrb[0].mxu0
      %v3174 = vadd.f32 0.0, %v3173
      %v3175 = vpop.f32.mrb[0].mxu0
      %v3176 = vpop.f32.mrb[0].mxu0
      %v3177 = vadd.f32 0.0, %v3176
      %v3178 = vpop.f32.mrb[0].mxu0
      %3179 = vmatprep.mubr.bf16.mxu0 0
      %3180 = vmatmul.mubr.bf16.gmra.mrb[0].mxu0 %v3085
      %v3181 = vpop.f32.mrb[0].mxu0
      %v3182 = vadd.f32 0.0, %v3181
      %v3183 = vpop.f32.mrb[0].mxu0
      %v3184 = vpop.f32.mrb[0].mxu0
      %v3185 = vadd.f32 0.0, %v3184
      %v3186 = vpop.f32.mrb[0].mxu0
      %3187 = vmatprep.mubr.bf16.mxu0 0
      %3188 = vmatmul.mubr.bf16.gmra.mrb[0].mxu0 %v3088
      %v3189 = vpop.f32.mrb[0].mxu0
      %v3190 = vadd.f32 0.0, %v3189
      %v3191 = vpop.f32.mrb[0].mxu0
      %v3192 = vpop.f32.mrb[0].mxu0
      %v3193 = vadd.f32 0.0, %v3192
      %v3194 = vpop.f32.mrb[0].mxu0
      %3195 = vmatprep.mubr.bf16.mxu0 0
      %3196 = vmatmul.mubr.bf16.gmra.mrb[0].mxu0 %v3091
      %v3197 = vpop.f32.mrb[0].mxu0
      %v3198 = vadd.f32 0.0, %v3197
      %v3199 = vpop.f32.mrb[0].mxu0
      %v3200 = vpop.f32.mrb[0].mxu0
      %v3201 = vadd.f32 0.0, %v3200
      %v3202 = vpop.f32.mrb[0].mxu0
      %3203 = vmatprep.mubr.bf16.mxu0 0
      %3204 = vmatmul.mubr.bf16.gmra.mrb[0].mxu0 %v3094
      %v3205 = vpop.f32.mrb[0].mxu0
      %v3206 = vadd.f32 0.0, %v3205
      %v3207 = vpop.f32.mrb[0].mxu0
      %v3208 = vpop.f32.mrb[0].mxu0
      %v3209 = vadd.f32 0.0, %v3208
      %v3210 = vpop.f32.mrb[0].mxu0
      %3211 = vmatprep.mubr.bf16.mxu0 0
      %3212 = vmatmul.mubr.bf16.gmra.mrb[0].mxu0 %v3097
      %v3213 = vpop.f32.mrb[0].mxu0
      %v3214 = vadd.f32 0.0, %v3213
      %v3215 = vpop.f32.mrb[0].mxu0
      %v3216 = vpop.f32.mrb[0].mxu0
      %v3217 = vadd.f32 0.0, %v3216
      %v3218 = vpop.f32.mrb[0].mxu0
      %3219 = vmatprep.mubr.bf16.mxu0 0
      %3220 = vmatmul.mubr.bf16.gmra.mrb[0].mxu0 %v3100
      %v3221 = vpop.f32.mrb[0].mxu0
      %v3222 = vadd.f32 0.0, %v3221
      %v3223 = vpop.f32.mrb[0].mxu0
      %v3224 = vpop.f32.mrb[0].mxu0
      %v3225 = vadd.f32 0.0, %v3224
      %v3226 = vpop.f32.mrb[0].mxu0
      %3227 = vmatprep.mubr.bf16.mxu0 0
      %3228 = vmatmul.mubr.bf16.gmra.mrb[0].mxu0 %v3103
      %v3229 = vpop.f32.mrb[0].mxu0
      %v3230 = vadd.f32 0.0, %v3229
      %v3231 = vpop.f32.mrb[0].mxu0
      %v3232 = vpop.f32.mrb[0].mxu0
      %v3233 = vadd.f32 0.0, %v3232
      %v3234 = vpop.f32.mrb[0].mxu0
      %3235 = vmatprep.mubr.bf16.mxu0 0
      %3236 = vmatmul.mubr.bf16.gmra.mrb[0].mxu0 %v3106
      %v3237 = vpop.f32.mrb[0].mxu0
      %v3238 = vadd.f32 0.0, %v3237
      %v3239 = vpop.f32.mrb[0].mxu0
      %v3240 = vpop.f32.mrb[0].mxu0
      %v3241 = vadd.f32 0.0, %v3240
      %v3242 = vpop.f32.mrb[0].mxu0
      %3243 = vmatprep.mubr.bf16.mxu0 0
      %3244 = vmatmul.mubr.bf16.gmra.mrb[0].mxu0 %v3109
      %v3245 = vpop.f32.mrb[0].mxu0
      %v3246 = vadd.f32 0.0, %v3245
      %v3247 = vpop.f32.mrb[0].mxu0
      %v3248 = vpop.f32.mrb[0].mxu0
      %v3249 = vadd.f32 0.0, %v3248
      %v3250 = vpop.f32.mrb[0].mxu0
      %3251 = vmatprep.mubr.bf16.mxu0 0
      %3252 = vmatmul.mubr.bf16.gmra.mrb[0].mxu0 %v3112
      %v3253 = vpop.f32.mrb[0].mxu0
      %v3254 = vadd.f32 0.0, %v3253
      %v3255 = vpop.f32.mrb[0].mxu0
      %v3256 = vpop.f32.mrb[0].mxu0
      %v3257 = vadd.f32 0.0, %v3256
      %v3258 = vpop.f32.mrb[0].mxu0
      %3259 = vmatprep.mubr.bf16.mxu0 0
      %3260 = vmatmul.mubr.bf16.gmra.mrb[0].mxu0 %v3115
      %v3261 = vpop.f32.mrb[0].mxu0
      %v3262 = vadd.f32 0.0, %v3261
      %v3263 = vpop.f32.mrb[0].mxu0
      %v3264 = vpop.f32.mrb[0].mxu0
      %v3265 = vadd.f32 0.0, %v3264
      %v3266 = vpop.f32.mrb[0].mxu0
      %3267 = vmatprep.mubr.bf16.mxu0 0
      %3268 = vmatmul.mubr.bf16.gmra.mrb[0].mxu0 %v3118
      %v3269 = vpop.f32.mrb[0].mxu0
      %v3270 = vadd.f32 0.0, %v3269
      %v3271 = vpop.f32.mrb[0].mxu0
      %v3272 = vpop.f32.mrb[0].mxu0
      %v3273 = vadd.f32 0.0, %v3272
      %v3274 = vpop.f32.mrb[0].mxu0
      %3275 = vmatprep.mubr.bf16.mxu0 0
      %3276 = vmatmul.mubr.bf16.gmra.mrb[0].mxu0 %v3121
      %v3277 = vpop.f32.mrb[0].mxu0
      %v3278 = vadd.f32 0.0, %v3277
      %v3279 = vpop.f32.mrb[0].mxu0
      %v3280 = vpop.f32.mrb[0].mxu0
      %v3281 = vadd.f32 0.0, %v3280
      %v3282 = vpop.f32.mrb[0].mxu0
      %3283 = vdwg.mxu0
      %v3284 = vadd.f32 %v2787, %v3158
      %v3285 = vadd.f32 %v2788, %v3161
      %v3286 = vadd.f32 %v2789, %v3166
      %v3287 = vadd.f32 %v2790, %v3169
      %v3288 = vadd.f32 %v2791, %v3174
      %v3289 = vadd.f32 %v2792, %v3177
      %v3290 = vadd.f32 %v2793, %v3182
      %v3291 = vadd.f32 %v2794, %v3185
      %v3292 = vadd.f32 %v2795, %v3190
      %v3293 = vadd.f32 %v2796, %v3193
      %v3294 = vadd.f32 %v2797, %v3198
      %v3295 = vadd.f32 %v2798, %v3201
      %v3296 = vadd.f32 %v2799, %v3206
      %v3297 = vadd.f32 %v2800, %v3209
      %v3298 = vadd.f32 %v2801, %v3214
      %v3299 = vadd.f32 %v2802, %v3217
      %v3300 = vadd.f32 %v2803, %v3222
      %v3301 = vadd.f32 %v2804, %v3225
      %v3302 = vadd.f32 %v2805, %v3230
      %v3303 = vadd.f32 %v2806, %v3233
      %v3304 = vadd.f32 %v2807, %v3238
      %v3305 = vadd.f32 %v2808, %v3241
      %v3306 = vadd.f32 %v2809, %v3246
      %v3307 = vadd.f32 %v2810, %v3249
      %v3308 = vadd.f32 %v2811, %v3254
      %v3309 = vadd.f32 %v2812, %v3257
      %v3310 = vadd.f32 %v2813, %v3262
      %v3311 = vadd.f32 %v2814, %v3265
      %v3312 = vadd.f32 %v2815, %v3270
      %v3313 = vadd.f32 %v2816, %v3273
      %v3314 = vadd.f32 %v2817, %v3278
      %v3315 = vadd.f32 %v2818, %v3281
      %v3316 = vld [vmem:[%s342 + $0x10] sm:$0xe]
      %v3317 = vld [vmem:[%s1 + $0x40] sm:$0xf]
      %v3318 = vld [vmem:[%s1 + $0x44] sm:$0xf]
      %v3320 = vunpack.c.l.b16 %v3316
      %v3321 = vpack.c.b16 %v2888, %v3320
      %v3322 = vrot.slane %v3321, 1
      %v3323 = vrot.slane %v2921, 1
      %v3324 = vsel %vm1033, %v3322, %v3323
      %v3325 = vrot.slane %v2922, 1
      %v3326 = vsel %vm1033, %v3323, %v3325
      %v3327 = vrot.slane %v2923, 1
      %v3328 = vsel %vm1033, %v3325, %v3327
      %v3329 = vrot.slane %v2924, 1
      %v3330 = vsel %vm1033, %v3327, %v3329
      %v3331 = vrot.slane %v2925, 1
      %v3332 = vsel %vm1033, %v3329, %v3331
      %v3333 = vrot.slane %v2926, 1
      %v3334 = vsel %vm1033, %v3331, %v3333
      %v3335 = vrot.slane %v2927, 1
      %v3336 = vsel %vm1033, %v3333, %v3335
      %v3337 = vrot.slane %v2928, 1
      %v3338 = vsel %vm1033, %v3335, %v3337
      %v3339 = vrot.slane %v2929, 1
      %v3340 = vsel %vm1033, %v3337, %v3339
      %v3341 = vrot.slane %v2930, 1
      %v3342 = vsel %vm1033, %v3339, %v3341
      %v3343 = vrot.slane %v2931, 1
      %v3344 = vsel %vm1033, %v3341, %v3343
      %v3345 = vrot.slane %v2932, 1
      %v3346 = vsel %vm1033, %v3343, %v3345
      %v3347 = vrot.slane %v2933, 1
      %v3348 = vsel %vm1033, %v3345, %v3347
      %v3349 = vrot.slane %v2934, 1
      %v3350 = vsel %vm1033, %v3347, %v3349
      %v3351 = vrot.slane %v2935, 1
      %v3352 = vsel %vm1033, %v3349, %v3351
      %v3353 = vrot.slane %v2936, 1
      %v3354 = vsel %vm1033, %v3351, %v3353
      %v3357 = vunpack.c.l.b16 %v3317
      %v3358 = vunpack.c.l.b16 %v3318
      %v3359 = vpack.c.b16 %v3358, %v3357
      %v3362 = vsel %vm618, %v3324, 0
      %v3365 = vsel %vm618, %v3326, 0
      %v3368 = vsel %vm618, %v3328, 0
      %v3371 = vsel %vm618, %v3330, 0
      %v3374 = vsel %vm618, %v3332, 0
      %v3377 = vsel %vm618, %v3334, 0
      %v3380 = vsel %vm618, %v3336, 0
      %v3383 = vsel %vm618, %v3338, 0
      %v3386 = vsel %vm618, %v3340, 0
      %v3389 = vsel %vm618, %v3342, 0
      %v3392 = vsel %vm618, %v3344, 0
      %v3395 = vsel %vm618, %v3346, 0
      %v3398 = vsel %vm618, %v3348, 0
      %v3401 = vsel %vm618, %v3350, 0
      %v3404 = vsel %vm618, %v3352, 0
      %v3407 = vsel %vm618, %v3354, 0
      %3409 = vmatprep.subr.bf16.mxu0 0
      %3410 = vmatpush1.bf16.msra.mxu0 %v3359
      %3411 = vmatprep.subr.bf16.mxu0 0
      %3412 = vmatpush1.bf16.msra.mxu0 0
      %3413 = vmatprep.subr.bf16.mxu0 0
      %3414 = vmatpush1.bf16.msra.mxu0 0
      %3415 = vmatprep.subr.bf16.mxu0 0
      %3416 = vmatpush1.bf16.msra.mxu0 0
      %3417 = vmatprep.subr.bf16.mxu0 0
      %3418 = vmatpush1.bf16.msra.mxu0 0
      %3419 = vmatprep.subr.bf16.mxu0 0
      %3420 = vmatpush1.bf16.msra.mxu0 0
      %3421 = vmatprep.subr.bf16.mxu0 0
      %3422 = vmatpush1.bf16.msra.mxu0 0
      %3423 = vmatprep.subr.bf16.mxu0 0
      %3424 = vmatpush1.bf16.msra.mxu0 0
      %3425 = vmatprep.subr.bf16.mxu0 0
      %3426 = vmatpush1.bf16.msra.mxu0 0
      %3427 = vmatprep.subr.bf16.mxu0 0
      %3428 = vmatpush1.bf16.msra.mxu0 0
      %3429 = vmatprep.subr.bf16.mxu0 0
      %3430 = vmatpush1.bf16.msra.mxu0 0
      %3431 = vmatprep.subr.bf16.mxu0 0
      %3432 = vmatpush1.bf16.msra.mxu0 0
      %3433 = vmatprep.subr.bf16.mxu0 0
      %3434 = vmatpush1.bf16.msra.mxu0 0
      %3435 = vmatprep.subr.bf16.mxu0 0
      %3436 = vmatpush1.bf16.msra.mxu0 0
      %3437 = vmatprep.subr.bf16.mxu0 0
      %3438 = vmatpush1.bf16.msra.mxu0 0
      %3439 = vmatprep.subr.bf16.mxu0 0
      %3440 = vmatpush1.bf16.msra.mxu0 0
      %3441 = vmatprep.mubr.bf16.mxu0 0
      %3442 = vmatmul.mubr.bf16.gmra.mrb[0].mxu0 %v3362
      %v3443 = vpop.f32.mrb[0].mxu0
      %v3444 = vadd.f32 0.0, %v3443
      %v3445 = vpop.f32.mrb[0].mxu0
      %v3446 = vpop.f32.mrb[0].mxu0
      %v3447 = vadd.f32 0.0, %v3446
      %v3448 = vpop.f32.mrb[0].mxu0
      %3449 = vmatprep.mubr.bf16.mxu0 0
      %3450 = vmatmul.mubr.bf16.gmra.mrb[0].mxu0 %v3365
      %v3451 = vpop.f32.mrb[0].mxu0
      %v3452 = vadd.f32 0.0, %v3451
      %v3453 = vpop.f32.mrb[0].mxu0
      %v3454 = vpop.f32.mrb[0].mxu0
      %v3455 = vadd.f32 0.0, %v3454
      %v3456 = vpop.f32.mrb[0].mxu0
      %3457 = vmatprep.mubr.bf16.mxu0 0
      %3458 = vmatmul.mubr.bf16.gmra.mrb[0].mxu0 %v3368
      %v3459 = vpop.f32.mrb[0].mxu0
      %v3460 = vadd.f32 0.0, %v3459
      %v3461 = vpop.f32.mrb[0].mxu0
      %v3462 = vpop.f32.mrb[0].mxu0
      %v3463 = vadd.f32 0.0, %v3462
      %v3464 = vpop.f32.mrb[0].mxu0
      %3465 = vmatprep.mubr.bf16.mxu0 0
      %3466 = vmatmul.mubr.bf16.gmra.mrb[0].mxu0 %v3371
      %v3467 = vpop.f32.mrb[0].mxu0
      %v3468 = vadd.f32 0.0, %v3467
      %v3469 = vpop.f32.mrb[0].mxu0
      %v3470 = vpop.f32.mrb[0].mxu0
      %v3471 = vadd.f32 0.0, %v3470
      %v3472 = vpop.f32.mrb[0].mxu0
      %3473 = vmatprep.mubr.bf16.mxu0 0
      %3474 = vmatmul.mubr.bf16.gmra.mrb[0].mxu0 %v3374
      %v3475 = vpop.f32.mrb[0].mxu0
      %v3476 = vadd.f32 0.0, %v3475
      %v3477 = vpop.f32.mrb[0].mxu0
      %v3478 = vpop.f32.mrb[0].mxu0
      %v3479 = vadd.f32 0.0, %v3478
      %v3480 = vpop.f32.mrb[0].mxu0
      %3481 = vmatprep.mubr.bf16.mxu0 0
      %3482 = vmatmul.mubr.bf16.gmra.mrb[0].mxu0 %v3377
      %v3483 = vpop.f32.mrb[0].mxu0
      %v3484 = vadd.f32 0.0, %v3483
      %v3485 = vpop.f32.mrb[0].mxu0
      %v3486 = vpop.f32.mrb[0].mxu0
      %v3487 = vadd.f32 0.0, %v3486
      %v3488 = vpop.f32.mrb[0].mxu0
      %3489 = vmatprep.mubr.bf16.mxu0 0
      %3490 = vmatmul.mubr.bf16.gmra.mrb[0].mxu0 %v3380
      %v3491 = vpop.f32.mrb[0].mxu0
      %v3492 = vadd.f32 0.0, %v3491
      %v3493 = vpop.f32.mrb[0].mxu0
      %v3494 = vpop.f32.mrb[0].mxu0
      %v3495 = vadd.f32 0.0, %v3494
      %v3496 = vpop.f32.mrb[0].mxu0
      %3497 = vmatprep.mubr.bf16.mxu0 0
      %3498 = vmatmul.mubr.bf16.gmra.mrb[0].mxu0 %v3383
      %v3499 = vpop.f32.mrb[0].mxu0
      %v3500 = vadd.f32 0.0, %v3499
      %v3501 = vpop.f32.mrb[0].mxu0
      %v3502 = vpop.f32.mrb[0].mxu0
      %v3503 = vadd.f32 0.0, %v3502
      %v3504 = vpop.f32.mrb[0].mxu0
      %3505 = vmatprep.mubr.bf16.mxu0 0
      %3506 = vmatmul.mubr.bf16.gmra.mrb[0].mxu0 %v3386
      %v3507 = vpop.f32.mrb[0].mxu0
      %v3508 = vadd.f32 0.0, %v3507
      %v3509 = vpop.f32.mrb[0].mxu0
      %v3510 = vpop.f32.mrb[0].mxu0
      %v3511 = vadd.f32 0.0, %v3510
      %v3512 = vpop.f32.mrb[0].mxu0
      %3513 = vmatprep.mubr.bf16.mxu0 0
      %3514 = vmatmul.mubr.bf16.gmra.mrb[0].mxu0 %v3389
      %v3515 = vpop.f32.mrb[0].mxu0
      %v3516 = vadd.f32 0.0, %v3515
      %v3517 = vpop.f32.mrb[0].mxu0
      %v3518 = vpop.f32.mrb[0].mxu0
      %v3519 = vadd.f32 0.0, %v3518
      %v3520 = vpop.f32.mrb[0].mxu0
      %3521 = vmatprep.mubr.bf16.mxu0 0
      %3522 = vmatmul.mubr.bf16.gmra.mrb[0].mxu0 %v3392
      %v3523 = vpop.f32.mrb[0].mxu0
      %v3524 = vadd.f32 0.0, %v3523
      %v3525 = vpop.f32.mrb[0].mxu0
      %v3526 = vpop.f32.mrb[0].mxu0
      %v3527 = vadd.f32 0.0, %v3526
      %v3528 = vpop.f32.mrb[0].mxu0
      %3529 = vmatprep.mubr.bf16.mxu0 0
      %3530 = vmatmul.mubr.bf16.gmra.mrb[0].mxu0 %v3395
      %v3531 = vpop.f32.mrb[0].mxu0
      %v3532 = vadd.f32 0.0, %v3531
      %v3533 = vpop.f32.mrb[0].mxu0
      %v3534 = vpop.f32.mrb[0].mxu0
      %v3535 = vadd.f32 0.0, %v3534
      %v3536 = vpop.f32.mrb[0].mxu0
      %3537 = vmatprep.mubr.bf16.mxu0 0
      %3538 = vmatmul.mubr.bf16.gmra.mrb[0].mxu0 %v3398
      %v3539 = vpop.f32.mrb[0].mxu0
      %v3540 = vadd.f32 0.0, %v3539
      %v3541 = vpop.f32.mrb[0].mxu0
      %v3542 = vpop.f32.mrb[0].mxu0
      %v3543 = vadd.f32 0.0, %v3542
      %v3544 = vpop.f32.mrb[0].mxu0
      %3545 = vmatprep.mubr.bf16.mxu0 0
      %3546 = vmatmul.mubr.bf16.gmra.mrb[0].mxu0 %v3401
      %v3547 = vpop.f32.mrb[0].mxu0
      %v3548 = vadd.f32 0.0, %v3547
      %v3549 = vpop.f32.mrb[0].mxu0
      %v3550 = vpop.f32.mrb[0].mxu0
      %v3551 = vadd.f32 0.0, %v3550
      %v3552 = vpop.f32.mrb[0].mxu0
      %3553 = vmatprep.mubr.bf16.mxu0 0
      %3554 = vmatmul.mubr.bf16.gmra.mrb[0].mxu0 %v3404
      %v3555 = vpop.f32.mrb[0].mxu0
      %v3556 = vadd.f32 0.0, %v3555
      %v3557 = vpop.f32.mrb[0].mxu0
      %v3558 = vpop.f32.mrb[0].mxu0
      %v3559 = vadd.f32 0.0, %v3558
      %v3560 = vpop.f32.mrb[0].mxu0
      %3561 = vmatprep.mubr.bf16.mxu0 0
      %3562 = vmatmul.mubr.bf16.gmra.mrb[0].mxu0 %v3407
      %v3563 = vpop.f32.mrb[0].mxu0
      %v3564 = vadd.f32 0.0, %v3563
      %v3565 = vpop.f32.mrb[0].mxu0
      %v3566 = vpop.f32.mrb[0].mxu0
      %v3567 = vadd.f32 0.0, %v3566
      %v3568 = vpop.f32.mrb[0].mxu0
      %3569 = vdwg.mxu0
      %v3570 = vadd.f32 %v3284, %v3444
      %v3571 = vadd.f32 %v3285, %v3447
      %v3572 = vadd.f32 %v3286, %v3452
      %v3573 = vadd.f32 %v3287, %v3455
      %v3574 = vadd.f32 %v3288, %v3460
      %v3575 = vadd.f32 %v3289, %v3463
      %v3576 = vadd.f32 %v3290, %v3468
      %v3577 = vadd.f32 %v3291, %v3471
      %v3578 = vadd.f32 %v3292, %v3476
      %v3579 = vadd.f32 %v3293, %v3479
      %v3580 = vadd.f32 %v3294, %v3484
      %v3581 = vadd.f32 %v3295, %v3487
      %v3582 = vadd.f32 %v3296, %v3492
      %v3583 = vadd.f32 %v3297, %v3495
      %v3584 = vadd.f32 %v3298, %v3500
      %v3585 = vadd.f32 %v3299, %v3503
      %v3586 = vadd.f32 %v3300, %v3508
      %v3587 = vadd.f32 %v3301, %v3511
      %v3588 = vadd.f32 %v3302, %v3516
      %v3589 = vadd.f32 %v3303, %v3519
      %v3590 = vadd.f32 %v3304, %v3524
      %v3591 = vadd.f32 %v3305, %v3527
      %v3592 = vadd.f32 %v3306, %v3532
      %v3593 = vadd.f32 %v3307, %v3535
      %v3594 = vadd.f32 %v3308, %v3540
      %v3595 = vadd.f32 %v3309, %v3543
      %v3596 = vadd.f32 %v3310, %v3548
      %v3597 = vadd.f32 %v3311, %v3551
      %v3598 = vadd.f32 %v3312, %v3556
      %v3599 = vadd.f32 %v3313, %v3559
      %v3600 = vadd.f32 %v3314, %v3564
      %v3601 = vadd.f32 %v3315, %v3567
      %v3602 = vld [vmem:[%s2] sm:$0x1]
      %v3604 = vlaneseq
      %v3605 = vshrl.u32 %v3604, 7
      %v3606 = vsub.s32 0, %v3605
      %v3607 = vrot.slane %v3602, %v3606
      %v3609 = vadd.f32 %v3570, %v3607
      %v3610 = vadd.f32 %v3571, %v3607
      %v3611 = vadd.f32 %v3572, %v3607
      %v3612 = vadd.f32 %v3573, %v3607
      %v3613 = vadd.f32 %v3574, %v3607
      %v3614 = vadd.f32 %v3575, %v3607
      %v3615 = vadd.f32 %v3576, %v3607
      %v3616 = vadd.f32 %v3577, %v3607
      %v3617 = vadd.f32 %v3578, %v3607
      %v3618 = vadd.f32 %v3579, %v3607
      %v3619 = vadd.f32 %v3580, %v3607
      %v3620 = vadd.f32 %v3581, %v3607
      %v3621 = vadd.f32 %v3582, %v3607
      %v3622 = vadd.f32 %v3583, %v3607
      %v3623 = vadd.f32 %v3584, %v3607
      %v3624 = vadd.f32 %v3585, %v3607
      %v3625 = vadd.f32 %v3586, %v3607
      %v3626 = vadd.f32 %v3587, %v3607
      %v3627 = vadd.f32 %v3588, %v3607
      %v3628 = vadd.f32 %v3589, %v3607
      %v3629 = vadd.f32 %v3590, %v3607
      %v3630 = vadd.f32 %v3591, %v3607
      %v3631 = vadd.f32 %v3592, %v3607
      %v3632 = vadd.f32 %v3593, %v3607
      %v3633 = vadd.f32 %v3594, %v3607
      %v3634 = vadd.f32 %v3595, %v3607
      %v3635 = vadd.f32 %v3596, %v3607
      %v3636 = vadd.f32 %v3597, %v3607
      %v3637 = vadd.f32 %v3598, %v3607
      %v3638 = vadd.f32 %v3599, %v3607
      %v3639 = vadd.f32 %v3600, %v3607
      %v3640 = vadd.f32 %v3601, %v3607
      %v3641 = vpack.c.bf16 %v3610, %v3609
      %v3642 = vpack.c.bf16 %v3612, %v3611
      %v3643 = vpack.c.bf16 %v3614, %v3613
      %v3644 = vpack.c.bf16 %v3616, %v3615
      %v3645 = vpack.c.bf16 %v3618, %v3617
      %v3646 = vpack.c.bf16 %v3620, %v3619
      %v3647 = vpack.c.bf16 %v3622, %v3621
      %v3648 = vpack.c.bf16 %v3624, %v3623
      %v3649 = vpack.c.bf16 %v3626, %v3625
      %v3650 = vpack.c.bf16 %v3628, %v3627
      %v3651 = vpack.c.bf16 %v3630, %v3629
      %v3652 = vpack.c.bf16 %v3632, %v3631
      %v3653 = vpack.c.bf16 %v3634, %v3633
      %v3654 = vpack.c.bf16 %v3636, %v3635
      %v3655 = vpack.c.bf16 %v3638, %v3637
      %v3656 = vpack.c.bf16 %v3640, %v3639
      %v3673 = vunpack.c.l.b16 %v3641
      %v3674 = vunpack.c.h.b16 %v3641
      %v3675 = vunpack.c.l.b16 %v3642
      %v3676 = vunpack.c.h.b16 %v3642
      %v3677 = vunpack.c.l.b16 %v3643
      %v3678 = vunpack.c.h.b16 %v3643
      %v3679 = vunpack.c.l.b16 %v3644
      %v3680 = vunpack.c.h.b16 %v3644
      %v3681 = vunpack.c.l.b16 %v3645
      %v3682 = vunpack.c.h.b16 %v3645
      %v3683 = vunpack.c.l.b16 %v3646
      %v3684 = vunpack.c.h.b16 %v3646
      %v3685 = vunpack.c.l.b16 %v3647
      %v3686 = vunpack.c.h.b16 %v3647
      %v3687 = vunpack.c.l.b16 %v3648
      %v3688 = vunpack.c.h.b16 %v3648
      %v3689 = vunpack.c.l.b16 %v3649
      %v3690 = vunpack.c.h.b16 %v3649
      %v3691 = vunpack.c.l.b16 %v3650
      %v3692 = vunpack.c.h.b16 %v3650
      %v3693 = vunpack.c.l.b16 %v3651
      %v3694 = vunpack.c.h.b16 %v3651
      %v3695 = vunpack.c.l.b16 %v3652
      %v3696 = vunpack.c.h.b16 %v3652
      %v3697 = vunpack.c.l.b16 %v3653
      %v3698 = vunpack.c.h.b16 %v3653
      %v3699 = vunpack.c.l.b16 %v3654
      %v3700 = vunpack.c.h.b16 %v3654
      %v3701 = vunpack.c.l.b16 %v3655
      %v3702 = vunpack.c.h.b16 %v3655
      %v3703 = vunpack.c.l.b16 %v3656
      %v3704 = vunpack.c.h.b16 %v3656
      %v3705 = vpack.c.b16 %v3673, %v3673
      %v3706 = vpack.c.b16 %v3674, %v3674
      %v3707 = vpack.c.b16 %v3675, %v3675
      %v3708 = vpack.c.b16 %v3676, %v3676
      %v3709 = vpack.c.b16 %v3677, %v3677
      %v3710 = vpack.c.b16 %v3678, %v3678
      %v3711 = vpack.c.b16 %v3679, %v3679
      %v3712 = vpack.c.b16 %v3680, %v3680
      %v3713 = vpack.c.b16 %v3681, %v3681
      %v3714 = vpack.c.b16 %v3682, %v3682
      %v3715 = vpack.c.b16 %v3683, %v3683
      %v3716 = vpack.c.b16 %v3684, %v3684
      %v3717 = vpack.c.b16 %v3685, %v3685
      %v3718 = vpack.c.b16 %v3686, %v3686
      %v3719 = vpack.c.b16 %v3687, %v3687
      %v3720 = vpack.c.b16 %v3688, %v3688
      %v3721 = vpack.c.b16 %v3689, %v3689
      %v3722 = vpack.c.b16 %v3690, %v3690
      %v3723 = vpack.c.b16 %v3691, %v3691
      %v3724 = vpack.c.b16 %v3692, %v3692
      %v3725 = vpack.c.b16 %v3693, %v3693
      %v3726 = vpack.c.b16 %v3694, %v3694
      %v3727 = vpack.c.b16 %v3695, %v3695
      %v3728 = vpack.c.b16 %v3696, %v3696
      %v3729 = vpack.c.b16 %v3697, %v3697
      %v3730 = vpack.c.b16 %v3698, %v3698
      %v3731 = vpack.c.b16 %v3699, %v3699
      %v3732 = vpack.c.b16 %v3700, %v3700
      %v3733 = vpack.c.b16 %v3701, %v3701
      %v3734 = vpack.c.b16 %v3702, %v3702
      %v3735 = vpack.c.b16 %v3703, %v3703
      %v3736 = vpack.c.b16 %v3704, %v3704
      %vm3769 = vcmask 257024
      %3770 = vst.msk [vmem:[%s347] sm:$0xf] %vm3769, %v3705
      %3771 = vst.msk [vmem:[%s347 + $0x4] sm:$0xf] %vm3769, %v3706
      %3772 = vst.msk [vmem:[%s347 + $0x8] sm:$0xf] %vm3769, %v3707
      %3773 = vst.msk [vmem:[%s347 + $0xc] sm:$0xf] %vm3769, %v3708
      %3774 = vst.msk [vmem:[%s347 + $0x10] sm:$0xf] %vm3769, %v3709
      %3775 = vst.msk [vmem:[%s347 + $0x14] sm:$0xf] %vm3769, %v3710
      %3776 = vst.msk [vmem:[%s347 + $0x18] sm:$0xf] %vm3769, %v3711
      %3777 = vst.msk [vmem:[%s347 + $0x1c] sm:$0xf] %vm3769, %v3712
      %3778 = vst.msk [vmem:[%s347 + $0x20] sm:$0xf] %vm3769, %v3713
      %3779 = vst.msk [vmem:[%s347 + $0x24] sm:$0xf] %vm3769, %v3714
      %3780 = vst.msk [vmem:[%s347 + $0x28] sm:$0xf] %vm3769, %v3715
      %3781 = vst.msk [vmem:[%s347 + $0x2c] sm:$0xf] %vm3769, %v3716
      %3782 = vst.msk [vmem:[%s347 + $0x30] sm:$0xf] %vm3769, %v3717
      %3783 = vst.msk [vmem:[%s347 + $0x34] sm:$0xf] %vm3769, %v3718
      %3784 = vst.msk [vmem:[%s347 + $0x38] sm:$0xf] %vm3769, %v3719
      %3785 = vst.msk [vmem:[%s347 + $0x3c] sm:$0xf] %vm3769, %v3720
      %3786 = vst.msk [vmem:[%s347 + $0x40] sm:$0xf] %vm3769, %v3721
      %3787 = vst.msk [vmem:[%s347 + $0x44] sm:$0xf] %vm3769, %v3722
      %3788 = vst.msk [vmem:[%s347 + $0x48] sm:$0xf] %vm3769, %v3723
      %3789 = vst.msk [vmem:[%s347 + $0x4c] sm:$0xf] %vm3769, %v3724
      %3790 = vst.msk [vmem:[%s347 + $0x50] sm:$0xf] %vm3769, %v3725
      %3791 = vst.msk [vmem:[%s347 + $0x54] sm:$0xf] %vm3769, %v3726
      %3792 = vst.msk [vmem:[%s347 + $0x58] sm:$0xf] %vm3769, %v3727
      %3793 = vst.msk [vmem:[%s347 + $0x5c] sm:$0xf] %vm3769, %v3728
      %3794 = vst.msk [vmem:[%s347 + $0x60] sm:$0xf] %vm3769, %v3729
      %3795 = vst.msk [vmem:[%s347 + $0x64] sm:$0xf] %vm3769, %v3730
      %3796 = vst.msk [vmem:[%s347 + $0x68] sm:$0xf] %vm3769, %v3731
      %3797 = vst.msk [vmem:[%s347 + $0x6c] sm:$0xf] %vm3769, %v3732
      %3798 = vst.msk [vmem:[%s347 + $0x70] sm:$0xf] %vm3769, %v3733
      %3799 = vst.msk [vmem:[%s347 + $0x74] sm:$0xf] %vm3769, %v3734
      %3800 = vst.msk [vmem:[%s347 + $0x78] sm:$0xf] %vm3769, %v3735
      %3801 = vst.msk [vmem:[%s347 + $0x7c] sm:$0xf] %vm3769, %v3736
      %v3802 = vld [vmem:[%s347] sm:$0xf]
      %v3803 = vld [vmem:[%s347 + $0x4] sm:$0xf]
      %v3804 = vld [vmem:[%s347 + $0x8] sm:$0xf]
      %v3805 = vld [vmem:[%s347 + $0xc] sm:$0xf]
      %v3806 = vld [vmem:[%s347 + $0x10] sm:$0xf]
      %v3807 = vld [vmem:[%s347 + $0x14] sm:$0xf]
      %v3808 = vld [vmem:[%s347 + $0x18] sm:$0xf]
      %v3809 = vld [vmem:[%s347 + $0x1c] sm:$0xf]
      %v3810 = vld [vmem:[%s347 + $0x20] sm:$0xf]
      %v3811 = vld [vmem:[%s347 + $0x24] sm:$0xf]
      %v3812 = vld [vmem:[%s347 + $0x28] sm:$0xf]
      %v3813 = vld [vmem:[%s347 + $0x2c] sm:$0xf]
      %v3814 = vld [vmem:[%s347 + $0x30] sm:$0xf]
      %v3815 = vld [vmem:[%s347 + $0x34] sm:$0xf]
      %v3816 = vld [vmem:[%s347 + $0x38] sm:$0xf]
      %v3817 = vld [vmem:[%s347 + $0x3c] sm:$0xf]
      %v3818 = vld [vmem:[%s347 + $0x40] sm:$0xf]
      %v3819 = vld [vmem:[%s347 + $0x44] sm:$0xf]
      %v3820 = vld [vmem:[%s347 + $0x48] sm:$0xf]
      %v3821 = vld [vmem:[%s347 + $0x4c] sm:$0xf]
      %v3822 = vld [vmem:[%s347 + $0x50] sm:$0xf]
      %v3823 = vld [vmem:[%s347 + $0x54] sm:$0xf]
      %v3824 = vld [vmem:[%s347 + $0x58] sm:$0xf]
      %v3825 = vld [vmem:[%s347 + $0x5c] sm:$0xf]
      %v3826 = vld [vmem:[%s347 + $0x60] sm:$0xf]
      %v3827 = vld [vmem:[%s347 + $0x64] sm:$0xf]
      %v3828 = vld [vmem:[%s3] sm:$0xf]
      %v3829 = vld [vmem:[%s3 + $0x4] sm:$0xf]
      %v3830 = vld [vmem:[%s3 + $0x8] sm:$0xf]
      %v3831 = vld [vmem:[%s3 + $0xc] sm:$0xf]
      %v3832 = vld [vmem:[%s347 + $0x68] sm:$0x1]
      %v3833 = vld [vmem:[%s3 + $0x10] sm:$0xf]
      %v3834 = vld [vmem:[%s3 + $0x14] sm:$0xf]
      %v3835 = vld [vmem:[%s3 + $0x18] sm:$0xf]
      %v3836 = vld [vmem:[%s3 + $0x1c] sm:$0xf]
      %v3864 = vunpack.c.l.b16 %v3802
      %v3865 = vunpack.c.l.b16 %v3803
      %v3866 = vunpack.c.l.b16 %v3804
      %v3867 = vunpack.c.l.b16 %v3805
      %v3868 = vunpack.c.l.b16 %v3806
      %v3869 = vunpack.c.l.b16 %v3807
      %v3870 = vunpack.c.l.b16 %v3808
      %v3871 = vunpack.c.l.b16 %v3809
      %v3872 = vunpack.c.l.b16 %v3810
      %v3873 = vunpack.c.l.b16 %v3811
      %v3874 = vunpack.c.l.b16 %v3812
      %v3875 = vunpack.c.l.b16 %v3813
      %v3876 = vunpack.c.l.b16 %v3814
      %v3877 = vunpack.c.l.b16 %v3815
      %v3878 = vunpack.c.l.b16 %v3816
      %v3879 = vunpack.c.l.b16 %v3817
      %v3880 = vunpack.c.l.b16 %v3818
      %v3881 = vunpack.c.l.b16 %v3819
      %v3882 = vunpack.c.l.b16 %v3820
      %v3883 = vunpack.c.l.b16 %v3821
      %v3884 = vunpack.c.l.b16 %v3822
      %v3885 = vunpack.c.l.b16 %v3823
      %v3886 = vunpack.c.l.b16 %v3824
      %v3887 = vunpack.c.l.b16 %v3825
      %v3888 = vunpack.c.l.b16 %v3826
      %v3889 = vunpack.c.l.b16 %v3827
      %v3890 = vunpack.c.l.b16 %v3832
      %v3891 = vpack.c.b16 %v3865, %v3864
      %v3892 = vpack.c.b16 %v3867, %v3866
      %v3893 = vpack.c.b16 %v3869, %v3868
      %v3894 = vpack.c.b16 %v3871, %v3870
      %v3895 = vpack.c.b16 %v3873, %v3872
      %v3896 = vpack.c.b16 %v3875, %v3874
      %v3897 = vpack.c.b16 %v3877, %v3876
      %v3898 = vpack.c.b16 %v3879, %v3878
      %v3899 = vpack.c.b16 %v3881, %v3880
      %v3900 = vpack.c.b16 %v3883, %v3882
      %v3901 = vpack.c.b16 %v3885, %v3884
      %v3902 = vpack.c.b16 %v3887, %v3886
      %v3903 = vpack.c.b16 %v3889, %v3888
      %v3904 = vpack.c.b16 %v3890, %v3890
      %v3906 = vshrl.u32 %v3891, 16
      %v3908 = vshll.u32 %v3891, 16
      %v3910 = vrot.slane %v3908, 1
      %v3911 = vor.u32 %v3906, %v3910
      %v3913 = vshll.u32 %v3892, 16
      %v3915 = vrot.slane %v3913, 1
      %v3916 = vsel %vm479, %v3911, %v3915
      %v3917 = vshrl.u32 %v3892, 16
      %v3919 = vor.u32 %v3917, %v3915
      %v3921 = vshll.u32 %v3893, 16
      %v3923 = vrot.slane %v3921, 1
      %v3924 = vsel %vm479, %v3919, %v3923
      %v3925 = vshrl.u32 %v3893, 16
      %v3927 = vor.u32 %v3925, %v3923
      %v3929 = vshll.u32 %v3894, 16
      %v3931 = vrot.slane %v3929, 1
      %v3932 = vsel %vm479, %v3927, %v3931
      %v3933 = vshrl.u32 %v3894, 16
      %v3935 = vor.u32 %v3933, %v3931
      %v3937 = vshll.u32 %v3895, 16
      %v3939 = vrot.slane %v3937, 1
      %v3940 = vsel %vm479, %v3935, %v3939
      %v3941 = vshrl.u32 %v3895, 16
      %v3943 = vor.u32 %v3941, %v3939
      %v3945 = vshll.u32 %v3896, 16
      %v3947 = vrot.slane %v3945, 1
      %v3948 = vsel %vm479, %v3943, %v3947
      %v3949 = vshrl.u32 %v3896, 16
      %v3951 = vor.u32 %v3949, %v3947
      %v3953 = vshll.u32 %v3897, 16
      %v3955 = vrot.slane %v3953, 1
      %v3956 = vsel %vm479, %v3951, %v3955
      %v3957 = vshrl.u32 %v3897, 16
      %v3959 = vor.u32 %v3957, %v3955
      %v3961 = vshll.u32 %v3898, 16
      %v3963 = vrot.slane %v3961, 1
      %v3964 = vsel %vm479, %v3959, %v3963
      %v3965 = vshrl.u32 %v3898, 16
      %v3967 = vor.u32 %v3965, %v3963
      %v3969 = vshll.u32 %v3899, 16
      %v3971 = vrot.slane %v3969, 1
      %v3972 = vsel %vm479, %v3967, %v3971
      %v3973 = vshrl.u32 %v3899, 16
      %v3975 = vor.u32 %v3973, %v3971
      %v3977 = vshll.u32 %v3900, 16
      %v3979 = vrot.slane %v3977, 1
      %v3980 = vsel %vm479, %v3975, %v3979
      %v3981 = vshrl.u32 %v3900, 16
      %v3983 = vor.u32 %v3981, %v3979
      %v3985 = vshll.u32 %v3901, 16
      %v3987 = vrot.slane %v3985, 1
      %v3988 = vsel %vm479, %v3983, %v3987
      %v3989 = vshrl.u32 %v3901, 16
      %v3991 = vor.u32 %v3989, %v3987
      %v3993 = vshll.u32 %v3902, 16
      %v3995 = vrot.slane %v3993, 1
      %v3996 = vsel %vm479, %v3991, %v3995
      %v3997 = vshrl.u32 %v3902, 16
      %v3999 = vor.u32 %v3997, %v3995
      %v4001 = vshll.u32 %v3903, 16
      %v4003 = vrot.slane %v4001, 1
      %v4004 = vsel %vm479, %v3999, %v4003
      %v4005 = vshrl.u32 %v3903, 16
      %v4007 = vor.u32 %v4005, %v4003
      %v4009 = vshll.u32 %v3904, 16
      %v4011 = vrot.slane %v4009, 1
      %v4012 = vsel %vm479, %v4007, %v4011
      %v4017 = vunpack.c.l.b16 %v3833
      %v4018 = vunpack.c.l.b16 %v3834
      %v4019 = vunpack.c.l.b16 %v3835
      %v4020 = vunpack.c.l.b16 %v3836
      %v4021 = vpack.c.b16 %v4018, %v4017
      %v4022 = vpack.c.b16 %v4020, %v4019
      %vm4025 = vcmask 261120
      %v4027 = vsel %vm4025, %v3916, 0
      %v4030 = vsel %vm4025, %v3924, 0
      %v4033 = vsel %vm4025, %v3932, 0
      %v4036 = vsel %vm4025, %v3940, 0
      %v4039 = vsel %vm4025, %v3948, 0
      %v4042 = vsel %vm4025, %v3956, 0
      %v4045 = vsel %vm4025, %v3964, 0
      %v4048 = vsel %vm4025, %v3972, 0
      %v4051 = vsel %vm4025, %v3980, 0
      %v4054 = vsel %vm4025, %v3988, 0
      %v4057 = vsel %vm4025, %v3996, 0
      %v4060 = vsel %vm4025, %v4004, 0
      %v4063 = vsel %vm4025, %v4012, 0
      %4065 = vmatprep.subr.bf16.mxu0 0
      %4066 = vmatpush1.bf16.msra.mxu0 %v4021
      %4067 = vmatprep.subr.bf16.mxu0 0
      %4068 = vmatpush1.bf16.msra.mxu0 %v4022
      %4069 = vmatprep.subr.bf16.mxu0 0
      %4070 = vmatpush1.bf16.msra.mxu0 0
      %4071 = vmatprep.subr.bf16.mxu0 0
      %4072 = vmatpush1.bf16.msra.mxu0 0
      %4073 = vmatprep.subr.bf16.mxu0 0
      %4074 = vmatpush1.bf16.msra.mxu0 0
      %4075 = vmatprep.subr.bf16.mxu0 0
      %4076 = vmatpush1.bf16.msra.mxu0 0
      %4077 = vmatprep.subr.bf16.mxu0 0
      %4078 = vmatpush1.bf16.msra.mxu0 0
      %4079 = vmatprep.subr.bf16.mxu0 0
      %4080 = vmatpush1.bf16.msra.mxu0 0
      %4081 = vmatprep.subr.bf16.mxu0 0
      %4082 = vmatpush1.bf16.msra.mxu0 0
      %4083 = vmatprep.subr.bf16.mxu0 0
      %4084 = vmatpush1.bf16.msra.mxu0 0
      %4085 = vmatprep.subr.bf16.mxu0 0
      %4086 = vmatpush1.bf16.msra.mxu0 0
      %4087 = vmatprep.subr.bf16.mxu0 0
      %4088 = vmatpush1.bf16.msra.mxu0 0
      %4089 = vmatprep.subr.bf16.mxu0 0
      %4090 = vmatpush1.bf16.msra.mxu0 0
      %4091 = vmatprep.subr.bf16.mxu0 0
      %4092 = vmatpush1.bf16.msra.mxu0 0
      %4093 = vmatprep.subr.bf16.mxu0 0
      %4094 = vmatpush1.bf16.msra.mxu0 0
      %4095 = vmatprep.subr.bf16.mxu0 0
      %4096 = vmatpush1.bf16.msra.mxu0 0
      %4097 = vmatprep.mubr.bf16.mxu0 0
      %4098 = vmatmul.mubr.bf16.gmra.mrb[0].mxu0 %v4027
      %v4099 = vpop.f32.mrb[0].mxu0
      %v4100 = vadd.f32 0.0, %v4099
      %v4101 = vpop.f32.mrb[0].mxu0
      %v4102 = vpop.f32.mrb[0].mxu0
      %v4103 = vadd.f32 0.0, %v4102
      %v4104 = vpop.f32.mrb[0].mxu0
      %4105 = vmatprep.mubr.bf16.mxu0 0
      %4106 = vmatmul.mubr.bf16.gmra.mrb[0].mxu0 %v4030
      %v4107 = vpop.f32.mrb[0].mxu0
      %v4108 = vadd.f32 0.0, %v4107
      %v4109 = vpop.f32.mrb[0].mxu0
      %v4110 = vpop.f32.mrb[0].mxu0
      %v4111 = vadd.f32 0.0, %v4110
      %v4112 = vpop.f32.mrb[0].mxu0
      %4113 = vmatprep.mubr.bf16.mxu0 0
      %4114 = vmatmul.mubr.bf16.gmra.mrb[0].mxu0 %v4033
      %v4115 = vpop.f32.mrb[0].mxu0
      %v4116 = vadd.f32 0.0, %v4115
      %v4117 = vpop.f32.mrb[0].mxu0
      %v4118 = vpop.f32.mrb[0].mxu0
      %v4119 = vadd.f32 0.0, %v4118
      %v4120 = vpop.f32.mrb[0].mxu0
      %4121 = vmatprep.mubr.bf16.mxu0 0
      %4122 = vmatmul.mubr.bf16.gmra.mrb[0].mxu0 %v4036
      %v4123 = vpop.f32.mrb[0].mxu0
      %v4124 = vadd.f32 0.0, %v4123
      %v4125 = vpop.f32.mrb[0].mxu0
      %v4126 = vpop.f32.mrb[0].mxu0
      %v4127 = vadd.f32 0.0, %v4126
      %v4128 = vpop.f32.mrb[0].mxu0
      %4129 = vmatprep.mubr.bf16.mxu0 0
      %4130 = vmatmul.mubr.bf16.gmra.mrb[0].mxu0 %v4039
      %v4131 = vpop.f32.mrb[0].mxu0
      %v4132 = vadd.f32 0.0, %v4131
      %v4133 = vpop.f32.mrb[0].mxu0
      %v4134 = vpop.f32.mrb[0].mxu0
      %v4135 = vadd.f32 0.0, %v4134
      %v4136 = vpop.f32.mrb[0].mxu0
      %4137 = vmatprep.mubr.bf16.mxu0 0
      %4138 = vmatmul.mubr.bf16.gmra.mrb[0].mxu0 %v4042
      %v4139 = vpop.f32.mrb[0].mxu0
      %v4140 = vadd.f32 0.0, %v4139
      %v4141 = vpop.f32.mrb[0].mxu0
      %v4142 = vpop.f32.mrb[0].mxu0
      %v4143 = vadd.f32 0.0, %v4142
      %v4144 = vpop.f32.mrb[0].mxu0
      %4145 = vmatprep.mubr.bf16.mxu0 0
      %4146 = vmatmul.mubr.bf16.gmra.mrb[0].mxu0 %v4045
      %v4147 = vpop.f32.mrb[0].mxu0
      %v4148 = vadd.f32 0.0, %v4147
      %v4149 = vpop.f32.mrb[0].mxu0
      %v4150 = vpop.f32.mrb[0].mxu0
      %v4151 = vadd.f32 0.0, %v4150
      %v4152 = vpop.f32.mrb[0].mxu0
      %4153 = vmatprep.mubr.bf16.mxu0 0
      %4154 = vmatmul.mubr.bf16.gmra.mrb[0].mxu0 %v4048
      %v4155 = vpop.f32.mrb[0].mxu0
      %v4156 = vadd.f32 0.0, %v4155
      %v4157 = vpop.f32.mrb[0].mxu0
      %v4158 = vpop.f32.mrb[0].mxu0
      %v4159 = vadd.f32 0.0, %v4158
      %v4160 = vpop.f32.mrb[0].mxu0
      %4161 = vmatprep.mubr.bf16.mxu0 0
      %4162 = vmatmul.mubr.bf16.gmra.mrb[0].mxu0 %v4051
      %v4163 = vpop.f32.mrb[0].mxu0
      %v4164 = vadd.f32 0.0, %v4163
      %v4165 = vpop.f32.mrb[0].mxu0
      %v4166 = vpop.f32.mrb[0].mxu0
      %v4167 = vadd.f32 0.0, %v4166
      %v4168 = vpop.f32.mrb[0].mxu0
      %4169 = vmatprep.mubr.bf16.mxu0 0
      %4170 = vmatmul.mubr.bf16.gmra.mrb[0].mxu0 %v4054
      %v4171 = vpop.f32.mrb[0].mxu0
      %v4172 = vadd.f32 0.0, %v4171
      %v4173 = vpop.f32.mrb[0].mxu0
      %v4174 = vpop.f32.mrb[0].mxu0
      %v4175 = vadd.f32 0.0, %v4174
      %v4176 = vpop.f32.mrb[0].mxu0
      %4177 = vmatprep.mubr.bf16.mxu0 0
      %4178 = vmatmul.mubr.bf16.gmra.mrb[0].mxu0 %v4057
      %v4179 = vpop.f32.mrb[0].mxu0
      %v4180 = vadd.f32 0.0, %v4179
      %v4181 = vpop.f32.mrb[0].mxu0
      %v4182 = vpop.f32.mrb[0].mxu0
      %v4183 = vadd.f32 0.0, %v4182
      %v4184 = vpop.f32.mrb[0].mxu0
      %4185 = vmatprep.mubr.bf16.mxu0 0
      %4186 = vmatmul.mubr.bf16.gmra.mrb[0].mxu0 %v4060
      %v4187 = vpop.f32.mrb[0].mxu0
      %v4188 = vadd.f32 0.0, %v4187
      %v4189 = vpop.f32.mrb[0].mxu0
      %v4190 = vpop.f32.mrb[0].mxu0
      %v4191 = vadd.f32 0.0, %v4190
      %v4192 = vpop.f32.mrb[0].mxu0
      %4193 = vmatprep.mubr.bf16.mxu0 0
      %4194 = vmatmul.mubr.bf16.gmra.mrb[0].mxu0 %v4063
      %v4195 = vpop.f32.mrb[0].mxu0
      %v4196 = vadd.f32 0.0, %v4195
      %v4197 = vpop.f32.mrb[0].mxu0
      %v4198 = vpop.f32.mrb[0].mxu0
      %v4199 = vadd.f32 0.0, %v4198
      %v4200 = vpop.f32.mrb[0].mxu0
      %4201 = vdwg.mxu0
      %v4206 = vunpack.c.l.b16 %v3828
      %v4207 = vunpack.c.l.b16 %v3829
      %v4208 = vunpack.c.l.b16 %v3830
      %v4209 = vunpack.c.l.b16 %v3831
      %v4210 = vpack.c.b16 %v4207, %v4206
      %v4211 = vpack.c.b16 %v4209, %v4208
      %v4214 = vsel %vm4025, %v3891, 0
      %v4216 = vsel %vm4025, %v3892, 0
      %v4218 = vsel %vm4025, %v3893, 0
      %v4220 = vsel %vm4025, %v3894, 0
      %v4222 = vsel %vm4025, %v3895, 0
      %v4224 = vsel %vm4025, %v3896, 0
      %v4226 = vsel %vm4025, %v3897, 0
      %v4228 = vsel %vm4025, %v3898, 0
      %v4230 = vsel %vm4025, %v3899, 0
      %v4232 = vsel %vm4025, %v3900, 0
      %v4234 = vsel %vm4025, %v3901, 0
      %v4236 = vsel %vm4025, %v3902, 0
      %v4238 = vsel %vm4025, %v3903, 0
      %4240 = vmatprep.subr.bf16.mxu0 0
      %4241 = vmatpush1.bf16.msra.mxu0 %v4210
      %4242 = vmatprep.subr.bf16.mxu0 0
      %4243 = vmatpush1.bf16.msra.mxu0 %v4211
      %4244 = vmatprep.subr.bf16.mxu0 0
      %4245 = vmatpush1.bf16.msra.mxu0 0
      %4246 = vmatprep.subr.bf16.mxu0 0
      %4247 = vmatpush1.bf16.msra.mxu0 0
      %4248 = vmatprep.subr.bf16.mxu0 0
      %4249 = vmatpush1.bf16.msra.mxu0 0
      %4250 = vmatprep.subr.bf16.mxu0 0
      %4251 = vmatpush1.bf16.msra.mxu0 0
      %4252 = vmatprep.subr.bf16.mxu0 0
      %4253 = vmatpush1.bf16.msra.mxu0 0
      %4254 = vmatprep.subr.bf16.mxu0 0
      %4255 = vmatpush1.bf16.msra.mxu0 0
      %4256 = vmatprep.subr.bf16.mxu0 0
      %4257 = vmatpush1.bf16.msra.mxu0 0
      %4258 = vmatprep.subr.bf16.mxu0 0
      %4259 = vmatpush1.bf16.msra.mxu0 0
      %4260 = vmatprep.subr.bf16.mxu0 0
      %4261 = vmatpush1.bf16.msra.mxu0 0
      %4262 = vmatprep.subr.bf16.mxu0 0
      %4263 = vmatpush1.bf16.msra.mxu0 0
      %4264 = vmatprep.subr.bf16.mxu0 0
      %4265 = vmatpush1.bf16.msra.mxu0 0
      %4266 = vmatprep.subr.bf16.mxu0 0
      %4267 = vmatpush1.bf16.msra.mxu0 0
      %4268 = vmatprep.subr.bf16.mxu0 0
      %4269 = vmatpush1.bf16.msra.mxu0 0
      %4270 = vmatprep.subr.bf16.mxu0 0
      %4271 = vmatpush1.bf16.msra.mxu0 0
      %4272 = vmatprep.mubr.bf16.mxu0 0
      %4273 = vmatmul.mubr.bf16.gmra.mrb[0].mxu0 %v4214
      %v4274 = vpop.f32.mrb[0].mxu0
      %v4275 = vadd.f32 %v4100, %v4274
      %v4276 = vpop.f32.mrb[0].mxu0
      %v4277 = vpop.f32.mrb[0].mxu0
      %v4278 = vadd.f32 %v4103, %v4277
      %v4279 = vpop.f32.mrb[0].mxu0
      %4280 = vmatprep.mubr.bf16.mxu0 0
      %4281 = vmatmul.mubr.bf16.gmra.mrb[0].mxu0 %v4216
      %v4282 = vpop.f32.mrb[0].mxu0
      %v4283 = vadd.f32 %v4108, %v4282
      %v4284 = vpop.f32.mrb[0].mxu0
      %v4285 = vpop.f32.mrb[0].mxu0
      %v4286 = vadd.f32 %v4111, %v4285
      %v4287 = vpop.f32.mrb[0].mxu0
      %4288 = vmatprep.mubr.bf16.mxu0 0
      %4289 = vmatmul.mubr.bf16.gmra.mrb[0].mxu0 %v4218
      %v4290 = vpop.f32.mrb[0].mxu0
      %v4291 = vadd.f32 %v4116, %v4290
      %v4292 = vpop.f32.mrb[0].mxu0
      %v4293 = vpop.f32.mrb[0].mxu0
      %v4294 = vadd.f32 %v4119, %v4293
      %v4295 = vpop.f32.mrb[0].mxu0
      %4296 = vmatprep.mubr.bf16.mxu0 0
      %4297 = vmatmul.mubr.bf16.gmra.mrb[0].mxu0 %v4220
      %v4298 = vpop.f32.mrb[0].mxu0
      %v4299 = vadd.f32 %v4124, %v4298
      %v4300 = vpop.f32.mrb[0].mxu0
      %v4301 = vpop.f32.mrb[0].mxu0
      %v4302 = vadd.f32 %v4127, %v4301
      %v4303 = vpop.f32.mrb[0].mxu0
      %4304 = vmatprep.mubr.bf16.mxu0 0
      %4305 = vmatmul.mubr.bf16.gmra.mrb[0].mxu0 %v4222
      %v4306 = vpop.f32.mrb[0].mxu0
      %v4307 = vadd.f32 %v4132, %v4306
      %v4308 = vpop.f32.mrb[0].mxu0
      %v4309 = vpop.f32.mrb[0].mxu0
      %v4310 = vadd.f32 %v4135, %v4309
      %v4311 = vpop.f32.mrb[0].mxu0
      %4312 = vmatprep.mubr.bf16.mxu0 0
      %4313 = vmatmul.mubr.bf16.gmra.mrb[0].mxu0 %v4224
      %v4314 = vpop.f32.mrb[0].mxu0
      %v4315 = vadd.f32 %v4140, %v4314
      %v4316 = vpop.f32.mrb[0].mxu0
      %v4317 = vpop.f32.mrb[0].mxu0
      %v4318 = vadd.f32 %v4143, %v4317
      %v4319 = vpop.f32.mrb[0].mxu0
      %4320 = vmatprep.mubr.bf16.mxu0 0
      %4321 = vmatmul.mubr.bf16.gmra.mrb[0].mxu0 %v4226
      %v4322 = vpop.f32.mrb[0].mxu0
      %v4323 = vadd.f32 %v4148, %v4322
      %v4324 = vpop.f32.mrb[0].mxu0
      %v4325 = vpop.f32.mrb[0].mxu0
      %v4326 = vadd.f32 %v4151, %v4325
      %v4327 = vpop.f32.mrb[0].mxu0
      %4328 = vmatprep.mubr.bf16.mxu0 0
      %4329 = vmatmul.mubr.bf16.gmra.mrb[0].mxu0 %v4228
      %v4330 = vpop.f32.mrb[0].mxu0
      %v4331 = vadd.f32 %v4156, %v4330
      %v4332 = vpop.f32.mrb[0].mxu0
      %v4333 = vpop.f32.mrb[0].mxu0
      %v4334 = vadd.f32 %v4159, %v4333
      %v4335 = vpop.f32.mrb[0].mxu0
      %4336 = vmatprep.mubr.bf16.mxu0 0
      %4337 = vmatmul.mubr.bf16.gmra.mrb[0].mxu0 %v4230
      %v4338 = vpop.f32.mrb[0].mxu0
      %v4339 = vadd.f32 %v4164, %v4338
      %v4340 = vpop.f32.mrb[0].mxu0
      %v4341 = vpop.f32.mrb[0].mxu0
      %v4342 = vadd.f32 %v4167, %v4341
      %v4343 = vpop.f32.mrb[0].mxu0
      %4344 = vmatprep.mubr.bf16.mxu0 0
      %4345 = vmatmul.mubr.bf16.gmra.mrb[0].mxu0 %v4232
      %v4346 = vpop.f32.mrb[0].mxu0
      %v4347 = vadd.f32 %v4172, %v4346
      %v4348 = vpop.f32.mrb[0].mxu0
      %v4349 = vpop.f32.mrb[0].mxu0
      %v4350 = vadd.f32 %v4175, %v4349
      %v4351 = vpop.f32.mrb[0].mxu0
      %4352 = vmatprep.mubr.bf16.mxu0 0
      %4353 = vmatmul.mubr.bf16.gmra.mrb[0].mxu0 %v4234
      %v4354 = vpop.f32.mrb[0].mxu0
      %v4355 = vadd.f32 %v4180, %v4354
      %v4356 = vpop.f32.mrb[0].mxu0
      %v4357 = vpop.f32.mrb[0].mxu0
      %v4358 = vadd.f32 %v4183, %v4357
      %v4359 = vpop.f32.mrb[0].mxu0
      %4360 = vmatprep.mubr.bf16.mxu0 0
      %4361 = vmatmul.mubr.bf16.gmra.mrb[0].mxu0 %v4236
      %v4362 = vpop.f32.mrb[0].mxu0
      %v4363 = vadd.f32 %v4188, %v4362
      %v4364 = vpop.f32.mrb[0].mxu0
      %v4365 = vpop.f32.mrb[0].mxu0
      %v4366 = vadd.f32 %v4191, %v4365
      %v4367 = vpop.f32.mrb[0].mxu0
      %4368 = vmatprep.mubr.bf16.mxu0 0
      %4369 = vmatmul.mubr.bf16.gmra.mrb[0].mxu0 %v4238
      %v4370 = vpop.f32.mrb[0].mxu0
      %v4371 = vadd.f32 %v4196, %v4370
      %v4372 = vpop.f32.mrb[0].mxu0
      %v4373 = vpop.f32.mrb[0].mxu0
      %v4374 = vadd.f32 %v4199, %v4373
      %v4375 = vpop.f32.mrb[0].mxu0
      %4376 = vdwg.mxu0
      %v4377 = vld [vmem:[%s347] sm:$0xe]
      %v4378 = vld [vmem:[%s3 + $0x20] sm:$0xf]
      %v4379 = vld [vmem:[%s3 + $0x24] sm:$0xf]
      %v4380 = vld [vmem:[%s3 + $0x28] sm:$0xf]
      %v4381 = vld [vmem:[%s3 + $0x2c] sm:$0xf]
      %v4383 = vunpack.c.l.b16 %v4377
      %v4384 = vpack.c.b16 %v3865, %v4383
      %v4385 = vrot.slane %v4384, 1
      %v4386 = vrot.slane %v3892, 1
      %v4387 = vsel %vm1033, %v4385, %v4386
      %v4388 = vrot.slane %v3893, 1
      %v4389 = vsel %vm1033, %v4386, %v4388
      %v4390 = vrot.slane %v3894, 1
      %v4391 = vsel %vm1033, %v4388, %v4390
      %v4392 = vrot.slane %v3895, 1
      %v4393 = vsel %vm1033, %v4390, %v4392
      %v4394 = vrot.slane %v3896, 1
      %v4395 = vsel %vm1033, %v4392, %v4394
      %v4396 = vrot.slane %v3897, 1
      %v4397 = vsel %vm1033, %v4394, %v4396
      %v4398 = vrot.slane %v3898, 1
      %v4399 = vsel %vm1033, %v4396, %v4398
      %v4400 = vrot.slane %v3899, 1
      %v4401 = vsel %vm1033, %v4398, %v4400
      %v4402 = vrot.slane %v3900, 1
      %v4403 = vsel %vm1033, %v4400, %v4402
      %v4404 = vrot.slane %v3901, 1
      %v4405 = vsel %vm1033, %v4402, %v4404
      %v4406 = vrot.slane %v3902, 1
      %v4407 = vsel %vm1033, %v4404, %v4406
      %v4408 = vrot.slane %v3903, 1
      %v4409 = vsel %vm1033, %v4406, %v4408
      %v4410 = vrot.slane %v3904, 1
      %v4411 = vsel %vm1033, %v4408, %v4410
      %v4416 = vunpack.c.l.b16 %v4378
      %v4417 = vunpack.c.l.b16 %v4379
      %v4418 = vunpack.c.l.b16 %v4380
      %v4419 = vunpack.c.l.b16 %v4381
      %v4420 = vpack.c.b16 %v4417, %v4416
      %v4421 = vpack.c.b16 %v4419, %v4418
      %v4425 = vsel %vm4025, %v4387, 0
      %v4428 = vsel %vm4025, %v4389, 0
      %v4431 = vsel %vm4025, %v4391, 0
      %v4434 = vsel %vm4025, %v4393, 0
      %v4437 = vsel %vm4025, %v4395, 0
      %v4440 = vsel %vm4025, %v4397, 0
      %v4443 = vsel %vm4025, %v4399, 0
      %v4446 = vsel %vm4025, %v4401, 0
      %v4449 = vsel %vm4025, %v4403, 0
      %v4452 = vsel %vm4025, %v4405, 0
      %v4455 = vsel %vm4025, %v4407, 0
      %v4458 = vsel %vm4025, %v4409, 0
      %v4461 = vsel %vm4025, %v4411, 0
      %4463 = vmatprep.subr.bf16.mxu0 0
      %4464 = vmatpush1.bf16.msra.mxu0 %v4420
      %4465 = vmatprep.subr.bf16.mxu0 0
      %4466 = vmatpush1.bf16.msra.mxu0 %v4421
      %4467 = vmatprep.subr.bf16.mxu0 0
      %4468 = vmatpush1.bf16.msra.mxu0 0
      %4469 = vmatprep.subr.bf16.mxu0 0
      %4470 = vmatpush1.bf16.msra.mxu0 0
      %4471 = vmatprep.subr.bf16.mxu0 0
      %4472 = vmatpush1.bf16.msra.mxu0 0
      %4473 = vmatprep.subr.bf16.mxu0 0
      %4474 = vmatpush1.bf16.msra.mxu0 0
      %4475 = vmatprep.subr.bf16.mxu0 0
      %4476 = vmatpush1.bf16.msra.mxu0 0
      %4477 = vmatprep.subr.bf16.mxu0 0
      %4478 = vmatpush1.bf16.msra.mxu0 0
      %4479 = vmatprep.subr.bf16.mxu0 0
      %4480 = vmatpush1.bf16.msra.mxu0 0
      %4481 = vmatprep.subr.bf16.mxu0 0
      %4482 = vmatpush1.bf16.msra.mxu0 0
      %4483 = vmatprep.subr.bf16.mxu0 0
      %4484 = vmatpush1.bf16.msra.mxu0 0
      %4485 = vmatprep.subr.bf16.mxu0 0
      %4486 = vmatpush1.bf16.msra.mxu0 0
      %4487 = vmatprep.subr.bf16.mxu0 0
      %4488 = vmatpush1.bf16.msra.mxu0 0
      %4489 = vmatprep.subr.bf16.mxu0 0
      %4490 = vmatpush1.bf16.msra.mxu0 0
      %4491 = vmatprep.subr.bf16.mxu0 0
      %4492 = vmatpush1.bf16.msra.mxu0 0
      %4493 = vmatprep.subr.bf16.mxu0 0
      %4494 = vmatpush1.bf16.msra.mxu0 0
      %4495 = vmatprep.mubr.bf16.mxu0 0
      %4496 = vmatmul.mubr.bf16.gmra.mrb[0].mxu0 %v4425
      %v4497 = vpop.f32.mrb[0].mxu0
      %v4498 = vadd.f32 0.0, %v4497
      %v4499 = vpop.f32.mrb[0].mxu0
      %v4500 = vpop.f32.mrb[0].mxu0
      %v4501 = vadd.f32 0.0, %v4500
      %v4502 = vpop.f32.mrb[0].mxu0
      %4503 = vmatprep.mubr.bf16.mxu0 0
      %4504 = vmatmul.mubr.bf16.gmra.mrb[0].mxu0 %v4428
      %v4505 = vpop.f32.mrb[0].mxu0
      %v4506 = vadd.f32 0.0, %v4505
      %v4507 = vpop.f32.mrb[0].mxu0
      %v4508 = vpop.f32.mrb[0].mxu0
      %v4509 = vadd.f32 0.0, %v4508
      %v4510 = vpop.f32.mrb[0].mxu0
      %4511 = vmatprep.mubr.bf16.mxu0 0
      %4512 = vmatmul.mubr.bf16.gmra.mrb[0].mxu0 %v4431
      %v4513 = vpop.f32.mrb[0].mxu0
      %v4514 = vadd.f32 0.0, %v4513
      %v4515 = vpop.f32.mrb[0].mxu0
      %v4516 = vpop.f32.mrb[0].mxu0
      %v4517 = vadd.f32 0.0, %v4516
      %v4518 = vpop.f32.mrb[0].mxu0
      %4519 = vmatprep.mubr.bf16.mxu0 0
      %4520 = vmatmul.mubr.bf16.gmra.mrb[0].mxu0 %v4434
      %v4521 = vpop.f32.mrb[0].mxu0
      %v4522 = vadd.f32 0.0, %v4521
      %v4523 = vpop.f32.mrb[0].mxu0
      %v4524 = vpop.f32.mrb[0].mxu0
      %v4525 = vadd.f32 0.0, %v4524
      %v4526 = vpop.f32.mrb[0].mxu0
      %4527 = vmatprep.mubr.bf16.mxu0 0
      %4528 = vmatmul.mubr.bf16.gmra.mrb[0].mxu0 %v4437
      %v4529 = vpop.f32.mrb[0].mxu0
      %v4530 = vadd.f32 0.0, %v4529
      %v4531 = vpop.f32.mrb[0].mxu0
      %v4532 = vpop.f32.mrb[0].mxu0
      %v4533 = vadd.f32 0.0, %v4532
      %v4534 = vpop.f32.mrb[0].mxu0
      %4535 = vmatprep.mubr.bf16.mxu0 0
      %4536 = vmatmul.mubr.bf16.gmra.mrb[0].mxu0 %v4440
      %v4537 = vpop.f32.mrb[0].mxu0
      %v4538 = vadd.f32 0.0, %v4537
      %v4539 = vpop.f32.mrb[0].mxu0
      %v4540 = vpop.f32.mrb[0].mxu0
      %v4541 = vadd.f32 0.0, %v4540
      %v4542 = vpop.f32.mrb[0].mxu0
      %4543 = vmatprep.mubr.bf16.mxu0 0
      %4544 = vmatmul.mubr.bf16.gmra.mrb[0].mxu0 %v4443
      %v4545 = vpop.f32.mrb[0].mxu0
      %v4546 = vadd.f32 0.0, %v4545
      %v4547 = vpop.f32.mrb[0].mxu0
      %v4548 = vpop.f32.mrb[0].mxu0
      %v4549 = vadd.f32 0.0, %v4548
      %v4550 = vpop.f32.mrb[0].mxu0
      %4551 = vmatprep.mubr.bf16.mxu0 0
      %4552 = vmatmul.mubr.bf16.gmra.mrb[0].mxu0 %v4446
      %v4553 = vpop.f32.mrb[0].mxu0
      %v4554 = vadd.f32 0.0, %v4553
      %v4555 = vpop.f32.mrb[0].mxu0
      %v4556 = vpop.f32.mrb[0].mxu0
      %v4557 = vadd.f32 0.0, %v4556
      %v4558 = vpop.f32.mrb[0].mxu0
      %4559 = vmatprep.mubr.bf16.mxu0 0
      %4560 = vmatmul.mubr.bf16.gmra.mrb[0].mxu0 %v4449
      %v4561 = vpop.f32.mrb[0].mxu0
      %v4562 = vadd.f32 0.0, %v4561
      %v4563 = vpop.f32.mrb[0].mxu0
      %v4564 = vpop.f32.mrb[0].mxu0
      %v4565 = vadd.f32 0.0, %v4564
      %v4566 = vpop.f32.mrb[0].mxu0
      %4567 = vmatprep.mubr.bf16.mxu0 0
      %4568 = vmatmul.mubr.bf16.gmra.mrb[0].mxu0 %v4452
      %v4569 = vpop.f32.mrb[0].mxu0
      %v4570 = vadd.f32 0.0, %v4569
      %v4571 = vpop.f32.mrb[0].mxu0
      %v4572 = vpop.f32.mrb[0].mxu0
      %v4573 = vadd.f32 0.0, %v4572
      %v4574 = vpop.f32.mrb[0].mxu0
      %4575 = vmatprep.mubr.bf16.mxu0 0
      %4576 = vmatmul.mubr.bf16.gmra.mrb[0].mxu0 %v4455
      %v4577 = vpop.f32.mrb[0].mxu0
      %v4578 = vadd.f32 0.0, %v4577
      %v4579 = vpop.f32.mrb[0].mxu0
      %v4580 = vpop.f32.mrb[0].mxu0
      %v4581 = vadd.f32 0.0, %v4580
      %v4582 = vpop.f32.mrb[0].mxu0
      %4583 = vmatprep.mubr.bf16.mxu0 0
      %4584 = vmatmul.mubr.bf16.gmra.mrb[0].mxu0 %v4458
      %v4585 = vpop.f32.mrb[0].mxu0
      %v4586 = vadd.f32 0.0, %v4585
      %v4587 = vpop.f32.mrb[0].mxu0
      %v4588 = vpop.f32.mrb[0].mxu0
      %v4589 = vadd.f32 0.0, %v4588
      %v4590 = vpop.f32.mrb[0].mxu0
      %4591 = vmatprep.mubr.bf16.mxu0 0
      %4592 = vmatmul.mubr.bf16.gmra.mrb[0].mxu0 %v4461
      %v4593 = vpop.f32.mrb[0].mxu0
      %v4594 = vadd.f32 0.0, %v4593
      %v4595 = vpop.f32.mrb[0].mxu0
      %v4596 = vpop.f32.mrb[0].mxu0
      %v4597 = vadd.f32 0.0, %v4596
      %v4598 = vpop.f32.mrb[0].mxu0
      %4599 = vdwg.mxu0
      %v4600 = vadd.f32 %v4275, %v4498
      %v4601 = vadd.f32 %v4278, %v4501
      %v4602 = vadd.f32 %v4283, %v4506
      %v4603 = vadd.f32 %v4286, %v4509
      %v4604 = vadd.f32 %v4291, %v4514
      %v4605 = vadd.f32 %v4294, %v4517
      %v4606 = vadd.f32 %v4299, %v4522
      %v4607 = vadd.f32 %v4302, %v4525
      %v4608 = vadd.f32 %v4307, %v4530
      %v4609 = vadd.f32 %v4310, %v4533
      %v4610 = vadd.f32 %v4315, %v4538
      %v4611 = vadd.f32 %v4318, %v4541
      %v4612 = vadd.f32 %v4323, %v4546
      %v4613 = vadd.f32 %v4326, %v4549
      %v4614 = vadd.f32 %v4331, %v4554
      %v4615 = vadd.f32 %v4334, %v4557
      %v4616 = vadd.f32 %v4339, %v4562
      %v4617 = vadd.f32 %v4342, %v4565
      %v4618 = vadd.f32 %v4347, %v4570
      %v4619 = vadd.f32 %v4350, %v4573
      %v4620 = vadd.f32 %v4355, %v4578
      %v4621 = vadd.f32 %v4358, %v4581
      %v4622 = vadd.f32 %v4363, %v4586
      %v4623 = vadd.f32 %v4366, %v4589
      %v4624 = vadd.f32 %v4371, %v4594
      %v4625 = vadd.f32 %v4374, %v4597
      %v4626 = vld [vmem:[%s347 + $0x8] sm:$0xf]
      %v4627 = vld [vmem:[%s347 + $0xc] sm:$0xf]
      %v4628 = vld [vmem:[%s347 + $0x10] sm:$0xf]
      %v4629 = vld [vmem:[%s347 + $0x14] sm:$0xf]
      %v4630 = vld [vmem:[%s347 + $0x18] sm:$0xf]
      %v4631 = vld [vmem:[%s347 + $0x1c] sm:$0xf]
      %v4632 = vld [vmem:[%s347 + $0x20] sm:$0xf]
      %v4633 = vld [vmem:[%s347 + $0x24] sm:$0xf]
      %v4634 = vld [vmem:[%s347 + $0x28] sm:$0xf]
      %v4635 = vld [vmem:[%s347 + $0x2c] sm:$0xf]
      %v4636 = vld [vmem:[%s347 + $0x30] sm:$0xf]
      %v4637 = vld [vmem:[%s347 + $0x34] sm:$0xf]
      %v4638 = vld [vmem:[%s347 + $0x38] sm:$0xf]
      %v4639 = vld [vmem:[%s347 + $0x3c] sm:$0xf]
      %v4640 = vld [vmem:[%s347 + $0x40] sm:$0xf]
      %v4641 = vld [vmem:[%s347 + $0x44] sm:$0xf]
      %v4642 = vld [vmem:[%s347 + $0x48] sm:$0xf]
      %v4643 = vld [vmem:[%s347 + $0x4c] sm:$0xf]
      %v4644 = vld [vmem:[%s347 + $0x50] sm:$0xf]
      %v4645 = vld [vmem:[%s347 + $0x54] sm:$0xf]
      %v4646 = vld [vmem:[%s347 + $0x58] sm:$0xf]
      %v4647 = vld [vmem:[%s347 + $0x5c] sm:$0xf]
      %v4648 = vld [vmem:[%s347 + $0x60] sm:$0xf]
      %v4649 = vld [vmem:[%s347 + $0x64] sm:$0xf]
      %v4650 = vld [vmem:[%s347 + $0x68] sm:$0xf]
      %v4651 = vld [vmem:[%s347 + $0x6c] sm:$0xf]
      %v4652 = vld [vmem:[%s3 + $0x30] sm:$0xf]
      %v4653 = vld [vmem:[%s3 + $0x34] sm:$0xf]
      %v4654 = vld [vmem:[%s3 + $0x38] sm:$0xf]
      %v4655 = vld [vmem:[%s3 + $0x3c] sm:$0xf]
      %v4682 = vunpack.c.l.b16 %v4626
      %v4683 = vunpack.c.l.b16 %v4627
      %v4684 = vunpack.c.l.b16 %v4628
      %v4685 = vunpack.c.l.b16 %v4629
      %v4686 = vunpack.c.l.b16 %v4630
      %v4687 = vunpack.c.l.b16 %v4631
      %v4688 = vunpack.c.l.b16 %v4632
      %v4689 = vunpack.c.l.b16 %v4633
      %v4690 = vunpack.c.l.b16 %v4634
      %v4691 = vunpack.c.l.b16 %v4635
      %v4692 = vunpack.c.l.b16 %v4636
      %v4693 = vunpack.c.l.b16 %v4637
      %v4694 = vunpack.c.l.b16 %v4638
      %v4695 = vunpack.c.l.b16 %v4639
      %v4696 = vunpack.c.l.b16 %v4640
      %v4697 = vunpack.c.l.b16 %v4641
      %v4698 = vunpack.c.l.b16 %v4642
      %v4699 = vunpack.c.l.b16 %v4643
      %v4700 = vunpack.c.l.b16 %v4644
      %v4701 = vunpack.c.l.b16 %v4645
      %v4702 = vunpack.c.l.b16 %v4646
      %v4703 = vunpack.c.l.b16 %v4647
      %v4704 = vunpack.c.l.b16 %v4648
      %v4705 = vunpack.c.l.b16 %v4649
      %v4706 = vunpack.c.l.b16 %v4650
      %v4707 = vunpack.c.l.b16 %v4651
      %v4708 = vpack.c.b16 %v4683, %v4682
      %v4709 = vpack.c.b16 %v4685, %v4684
      %v4710 = vpack.c.b16 %v4687, %v4686
      %v4711 = vpack.c.b16 %v4689, %v4688
      %v4712 = vpack.c.b16 %v4691, %v4690
      %v4713 = vpack.c.b16 %v4693, %v4692
      %v4714 = vpack.c.b16 %v4695, %v4694
      %v4715 = vpack.c.b16 %v4697, %v4696
      %v4716 = vpack.c.b16 %v4699, %v4698
      %v4717 = vpack.c.b16 %v4701, %v4700
      %v4718 = vpack.c.b16 %v4703, %v4702
      %v4719 = vpack.c.b16 %v4705, %v4704
      %v4720 = vpack.c.b16 %v4707, %v4706
      %v4725 = vunpack.c.l.b16 %v4652
      %v4726 = vunpack.c.l.b16 %v4653
      %v4727 = vunpack.c.l.b16 %v4654
      %v4728 = vunpack.c.l.b16 %v4655
      %v4729 = vpack.c.b16 %v4726, %v4725
      %v4730 = vpack.c.b16 %v4728, %v4727
      %v4734 = vsel %vm4025, %v4708, 0
      %v4737 = vsel %vm4025, %v4709, 0
      %v4740 = vsel %vm4025, %v4710, 0
      %v4743 = vsel %vm4025, %v4711, 0
      %v4746 = vsel %vm4025, %v4712, 0
      %v4749 = vsel %vm4025, %v4713, 0
      %v4752 = vsel %vm4025, %v4714, 0
      %v4755 = vsel %vm4025, %v4715, 0
      %v4758 = vsel %vm4025, %v4716, 0
      %v4761 = vsel %vm4025, %v4717, 0
      %v4764 = vsel %vm4025, %v4718, 0
      %v4767 = vsel %vm4025, %v4719, 0
      %v4770 = vsel %vm4025, %v4720, 0
      %4772 = vmatprep.subr.bf16.mxu0 0
      %4773 = vmatpush1.bf16.msra.mxu0 %v4729
      %4774 = vmatprep.subr.bf16.mxu0 0
      %4775 = vmatpush1.bf16.msra.mxu0 %v4730
      %4776 = vmatprep.subr.bf16.mxu0 0
      %4777 = vmatpush1.bf16.msra.mxu0 0
      %4778 = vmatprep.subr.bf16.mxu0 0
      %4779 = vmatpush1.bf16.msra.mxu0 0
      %4780 = vmatprep.subr.bf16.mxu0 0
      %4781 = vmatpush1.bf16.msra.mxu0 0
      %4782 = vmatprep.subr.bf16.mxu0 0
      %4783 = vmatpush1.bf16.msra.mxu0 0
      %4784 = vmatprep.subr.bf16.mxu0 0
      %4785 = vmatpush1.bf16.msra.mxu0 0
      %4786 = vmatprep.subr.bf16.mxu0 0
      %4787 = vmatpush1.bf16.msra.mxu0 0
      %4788 = vmatprep.subr.bf16.mxu0 0
      %4789 = vmatpush1.bf16.msra.mxu0 0
      %4790 = vmatprep.subr.bf16.mxu0 0
      %4791 = vmatpush1.bf16.msra.mxu0 0
      %4792 = vmatprep.subr.bf16.mxu0 0
      %4793 = vmatpush1.bf16.msra.mxu0 0
      %4794 = vmatprep.subr.bf16.mxu0 0
      %4795 = vmatpush1.bf16.msra.mxu0 0
      %4796 = vmatprep.subr.bf16.mxu0 0
      %4797 = vmatpush1.bf16.msra.mxu0 0
      %4798 = vmatprep.subr.bf16.mxu0 0
      %4799 = vmatpush1.bf16.msra.mxu0 0
      %4800 = vmatprep.subr.bf16.mxu0 0
      %4801 = vmatpush1.bf16.msra.mxu0 0
      %4802 = vmatprep.subr.bf16.mxu0 0
      %4803 = vmatpush1.bf16.msra.mxu0 0
      %4804 = vmatprep.mubr.bf16.mxu0 0
      %4805 = vmatmul.mubr.bf16.gmra.mrb[0].mxu0 %v4734
      %v4806 = vpop.f32.mrb[0].mxu0
      %v4807 = vadd.f32 0.0, %v4806
      %v4808 = vpop.f32.mrb[0].mxu0
      %v4809 = vpop.f32.mrb[0].mxu0
      %v4810 = vadd.f32 0.0, %v4809
      %v4811 = vpop.f32.mrb[0].mxu0
      %4812 = vmatprep.mubr.bf16.mxu0 0
      %4813 = vmatmul.mubr.bf16.gmra.mrb[0].mxu0 %v4737
      %v4814 = vpop.f32.mrb[0].mxu0
      %v4815 = vadd.f32 0.0, %v4814
      %v4816 = vpop.f32.mrb[0].mxu0
      %v4817 = vpop.f32.mrb[0].mxu0
      %v4818 = vadd.f32 0.0, %v4817
      %v4819 = vpop.f32.mrb[0].mxu0
      %4820 = vmatprep.mubr.bf16.mxu0 0
      %4821 = vmatmul.mubr.bf16.gmra.mrb[0].mxu0 %v4740
      %v4822 = vpop.f32.mrb[0].mxu0
      %v4823 = vadd.f32 0.0, %v4822
      %v4824 = vpop.f32.mrb[0].mxu0
      %v4825 = vpop.f32.mrb[0].mxu0
      %v4826 = vadd.f32 0.0, %v4825
      %v4827 = vpop.f32.mrb[0].mxu0
      %4828 = vmatprep.mubr.bf16.mxu0 0
      %4829 = vmatmul.mubr.bf16.gmra.mrb[0].mxu0 %v4743
      %v4830 = vpop.f32.mrb[0].mxu0
      %v4831 = vadd.f32 0.0, %v4830
      %v4832 = vpop.f32.mrb[0].mxu0
      %v4833 = vpop.f32.mrb[0].mxu0
      %v4834 = vadd.f32 0.0, %v4833
      %v4835 = vpop.f32.mrb[0].mxu0
      %4836 = vmatprep.mubr.bf16.mxu0 0
      %4837 = vmatmul.mubr.bf16.gmra.mrb[0].mxu0 %v4746
      %v4838 = vpop.f32.mrb[0].mxu0
      %v4839 = vadd.f32 0.0, %v4838
      %v4840 = vpop.f32.mrb[0].mxu0
      %v4841 = vpop.f32.mrb[0].mxu0
      %v4842 = vadd.f32 0.0, %v4841
      %v4843 = vpop.f32.mrb[0].mxu0
      %4844 = vmatprep.mubr.bf16.mxu0 0
      %4845 = vmatmul.mubr.bf16.gmra.mrb[0].mxu0 %v4749
      %v4846 = vpop.f32.mrb[0].mxu0
      %v4847 = vadd.f32 0.0, %v4846
      %v4848 = vpop.f32.mrb[0].mxu0
      %v4849 = vpop.f32.mrb[0].mxu0
      %v4850 = vadd.f32 0.0, %v4849
      %v4851 = vpop.f32.mrb[0].mxu0
      %4852 = vmatprep.mubr.bf16.mxu0 0
      %4853 = vmatmul.mubr.bf16.gmra.mrb[0].mxu0 %v4752
      %v4854 = vpop.f32.mrb[0].mxu0
      %v4855 = vadd.f32 0.0, %v4854
      %v4856 = vpop.f32.mrb[0].mxu0
      %v4857 = vpop.f32.mrb[0].mxu0
      %v4858 = vadd.f32 0.0, %v4857
      %v4859 = vpop.f32.mrb[0].mxu0
      %4860 = vmatprep.mubr.bf16.mxu0 0
      %4861 = vmatmul.mubr.bf16.gmra.mrb[0].mxu0 %v4755
      %v4862 = vpop.f32.mrb[0].mxu0
      %v4863 = vadd.f32 0.0, %v4862
      %v4864 = vpop.f32.mrb[0].mxu0
      %v4865 = vpop.f32.mrb[0].mxu0
      %v4866 = vadd.f32 0.0, %v4865
      %v4867 = vpop.f32.mrb[0].mxu0
      %4868 = vmatprep.mubr.bf16.mxu0 0
      %4869 = vmatmul.mubr.bf16.gmra.mrb[0].mxu0 %v4758
      %v4870 = vpop.f32.mrb[0].mxu0
      %v4871 = vadd.f32 0.0, %v4870
      %v4872 = vpop.f32.mrb[0].mxu0
      %v4873 = vpop.f32.mrb[0].mxu0
      %v4874 = vadd.f32 0.0, %v4873
      %v4875 = vpop.f32.mrb[0].mxu0
      %4876 = vmatprep.mubr.bf16.mxu0 0
      %4877 = vmatmul.mubr.bf16.gmra.mrb[0].mxu0 %v4761
      %v4878 = vpop.f32.mrb[0].mxu0
      %v4879 = vadd.f32 0.0, %v4878
      %v4880 = vpop.f32.mrb[0].mxu0
      %v4881 = vpop.f32.mrb[0].mxu0
      %v4882 = vadd.f32 0.0, %v4881
      %v4883 = vpop.f32.mrb[0].mxu0
      %4884 = vmatprep.mubr.bf16.mxu0 0
      %4885 = vmatmul.mubr.bf16.gmra.mrb[0].mxu0 %v4764
      %v4886 = vpop.f32.mrb[0].mxu0
      %v4887 = vadd.f32 0.0, %v4886
      %v4888 = vpop.f32.mrb[0].mxu0
      %v4889 = vpop.f32.mrb[0].mxu0
      %v4890 = vadd.f32 0.0, %v4889
      %v4891 = vpop.f32.mrb[0].mxu0
      %4892 = vmatprep.mubr.bf16.mxu0 0
      %4893 = vmatmul.mubr.bf16.gmra.mrb[0].mxu0 %v4767
      %v4894 = vpop.f32.mrb[0].mxu0
      %v4895 = vadd.f32 0.0, %v4894
      %v4896 = vpop.f32.mrb[0].mxu0
      %v4897 = vpop.f32.mrb[0].mxu0
      %v4898 = vadd.f32 0.0, %v4897
      %v4899 = vpop.f32.mrb[0].mxu0
      %4900 = vmatprep.mubr.bf16.mxu0 0
      %4901 = vmatmul.mubr.bf16.gmra.mrb[0].mxu0 %v4770
      %v4902 = vpop.f32.mrb[0].mxu0
      %v4903 = vadd.f32 0.0, %v4902
      %v4904 = vpop.f32.mrb[0].mxu0
      %v4905 = vpop.f32.mrb[0].mxu0
      %v4906 = vadd.f32 0.0, %v4905
      %v4907 = vpop.f32.mrb[0].mxu0
      %4908 = vdwg.mxu0
      %v4909 = vadd.f32 %v4600, %v4807
      %v4910 = vadd.f32 %v4601, %v4810
      %v4911 = vadd.f32 %v4602, %v4815
      %v4912 = vadd.f32 %v4603, %v4818
      %v4913 = vadd.f32 %v4604, %v4823
      %v4914 = vadd.f32 %v4605, %v4826
      %v4915 = vadd.f32 %v4606, %v4831
      %v4916 = vadd.f32 %v4607, %v4834
      %v4917 = vadd.f32 %v4608, %v4839
      %v4918 = vadd.f32 %v4609, %v4842
      %v4919 = vadd.f32 %v4610, %v4847
      %v4920 = vadd.f32 %v4611, %v4850
      %v4921 = vadd.f32 %v4612, %v4855
      %v4922 = vadd.f32 %v4613, %v4858
      %v4923 = vadd.f32 %v4614, %v4863
      %v4924 = vadd.f32 %v4615, %v4866
      %v4925 = vadd.f32 %v4616, %v4871
      %v4926 = vadd.f32 %v4617, %v4874
      %v4927 = vadd.f32 %v4618, %v4879
      %v4928 = vadd.f32 %v4619, %v4882
      %v4929 = vadd.f32 %v4620, %v4887
      %v4930 = vadd.f32 %v4621, %v4890
      %v4931 = vadd.f32 %v4622, %v4895
      %v4932 = vadd.f32 %v4623, %v4898
      %v4933 = vadd.f32 %v4624, %v4903
      %v4934 = vadd.f32 %v4625, %v4906
      %v4935 = vld [vmem:[%s347 + $0x8] sm:$0xf]
      %v4936 = vld [vmem:[%s347 + $0xc] sm:$0xf]
      %v4937 = vld [vmem:[%s347 + $0x10] sm:$0xf]
      %v4938 = vld [vmem:[%s347 + $0x14] sm:$0xf]
      %v4939 = vld [vmem:[%s347 + $0x18] sm:$0xf]
      %v4940 = vld [vmem:[%s347 + $0x1c] sm:$0xf]
      %v4941 = vld [vmem:[%s347 + $0x20] sm:$0xf]
      %v4942 = vld [vmem:[%s347 + $0x24] sm:$0xf]
      %v4943 = vld [vmem:[%s347 + $0x28] sm:$0xf]
      %v4944 = vld [vmem:[%s347 + $0x2c] sm:$0xf]
      %v4945 = vld [vmem:[%s347 + $0x30] sm:$0xf]
      %v4946 = vld [vmem:[%s347 + $0x34] sm:$0xf]
      %v4947 = vld [vmem:[%s347 + $0x38] sm:$0xf]
      %v4948 = vld [vmem:[%s347 + $0x3c] sm:$0xf]
      %v4949 = vld [vmem:[%s347 + $0x40] sm:$0xf]
      %v4950 = vld [vmem:[%s347 + $0x44] sm:$0xf]
      %v4951 = vld [vmem:[%s347 + $0x48] sm:$0xf]
      %v4952 = vld [vmem:[%s347 + $0x4c] sm:$0xf]
      %v4953 = vld [vmem:[%s347 + $0x50] sm:$0xf]
      %v4954 = vld [vmem:[%s347 + $0x54] sm:$0xf]
      %v4955 = vld [vmem:[%s347 + $0x58] sm:$0xf]
      %v4956 = vld [vmem:[%s347 + $0x5c] sm:$0xf]
      %v4957 = vld [vmem:[%s347 + $0x60] sm:$0xf]
      %v4958 = vld [vmem:[%s347 + $0x64] sm:$0xf]
      %v4959 = vld [vmem:[%s347 + $0x68] sm:$0xf]
      %v4960 = vld [vmem:[%s347 + $0x6c] sm:$0xf]
      %v4961 = vld [vmem:[%s347 + $0x70] sm:$0x1]
      %v4962 = vld [vmem:[%s3 + $0x40] sm:$0xf]
      %v4963 = vld [vmem:[%s3 + $0x44] sm:$0xf]
      %v4964 = vld [vmem:[%s3 + $0x48] sm:$0xf]
      %v4965 = vld [vmem:[%s3 + $0x4c] sm:$0xf]
      %v4993 = vunpack.c.l.b16 %v4935
      %v4994 = vunpack.c.l.b16 %v4936
      %v4995 = vunpack.c.l.b16 %v4937
      %v4996 = vunpack.c.l.b16 %v4938
      %v4997 = vunpack.c.l.b16 %v4939
      %v4998 = vunpack.c.l.b16 %v4940
      %v4999 = vunpack.c.l.b16 %v4941
      %v5000 = vunpack.c.l.b16 %v4942
      %v5001 = vunpack.c.l.b16 %v4943
      %v5002 = vunpack.c.l.b16 %v4944
      %v5003 = vunpack.c.l.b16 %v4945
      %v5004 = vunpack.c.l.b16 %v4946
      %v5005 = vunpack.c.l.b16 %v4947
      %v5006 = vunpack.c.l.b16 %v4948
      %v5007 = vunpack.c.l.b16 %v4949
      %v5008 = vunpack.c.l.b16 %v4950
      %v5009 = vunpack.c.l.b16 %v4951
      %v5010 = vunpack.c.l.b16 %v4952
      %v5011 = vunpack.c.l.b16 %v4953
      %v5012 = vunpack.c.l.b16 %v4954
      %v5013 = vunpack.c.l.b16 %v4955
      %v5014 = vunpack.c.l.b16 %v4956
      %v5015 = vunpack.c.l.b16 %v4957
      %v5016 = vunpack.c.l.b16 %v4958
      %v5017 = vunpack.c.l.b16 %v4959
      %v5018 = vunpack.c.l.b16 %v4960
      %v5019 = vunpack.c.l.b16 %v4961
      %v5020 = vpack.c.b16 %v4994, %v4993
      %v5021 = vpack.c.b16 %v4996, %v4995
      %v5022 = vpack.c.b16 %v4998, %v4997
      %v5023 = vpack.c.b16 %v5000, %v4999
      %v5024 = vpack.c.b16 %v5002, %v5001
      %v5025 = vpack.c.b16 %v5004, %v5003
      %v5026 = vpack.c.b16 %v5006, %v5005
      %v5027 = vpack.c.b16 %v5008, %v5007
      %v5028 = vpack.c.b16 %v5010, %v5009
      %v5029 = vpack.c.b16 %v5012, %v5011
      %v5030 = vpack.c.b16 %v5014, %v5013
      %v5031 = vpack.c.b16 %v5016, %v5015
      %v5032 = vpack.c.b16 %v5018, %v5017
      %v5033 = vpack.c.b16 %v5019, %v5019
      %v5035 = vshrl.u32 %v5020, 16
      %v5037 = vshll.u32 %v5020, 16
      %v5039 = vrot.slane %v5037, 1
      %v5040 = vor.u32 %v5035, %v5039
      %v5042 = vshll.u32 %v5021, 16
      %v5044 = vrot.slane %v5042, 1
      %v5045 = vsel %vm479, %v5040, %v5044
      %v5046 = vshrl.u32 %v5021, 16
      %v5048 = vor.u32 %v5046, %v5044
      %v5050 = vshll.u32 %v5022, 16
      %v5052 = vrot.slane %v5050, 1
      %v5053 = vsel %vm479, %v5048, %v5052
      %v5054 = vshrl.u32 %v5022, 16
      %v5056 = vor.u32 %v5054, %v5052
      %v5058 = vshll.u32 %v5023, 16
      %v5060 = vrot.slane %v5058, 1
      %v5061 = vsel %vm479, %v5056, %v5060
      %v5062 = vshrl.u32 %v5023, 16
      %v5064 = vor.u32 %v5062, %v5060
      %v5066 = vshll.u32 %v5024, 16
      %v5068 = vrot.slane %v5066, 1
      %v5069 = vsel %vm479, %v5064, %v5068
      %v5070 = vshrl.u32 %v5024, 16
      %v5072 = vor.u32 %v5070, %v5068
      %v5074 = vshll.u32 %v5025, 16
      %v5076 = vrot.slane %v5074, 1
      %v5077 = vsel %vm479, %v5072, %v5076
      %v5078 = vshrl.u32 %v5025, 16
      %v5080 = vor.u32 %v5078, %v5076
      %v5082 = vshll.u32 %v5026, 16
      %v5084 = vrot.slane %v5082, 1
      %v5085 = vsel %vm479, %v5080, %v5084
      %v5086 = vshrl.u32 %v5026, 16
      %v5088 = vor.u32 %v5086, %v5084
      %v5090 = vshll.u32 %v5027, 16
      %v5092 = vrot.slane %v5090, 1
      %v5093 = vsel %vm479, %v5088, %v5092
      %v5094 = vshrl.u32 %v5027, 16
      %v5096 = vor.u32 %v5094, %v5092
      %v5098 = vshll.u32 %v5028, 16
      %v5100 = vrot.slane %v5098, 1
      %v5101 = vsel %vm479, %v5096, %v5100
      %v5102 = vshrl.u32 %v5028, 16
      %v5104 = vor.u32 %v5102, %v5100
      %v5106 = vshll.u32 %v5029, 16
      %v5108 = vrot.slane %v5106, 1
      %v5109 = vsel %vm479, %v5104, %v5108
      %v5110 = vshrl.u32 %v5029, 16
      %v5112 = vor.u32 %v5110, %v5108
      %v5114 = vshll.u32 %v5030, 16
      %v5116 = vrot.slane %v5114, 1
      %v5117 = vsel %vm479, %v5112, %v5116
      %v5118 = vshrl.u32 %v5030, 16
      %v5120 = vor.u32 %v5118, %v5116
      %v5122 = vshll.u32 %v5031, 16
      %v5124 = vrot.slane %v5122, 1
      %v5125 = vsel %vm479, %v5120, %v5124
      %v5126 = vshrl.u32 %v5031, 16
      %v5128 = vor.u32 %v5126, %v5124
      %v5130 = vshll.u32 %v5032, 16
      %v5132 = vrot.slane %v5130, 1
      %v5133 = vsel %vm479, %v5128, %v5132
      %v5134 = vshrl.u32 %v5032, 16
      %v5136 = vor.u32 %v5134, %v5132
      %v5138 = vshll.u32 %v5033, 16
      %v5140 = vrot.slane %v5138, 1
      %v5141 = vsel %vm479, %v5136, %v5140
      %v5146 = vunpack.c.l.b16 %v4962
      %v5147 = vunpack.c.l.b16 %v4963
      %v5148 = vunpack.c.l.b16 %v4964
      %v5149 = vunpack.c.l.b16 %v4965
      %v5150 = vpack.c.b16 %v5147, %v5146
      %v5151 = vpack.c.b16 %v5149, %v5148
      %v5155 = vsel %vm4025, %v5045, 0
      %v5158 = vsel %vm4025, %v5053, 0
      %v5161 = vsel %vm4025, %v5061, 0
      %v5164 = vsel %vm4025, %v5069, 0
      %v5167 = vsel %vm4025, %v5077, 0
      %v5170 = vsel %vm4025, %v5085, 0
      %v5173 = vsel %vm4025, %v5093, 0
      %v5176 = vsel %vm4025, %v5101, 0
      %v5179 = vsel %vm4025, %v5109, 0
      %v5182 = vsel %vm4025, %v5117, 0
      %v5185 = vsel %vm4025, %v5125, 0
      %v5188 = vsel %vm4025, %v5133, 0
      %v5191 = vsel %vm4025, %v5141, 0
      %5193 = vmatprep.subr.bf16.mxu0 0
      %5194 = vmatpush1.bf16.msra.mxu0 %v5150
      %5195 = vmatprep.subr.bf16.mxu0 0
      %5196 = vmatpush1.bf16.msra.mxu0 %v5151
      %5197 = vmatprep.subr.bf16.mxu0 0
      %5198 = vmatpush1.bf16.msra.mxu0 0
      %5199 = vmatprep.subr.bf16.mxu0 0
      %5200 = vmatpush1.bf16.msra.mxu0 0
      %5201 = vmatprep.subr.bf16.mxu0 0
      %5202 = vmatpush1.bf16.msra.mxu0 0
      %5203 = vmatprep.subr.bf16.mxu0 0
      %5204 = vmatpush1.bf16.msra.mxu0 0
      %5205 = vmatprep.subr.bf16.mxu0 0
      %5206 = vmatpush1.bf16.msra.mxu0 0
      %5207 = vmatprep.subr.bf16.mxu0 0
      %5208 = vmatpush1.bf16.msra.mxu0 0
      %5209 = vmatprep.subr.bf16.mxu0 0
      %5210 = vmatpush1.bf16.msra.mxu0 0
      %5211 = vmatprep.subr.bf16.mxu0 0
      %5212 = vmatpush1.bf16.msra.mxu0 0
      %5213 = vmatprep.subr.bf16.mxu0 0
      %5214 = vmatpush1.bf16.msra.mxu0 0
      %5215 = vmatprep.subr.bf16.mxu0 0
      %5216 = vmatpush1.bf16.msra.mxu0 0
      %5217 = vmatprep.subr.bf16.mxu0 0
      %5218 = vmatpush1.bf16.msra.mxu0 0
      %5219 = vmatprep.subr.bf16.mxu0 0
      %5220 = vmatpush1.bf16.msra.mxu0 0
      %5221 = vmatprep.subr.bf16.mxu0 0
      %5222 = vmatpush1.bf16.msra.mxu0 0
      %5223 = vmatprep.subr.bf16.mxu0 0
      %5224 = vmatpush1.bf16.msra.mxu0 0
      %5225 = vmatprep.mubr.bf16.mxu0 0
      %5226 = vmatmul.mubr.bf16.gmra.mrb[0].mxu0 %v5155
      %v5227 = vpop.f32.mrb[0].mxu0
      %v5228 = vadd.f32 0.0, %v5227
      %v5229 = vpop.f32.mrb[0].mxu0
      %v5230 = vpop.f32.mrb[0].mxu0
      %v5231 = vadd.f32 0.0, %v5230
      %v5232 = vpop.f32.mrb[0].mxu0
      %5233 = vmatprep.mubr.bf16.mxu0 0
      %5234 = vmatmul.mubr.bf16.gmra.mrb[0].mxu0 %v5158
      %v5235 = vpop.f32.mrb[0].mxu0
      %v5236 = vadd.f32 0.0, %v5235
      %v5237 = vpop.f32.mrb[0].mxu0
      %v5238 = vpop.f32.mrb[0].mxu0
      %v5239 = vadd.f32 0.0, %v5238
      %v5240 = vpop.f32.mrb[0].mxu0
      %5241 = vmatprep.mubr.bf16.mxu0 0
      %5242 = vmatmul.mubr.bf16.gmra.mrb[0].mxu0 %v5161
      %v5243 = vpop.f32.mrb[0].mxu0
      %v5244 = vadd.f32 0.0, %v5243
      %v5245 = vpop.f32.mrb[0].mxu0
      %v5246 = vpop.f32.mrb[0].mxu0
      %v5247 = vadd.f32 0.0, %v5246
      %v5248 = vpop.f32.mrb[0].mxu0
      %5249 = vmatprep.mubr.bf16.mxu0 0
      %5250 = vmatmul.mubr.bf16.gmra.mrb[0].mxu0 %v5164
      %v5251 = vpop.f32.mrb[0].mxu0
      %v5252 = vadd.f32 0.0, %v5251
      %v5253 = vpop.f32.mrb[0].mxu0
      %v5254 = vpop.f32.mrb[0].mxu0
      %v5255 = vadd.f32 0.0, %v5254
      %v5256 = vpop.f32.mrb[0].mxu0
      %5257 = vmatprep.mubr.bf16.mxu0 0
      %5258 = vmatmul.mubr.bf16.gmra.mrb[0].mxu0 %v5167
      %v5259 = vpop.f32.mrb[0].mxu0
      %v5260 = vadd.f32 0.0, %v5259
      %v5261 = vpop.f32.mrb[0].mxu0
      %v5262 = vpop.f32.mrb[0].mxu0
      %v5263 = vadd.f32 0.0, %v5262
      %v5264 = vpop.f32.mrb[0].mxu0
      %5265 = vmatprep.mubr.bf16.mxu0 0
      %5266 = vmatmul.mubr.bf16.gmra.mrb[0].mxu0 %v5170
      %v5267 = vpop.f32.mrb[0].mxu0
      %v5268 = vadd.f32 0.0, %v5267
      %v5269 = vpop.f32.mrb[0].mxu0
      %v5270 = vpop.f32.mrb[0].mxu0
      %v5271 = vadd.f32 0.0, %v5270
      %v5272 = vpop.f32.mrb[0].mxu0
      %5273 = vmatprep.mubr.bf16.mxu0 0
      %5274 = vmatmul.mubr.bf16.gmra.mrb[0].mxu0 %v5173
      %v5275 = vpop.f32.mrb[0].mxu0
      %v5276 = vadd.f32 0.0, %v5275
      %v5277 = vpop.f32.mrb[0].mxu0
      %v5278 = vpop.f32.mrb[0].mxu0
      %v5279 = vadd.f32 0.0, %v5278
      %v5280 = vpop.f32.mrb[0].mxu0
      %5281 = vmatprep.mubr.bf16.mxu0 0
      %5282 = vmatmul.mubr.bf16.gmra.mrb[0].mxu0 %v5176
      %v5283 = vpop.f32.mrb[0].mxu0
      %v5284 = vadd.f32 0.0, %v5283
      %v5285 = vpop.f32.mrb[0].mxu0
      %v5286 = vpop.f32.mrb[0].mxu0
      %v5287 = vadd.f32 0.0, %v5286
      %v5288 = vpop.f32.mrb[0].mxu0
      %5289 = vmatprep.mubr.bf16.mxu0 0
      %5290 = vmatmul.mubr.bf16.gmra.mrb[0].mxu0 %v5179
      %v5291 = vpop.f32.mrb[0].mxu0
      %v5292 = vadd.f32 0.0, %v5291
      %v5293 = vpop.f32.mrb[0].mxu0
      %v5294 = vpop.f32.mrb[0].mxu0
      %v5295 = vadd.f32 0.0, %v5294
      %v5296 = vpop.f32.mrb[0].mxu0
      %5297 = vmatprep.mubr.bf16.mxu0 0
      %5298 = vmatmul.mubr.bf16.gmra.mrb[0].mxu0 %v5182
      %v5299 = vpop.f32.mrb[0].mxu0
      %v5300 = vadd.f32 0.0, %v5299
      %v5301 = vpop.f32.mrb[0].mxu0
      %v5302 = vpop.f32.mrb[0].mxu0
      %v5303 = vadd.f32 0.0, %v5302
      %v5304 = vpop.f32.mrb[0].mxu0
      %5305 = vmatprep.mubr.bf16.mxu0 0
      %5306 = vmatmul.mubr.bf16.gmra.mrb[0].mxu0 %v5185
      %v5307 = vpop.f32.mrb[0].mxu0
      %v5308 = vadd.f32 0.0, %v5307
      %v5309 = vpop.f32.mrb[0].mxu0
      %v5310 = vpop.f32.mrb[0].mxu0
      %v5311 = vadd.f32 0.0, %v5310
      %v5312 = vpop.f32.mrb[0].mxu0
      %5313 = vmatprep.mubr.bf16.mxu0 0
      %5314 = vmatmul.mubr.bf16.gmra.mrb[0].mxu0 %v5188
      %v5315 = vpop.f32.mrb[0].mxu0
      %v5316 = vadd.f32 0.0, %v5315
      %v5317 = vpop.f32.mrb[0].mxu0
      %v5318 = vpop.f32.mrb[0].mxu0
      %v5319 = vadd.f32 0.0, %v5318
      %v5320 = vpop.f32.mrb[0].mxu0
      %5321 = vmatprep.mubr.bf16.mxu0 0
      %5322 = vmatmul.mubr.bf16.gmra.mrb[0].mxu0 %v5191
      %v5323 = vpop.f32.mrb[0].mxu0
      %v5324 = vadd.f32 0.0, %v5323
      %v5325 = vpop.f32.mrb[0].mxu0
      %v5326 = vpop.f32.mrb[0].mxu0
      %v5327 = vadd.f32 0.0, %v5326
      %v5328 = vpop.f32.mrb[0].mxu0
      %5329 = vdwg.mxu0
      %v5330 = vadd.f32 %v4909, %v5228
      %v5331 = vadd.f32 %v4910, %v5231
      %v5332 = vadd.f32 %v4911, %v5236
      %v5333 = vadd.f32 %v4912, %v5239
      %v5334 = vadd.f32 %v4913, %v5244
      %v5335 = vadd.f32 %v4914, %v5247
      %v5336 = vadd.f32 %v4915, %v5252
      %v5337 = vadd.f32 %v4916, %v5255
      %v5338 = vadd.f32 %v4917, %v5260
      %v5339 = vadd.f32 %v4918, %v5263
      %v5340 = vadd.f32 %v4919, %v5268
      %v5341 = vadd.f32 %v4920, %v5271
      %v5342 = vadd.f32 %v4921, %v5276
      %v5343 = vadd.f32 %v4922, %v5279
      %v5344 = vadd.f32 %v4923, %v5284
      %v5345 = vadd.f32 %v4924, %v5287
      %v5346 = vadd.f32 %v4925, %v5292
      %v5347 = vadd.f32 %v4926, %v5295
      %v5348 = vadd.f32 %v4927, %v5300
      %v5349 = vadd.f32 %v4928, %v5303
      %v5350 = vadd.f32 %v4929, %v5308
      %v5351 = vadd.f32 %v4930, %v5311
      %v5352 = vadd.f32 %v4931, %v5316
      %v5353 = vadd.f32 %v4932, %v5319
      %v5354 = vadd.f32 %v4933, %v5324
      %v5355 = vadd.f32 %v4934, %v5327
      %v5356 = vld [vmem:[%s347 + $0x8] sm:$0xe]
      %v5357 = vld [vmem:[%s3 + $0x50] sm:$0xf]
      %v5358 = vld [vmem:[%s3 + $0x54] sm:$0xf]
      %v5359 = vld [vmem:[%s3 + $0x58] sm:$0xf]
      %v5360 = vld [vmem:[%s3 + $0x5c] sm:$0xf]
      %v5362 = vunpack.c.l.b16 %v5356
      %v5363 = vpack.c.b16 %v4994, %v5362
      %v5364 = vrot.slane %v5363, 1
      %v5365 = vrot.slane %v5021, 1
      %v5366 = vsel %vm1033, %v5364, %v5365
      %v5367 = vrot.slane %v5022, 1
      %v5368 = vsel %vm1033, %v5365, %v5367
      %v5369 = vrot.slane %v5023, 1
      %v5370 = vsel %vm1033, %v5367, %v5369
      %v5371 = vrot.slane %v5024, 1
      %v5372 = vsel %vm1033, %v5369, %v5371
      %v5373 = vrot.slane %v5025, 1
      %v5374 = vsel %vm1033, %v5371, %v5373
      %v5375 = vrot.slane %v5026, 1
      %v5376 = vsel %vm1033, %v5373, %v5375
      %v5377 = vrot.slane %v5027, 1
      %v5378 = vsel %vm1033, %v5375, %v5377
      %v5379 = vrot.slane %v5028, 1
      %v5380 = vsel %vm1033, %v5377, %v5379
      %v5381 = vrot.slane %v5029, 1
      %v5382 = vsel %vm1033, %v5379, %v5381
      %v5383 = vrot.slane %v5030, 1
      %v5384 = vsel %vm1033, %v5381, %v5383
      %v5385 = vrot.slane %v5031, 1
      %v5386 = vsel %vm1033, %v5383, %v5385
      %v5387 = vrot.slane %v5032, 1
      %v5388 = vsel %vm1033, %v5385, %v5387
      %v5389 = vrot.slane %v5033, 1
      %v5390 = vsel %vm1033, %v5387, %v5389
      %v5395 = vunpack.c.l.b16 %v5357
      %v5396 = vunpack.c.l.b16 %v5358
      %v5397 = vunpack.c.l.b16 %v5359
      %v5398 = vunpack.c.l.b16 %v5360
      %v5399 = vpack.c.b16 %v5396, %v5395
      %v5400 = vpack.c.b16 %v5398, %v5397
      %v5404 = vsel %vm4025, %v5366, 0
      %v5407 = vsel %vm4025, %v5368, 0
      %v5410 = vsel %vm4025, %v5370, 0
      %v5413 = vsel %vm4025, %v5372, 0
      %v5416 = vsel %vm4025, %v5374, 0
      %v5419 = vsel %vm4025, %v5376, 0
      %v5422 = vsel %vm4025, %v5378, 0
      %v5425 = vsel %vm4025, %v5380, 0
      %v5428 = vsel %vm4025, %v5382, 0
      %v5431 = vsel %vm4025, %v5384, 0
      %v5434 = vsel %vm4025, %v5386, 0
      %v5437 = vsel %vm4025, %v5388, 0
      %v5440 = vsel %vm4025, %v5390, 0
      %5442 = vmatprep.subr.bf16.mxu0 0
      %5443 = vmatpush1.bf16.msra.mxu0 %v5399
      %5444 = vmatprep.subr.bf16.mxu0 0
      %5445 = vmatpush1.bf16.msra.mxu0 %v5400
      %5446 = vmatprep.subr.bf16.mxu0 0
      %5447 = vmatpush1.bf16.msra.mxu0 0
      %5448 = vmatprep.subr.bf16.mxu0 0
      %5449 = vmatpush1.bf16.msra.mxu0 0
      %5450 = vmatprep.subr.bf16.mxu0 0
      %5451 = vmatpush1.bf16.msra.mxu0 0
      %5452 = vmatprep.subr.bf16.mxu0 0
      %5453 = vmatpush1.bf16.msra.mxu0 0
      %5454 = vmatprep.subr.bf16.mxu0 0
      %5455 = vmatpush1.bf16.msra.mxu0 0
      %5456 = vmatprep.subr.bf16.mxu0 0
      %5457 = vmatpush1.bf16.msra.mxu0 0
      %5458 = vmatprep.subr.bf16.mxu0 0
      %5459 = vmatpush1.bf16.msra.mxu0 0
      %5460 = vmatprep.subr.bf16.mxu0 0
      %5461 = vmatpush1.bf16.msra.mxu0 0
      %5462 = vmatprep.subr.bf16.mxu0 0
      %5463 = vmatpush1.bf16.msra.mxu0 0
      %5464 = vmatprep.subr.bf16.mxu0 0
      %5465 = vmatpush1.bf16.msra.mxu0 0
      %5466 = vmatprep.subr.bf16.mxu0 0
      %5467 = vmatpush1.bf16.msra.mxu0 0
      %5468 = vmatprep.subr.bf16.mxu0 0
      %5469 = vmatpush1.bf16.msra.mxu0 0
      %5470 = vmatprep.subr.bf16.mxu0 0
      %5471 = vmatpush1.bf16.msra.mxu0 0
      %5472 = vmatprep.subr.bf16.mxu0 0
      %5473 = vmatpush1.bf16.msra.mxu0 0
      %5474 = vmatprep.mubr.bf16.mxu0 0
      %5475 = vmatmul.mubr.bf16.gmra.mrb[0].mxu0 %v5404
      %v5476 = vpop.f32.mrb[0].mxu0
      %v5477 = vadd.f32 0.0, %v5476
      %v5478 = vpop.f32.mrb[0].mxu0
      %v5479 = vpop.f32.mrb[0].mxu0
      %v5480 = vadd.f32 0.0, %v5479
      %v5481 = vpop.f32.mrb[0].mxu0
      %5482 = vmatprep.mubr.bf16.mxu0 0
      %5483 = vmatmul.mubr.bf16.gmra.mrb[0].mxu0 %v5407
      %v5484 = vpop.f32.mrb[0].mxu0
      %v5485 = vadd.f32 0.0, %v5484
      %v5486 = vpop.f32.mrb[0].mxu0
      %v5487 = vpop.f32.mrb[0].mxu0
      %v5488 = vadd.f32 0.0, %v5487
      %v5489 = vpop.f32.mrb[0].mxu0
      %5490 = vmatprep.mubr.bf16.mxu0 0
      %5491 = vmatmul.mubr.bf16.gmra.mrb[0].mxu0 %v5410
      %v5492 = vpop.f32.mrb[0].mxu0
      %v5493 = vadd.f32 0.0, %v5492
      %v5494 = vpop.f32.mrb[0].mxu0
      %v5495 = vpop.f32.mrb[0].mxu0
      %v5496 = vadd.f32 0.0, %v5495
      %v5497 = vpop.f32.mrb[0].mxu0
      %5498 = vmatprep.mubr.bf16.mxu0 0
      %5499 = vmatmul.mubr.bf16.gmra.mrb[0].mxu0 %v5413
      %v5500 = vpop.f32.mrb[0].mxu0
      %v5501 = vadd.f32 0.0, %v5500
      %v5502 = vpop.f32.mrb[0].mxu0
      %v5503 = vpop.f32.mrb[0].mxu0
      %v5504 = vadd.f32 0.0, %v5503
      %v5505 = vpop.f32.mrb[0].mxu0
      %5506 = vmatprep.mubr.bf16.mxu0 0
      %5507 = vmatmul.mubr.bf16.gmra.mrb[0].mxu0 %v5416
      %v5508 = vpop.f32.mrb[0].mxu0
      %v5509 = vadd.f32 0.0, %v5508
      %v5510 = vpop.f32.mrb[0].mxu0
      %v5511 = vpop.f32.mrb[0].mxu0
      %v5512 = vadd.f32 0.0, %v5511
      %v5513 = vpop.f32.mrb[0].mxu0
      %5514 = vmatprep.mubr.bf16.mxu0 0
      %5515 = vmatmul.mubr.bf16.gmra.mrb[0].mxu0 %v5419
      %v5516 = vpop.f32.mrb[0].mxu0
      %v5517 = vadd.f32 0.0, %v5516
      %v5518 = vpop.f32.mrb[0].mxu0
      %v5519 = vpop.f32.mrb[0].mxu0
      %v5520 = vadd.f32 0.0, %v5519
      %v5521 = vpop.f32.mrb[0].mxu0
      %5522 = vmatprep.mubr.bf16.mxu0 0
      %5523 = vmatmul.mubr.bf16.gmra.mrb[0].mxu0 %v5422
      %v5524 = vpop.f32.mrb[0].mxu0
      %v5525 = vadd.f32 0.0, %v5524
      %v5526 = vpop.f32.mrb[0].mxu0
      %v5527 = vpop.f32.mrb[0].mxu0
      %v5528 = vadd.f32 0.0, %v5527
      %v5529 = vpop.f32.mrb[0].mxu0
      %5530 = vmatprep.mubr.bf16.mxu0 0
      %5531 = vmatmul.mubr.bf16.gmra.mrb[0].mxu0 %v5425
      %v5532 = vpop.f32.mrb[0].mxu0
      %v5533 = vadd.f32 0.0, %v5532
      %v5534 = vpop.f32.mrb[0].mxu0
      %v5535 = vpop.f32.mrb[0].mxu0
      %v5536 = vadd.f32 0.0, %v5535
      %v5537 = vpop.f32.mrb[0].mxu0
      %5538 = vmatprep.mubr.bf16.mxu0 0
      %5539 = vmatmul.mubr.bf16.gmra.mrb[0].mxu0 %v5428
      %v5540 = vpop.f32.mrb[0].mxu0
      %v5541 = vadd.f32 0.0, %v5540
      %v5542 = vpop.f32.mrb[0].mxu0
      %v5543 = vpop.f32.mrb[0].mxu0
      %v5544 = vadd.f32 0.0, %v5543
      %v5545 = vpop.f32.mrb[0].mxu0
      %5546 = vmatprep.mubr.bf16.mxu0 0
      %5547 = vmatmul.mubr.bf16.gmra.mrb[0].mxu0 %v5431
      %v5548 = vpop.f32.mrb[0].mxu0
      %v5549 = vadd.f32 0.0, %v5548
      %v5550 = vpop.f32.mrb[0].mxu0
      %v5551 = vpop.f32.mrb[0].mxu0
      %v5552 = vadd.f32 0.0, %v5551
      %v5553 = vpop.f32.mrb[0].mxu0
      %5554 = vmatprep.mubr.bf16.mxu0 0
      %5555 = vmatmul.mubr.bf16.gmra.mrb[0].mxu0 %v5434
      %v5556 = vpop.f32.mrb[0].mxu0
      %v5557 = vadd.f32 0.0, %v5556
      %v5558 = vpop.f32.mrb[0].mxu0
      %v5559 = vpop.f32.mrb[0].mxu0
      %v5560 = vadd.f32 0.0, %v5559
      %v5561 = vpop.f32.mrb[0].mxu0
      %5562 = vmatprep.mubr.bf16.mxu0 0
      %5563 = vmatmul.mubr.bf16.gmra.mrb[0].mxu0 %v5437
      %v5564 = vpop.f32.mrb[0].mxu0
      %v5565 = vadd.f32 0.0, %v5564
      %v5566 = vpop.f32.mrb[0].mxu0
      %v5567 = vpop.f32.mrb[0].mxu0
      %v5568 = vadd.f32 0.0, %v5567
      %v5569 = vpop.f32.mrb[0].mxu0
      %5570 = vmatprep.mubr.bf16.mxu0 0
      %5571 = vmatmul.mubr.bf16.gmra.mrb[0].mxu0 %v5440
      %v5572 = vpop.f32.mrb[0].mxu0
      %v5573 = vadd.f32 0.0, %v5572
      %v5574 = vpop.f32.mrb[0].mxu0
      %v5575 = vpop.f32.mrb[0].mxu0
      %v5576 = vadd.f32 0.0, %v5575
      %v5577 = vpop.f32.mrb[0].mxu0
      %5578 = vdwg.mxu0
      %v5579 = vadd.f32 %v5330, %v5477
      %v5580 = vadd.f32 %v5331, %v5480
      %v5581 = vadd.f32 %v5332, %v5485
      %v5582 = vadd.f32 %v5333, %v5488
      %v5583 = vadd.f32 %v5334, %v5493
      %v5584 = vadd.f32 %v5335, %v5496
      %v5585 = vadd.f32 %v5336, %v5501
      %v5586 = vadd.f32 %v5337, %v5504
      %v5587 = vadd.f32 %v5338, %v5509
      %v5588 = vadd.f32 %v5339, %v5512
      %v5589 = vadd.f32 %v5340, %v5517
      %v5590 = vadd.f32 %v5341, %v5520
      %v5591 = vadd.f32 %v5342, %v5525
      %v5592 = vadd.f32 %v5343, %v5528
      %v5593 = vadd.f32 %v5344, %v5533
      %v5594 = vadd.f32 %v5345, %v5536
      %v5595 = vadd.f32 %v5346, %v5541
      %v5596 = vadd.f32 %v5347, %v5544
      %v5597 = vadd.f32 %v5348, %v5549
      %v5598 = vadd.f32 %v5349, %v5552
      %v5599 = vadd.f32 %v5350, %v5557
      %v5600 = vadd.f32 %v5351, %v5560
      %v5601 = vadd.f32 %v5352, %v5565
      %v5602 = vadd.f32 %v5353, %v5568
      %v5603 = vadd.f32 %v5354, %v5573
      %v5604 = vadd.f32 %v5355, %v5576
      %v5605 = vld [vmem:[%s347 + $0x10] sm:$0xf]
      %v5606 = vld [vmem:[%s347 + $0x14] sm:$0xf]
      %v5607 = vld [vmem:[%s347 + $0x18] sm:$0xf]
      %v5608 = vld [vmem:[%s347 + $0x1c] sm:$0xf]
      %v5609 = vld [vmem:[%s347 + $0x20] sm:$0xf]
      %v5610 = vld [vmem:[%s347 + $0x24] sm:$0xf]
      %v5611 = vld [vmem:[%s347 + $0x28] sm:$0xf]
      %v5612 = vld [vmem:[%s347 + $0x2c] sm:$0xf]
      %v5613 = vld [vmem:[%s347 + $0x30] sm:$0xf]
      %v5614 = vld [vmem:[%s347 + $0x34] sm:$0xf]
      %v5615 = vld [vmem:[%s347 + $0x38] sm:$0xf]
      %v5616 = vld [vmem:[%s347 + $0x3c] sm:$0xf]
      %v5617 = vld [vmem:[%s347 + $0x40] sm:$0xf]
      %v5618 = vld [vmem:[%s347 + $0x44] sm:$0xf]
      %v5619 = vld [vmem:[%s347 + $0x48] sm:$0xf]
      %v5620 = vld [vmem:[%s347 + $0x4c] sm:$0xf]
      %v5621 = vld [vmem:[%s347 + $0x50] sm:$0xf]
      %v5622 = vld [vmem:[%s347 + $0x54] sm:$0xf]
      %v5623 = vld [vmem:[%s347 + $0x58] sm:$0xf]
      %v5624 = vld [vmem:[%s347 + $0x5c] sm:$0xf]
      %v5625 = vld [vmem:[%s347 + $0x60] sm:$0xf]
      %v5626 = vld [vmem:[%s347 + $0x64] sm:$0xf]
      %v5627 = vld [vmem:[%s347 + $0x68] sm:$0xf]
      %v5628 = vld [vmem:[%s347 + $0x6c] sm:$0xf]
      %v5629 = vld [vmem:[%s347 + $0x70] sm:$0xf]
      %v5630 = vld [vmem:[%s347 + $0x74] sm:$0xf]
      %v5631 = vld [vmem:[%s3 + $0x60] sm:$0xf]
      %v5632 = vld [vmem:[%s3 + $0x64] sm:$0xf]
      %v5633 = vld [vmem:[%s3 + $0x68] sm:$0xf]
      %v5634 = vld [vmem:[%s3 + $0x6c] sm:$0xf]
      %v5661 = vunpack.c.l.b16 %v5605
      %v5662 = vunpack.c.l.b16 %v5606
      %v5663 = vunpack.c.l.b16 %v5607
      %v5664 = vunpack.c.l.b16 %v5608
      %v5665 = vunpack.c.l.b16 %v5609
      %v5666 = vunpack.c.l.b16 %v5610
      %v5667 = vunpack.c.l.b16 %v5611
      %v5668 = vunpack.c.l.b16 %v5612
      %v5669 = vunpack.c.l.b16 %v5613
      %v5670 = vunpack.c.l.b16 %v5614
      %v5671 = vunpack.c.l.b16 %v5615
      %v5672 = vunpack.c.l.b16 %v5616
      %v5673 = vunpack.c.l.b16 %v5617
      %v5674 = vunpack.c.l.b16 %v5618
      %v5675 = vunpack.c.l.b16 %v5619
      %v5676 = vunpack.c.l.b16 %v5620
      %v5677 = vunpack.c.l.b16 %v5621
      %v5678 = vunpack.c.l.b16 %v5622
      %v5679 = vunpack.c.l.b16 %v5623
      %v5680 = vunpack.c.l.b16 %v5624
      %v5681 = vunpack.c.l.b16 %v5625
      %v5682 = vunpack.c.l.b16 %v5626
      %v5683 = vunpack.c.l.b16 %v5627
      %v5684 = vunpack.c.l.b16 %v5628
      %v5685 = vunpack.c.l.b16 %v5629
      %v5686 = vunpack.c.l.b16 %v5630
      %v5687 = vpack.c.b16 %v5662, %v5661
      %v5688 = vpack.c.b16 %v5664, %v5663
      %v5689 = vpack.c.b16 %v5666, %v5665
      %v5690 = vpack.c.b16 %v5668, %v5667
      %v5691 = vpack.c.b16 %v5670, %v5669
      %v5692 = vpack.c.b16 %v5672, %v5671
      %v5693 = vpack.c.b16 %v5674, %v5673
      %v5694 = vpack.c.b16 %v5676, %v5675
      %v5695 = vpack.c.b16 %v5678, %v5677
      %v5696 = vpack.c.b16 %v5680, %v5679
      %v5697 = vpack.c.b16 %v5682, %v5681
      %v5698 = vpack.c.b16 %v5684, %v5683
      %v5699 = vpack.c.b16 %v5686, %v5685
      %v5704 = vunpack.c.l.b16 %v5631
      %v5705 = vunpack.c.l.b16 %v5632
      %v5706 = vunpack.c.l.b16 %v5633
      %v5707 = vunpack.c.l.b16 %v5634
      %v5708 = vpack.c.b16 %v5705, %v5704
      %v5709 = vpack.c.b16 %v5707, %v5706
      %v5713 = vsel %vm4025, %v5687, 0
      %v5716 = vsel %vm4025, %v5688, 0
      %v5719 = vsel %vm4025, %v5689, 0
      %v5722 = vsel %vm4025, %v5690, 0
      %v5725 = vsel %vm4025, %v5691, 0
      %v5728 = vsel %vm4025, %v5692, 0
      %v5731 = vsel %vm4025, %v5693, 0
      %v5734 = vsel %vm4025, %v5694, 0
      %v5737 = vsel %vm4025, %v5695, 0
      %v5740 = vsel %vm4025, %v5696, 0
      %v5743 = vsel %vm4025, %v5697, 0
      %v5746 = vsel %vm4025, %v5698, 0
      %v5749 = vsel %vm4025, %v5699, 0
      %5751 = vmatprep.subr.bf16.mxu0 0
      %5752 = vmatpush1.bf16.msra.mxu0 %v5708
      %5753 = vmatprep.subr.bf16.mxu0 0
      %5754 = vmatpush1.bf16.msra.mxu0 %v5709
      %5755 = vmatprep.subr.bf16.mxu0 0
      %5756 = vmatpush1.bf16.msra.mxu0 0
      %5757 = vmatprep.subr.bf16.mxu0 0
      %5758 = vmatpush1.bf16.msra.mxu0 0
      %5759 = vmatprep.subr.bf16.mxu0 0
      %5760 = vmatpush1.bf16.msra.mxu0 0
      %5761 = vmatprep.subr.bf16.mxu0 0
      %5762 = vmatpush1.bf16.msra.mxu0 0
      %5763 = vmatprep.subr.bf16.mxu0 0
      %5764 = vmatpush1.bf16.msra.mxu0 0
      %5765 = vmatprep.subr.bf16.mxu0 0
      %5766 = vmatpush1.bf16.msra.mxu0 0
      %5767 = vmatprep.subr.bf16.mxu0 0
      %5768 = vmatpush1.bf16.msra.mxu0 0
      %5769 = vmatprep.subr.bf16.mxu0 0
      %5770 = vmatpush1.bf16.msra.mxu0 0
      %5771 = vmatprep.subr.bf16.mxu0 0
      %5772 = vmatpush1.bf16.msra.mxu0 0
      %5773 = vmatprep.subr.bf16.mxu0 0
      %5774 = vmatpush1.bf16.msra.mxu0 0
      %5775 = vmatprep.subr.bf16.mxu0 0
      %5776 = vmatpush1.bf16.msra.mxu0 0
      %5777 = vmatprep.subr.bf16.mxu0 0
      %5778 = vmatpush1.bf16.msra.mxu0 0
      %5779 = vmatprep.subr.bf16.mxu0 0
      %5780 = vmatpush1.bf16.msra.mxu0 0
      %5781 = vmatprep.subr.bf16.mxu0 0
      %5782 = vmatpush1.bf16.msra.mxu0 0
      %5783 = vmatprep.mubr.bf16.mxu0 0
      %5784 = vmatmul.mubr.bf16.gmra.mrb[0].mxu0 %v5713
      %v5785 = vpop.f32.mrb[0].mxu0
      %v5786 = vadd.f32 0.0, %v5785
      %v5787 = vpop.f32.mrb[0].mxu0
      %v5788 = vpop.f32.mrb[0].mxu0
      %v5789 = vadd.f32 0.0, %v5788
      %v5790 = vpop.f32.mrb[0].mxu0
      %5791 = vmatprep.mubr.bf16.mxu0 0
      %5792 = vmatmul.mubr.bf16.gmra.mrb[0].mxu0 %v5716
      %v5793 = vpop.f32.mrb[0].mxu0
      %v5794 = vadd.f32 0.0, %v5793
      %v5795 = vpop.f32.mrb[0].mxu0
      %v5796 = vpop.f32.mrb[0].mxu0
      %v5797 = vadd.f32 0.0, %v5796
      %v5798 = vpop.f32.mrb[0].mxu0
      %5799 = vmatprep.mubr.bf16.mxu0 0
      %5800 = vmatmul.mubr.bf16.gmra.mrb[0].mxu0 %v5719
      %v5801 = vpop.f32.mrb[0].mxu0
      %v5802 = vadd.f32 0.0, %v5801
      %v5803 = vpop.f32.mrb[0].mxu0
      %v5804 = vpop.f32.mrb[0].mxu0
      %v5805 = vadd.f32 0.0, %v5804
      %v5806 = vpop.f32.mrb[0].mxu0
      %5807 = vmatprep.mubr.bf16.mxu0 0
      %5808 = vmatmul.mubr.bf16.gmra.mrb[0].mxu0 %v5722
      %v5809 = vpop.f32.mrb[0].mxu0
      %v5810 = vadd.f32 0.0, %v5809
      %v5811 = vpop.f32.mrb[0].mxu0
      %v5812 = vpop.f32.mrb[0].mxu0
      %v5813 = vadd.f32 0.0, %v5812
      %v5814 = vpop.f32.mrb[0].mxu0
      %5815 = vmatprep.mubr.bf16.mxu0 0
      %5816 = vmatmul.mubr.bf16.gmra.mrb[0].mxu0 %v5725
      %v5817 = vpop.f32.mrb[0].mxu0
      %v5818 = vadd.f32 0.0, %v5817
      %v5819 = vpop.f32.mrb[0].mxu0
      %v5820 = vpop.f32.mrb[0].mxu0
      %v5821 = vadd.f32 0.0, %v5820
      %v5822 = vpop.f32.mrb[0].mxu0
      %5823 = vmatprep.mubr.bf16.mxu0 0
      %5824 = vmatmul.mubr.bf16.gmra.mrb[0].mxu0 %v5728
      %v5825 = vpop.f32.mrb[0].mxu0
      %v5826 = vadd.f32 0.0, %v5825
      %v5827 = vpop.f32.mrb[0].mxu0
      %v5828 = vpop.f32.mrb[0].mxu0
      %v5829 = vadd.f32 0.0, %v5828
      %v5830 = vpop.f32.mrb[0].mxu0
      %5831 = vmatprep.mubr.bf16.mxu0 0
      %5832 = vmatmul.mubr.bf16.gmra.mrb[0].mxu0 %v5731
      %v5833 = vpop.f32.mrb[0].mxu0
      %v5834 = vadd.f32 0.0, %v5833
      %v5835 = vpop.f32.mrb[0].mxu0
      %v5836 = vpop.f32.mrb[0].mxu0
      %v5837 = vadd.f32 0.0, %v5836
      %v5838 = vpop.f32.mrb[0].mxu0
      %5839 = vmatprep.mubr.bf16.mxu0 0
      %5840 = vmatmul.mubr.bf16.gmra.mrb[0].mxu0 %v5734
      %v5841 = vpop.f32.mrb[0].mxu0
      %v5842 = vadd.f32 0.0, %v5841
      %v5843 = vpop.f32.mrb[0].mxu0
      %v5844 = vpop.f32.mrb[0].mxu0
      %v5845 = vadd.f32 0.0, %v5844
      %v5846 = vpop.f32.mrb[0].mxu0
      %5847 = vmatprep.mubr.bf16.mxu0 0
      %5848 = vmatmul.mubr.bf16.gmra.mrb[0].mxu0 %v5737
      %v5849 = vpop.f32.mrb[0].mxu0
      %v5850 = vadd.f32 0.0, %v5849
      %v5851 = vpop.f32.mrb[0].mxu0
      %v5852 = vpop.f32.mrb[0].mxu0
      %v5853 = vadd.f32 0.0, %v5852
      %v5854 = vpop.f32.mrb[0].mxu0
      %5855 = vmatprep.mubr.bf16.mxu0 0
      %5856 = vmatmul.mubr.bf16.gmra.mrb[0].mxu0 %v5740
      %v5857 = vpop.f32.mrb[0].mxu0
      %v5858 = vadd.f32 0.0, %v5857
      %v5859 = vpop.f32.mrb[0].mxu0
      %v5860 = vpop.f32.mrb[0].mxu0
      %v5861 = vadd.f32 0.0, %v5860
      %v5862 = vpop.f32.mrb[0].mxu0
      %5863 = vmatprep.mubr.bf16.mxu0 0
      %5864 = vmatmul.mubr.bf16.gmra.mrb[0].mxu0 %v5743
      %v5865 = vpop.f32.mrb[0].mxu0
      %v5866 = vadd.f32 0.0, %v5865
      %v5867 = vpop.f32.mrb[0].mxu0
      %v5868 = vpop.f32.mrb[0].mxu0
      %v5869 = vadd.f32 0.0, %v5868
      %v5870 = vpop.f32.mrb[0].mxu0
      %5871 = vmatprep.mubr.bf16.mxu0 0
      %5872 = vmatmul.mubr.bf16.gmra.mrb[0].mxu0 %v5746
      %v5873 = vpop.f32.mrb[0].mxu0
      %v5874 = vadd.f32 0.0, %v5873
      %v5875 = vpop.f32.mrb[0].mxu0
      %v5876 = vpop.f32.mrb[0].mxu0
      %v5877 = vadd.f32 0.0, %v5876
      %v5878 = vpop.f32.mrb[0].mxu0
      %5879 = vmatprep.mubr.bf16.mxu0 0
      %5880 = vmatmul.mubr.bf16.gmra.mrb[0].mxu0 %v5749
      %v5881 = vpop.f32.mrb[0].mxu0
      %v5882 = vadd.f32 0.0, %v5881
      %v5883 = vpop.f32.mrb[0].mxu0
      %v5884 = vpop.f32.mrb[0].mxu0
      %v5885 = vadd.f32 0.0, %v5884
      %v5886 = vpop.f32.mrb[0].mxu0
      %5887 = vdwg.mxu0
      %v5888 = vadd.f32 %v5579, %v5786
      %v5889 = vadd.f32 %v5580, %v5789
      %v5890 = vadd.f32 %v5581, %v5794
      %v5891 = vadd.f32 %v5582, %v5797
      %v5892 = vadd.f32 %v5583, %v5802
      %v5893 = vadd.f32 %v5584, %v5805
      %v5894 = vadd.f32 %v5585, %v5810
      %v5895 = vadd.f32 %v5586, %v5813
      %v5896 = vadd.f32 %v5587, %v5818
      %v5897 = vadd.f32 %v5588, %v5821
      %v5898 = vadd.f32 %v5589, %v5826
      %v5899 = vadd.f32 %v5590, %v5829
      %v5900 = vadd.f32 %v5591, %v5834
      %v5901 = vadd.f32 %v5592, %v5837
      %v5902 = vadd.f32 %v5593, %v5842
      %v5903 = vadd.f32 %v5594, %v5845
      %v5904 = vadd.f32 %v5595, %v5850
      %v5905 = vadd.f32 %v5596, %v5853
      %v5906 = vadd.f32 %v5597, %v5858
      %v5907 = vadd.f32 %v5598, %v5861
      %v5908 = vadd.f32 %v5599, %v5866
      %v5909 = vadd.f32 %v5600, %v5869
      %v5910 = vadd.f32 %v5601, %v5874
      %v5911 = vadd.f32 %v5602, %v5877
      %v5912 = vadd.f32 %v5603, %v5882
      %v5913 = vadd.f32 %v5604, %v5885
      %v5914 = vld [vmem:[%s347 + $0x10] sm:$0xf]
      %v5915 = vld [vmem:[%s347 + $0x14] sm:$0xf]
      %v5916 = vld [vmem:[%s347 + $0x18] sm:$0xf]
      %v5917 = vld [vmem:[%s347 + $0x1c] sm:$0xf]
      %v5918 = vld [vmem:[%s347 + $0x20] sm:$0xf]
      %v5919 = vld [vmem:[%s347 + $0x24] sm:$0xf]
      %v5920 = vld [vmem:[%s347 + $0x28] sm:$0xf]
      %v5921 = vld [vmem:[%s347 + $0x2c] sm:$0xf]
      %v5922 = vld [vmem:[%s347 + $0x30] sm:$0xf]
      %v5923 = vld [vmem:[%s347 + $0x34] sm:$0xf]
      %v5924 = vld [vmem:[%s347 + $0x38] sm:$0xf]
      %v5925 = vld [vmem:[%s347 + $0x3c] sm:$0xf]
      %v5926 = vld [vmem:[%s347 + $0x40] sm:$0xf]
      %v5927 = vld [vmem:[%s347 + $0x44] sm:$0xf]
      %v5928 = vld [vmem:[%s347 + $0x48] sm:$0xf]
      %v5929 = vld [vmem:[%s347 + $0x4c] sm:$0xf]
      %v5930 = vld [vmem:[%s347 + $0x50] sm:$0xf]
      %v5931 = vld [vmem:[%s347 + $0x54] sm:$0xf]
      %v5932 = vld [vmem:[%s347 + $0x58] sm:$0xf]
      %v5933 = vld [vmem:[%s347 + $0x5c] sm:$0xf]
      %v5934 = vld [vmem:[%s347 + $0x60] sm:$0xf]
      %v5935 = vld [vmem:[%s347 + $0x64] sm:$0xf]
      %v5936 = vld [vmem:[%s347 + $0x68] sm:$0xf]
      %v5937 = vld [vmem:[%s347 + $0x6c] sm:$0xf]
      %v5938 = vld [vmem:[%s347 + $0x70] sm:$0xf]
      %v5939 = vld [vmem:[%s347 + $0x74] sm:$0xf]
      %v5940 = vld [vmem:[%s347 + $0x78] sm:$0x1]
      %v5941 = vld [vmem:[%s3 + $0x70] sm:$0xf]
      %v5942 = vld [vmem:[%s3 + $0x74] sm:$0xf]
      %v5943 = vld [vmem:[%s3 + $0x78] sm:$0xf]
      %v5944 = vld [vmem:[%s3 + $0x7c] sm:$0xf]
      %v5972 = vunpack.c.l.b16 %v5914
      %v5973 = vunpack.c.l.b16 %v5915
      %v5974 = vunpack.c.l.b16 %v5916
      %v5975 = vunpack.c.l.b16 %v5917
      %v5976 = vunpack.c.l.b16 %v5918
      %v5977 = vunpack.c.l.b16 %v5919
      %v5978 = vunpack.c.l.b16 %v5920
      %v5979 = vunpack.c.l.b16 %v5921
      %v5980 = vunpack.c.l.b16 %v5922
      %v5981 = vunpack.c.l.b16 %v5923
      %v5982 = vunpack.c.l.b16 %v5924
      %v5983 = vunpack.c.l.b16 %v5925
      %v5984 = vunpack.c.l.b16 %v5926
      %v5985 = vunpack.c.l.b16 %v5927
      %v5986 = vunpack.c.l.b16 %v5928
      %v5987 = vunpack.c.l.b16 %v5929
      %v5988 = vunpack.c.l.b16 %v5930
      %v5989 = vunpack.c.l.b16 %v5931
      %v5990 = vunpack.c.l.b16 %v5932
      %v5991 = vunpack.c.l.b16 %v5933
      %v5992 = vunpack.c.l.b16 %v5934
      %v5993 = vunpack.c.l.b16 %v5935
      %v5994 = vunpack.c.l.b16 %v5936
      %v5995 = vunpack.c.l.b16 %v5937
      %v5996 = vunpack.c.l.b16 %v5938
      %v5997 = vunpack.c.l.b16 %v5939
      %v5998 = vunpack.c.l.b16 %v5940
      %v5999 = vpack.c.b16 %v5973, %v5972
      %v6000 = vpack.c.b16 %v5975, %v5974
      %v6001 = vpack.c.b16 %v5977, %v5976
      %v6002 = vpack.c.b16 %v5979, %v5978
      %v6003 = vpack.c.b16 %v5981, %v5980
      %v6004 = vpack.c.b16 %v5983, %v5982
      %v6005 = vpack.c.b16 %v5985, %v5984
      %v6006 = vpack.c.b16 %v5987, %v5986
      %v6007 = vpack.c.b16 %v5989, %v5988
      %v6008 = vpack.c.b16 %v5991, %v5990
      %v6009 = vpack.c.b16 %v5993, %v5992
      %v6010 = vpack.c.b16 %v5995, %v5994
      %v6011 = vpack.c.b16 %v5997, %v5996
      %v6012 = vpack.c.b16 %v5998, %v5998
      %v6014 = vshrl.u32 %v5999, 16
      %v6016 = vshll.u32 %v5999, 16
      %v6018 = vrot.slane %v6016, 1
      %v6019 = vor.u32 %v6014, %v6018
      %v6021 = vshll.u32 %v6000, 16
      %v6023 = vrot.slane %v6021, 1
      %v6024 = vsel %vm479, %v6019, %v6023
      %v6025 = vshrl.u32 %v6000, 16
      %v6027 = vor.u32 %v6025, %v6023
      %v6029 = vshll.u32 %v6001, 16
      %v6031 = vrot.slane %v6029, 1
      %v6032 = vsel %vm479, %v6027, %v6031
      %v6033 = vshrl.u32 %v6001, 16
      %v6035 = vor.u32 %v6033, %v6031
      %v6037 = vshll.u32 %v6002, 16
      %v6039 = vrot.slane %v6037, 1
      %v6040 = vsel %vm479, %v6035, %v6039
      %v6041 = vshrl.u32 %v6002, 16
      %v6043 = vor.u32 %v6041, %v6039
      %v6045 = vshll.u32 %v6003, 16
      %v6047 = vrot.slane %v6045, 1
      %v6048 = vsel %vm479, %v6043, %v6047
      %v6049 = vshrl.u32 %v6003, 16
      %v6051 = vor.u32 %v6049, %v6047
      %v6053 = vshll.u32 %v6004, 16
      %v6055 = vrot.slane %v6053, 1
      %v6056 = vsel %vm479, %v6051, %v6055
      %v6057 = vshrl.u32 %v6004, 16
      %v6059 = vor.u32 %v6057, %v6055
      %v6061 = vshll.u32 %v6005, 16
      %v6063 = vrot.slane %v6061, 1
      %v6064 = vsel %vm479, %v6059, %v6063
      %v6065 = vshrl.u32 %v6005, 16
      %v6067 = vor.u32 %v6065, %v6063
      %v6069 = vshll.u32 %v6006, 16
      %v6071 = vrot.slane %v6069, 1
      %v6072 = vsel %vm479, %v6067, %v6071
      %v6073 = vshrl.u32 %v6006, 16
      %v6075 = vor.u32 %v6073, %v6071
      %v6077 = vshll.u32 %v6007, 16
      %v6079 = vrot.slane %v6077, 1
      %v6080 = vsel %vm479, %v6075, %v6079
      %v6081 = vshrl.u32 %v6007, 16
      %v6083 = vor.u32 %v6081, %v6079
      %v6085 = vshll.u32 %v6008, 16
      %v6087 = vrot.slane %v6085, 1
      %v6088 = vsel %vm479, %v6083, %v6087
      %v6089 = vshrl.u32 %v6008, 16
      %v6091 = vor.u32 %v6089, %v6087
      %v6093 = vshll.u32 %v6009, 16
      %v6095 = vrot.slane %v6093, 1
      %v6096 = vsel %vm479, %v6091, %v6095
      %v6097 = vshrl.u32 %v6009, 16
      %v6099 = vor.u32 %v6097, %v6095
      %v6101 = vshll.u32 %v6010, 16
      %v6103 = vrot.slane %v6101, 1
      %v6104 = vsel %vm479, %v6099, %v6103
      %v6105 = vshrl.u32 %v6010, 16
      %v6107 = vor.u32 %v6105, %v6103
      %v6109 = vshll.u32 %v6011, 16
      %v6111 = vrot.slane %v6109, 1
      %v6112 = vsel %vm479, %v6107, %v6111
      %v6113 = vshrl.u32 %v6011, 16
      %v6115 = vor.u32 %v6113, %v6111
      %v6117 = vshll.u32 %v6012, 16
      %v6119 = vrot.slane %v6117, 1
      %v6120 = vsel %vm479, %v6115, %v6119
      %v6125 = vunpack.c.l.b16 %v5941
      %v6126 = vunpack.c.l.b16 %v5942
      %v6127 = vunpack.c.l.b16 %v5943
      %v6128 = vunpack.c.l.b16 %v5944
      %v6129 = vpack.c.b16 %v6126, %v6125
      %v6130 = vpack.c.b16 %v6128, %v6127
      %v6134 = vsel %vm4025, %v6024, 0
      %v6137 = vsel %vm4025, %v6032, 0
      %v6140 = vsel %vm4025, %v6040, 0
      %v6143 = vsel %vm4025, %v6048, 0
      %v6146 = vsel %vm4025, %v6056, 0
      %v6149 = vsel %vm4025, %v6064, 0
      %v6152 = vsel %vm4025, %v6072, 0
      %v6155 = vsel %vm4025, %v6080, 0
      %v6158 = vsel %vm4025, %v6088, 0
      %v6161 = vsel %vm4025, %v6096, 0
      %v6164 = vsel %vm4025, %v6104, 0
      %v6167 = vsel %vm4025, %v6112, 0
      %v6170 = vsel %vm4025, %v6120, 0
      %6172 = vmatprep.subr.bf16.mxu0 0
      %6173 = vmatpush1.bf16.msra.mxu0 %v6129
      %6174 = vmatprep.subr.bf16.mxu0 0
      %6175 = vmatpush1.bf16.msra.mxu0 %v6130
      %6176 = vmatprep.subr.bf16.mxu0 0
      %6177 = vmatpush1.bf16.msra.mxu0 0
      %6178 = vmatprep.subr.bf16.mxu0 0
      %6179 = vmatpush1.bf16.msra.mxu0 0
      %6180 = vmatprep.subr.bf16.mxu0 0
      %6181 = vmatpush1.bf16.msra.mxu0 0
      %6182 = vmatprep.subr.bf16.mxu0 0
      %6183 = vmatpush1.bf16.msra.mxu0 0
      %6184 = vmatprep.subr.bf16.mxu0 0
      %6185 = vmatpush1.bf16.msra.mxu0 0
      %6186 = vmatprep.subr.bf16.mxu0 0
      %6187 = vmatpush1.bf16.msra.mxu0 0
      %6188 = vmatprep.subr.bf16.mxu0 0
      %6189 = vmatpush1.bf16.msra.mxu0 0
      %6190 = vmatprep.subr.bf16.mxu0 0
      %6191 = vmatpush1.bf16.msra.mxu0 0
      %6192 = vmatprep.subr.bf16.mxu0 0
      %6193 = vmatpush1.bf16.msra.mxu0 0
      %6194 = vmatprep.subr.bf16.mxu0 0
      %6195 = vmatpush1.bf16.msra.mxu0 0
      %6196 = vmatprep.subr.bf16.mxu0 0
      %6197 = vmatpush1.bf16.msra.mxu0 0
      %6198 = vmatprep.subr.bf16.mxu0 0
      %6199 = vmatpush1.bf16.msra.mxu0 0
      %6200 = vmatprep.subr.bf16.mxu0 0
      %6201 = vmatpush1.bf16.msra.mxu0 0
      %6202 = vmatprep.subr.bf16.mxu0 0
      %6203 = vmatpush1.bf16.msra.mxu0 0
      %6204 = vmatprep.mubr.bf16.mxu0 0
      %6205 = vmatmul.mubr.bf16.gmra.mrb[0].mxu0 %v6134
      %v6206 = vpop.f32.mrb[0].mxu0
      %v6207 = vadd.f32 0.0, %v6206
      %v6208 = vpop.f32.mrb[0].mxu0
      %v6209 = vpop.f32.mrb[0].mxu0
      %v6210 = vadd.f32 0.0, %v6209
      %v6211 = vpop.f32.mrb[0].mxu0
      %6212 = vmatprep.mubr.bf16.mxu0 0
      %6213 = vmatmul.mubr.bf16.gmra.mrb[0].mxu0 %v6137
      %v6214 = vpop.f32.mrb[0].mxu0
      %v6215 = vadd.f32 0.0, %v6214
      %v6216 = vpop.f32.mrb[0].mxu0
      %v6217 = vpop.f32.mrb[0].mxu0
      %v6218 = vadd.f32 0.0, %v6217
      %v6219 = vpop.f32.mrb[0].mxu0
      %6220 = vmatprep.mubr.bf16.mxu0 0
      %6221 = vmatmul.mubr.bf16.gmra.mrb[0].mxu0 %v6140
      %v6222 = vpop.f32.mrb[0].mxu0
      %v6223 = vadd.f32 0.0, %v6222
      %v6224 = vpop.f32.mrb[0].mxu0
      %v6225 = vpop.f32.mrb[0].mxu0
      %v6226 = vadd.f32 0.0, %v6225
      %v6227 = vpop.f32.mrb[0].mxu0
      %6228 = vmatprep.mubr.bf16.mxu0 0
      %6229 = vmatmul.mubr.bf16.gmra.mrb[0].mxu0 %v6143
      %v6230 = vpop.f32.mrb[0].mxu0
      %v6231 = vadd.f32 0.0, %v6230
      %v6232 = vpop.f32.mrb[0].mxu0
      %v6233 = vpop.f32.mrb[0].mxu0
      %v6234 = vadd.f32 0.0, %v6233
      %v6235 = vpop.f32.mrb[0].mxu0
      %6236 = vmatprep.mubr.bf16.mxu0 0
      %6237 = vmatmul.mubr.bf16.gmra.mrb[0].mxu0 %v6146
      %v6238 = vpop.f32.mrb[0].mxu0
      %v6239 = vadd.f32 0.0, %v6238
      %v6240 = vpop.f32.mrb[0].mxu0
      %v6241 = vpop.f32.mrb[0].mxu0
      %v6242 = vadd.f32 0.0, %v6241
      %v6243 = vpop.f32.mrb[0].mxu0
      %6244 = vmatprep.mubr.bf16.mxu0 0
      %6245 = vmatmul.mubr.bf16.gmra.mrb[0].mxu0 %v6149
      %v6246 = vpop.f32.mrb[0].mxu0
      %v6247 = vadd.f32 0.0, %v6246
      %v6248 = vpop.f32.mrb[0].mxu0
      %v6249 = vpop.f32.mrb[0].mxu0
      %v6250 = vadd.f32 0.0, %v6249
      %v6251 = vpop.f32.mrb[0].mxu0
      %6252 = vmatprep.mubr.bf16.mxu0 0
      %6253 = vmatmul.mubr.bf16.gmra.mrb[0].mxu0 %v6152
      %v6254 = vpop.f32.mrb[0].mxu0
      %v6255 = vadd.f32 0.0, %v6254
      %v6256 = vpop.f32.mrb[0].mxu0
      %v6257 = vpop.f32.mrb[0].mxu0
      %v6258 = vadd.f32 0.0, %v6257
      %v6259 = vpop.f32.mrb[0].mxu0
      %6260 = vmatprep.mubr.bf16.mxu0 0
      %6261 = vmatmul.mubr.bf16.gmra.mrb[0].mxu0 %v6155
      %v6262 = vpop.f32.mrb[0].mxu0
      %v6263 = vadd.f32 0.0, %v6262
      %v6264 = vpop.f32.mrb[0].mxu0
      %v6265 = vpop.f32.mrb[0].mxu0
      %v6266 = vadd.f32 0.0, %v6265
      %v6267 = vpop.f32.mrb[0].mxu0
      %6268 = vmatprep.mubr.bf16.mxu0 0
      %6269 = vmatmul.mubr.bf16.gmra.mrb[0].mxu0 %v6158
      %v6270 = vpop.f32.mrb[0].mxu0
      %v6271 = vadd.f32 0.0, %v6270
      %v6272 = vpop.f32.mrb[0].mxu0
      %v6273 = vpop.f32.mrb[0].mxu0
      %v6274 = vadd.f32 0.0, %v6273
      %v6275 = vpop.f32.mrb[0].mxu0
      %6276 = vmatprep.mubr.bf16.mxu0 0
      %6277 = vmatmul.mubr.bf16.gmra.mrb[0].mxu0 %v6161
      %v6278 = vpop.f32.mrb[0].mxu0
      %v6279 = vadd.f32 0.0, %v6278
      %v6280 = vpop.f32.mrb[0].mxu0
      %v6281 = vpop.f32.mrb[0].mxu0
      %v6282 = vadd.f32 0.0, %v6281
      %v6283 = vpop.f32.mrb[0].mxu0
      %6284 = vmatprep.mubr.bf16.mxu0 0
      %6285 = vmatmul.mubr.bf16.gmra.mrb[0].mxu0 %v6164
      %v6286 = vpop.f32.mrb[0].mxu0
      %v6287 = vadd.f32 0.0, %v6286
      %v6288 = vpop.f32.mrb[0].mxu0
      %v6289 = vpop.f32.mrb[0].mxu0
      %v6290 = vadd.f32 0.0, %v6289
      %v6291 = vpop.f32.mrb[0].mxu0
      %6292 = vmatprep.mubr.bf16.mxu0 0
      %6293 = vmatmul.mubr.bf16.gmra.mrb[0].mxu0 %v6167
      %v6294 = vpop.f32.mrb[0].mxu0
      %v6295 = vadd.f32 0.0, %v6294
      %v6296 = vpop.f32.mrb[0].mxu0
      %v6297 = vpop.f32.mrb[0].mxu0
      %v6298 = vadd.f32 0.0, %v6297
      %v6299 = vpop.f32.mrb[0].mxu0
      %6300 = vmatprep.mubr.bf16.mxu0 0
      %6301 = vmatmul.mubr.bf16.gmra.mrb[0].mxu0 %v6170
      %v6302 = vpop.f32.mrb[0].mxu0
      %v6303 = vadd.f32 0.0, %v6302
      %v6304 = vpop.f32.mrb[0].mxu0
      %v6305 = vpop.f32.mrb[0].mxu0
      %v6306 = vadd.f32 0.0, %v6305
      %v6307 = vpop.f32.mrb[0].mxu0
      %6308 = vdwg.mxu0
      %v6309 = vadd.f32 %v5888, %v6207
      %v6310 = vadd.f32 %v5889, %v6210
      %v6311 = vadd.f32 %v5890, %v6215
      %v6312 = vadd.f32 %v5891, %v6218
      %v6313 = vadd.f32 %v5892, %v6223
      %v6314 = vadd.f32 %v5893, %v6226
      %v6315 = vadd.f32 %v5894, %v6231
      %v6316 = vadd.f32 %v5895, %v6234
      %v6317 = vadd.f32 %v5896, %v6239
      %v6318 = vadd.f32 %v5897, %v6242
      %v6319 = vadd.f32 %v5898, %v6247
      %v6320 = vadd.f32 %v5899, %v6250
      %v6321 = vadd.f32 %v5900, %v6255
      %v6322 = vadd.f32 %v5901, %v6258
      %v6323 = vadd.f32 %v5902, %v6263
      %v6324 = vadd.f32 %v5903, %v6266
      %v6325 = vadd.f32 %v5904, %v6271
      %v6326 = vadd.f32 %v5905, %v6274
      %v6327 = vadd.f32 %v5906, %v6279
      %v6328 = vadd.f32 %v5907, %v6282
      %v6329 = vadd.f32 %v5908, %v6287
      %v6330 = vadd.f32 %v5909, %v6290
      %v6331 = vadd.f32 %v5910, %v6295
      %v6332 = vadd.f32 %v5911, %v6298
      %v6333 = vadd.f32 %v5912, %v6303
      %v6334 = vadd.f32 %v5913, %v6306
      %v6335 = vld [vmem:[%s347 + $0x10] sm:$0xe]
      %v6336 = vld [vmem:[%s3 + $0x80] sm:$0xf]
      %v6337 = vld [vmem:[%s3 + $0x84] sm:$0xf]
      %v6338 = vld [vmem:[%s3 + $0x88] sm:$0xf]
      %v6339 = vld [vmem:[%s3 + $0x8c] sm:$0xf]
      %v6341 = vunpack.c.l.b16 %v6335
      %v6342 = vpack.c.b16 %v5973, %v6341
      %v6343 = vrot.slane %v6342, 1
      %v6344 = vrot.slane %v6000, 1
      %v6345 = vsel %vm1033, %v6343, %v6344
      %v6346 = vrot.slane %v6001, 1
      %v6347 = vsel %vm1033, %v6344, %v6346
      %v6348 = vrot.slane %v6002, 1
      %v6349 = vsel %vm1033, %v6346, %v6348
      %v6350 = vrot.slane %v6003, 1
      %v6351 = vsel %vm1033, %v6348, %v6350
      %v6352 = vrot.slane %v6004, 1
      %v6353 = vsel %vm1033, %v6350, %v6352
      %v6354 = vrot.slane %v6005, 1
      %v6355 = vsel %vm1033, %v6352, %v6354
      %v6356 = vrot.slane %v6006, 1
      %v6357 = vsel %vm1033, %v6354, %v6356
      %v6358 = vrot.slane %v6007, 1
      %v6359 = vsel %vm1033, %v6356, %v6358
      %v6360 = vrot.slane %v6008, 1
      %v6361 = vsel %vm1033, %v6358, %v6360
      %v6362 = vrot.slane %v6009, 1
      %v6363 = vsel %vm1033, %v6360, %v6362
      %v6364 = vrot.slane %v6010, 1
      %v6365 = vsel %vm1033, %v6362, %v6364
      %v6366 = vrot.slane %v6011, 1
      %v6367 = vsel %vm1033, %v6364, %v6366
      %v6368 = vrot.slane %v6012, 1
      %v6369 = vsel %vm1033, %v6366, %v6368
      %v6374 = vunpack.c.l.b16 %v6336
      %v6375 = vunpack.c.l.b16 %v6337
      %v6376 = vunpack.c.l.b16 %v6338
      %v6377 = vunpack.c.l.b16 %v6339
      %v6378 = vpack.c.b16 %v6375, %v6374
      %v6379 = vpack.c.b16 %v6377, %v6376
      %v6383 = vsel %vm4025, %v6345, 0
      %v6386 = vsel %vm4025, %v6347, 0
      %v6389 = vsel %vm4025, %v6349, 0
      %v6392 = vsel %vm4025, %v6351, 0
      %v6395 = vsel %vm4025, %v6353, 0
      %v6398 = vsel %vm4025, %v6355, 0
      %v6401 = vsel %vm4025, %v6357, 0
      %v6404 = vsel %vm4025, %v6359, 0
      %v6407 = vsel %vm4025, %v6361, 0
      %v6410 = vsel %vm4025, %v6363, 0
      %v6413 = vsel %vm4025, %v6365, 0
      %v6416 = vsel %vm4025, %v6367, 0
      %v6419 = vsel %vm4025, %v6369, 0
      %6421 = vmatprep.subr.bf16.mxu0 0
      %6422 = vmatpush1.bf16.msra.mxu0 %v6378
      %6423 = vmatprep.subr.bf16.mxu0 0
      %6424 = vmatpush1.bf16.msra.mxu0 %v6379
      %6425 = vmatprep.subr.bf16.mxu0 0
      %6426 = vmatpush1.bf16.msra.mxu0 0
      %6427 = vmatprep.subr.bf16.mxu0 0
      %6428 = vmatpush1.bf16.msra.mxu0 0
      %6429 = vmatprep.subr.bf16.mxu0 0
      %6430 = vmatpush1.bf16.msra.mxu0 0
      %6431 = vmatprep.subr.bf16.mxu0 0
      %6432 = vmatpush1.bf16.msra.mxu0 0
      %6433 = vmatprep.subr.bf16.mxu0 0
      %6434 = vmatpush1.bf16.msra.mxu0 0
      %6435 = vmatprep.subr.bf16.mxu0 0
      %6436 = vmatpush1.bf16.msra.mxu0 0
      %6437 = vmatprep.subr.bf16.mxu0 0
      %6438 = vmatpush1.bf16.msra.mxu0 0
      %6439 = vmatprep.subr.bf16.mxu0 0
      %6440 = vmatpush1.bf16.msra.mxu0 0
      %6441 = vmatprep.subr.bf16.mxu0 0
      %6442 = vmatpush1.bf16.msra.mxu0 0
      %6443 = vmatprep.subr.bf16.mxu0 0
      %6444 = vmatpush1.bf16.msra.mxu0 0
      %6445 = vmatprep.subr.bf16.mxu0 0
      %6446 = vmatpush1.bf16.msra.mxu0 0
      %6447 = vmatprep.subr.bf16.mxu0 0
      %6448 = vmatpush1.bf16.msra.mxu0 0
      %6449 = vmatprep.subr.bf16.mxu0 0
      %6450 = vmatpush1.bf16.msra.mxu0 0
      %6451 = vmatprep.subr.bf16.mxu0 0
      %6452 = vmatpush1.bf16.msra.mxu0 0
      %6453 = vmatprep.mubr.bf16.mxu0 0
      %6454 = vmatmul.mubr.bf16.gmra.mrb[0].mxu0 %v6383
      %v6455 = vpop.f32.mrb[0].mxu0
      %v6456 = vadd.f32 0.0, %v6455
      %v6457 = vpop.f32.mrb[0].mxu0
      %v6458 = vpop.f32.mrb[0].mxu0
      %v6459 = vadd.f32 0.0, %v6458
      %v6460 = vpop.f32.mrb[0].mxu0
      %6461 = vmatprep.mubr.bf16.mxu0 0
      %6462 = vmatmul.mubr.bf16.gmra.mrb[0].mxu0 %v6386
      %v6463 = vpop.f32.mrb[0].mxu0
      %v6464 = vadd.f32 0.0, %v6463
      %v6465 = vpop.f32.mrb[0].mxu0
      %v6466 = vpop.f32.mrb[0].mxu0
      %v6467 = vadd.f32 0.0, %v6466
      %v6468 = vpop.f32.mrb[0].mxu0
      %6469 = vmatprep.mubr.bf16.mxu0 0
      %6470 = vmatmul.mubr.bf16.gmra.mrb[0].mxu0 %v6389
      %v6471 = vpop.f32.mrb[0].mxu0
      %v6472 = vadd.f32 0.0, %v6471
      %v6473 = vpop.f32.mrb[0].mxu0
      %v6474 = vpop.f32.mrb[0].mxu0
      %v6475 = vadd.f32 0.0, %v6474
      %v6476 = vpop.f32.mrb[0].mxu0
      %6477 = vmatprep.mubr.bf16.mxu0 0
      %6478 = vmatmul.mubr.bf16.gmra.mrb[0].mxu0 %v6392
      %v6479 = vpop.f32.mrb[0].mxu0
      %v6480 = vadd.f32 0.0, %v6479
      %v6481 = vpop.f32.mrb[0].mxu0
      %v6482 = vpop.f32.mrb[0].mxu0
      %v6483 = vadd.f32 0.0, %v6482
      %v6484 = vpop.f32.mrb[0].mxu0
      %6485 = vmatprep.mubr.bf16.mxu0 0
      %6486 = vmatmul.mubr.bf16.gmra.mrb[0].mxu0 %v6395
      %v6487 = vpop.f32.mrb[0].mxu0
      %v6488 = vadd.f32 0.0, %v6487
      %v6489 = vpop.f32.mrb[0].mxu0
      %v6490 = vpop.f32.mrb[0].mxu0
      %v6491 = vadd.f32 0.0, %v6490
      %v6492 = vpop.f32.mrb[0].mxu0
      %6493 = vmatprep.mubr.bf16.mxu0 0
      %6494 = vmatmul.mubr.bf16.gmra.mrb[0].mxu0 %v6398
      %v6495 = vpop.f32.mrb[0].mxu0
      %v6496 = vadd.f32 0.0, %v6495
      %v6497 = vpop.f32.mrb[0].mxu0
      %v6498 = vpop.f32.mrb[0].mxu0
      %v6499 = vadd.f32 0.0, %v6498
      %v6500 = vpop.f32.mrb[0].mxu0
      %6501 = vmatprep.mubr.bf16.mxu0 0
      %6502 = vmatmul.mubr.bf16.gmra.mrb[0].mxu0 %v6401
      %v6503 = vpop.f32.mrb[0].mxu0
      %v6504 = vadd.f32 0.0, %v6503
      %v6505 = vpop.f32.mrb[0].mxu0
      %v6506 = vpop.f32.mrb[0].mxu0
      %v6507 = vadd.f32 0.0, %v6506
      %v6508 = vpop.f32.mrb[0].mxu0
      %6509 = vmatprep.mubr.bf16.mxu0 0
      %6510 = vmatmul.mubr.bf16.gmra.mrb[0].mxu0 %v6404
      %v6511 = vpop.f32.mrb[0].mxu0
      %v6512 = vadd.f32 0.0, %v6511
      %v6513 = vpop.f32.mrb[0].mxu0
      %v6514 = vpop.f32.mrb[0].mxu0
      %v6515 = vadd.f32 0.0, %v6514
      %v6516 = vpop.f32.mrb[0].mxu0
      %6517 = vmatprep.mubr.bf16.mxu0 0
      %6518 = vmatmul.mubr.bf16.gmra.mrb[0].mxu0 %v6407
      %v6519 = vpop.f32.mrb[0].mxu0
      %v6520 = vadd.f32 0.0, %v6519
      %v6521 = vpop.f32.mrb[0].mxu0
      %v6522 = vpop.f32.mrb[0].mxu0
      %v6523 = vadd.f32 0.0, %v6522
      %v6524 = vpop.f32.mrb[0].mxu0
      %6525 = vmatprep.mubr.bf16.mxu0 0
      %6526 = vmatmul.mubr.bf16.gmra.mrb[0].mxu0 %v6410
      %v6527 = vpop.f32.mrb[0].mxu0
      %v6528 = vadd.f32 0.0, %v6527
      %v6529 = vpop.f32.mrb[0].mxu0
      %v6530 = vpop.f32.mrb[0].mxu0
      %v6531 = vadd.f32 0.0, %v6530
      %v6532 = vpop.f32.mrb[0].mxu0
      %6533 = vmatprep.mubr.bf16.mxu0 0
      %6534 = vmatmul.mubr.bf16.gmra.mrb[0].mxu0 %v6413
      %v6535 = vpop.f32.mrb[0].mxu0
      %v6536 = vadd.f32 0.0, %v6535
      %v6537 = vpop.f32.mrb[0].mxu0
      %v6538 = vpop.f32.mrb[0].mxu0
      %v6539 = vadd.f32 0.0, %v6538
      %v6540 = vpop.f32.mrb[0].mxu0
      %6541 = vmatprep.mubr.bf16.mxu0 0
      %6542 = vmatmul.mubr.bf16.gmra.mrb[0].mxu0 %v6416
      %v6543 = vpop.f32.mrb[0].mxu0
      %v6544 = vadd.f32 0.0, %v6543
      %v6545 = vpop.f32.mrb[0].mxu0
      %v6546 = vpop.f32.mrb[0].mxu0
      %v6547 = vadd.f32 0.0, %v6546
      %v6548 = vpop.f32.mrb[0].mxu0
      %6549 = vmatprep.mubr.bf16.mxu0 0
      %6550 = vmatmul.mubr.bf16.gmra.mrb[0].mxu0 %v6419
      %v6551 = vpop.f32.mrb[0].mxu0
      %v6552 = vadd.f32 0.0, %v6551
      %v6553 = vpop.f32.mrb[0].mxu0
      %v6554 = vpop.f32.mrb[0].mxu0
      %v6555 = vadd.f32 0.0, %v6554
      %v6556 = vpop.f32.mrb[0].mxu0
      %6557 = vdwg.mxu0
      %v6558 = vadd.f32 %v6309, %v6456
      %v6559 = vadd.f32 %v6310, %v6459
      %v6560 = vadd.f32 %v6311, %v6464
      %v6561 = vadd.f32 %v6312, %v6467
      %v6562 = vadd.f32 %v6313, %v6472
      %v6563 = vadd.f32 %v6314, %v6475
      %v6564 = vadd.f32 %v6315, %v6480
      %v6565 = vadd.f32 %v6316, %v6483
      %v6566 = vadd.f32 %v6317, %v6488
      %v6567 = vadd.f32 %v6318, %v6491
      %v6568 = vadd.f32 %v6319, %v6496
      %v6569 = vadd.f32 %v6320, %v6499
      %v6570 = vadd.f32 %v6321, %v6504
      %v6571 = vadd.f32 %v6322, %v6507
      %v6572 = vadd.f32 %v6323, %v6512
      %v6573 = vadd.f32 %v6324, %v6515
      %v6574 = vadd.f32 %v6325, %v6520
      %v6575 = vadd.f32 %v6326, %v6523
      %v6576 = vadd.f32 %v6327, %v6528
      %v6577 = vadd.f32 %v6328, %v6531
      %v6578 = vadd.f32 %v6329, %v6536
      %v6579 = vadd.f32 %v6330, %v6539
      %v6580 = vadd.f32 %v6331, %v6544
      %v6581 = vadd.f32 %v6332, %v6547
      %v6582 = vadd.f32 %v6333, %v6552
      %v6583 = vadd.f32 %v6334, %v6555
      %v6584 = vld [vmem:[%s4] sm:$0x1]
      %v6586 = vlaneseq
      %v6587 = vshrl.u32 %v6586, 7
      %v6588 = vsub.s32 0, %v6587
      %v6589 = vrot.slane %v6584, %v6588
      %v6591 = vadd.f32 %v6558, %v6589
      %v6592 = vadd.f32 %v6559, %v6589
      %v6593 = vadd.f32 %v6560, %v6589
      %v6594 = vadd.f32 %v6561, %v6589
      %v6595 = vadd.f32 %v6562, %v6589
      %v6596 = vadd.f32 %v6563, %v6589
      %v6597 = vadd.f32 %v6564, %v6589
      %v6598 = vadd.f32 %v6565, %v6589
      %v6599 = vadd.f32 %v6566, %v6589
      %v6600 = vadd.f32 %v6567, %v6589
      %v6601 = vadd.f32 %v6568, %v6589
      %v6602 = vadd.f32 %v6569, %v6589
      %v6603 = vadd.f32 %v6570, %v6589
      %v6604 = vadd.f32 %v6571, %v6589
      %v6605 = vadd.f32 %v6572, %v6589
      %v6606 = vadd.f32 %v6573, %v6589
      %v6607 = vadd.f32 %v6574, %v6589
      %v6608 = vadd.f32 %v6575, %v6589
      %v6609 = vadd.f32 %v6576, %v6589
      %v6610 = vadd.f32 %v6577, %v6589
      %v6611 = vadd.f32 %v6578, %v6589
      %v6612 = vadd.f32 %v6579, %v6589
      %v6613 = vadd.f32 %v6580, %v6589
      %v6614 = vadd.f32 %v6581, %v6589
      %v6615 = vadd.f32 %v6582, %v6589
      %v6616 = vadd.f32 %v6583, %v6589
      %v6617 = vpack.c.bf16 %v6592, %v6591
      %v6618 = vpack.c.bf16 %v6594, %v6593
      %v6619 = vpack.c.bf16 %v6596, %v6595
      %v6620 = vpack.c.bf16 %v6598, %v6597
      %v6621 = vpack.c.bf16 %v6600, %v6599
      %v6622 = vpack.c.bf16 %v6602, %v6601
      %v6623 = vpack.c.bf16 %v6604, %v6603
      %v6624 = vpack.c.bf16 %v6606, %v6605
      %v6625 = vpack.c.bf16 %v6608, %v6607
      %v6626 = vpack.c.bf16 %v6610, %v6609
      %v6627 = vpack.c.bf16 %v6612, %v6611
      %v6628 = vpack.c.bf16 %v6614, %v6613
      %v6629 = vpack.c.bf16 %v6616, %v6615
      %v6643 = vunpack.c.l.b16 %v6617
      %v6644 = vunpack.c.h.b16 %v6617
      %v6645 = vunpack.c.l.b16 %v6618
      %v6646 = vunpack.c.h.b16 %v6618
      %v6647 = vunpack.c.l.b16 %v6619
      %v6648 = vunpack.c.h.b16 %v6619
      %v6649 = vunpack.c.l.b16 %v6620
      %v6650 = vunpack.c.h.b16 %v6620
      %v6651 = vunpack.c.l.b16 %v6621
      %v6652 = vunpack.c.h.b16 %v6621
      %v6653 = vunpack.c.l.b16 %v6622
      %v6654 = vunpack.c.h.b16 %v6622
      %v6655 = vunpack.c.l.b16 %v6623
      %v6656 = vunpack.c.h.b16 %v6623
      %v6657 = vunpack.c.l.b16 %v6624
      %v6658 = vunpack.c.h.b16 %v6624
      %v6659 = vunpack.c.l.b16 %v6625
      %v6660 = vunpack.c.h.b16 %v6625
      %v6661 = vunpack.c.l.b16 %v6626
      %v6662 = vunpack.c.h.b16 %v6626
      %v6663 = vunpack.c.l.b16 %v6627
      %v6664 = vunpack.c.h.b16 %v6627
      %v6665 = vunpack.c.l.b16 %v6628
      %v6666 = vunpack.c.h.b16 %v6628
      %v6667 = vunpack.c.l.b16 %v6629
      %v6668 = vunpack.c.h.b16 %v6629
      %v6669 = vpack.c.b16 %v6643, %v6643
      %v6670 = vpack.c.b16 %v6644, %v6644
      %v6671 = vpack.c.b16 %v6645, %v6645
      %v6672 = vpack.c.b16 %v6646, %v6646
      %v6673 = vpack.c.b16 %v6647, %v6647
      %v6674 = vpack.c.b16 %v6648, %v6648
      %v6675 = vpack.c.b16 %v6649, %v6649
      %v6676 = vpack.c.b16 %v6650, %v6650
      %v6677 = vpack.c.b16 %v6651, %v6651
      %v6678 = vpack.c.b16 %v6652, %v6652
      %v6679 = vpack.c.b16 %v6653, %v6653
      %v6680 = vpack.c.b16 %v6654, %v6654
      %v6681 = vpack.c.b16 %v6655, %v6655
      %v6682 = vpack.c.b16 %v6656, %v6656
      %v6683 = vpack.c.b16 %v6657, %v6657
      %v6684 = vpack.c.b16 %v6658, %v6658
      %v6685 = vpack.c.b16 %v6659, %v6659
      %v6686 = vpack.c.b16 %v6660, %v6660
      %v6687 = vpack.c.b16 %v6661, %v6661
      %v6688 = vpack.c.b16 %v6662, %v6662
      %v6689 = vpack.c.b16 %v6663, %v6663
      %v6690 = vpack.c.b16 %v6664, %v6664
      %v6691 = vpack.c.b16 %v6665, %v6665
      %v6692 = vpack.c.b16 %v6666, %v6666
      %v6693 = vpack.c.b16 %v6667, %v6667
      %v6694 = vpack.c.b16 %v6668, %v6668
      %vm6721 = vcmask 519168
      %6722 = vst.msk [vmem:[%s352] sm:$0xf] %vm6721, %v6669
      %6723 = vst.msk [vmem:[%s352 + $0x4] sm:$0xf] %vm6721, %v6670
      %6724 = vst.msk [vmem:[%s352 + $0x8] sm:$0xf] %vm6721, %v6671
      %6725 = vst.msk [vmem:[%s352 + $0xc] sm:$0xf] %vm6721, %v6672
      %6726 = vst.msk [vmem:[%s352 + $0x10] sm:$0xf] %vm6721, %v6673
      %6727 = vst.msk [vmem:[%s352 + $0x14] sm:$0xf] %vm6721, %v6674
      %6728 = vst.msk [vmem:[%s352 + $0x18] sm:$0xf] %vm6721, %v6675
      %6729 = vst.msk [vmem:[%s352 + $0x1c] sm:$0xf] %vm6721, %v6676
      %6730 = vst.msk [vmem:[%s352 + $0x20] sm:$0xf] %vm6721, %v6677
      %6731 = vst.msk [vmem:[%s352 + $0x24] sm:$0xf] %vm6721, %v6678
      %6732 = vst.msk [vmem:[%s352 + $0x28] sm:$0xf] %vm6721, %v6679
      %6733 = vst.msk [vmem:[%s352 + $0x2c] sm:$0xf] %vm6721, %v6680
      %6734 = vst.msk [vmem:[%s352 + $0x30] sm:$0xf] %vm6721, %v6681
      %6735 = vst.msk [vmem:[%s352 + $0x34] sm:$0xf] %vm6721, %v6682
      %6736 = vst.msk [vmem:[%s352 + $0x38] sm:$0xf] %vm6721, %v6683
      %6737 = vst.msk [vmem:[%s352 + $0x3c] sm:$0xf] %vm6721, %v6684
      %6738 = vst.msk [vmem:[%s352 + $0x40] sm:$0xf] %vm6721, %v6685
      %6739 = vst.msk [vmem:[%s352 + $0x44] sm:$0xf] %vm6721, %v6686
      %6740 = vst.msk [vmem:[%s352 + $0x48] sm:$0xf] %vm6721, %v6687
      %6741 = vst.msk [vmem:[%s352 + $0x4c] sm:$0xf] %vm6721, %v6688
      %6742 = vst.msk [vmem:[%s352 + $0x50] sm:$0xf] %vm6721, %v6689
      %6743 = vst.msk [vmem:[%s352 + $0x54] sm:$0xf] %vm6721, %v6690
      %6744 = vst.msk [vmem:[%s352 + $0x58] sm:$0xf] %vm6721, %v6691
      %6745 = vst.msk [vmem:[%s352 + $0x5c] sm:$0xf] %vm6721, %v6692
      %6746 = vst.msk [vmem:[%s352 + $0x60] sm:$0xf] %vm6721, %v6693
      %6747 = vst.msk [vmem:[%s352 + $0x64] sm:$0xf] %vm6721, %v6694
      %v6748 = vld [vmem:[%s352] sm:$0xf]
      %v6749 = vld [vmem:[%s352 + $0x4] sm:$0xf]
      %v6750 = vld [vmem:[%s352 + $0x8] sm:$0xf]
      %v6751 = vld [vmem:[%s352 + $0xc] sm:$0xf]
      %v6752 = vld [vmem:[%s352 + $0x10] sm:$0xf]
      %v6753 = vld [vmem:[%s352 + $0x14] sm:$0xf]
      %v6754 = vld [vmem:[%s352 + $0x18] sm:$0xf]
      %v6755 = vld [vmem:[%s352 + $0x1c] sm:$0xf]
      %v6756 = vld [vmem:[%s352 + $0x20] sm:$0xf]
      %v6757 = vld [vmem:[%s352 + $0x24] sm:$0xf]
      %v6758 = vld [vmem:[%s352 + $0x28] sm:$0xf]
      %v6759 = vld [vmem:[%s352 + $0x2c] sm:$0xf]
      %v6760 = vld [vmem:[%s352 + $0x30] sm:$0xf]
      %v6761 = vld [vmem:[%s352 + $0x34] sm:$0xf]
      %v6762 = vld [vmem:[%s352 + $0x38] sm:$0xf]
      %v6763 = vld [vmem:[%s352 + $0x3c] sm:$0xf]
      %v6764 = vld [vmem:[%s352 + $0x40] sm:$0xf]
      %v6765 = vld [vmem:[%s352 + $0x44] sm:$0xf]
      %v6766 = vld [vmem:[%s352 + $0x48] sm:$0xf]
      %v6767 = vld [vmem:[%s352 + $0x4c] sm:$0xf]
      %v6768 = vld [vmem:[%s5] sm:$0xf]
      %v6769 = vld [vmem:[%s5 + $0x4] sm:$0xf]
      %v6770 = vld [vmem:[%s5 + $0x8] sm:$0xf]
      %v6771 = vld [vmem:[%s5 + $0xc] sm:$0xf]
      %v6772 = vld [vmem:[%s5 + $0x10] sm:$0xf]
      %v6773 = vld [vmem:[%s5 + $0x14] sm:$0xf]
      %v6774 = vld [vmem:[%s5 + $0x18] sm:$0xf]
      %v6775 = vld [vmem:[%s5 + $0x1c] sm:$0xf]
      %v6776 = vld [vmem:[%s352 + $0x50] sm:$0x1]
      %v6777 = vld [vmem:[%s5 + $0x20] sm:$0xf]
      %v6778 = vld [vmem:[%s5 + $0x24] sm:$0xf]
      %v6779 = vld [vmem:[%s5 + $0x28] sm:$0xf]
      %v6780 = vld [vmem:[%s5 + $0x2c] sm:$0xf]
      %v6781 = vld [vmem:[%s5 + $0x30] sm:$0xf]
      %v6782 = vld [vmem:[%s5 + $0x34] sm:$0xf]
      %v6783 = vld [vmem:[%s5 + $0x38] sm:$0xf]
      %v6784 = vld [vmem:[%s5 + $0x3c] sm:$0xf]
      %v6806 = vunpack.c.l.b16 %v6748
      %v6807 = vunpack.c.l.b16 %v6749
      %v6808 = vunpack.c.l.b16 %v6750
      %v6809 = vunpack.c.l.b16 %v6751
      %v6810 = vunpack.c.l.b16 %v6752
      %v6811 = vunpack.c.l.b16 %v6753
      %v6812 = vunpack.c.l.b16 %v6754
      %v6813 = vunpack.c.l.b16 %v6755
      %v6814 = vunpack.c.l.b16 %v6756
      %v6815 = vunpack.c.l.b16 %v6757
      %v6816 = vunpack.c.l.b16 %v6758
      %v6817 = vunpack.c.l.b16 %v6759
      %v6818 = vunpack.c.l.b16 %v6760
      %v6819 = vunpack.c.l.b16 %v6761
      %v6820 = vunpack.c.l.b16 %v6762
      %v6821 = vunpack.c.l.b16 %v6763
      %v6822 = vunpack.c.l.b16 %v6764
      %v6823 = vunpack.c.l.b16 %v6765
      %v6824 = vunpack.c.l.b16 %v6766
      %v6825 = vunpack.c.l.b16 %v6767
      %v6826 = vunpack.c.l.b16 %v6776
      %v6827 = vpack.c.b16 %v6807, %v6806
      %v6828 = vpack.c.b16 %v6809, %v6808
      %v6829 = vpack.c.b16 %v6811, %v6810
      %v6830 = vpack.c.b16 %v6813, %v6812
      %v6831 = vpack.c.b16 %v6815, %v6814
      %v6832 = vpack.c.b16 %v6817, %v6816
      %v6833 = vpack.c.b16 %v6819, %v6818
      %v6834 = vpack.c.b16 %v6821, %v6820
      %v6835 = vpack.c.b16 %v6823, %v6822
      %v6836 = vpack.c.b16 %v6825, %v6824
      %v6837 = vpack.c.b16 %v6826, %v6826
      %v6839 = vshrl.u32 %v6827, 16
      %v6841 = vshll.u32 %v6827, 16
      %v6843 = vrot.slane %v6841, 1
      %v6844 = vor.u32 %v6839, %v6843
      %v6846 = vshll.u32 %v6828, 16
      %v6848 = vrot.slane %v6846, 1
      %v6849 = vsel %vm479, %v6844, %v6848
      %v6850 = vshrl.u32 %v6828, 16
      %v6852 = vor.u32 %v6850, %v6848
      %v6854 = vshll.u32 %v6829, 16
      %v6856 = vrot.slane %v6854, 1
      %v6857 = vsel %vm479, %v6852, %v6856
      %v6858 = vshrl.u32 %v6829, 16
      %v6860 = vor.u32 %v6858, %v6856
      %v6862 = vshll.u32 %v6830, 16
      %v6864 = vrot.slane %v6862, 1
      %v6865 = vsel %vm479, %v6860, %v6864
      %v6866 = vshrl.u32 %v6830, 16
      %v6868 = vor.u32 %v6866, %v6864
      %v6870 = vshll.u32 %v6831, 16
      %v6872 = vrot.slane %v6870, 1
      %v6873 = vsel %vm479, %v6868, %v6872
      %v6874 = vshrl.u32 %v6831, 16
      %v6876 = vor.u32 %v6874, %v6872
      %v6878 = vshll.u32 %v6832, 16
      %v6880 = vrot.slane %v6878, 1
      %v6881 = vsel %vm479, %v6876, %v6880
      %v6882 = vshrl.u32 %v6832, 16
      %v6884 = vor.u32 %v6882, %v6880
      %v6886 = vshll.u32 %v6833, 16
      %v6888 = vrot.slane %v6886, 1
      %v6889 = vsel %vm479, %v6884, %v6888
      %v6890 = vshrl.u32 %v6833, 16
      %v6892 = vor.u32 %v6890, %v6888
      %v6894 = vshll.u32 %v6834, 16
      %v6896 = vrot.slane %v6894, 1
      %v6897 = vsel %vm479, %v6892, %v6896
      %v6898 = vshrl.u32 %v6834, 16
      %v6900 = vor.u32 %v6898, %v6896
      %v6902 = vshll.u32 %v6835, 16
      %v6904 = vrot.slane %v6902, 1
      %v6905 = vsel %vm479, %v6900, %v6904
      %v6906 = vshrl.u32 %v6835, 16
      %v6908 = vor.u32 %v6906, %v6904
      %v6910 = vshll.u32 %v6836, 16
      %v6912 = vrot.slane %v6910, 1
      %v6913 = vsel %vm479, %v6908, %v6912
      %v6914 = vshrl.u32 %v6836, 16
      %v6916 = vor.u32 %v6914, %v6912
      %v6918 = vshll.u32 %v6837, 16
      %v6920 = vrot.slane %v6918, 1
      %v6921 = vsel %vm479, %v6916, %v6920
      %v6930 = vunpack.c.l.b16 %v6777
      %v6931 = vunpack.c.l.b16 %v6778
      %v6932 = vunpack.c.l.b16 %v6779
      %v6933 = vunpack.c.l.b16 %v6780
      %v6934 = vunpack.c.l.b16 %v6781
      %v6935 = vunpack.c.l.b16 %v6782
      %v6936 = vunpack.c.l.b16 %v6783
      %v6937 = vunpack.c.l.b16 %v6784
      %v6938 = vpack.c.b16 %v6931, %v6930
      %v6939 = vpack.c.b16 %v6933, %v6932
      %v6940 = vpack.c.b16 %v6935, %v6934
      %v6941 = vpack.c.b16 %v6937, %v6936
      %vm6946 = vcmask 523264
      %v6948 = vsel %vm6946, %v6849, 0
      %v6951 = vsel %vm6946, %v6857, 0
      %v6954 = vsel %vm6946, %v6865, 0
      %v6957 = vsel %vm6946, %v6873, 0
      %v6960 = vsel %vm6946, %v6881, 0
      %v6963 = vsel %vm6946, %v6889, 0
      %v6966 = vsel %vm6946, %v6897, 0
      %v6969 = vsel %vm6946, %v6905, 0
      %v6972 = vsel %vm6946, %v6913, 0
      %v6975 = vsel %vm6946, %v6921, 0
      %6977 = vmatprep.subr.bf16.mxu0 0
      %6978 = vmatpush1.bf16.msra.mxu0 %v6938
      %6979 = vmatprep.subr.bf16.mxu0 0
      %6980 = vmatpush1.bf16.msra.mxu0 %v6939
      %6981 = vmatprep.subr.bf16.mxu0 0
      %6982 = vmatpush1.bf16.msra.mxu0 %v6940
      %6983 = vmatprep.subr.bf16.mxu0 0
      %6984 = vmatpush1.bf16.msra.mxu0 %v6941
      %6985 = vmatprep.subr.bf16.mxu0 0
      %6986 = vmatpush1.bf16.msra.mxu0 0
      %6987 = vmatprep.subr.bf16.mxu0 0
      %6988 = vmatpush1.bf16.msra.mxu0 0
      %6989 = vmatprep.subr.bf16.mxu0 0
      %6990 = vmatpush1.bf16.msra.mxu0 0
      %6991 = vmatprep.subr.bf16.mxu0 0
      %6992 = vmatpush1.bf16.msra.mxu0 0
      %6993 = vmatprep.subr.bf16.mxu0 0
      %6994 = vmatpush1.bf16.msra.mxu0 0
      %6995 = vmatprep.subr.bf16.mxu0 0
      %6996 = vmatpush1.bf16.msra.mxu0 0
      %6997 = vmatprep.subr.bf16.mxu0 0
      %6998 = vmatpush1.bf16.msra.mxu0 0
      %6999 = vmatprep.subr.bf16.mxu0 0
      %7000 = vmatpush1.bf16.msra.mxu0 0
      %7001 = vmatprep.subr.bf16.mxu0 0
      %7002 = vmatpush1.bf16.msra.mxu0 0
      %7003 = vmatprep.subr.bf16.mxu0 0
      %7004 = vmatpush1.bf16.msra.mxu0 0
      %7005 = vmatprep.subr.bf16.mxu0 0
      %7006 = vmatpush1.bf16.msra.mxu0 0
      %7007 = vmatprep.subr.bf16.mxu0 0
      %7008 = vmatpush1.bf16.msra.mxu0 0
      %7009 = vmatprep.mubr.bf16.mxu0 0
      %7010 = vmatmul.mubr.bf16.gmra.mrb[0].mxu0 %v6948
      %v7011 = vpop.f32.mrb[0].mxu0
      %v7012 = vadd.f32 0.0, %v7011
      %v7013 = vpop.f32.mrb[0].mxu0
      %v7014 = vpop.f32.mrb[0].mxu0
      %v7015 = vadd.f32 0.0, %v7014
      %v7016 = vpop.f32.mrb[0].mxu0
      %7017 = vmatprep.mubr.bf16.mxu0 0
      %7018 = vmatmul.mubr.bf16.gmra.mrb[0].mxu0 %v6951
      %v7019 = vpop.f32.mrb[0].mxu0
      %v7020 = vadd.f32 0.0, %v7019
      %v7021 = vpop.f32.mrb[0].mxu0
      %v7022 = vpop.f32.mrb[0].mxu0
      %v7023 = vadd.f32 0.0, %v7022
      %v7024 = vpop.f32.mrb[0].mxu0
      %7025 = vmatprep.mubr.bf16.mxu0 0
      %7026 = vmatmul.mubr.bf16.gmra.mrb[0].mxu0 %v6954
      %v7027 = vpop.f32.mrb[0].mxu0
      %v7028 = vadd.f32 0.0, %v7027
      %v7029 = vpop.f32.mrb[0].mxu0
      %v7030 = vpop.f32.mrb[0].mxu0
      %v7031 = vadd.f32 0.0, %v7030
      %v7032 = vpop.f32.mrb[0].mxu0
      %7033 = vmatprep.mubr.bf16.mxu0 0
      %7034 = vmatmul.mubr.bf16.gmra.mrb[0].mxu0 %v6957
      %v7035 = vpop.f32.mrb[0].mxu0
      %v7036 = vadd.f32 0.0, %v7035
      %v7037 = vpop.f32.mrb[0].mxu0
      %v7038 = vpop.f32.mrb[0].mxu0
      %v7039 = vadd.f32 0.0, %v7038
      %v7040 = vpop.f32.mrb[0].mxu0
      %7041 = vmatprep.mubr.bf16.mxu0 0
      %7042 = vmatmul.mubr.bf16.gmra.mrb[0].mxu0 %v6960
      %v7043 = vpop.f32.mrb[0].mxu0
      %v7044 = vadd.f32 0.0, %v7043
      %v7045 = vpop.f32.mrb[0].mxu0
      %v7046 = vpop.f32.mrb[0].mxu0
      %v7047 = vadd.f32 0.0, %v7046
      %v7048 = vpop.f32.mrb[0].mxu0
      %7049 = vmatprep.mubr.bf16.mxu0 0
      %7050 = vmatmul.mubr.bf16.gmra.mrb[0].mxu0 %v6963
      %v7051 = vpop.f32.mrb[0].mxu0
      %v7052 = vadd.f32 0.0, %v7051
      %v7053 = vpop.f32.mrb[0].mxu0
      %v7054 = vpop.f32.mrb[0].mxu0
      %v7055 = vadd.f32 0.0, %v7054
      %v7056 = vpop.f32.mrb[0].mxu0
      %7057 = vmatprep.mubr.bf16.mxu0 0
      %7058 = vmatmul.mubr.bf16.gmra.mrb[0].mxu0 %v6966
      %v7059 = vpop.f32.mrb[0].mxu0
      %v7060 = vadd.f32 0.0, %v7059
      %v7061 = vpop.f32.mrb[0].mxu0
      %v7062 = vpop.f32.mrb[0].mxu0
      %v7063 = vadd.f32 0.0, %v7062
      %v7064 = vpop.f32.mrb[0].mxu0
      %7065 = vmatprep.mubr.bf16.mxu0 0
      %7066 = vmatmul.mubr.bf16.gmra.mrb[0].mxu0 %v6969
      %v7067 = vpop.f32.mrb[0].mxu0
      %v7068 = vadd.f32 0.0, %v7067
      %v7069 = vpop.f32.mrb[0].mxu0
      %v7070 = vpop.f32.mrb[0].mxu0
      %v7071 = vadd.f32 0.0, %v7070
      %v7072 = vpop.f32.mrb[0].mxu0
      %7073 = vmatprep.mubr.bf16.mxu0 0
      %7074 = vmatmul.mubr.bf16.gmra.mrb[0].mxu0 %v6972
      %v7075 = vpop.f32.mrb[0].mxu0
      %v7076 = vadd.f32 0.0, %v7075
      %v7077 = vpop.f32.mrb[0].mxu0
      %v7078 = vpop.f32.mrb[0].mxu0
      %v7079 = vadd.f32 0.0, %v7078
      %v7080 = vpop.f32.mrb[0].mxu0
      %7081 = vmatprep.mubr.bf16.mxu0 0
      %7082 = vmatmul.mubr.bf16.gmra.mrb[0].mxu0 %v6975
      %v7083 = vpop.f32.mrb[0].mxu0
      %v7084 = vadd.f32 0.0, %v7083
      %v7085 = vpop.f32.mrb[0].mxu0
      %v7086 = vpop.f32.mrb[0].mxu0
      %v7087 = vadd.f32 0.0, %v7086
      %v7088 = vpop.f32.mrb[0].mxu0
      %7089 = vdwg.mxu0
      %v7098 = vunpack.c.l.b16 %v6768
      %v7099 = vunpack.c.l.b16 %v6769
      %v7100 = vunpack.c.l.b16 %v6770
      %v7101 = vunpack.c.l.b16 %v6771
      %v7102 = vunpack.c.l.b16 %v6772
      %v7103 = vunpack.c.l.b16 %v6773
      %v7104 = vunpack.c.l.b16 %v6774
      %v7105 = vunpack.c.l.b16 %v6775
      %v7106 = vpack.c.b16 %v7099, %v7098
      %v7107 = vpack.c.b16 %v7101, %v7100
      %v7108 = vpack.c.b16 %v7103, %v7102
      %v7109 = vpack.c.b16 %v7105, %v7104
      %v7114 = vsel %vm6946, %v6827, 0
      %v7116 = vsel %vm6946, %v6828, 0
      %v7118 = vsel %vm6946, %v6829, 0
      %v7120 = vsel %vm6946, %v6830, 0
      %v7122 = vsel %vm6946, %v6831, 0
      %v7124 = vsel %vm6946, %v6832, 0
      %v7126 = vsel %vm6946, %v6833, 0
      %v7128 = vsel %vm6946, %v6834, 0
      %v7130 = vsel %vm6946, %v6835, 0
      %v7132 = vsel %vm6946, %v6836, 0
      %7134 = vmatprep.subr.bf16.mxu0 0
      %7135 = vmatpush1.bf16.msra.mxu0 %v7106
      %7136 = vmatprep.subr.bf16.mxu0 0
      %7137 = vmatpush1.bf16.msra.mxu0 %v7107
      %7138 = vmatprep.subr.bf16.mxu0 0
      %7139 = vmatpush1.bf16.msra.mxu0 %v7108
      %7140 = vmatprep.subr.bf16.mxu0 0
      %7141 = vmatpush1.bf16.msra.mxu0 %v7109
      %7142 = vmatprep.subr.bf16.mxu0 0
      %7143 = vmatpush1.bf16.msra.mxu0 0
      %7144 = vmatprep.subr.bf16.mxu0 0
      %7145 = vmatpush1.bf16.msra.mxu0 0
      %7146 = vmatprep.subr.bf16.mxu0 0
      %7147 = vmatpush1.bf16.msra.mxu0 0
      %7148 = vmatprep.subr.bf16.mxu0 0
      %7149 = vmatpush1.bf16.msra.mxu0 0
      %7150 = vmatprep.subr.bf16.mxu0 0
      %7151 = vmatpush1.bf16.msra.mxu0 0
      %7152 = vmatprep.subr.bf16.mxu0 0
      %7153 = vmatpush1.bf16.msra.mxu0 0
      %7154 = vmatprep.subr.bf16.mxu0 0
      %7155 = vmatpush1.bf16.msra.mxu0 0
      %7156 = vmatprep.subr.bf16.mxu0 0
      %7157 = vmatpush1.bf16.msra.mxu0 0
      %7158 = vmatprep.subr.bf16.mxu0 0
      %7159 = vmatpush1.bf16.msra.mxu0 0
      %7160 = vmatprep.subr.bf16.mxu0 0
      %7161 = vmatpush1.bf16.msra.mxu0 0
      %7162 = vmatprep.subr.bf16.mxu0 0
      %7163 = vmatpush1.bf16.msra.mxu0 0
      %7164 = vmatprep.subr.bf16.mxu0 0
      %7165 = vmatpush1.bf16.msra.mxu0 0
      %7166 = vmatprep.mubr.bf16.mxu0 0
      %7167 = vmatmul.mubr.bf16.gmra.mrb[0].mxu0 %v7114
      %v7168 = vpop.f32.mrb[0].mxu0
      %v7169 = vadd.f32 %v7012, %v7168
      %v7170 = vpop.f32.mrb[0].mxu0
      %v7171 = vpop.f32.mrb[0].mxu0
      %v7172 = vadd.f32 %v7015, %v7171
      %v7173 = vpop.f32.mrb[0].mxu0
      %7174 = vmatprep.mubr.bf16.mxu0 0
      %7175 = vmatmul.mubr.bf16.gmra.mrb[0].mxu0 %v7116
      %v7176 = vpop.f32.mrb[0].mxu0
      %v7177 = vadd.f32 %v7020, %v7176
      %v7178 = vpop.f32.mrb[0].mxu0
      %v7179 = vpop.f32.mrb[0].mxu0
      %v7180 = vadd.f32 %v7023, %v7179
      %v7181 = vpop.f32.mrb[0].mxu0
      %7182 = vmatprep.mubr.bf16.mxu0 0
      %7183 = vmatmul.mubr.bf16.gmra.mrb[0].mxu0 %v7118
      %v7184 = vpop.f32.mrb[0].mxu0
      %v7185 = vadd.f32 %v7028, %v7184
      %v7186 = vpop.f32.mrb[0].mxu0
      %v7187 = vpop.f32.mrb[0].mxu0
      %v7188 = vadd.f32 %v7031, %v7187
      %v7189 = vpop.f32.mrb[0].mxu0
      %7190 = vmatprep.mubr.bf16.mxu0 0
      %7191 = vmatmul.mubr.bf16.gmra.mrb[0].mxu0 %v7120
      %v7192 = vpop.f32.mrb[0].mxu0
      %v7193 = vadd.f32 %v7036, %v7192
      %v7194 = vpop.f32.mrb[0].mxu0
      %v7195 = vpop.f32.mrb[0].mxu0
      %v7196 = vadd.f32 %v7039, %v7195
      %v7197 = vpop.f32.mrb[0].mxu0
      %7198 = vmatprep.mubr.bf16.mxu0 0
      %7199 = vmatmul.mubr.bf16.gmra.mrb[0].mxu0 %v7122
      %v7200 = vpop.f32.mrb[0].mxu0
      %v7201 = vadd.f32 %v7044, %v7200
      %v7202 = vpop.f32.mrb[0].mxu0
      %v7203 = vpop.f32.mrb[0].mxu0
      %v7204 = vadd.f32 %v7047, %v7203
      %v7205 = vpop.f32.mrb[0].mxu0
      %7206 = vmatprep.mubr.bf16.mxu0 0
      %7207 = vmatmul.mubr.bf16.gmra.mrb[0].mxu0 %v7124
      %v7208 = vpop.f32.mrb[0].mxu0
      %v7209 = vadd.f32 %v7052, %v7208
      %v7210 = vpop.f32.mrb[0].mxu0
      %v7211 = vpop.f32.mrb[0].mxu0
      %v7212 = vadd.f32 %v7055, %v7211
      %v7213 = vpop.f32.mrb[0].mxu0
      %7214 = vmatprep.mubr.bf16.mxu0 0
      %7215 = vmatmul.mubr.bf16.gmra.mrb[0].mxu0 %v7126
      %v7216 = vpop.f32.mrb[0].mxu0
      %v7217 = vadd.f32 %v7060, %v7216
      %v7218 = vpop.f32.mrb[0].mxu0
      %v7219 = vpop.f32.mrb[0].mxu0
      %v7220 = vadd.f32 %v7063, %v7219
      %v7221 = vpop.f32.mrb[0].mxu0
      %7222 = vmatprep.mubr.bf16.mxu0 0
      %7223 = vmatmul.mubr.bf16.gmra.mrb[0].mxu0 %v7128
      %v7224 = vpop.f32.mrb[0].mxu0
      %v7225 = vadd.f32 %v7068, %v7224
      %v7226 = vpop.f32.mrb[0].mxu0
      %v7227 = vpop.f32.mrb[0].mxu0
      %v7228 = vadd.f32 %v7071, %v7227
      %v7229 = vpop.f32.mrb[0].mxu0
      %7230 = vmatprep.mubr.bf16.mxu0 0
      %7231 = vmatmul.mubr.bf16.gmra.mrb[0].mxu0 %v7130
      %v7232 = vpop.f32.mrb[0].mxu0
      %v7233 = vadd.f32 %v7076, %v7232
      %v7234 = vpop.f32.mrb[0].mxu0
      %v7235 = vpop.f32.mrb[0].mxu0
      %v7236 = vadd.f32 %v7079, %v7235
      %v7237 = vpop.f32.mrb[0].mxu0
      %7238 = vmatprep.mubr.bf16.mxu0 0
      %7239 = vmatmul.mubr.bf16.gmra.mrb[0].mxu0 %v7132
      %v7240 = vpop.f32.mrb[0].mxu0
      %v7241 = vadd.f32 %v7084, %v7240
      %v7242 = vpop.f32.mrb[0].mxu0
      %v7243 = vpop.f32.mrb[0].mxu0
      %v7244 = vadd.f32 %v7087, %v7243
      %v7245 = vpop.f32.mrb[0].mxu0
      %7246 = vdwg.mxu0
      %v7247 = vld [vmem:[%s352] sm:$0xe]
      %v7248 = vld [vmem:[%s5 + $0x40] sm:$0xf]
      %v7249 = vld [vmem:[%s5 + $0x44] sm:$0xf]
      %v7250 = vld [vmem:[%s5 + $0x48] sm:$0xf]
      %v7251 = vld [vmem:[%s5 + $0x4c] sm:$0xf]
      %v7252 = vld [vmem:[%s5 + $0x50] sm:$0xf]
      %v7253 = vld [vmem:[%s5 + $0x54] sm:$0xf]
      %v7254 = vld [vmem:[%s5 + $0x58] sm:$0xf]
      %v7255 = vld [vmem:[%s5 + $0x5c] sm:$0xf]
      %v7257 = vunpack.c.l.b16 %v7247
      %v7258 = vpack.c.b16 %v6807, %v7257
      %v7259 = vrot.slane %v7258, 1
      %v7260 = vrot.slane %v6828, 1
      %v7261 = vsel %vm1033, %v7259, %v7260
      %v7262 = vrot.slane %v6829, 1
      %v7263 = vsel %vm1033, %v7260, %v7262
      %v7264 = vrot.slane %v6830, 1
      %v7265 = vsel %vm1033, %v7262, %v7264
      %v7266 = vrot.slane %v6831, 1
      %v7267 = vsel %vm1033, %v7264, %v7266
      %v7268 = vrot.slane %v6832, 1
      %v7269 = vsel %vm1033, %v7266, %v7268
      %v7270 = vrot.slane %v6833, 1
      %v7271 = vsel %vm1033, %v7268, %v7270
      %v7272 = vrot.slane %v6834, 1
      %v7273 = vsel %vm1033, %v7270, %v7272
      %v7274 = vrot.slane %v6835, 1
      %v7275 = vsel %vm1033, %v7272, %v7274
      %v7276 = vrot.slane %v6836, 1
      %v7277 = vsel %vm1033, %v7274, %v7276
      %v7278 = vrot.slane %v6837, 1
      %v7279 = vsel %vm1033, %v7276, %v7278
      %v7288 = vunpack.c.l.b16 %v7248
      %v7289 = vunpack.c.l.b16 %v7249
      %v7290 = vunpack.c.l.b16 %v7250
      %v7291 = vunpack.c.l.b16 %v7251
      %v7292 = vunpack.c.l.b16 %v7252
      %v7293 = vunpack.c.l.b16 %v7253
      %v7294 = vunpack.c.l.b16 %v7254
      %v7295 = vunpack.c.l.b16 %v7255
      %v7296 = vpack.c.b16 %v7289, %v7288
      %v7297 = vpack.c.b16 %v7291, %v7290
      %v7298 = vpack.c.b16 %v7293, %v7292
      %v7299 = vpack.c.b16 %v7295, %v7294
      %v7305 = vsel %vm6946, %v7261, 0
      %v7308 = vsel %vm6946, %v7263, 0
      %v7311 = vsel %vm6946, %v7265, 0
      %v7314 = vsel %vm6946, %v7267, 0
      %v7317 = vsel %vm6946, %v7269, 0
      %v7320 = vsel %vm6946, %v7271, 0
      %v7323 = vsel %vm6946, %v7273, 0
      %v7326 = vsel %vm6946, %v7275, 0
      %v7329 = vsel %vm6946, %v7277, 0
      %v7332 = vsel %vm6946, %v7279, 0
      %7334 = vmatprep.subr.bf16.mxu0 0
      %7335 = vmatpush1.bf16.msra.mxu0 %v7296
      %7336 = vmatprep.subr.bf16.mxu0 0
      %7337 = vmatpush1.bf16.msra.mxu0 %v7297
      %7338 = vmatprep.subr.bf16.mxu0 0
      %7339 = vmatpush1.bf16.msra.mxu0 %v7298
      %7340 = vmatprep.subr.bf16.mxu0 0
      %7341 = vmatpush1.bf16.msra.mxu0 %v7299
      %7342 = vmatprep.subr.bf16.mxu0 0
      %7343 = vmatpush1.bf16.msra.mxu0 0
      %7344 = vmatprep.subr.bf16.mxu0 0
      %7345 = vmatpush1.bf16.msra.mxu0 0
      %7346 = vmatprep.subr.bf16.mxu0 0
      %7347 = vmatpush1.bf16.msra.mxu0 0
      %7348 = vmatprep.subr.bf16.mxu0 0
      %7349 = vmatpush1.bf16.msra.mxu0 0
      %7350 = vmatprep.subr.bf16.mxu0 0
      %7351 = vmatpush1.bf16.msra.mxu0 0
      %7352 = vmatprep.subr.bf16.mxu0 0
      %7353 = vmatpush1.bf16.msra.mxu0 0
      %7354 = vmatprep.subr.bf16.mxu0 0
      %7355 = vmatpush1.bf16.msra.mxu0 0
      %7356 = vmatprep.subr.bf16.mxu0 0
      %7357 = vmatpush1.bf16.msra.mxu0 0
      %7358 = vmatprep.subr.bf16.mxu0 0
      %7359 = vmatpush1.bf16.msra.mxu0 0
      %7360 = vmatprep.subr.bf16.mxu0 0
      %7361 = vmatpush1.bf16.msra.mxu0 0
      %7362 = vmatprep.subr.bf16.mxu0 0
      %7363 = vmatpush1.bf16.msra.mxu0 0
      %7364 = vmatprep.subr.bf16.mxu0 0
      %7365 = vmatpush1.bf16.msra.mxu0 0
      %7366 = vmatprep.mubr.bf16.mxu0 0
      %7367 = vmatmul.mubr.bf16.gmra.mrb[0].mxu0 %v7305
      %v7368 = vpop.f32.mrb[0].mxu0
      %v7369 = vadd.f32 0.0, %v7368
      %v7370 = vpop.f32.mrb[0].mxu0
      %v7371 = vpop.f32.mrb[0].mxu0
      %v7372 = vadd.f32 0.0, %v7371
      %v7373 = vpop.f32.mrb[0].mxu0
      %7374 = vmatprep.mubr.bf16.mxu0 0
      %7375 = vmatmul.mubr.bf16.gmra.mrb[0].mxu0 %v7308
      %v7376 = vpop.f32.mrb[0].mxu0
      %v7377 = vadd.f32 0.0, %v7376
      %v7378 = vpop.f32.mrb[0].mxu0
      %v7379 = vpop.f32.mrb[0].mxu0
      %v7380 = vadd.f32 0.0, %v7379
      %v7381 = vpop.f32.mrb[0].mxu0
      %7382 = vmatprep.mubr.bf16.mxu0 0
      %7383 = vmatmul.mubr.bf16.gmra.mrb[0].mxu0 %v7311
      %v7384 = vpop.f32.mrb[0].mxu0
      %v7385 = vadd.f32 0.0, %v7384
      %v7386 = vpop.f32.mrb[0].mxu0
      %v7387 = vpop.f32.mrb[0].mxu0
      %v7388 = vadd.f32 0.0, %v7387
      %v7389 = vpop.f32.mrb[0].mxu0
      %7390 = vmatprep.mubr.bf16.mxu0 0
      %7391 = vmatmul.mubr.bf16.gmra.mrb[0].mxu0 %v7314
      %v7392 = vpop.f32.mrb[0].mxu0
      %v7393 = vadd.f32 0.0, %v7392
      %v7394 = vpop.f32.mrb[0].mxu0
      %v7395 = vpop.f32.mrb[0].mxu0
      %v7396 = vadd.f32 0.0, %v7395
      %v7397 = vpop.f32.mrb[0].mxu0
      %7398 = vmatprep.mubr.bf16.mxu0 0
      %7399 = vmatmul.mubr.bf16.gmra.mrb[0].mxu0 %v7317
      %v7400 = vpop.f32.mrb[0].mxu0
      %v7401 = vadd.f32 0.0, %v7400
      %v7402 = vpop.f32.mrb[0].mxu0
      %v7403 = vpop.f32.mrb[0].mxu0
      %v7404 = vadd.f32 0.0, %v7403
      %v7405 = vpop.f32.mrb[0].mxu0
      %7406 = vmatprep.mubr.bf16.mxu0 0
      %7407 = vmatmul.mubr.bf16.gmra.mrb[0].mxu0 %v7320
      %v7408 = vpop.f32.mrb[0].mxu0
      %v7409 = vadd.f32 0.0, %v7408
      %v7410 = vpop.f32.mrb[0].mxu0
      %v7411 = vpop.f32.mrb[0].mxu0
      %v7412 = vadd.f32 0.0, %v7411
      %v7413 = vpop.f32.mrb[0].mxu0
      %7414 = vmatprep.mubr.bf16.mxu0 0
      %7415 = vmatmul.mubr.bf16.gmra.mrb[0].mxu0 %v7323
      %v7416 = vpop.f32.mrb[0].mxu0
      %v7417 = vadd.f32 0.0, %v7416
      %v7418 = vpop.f32.mrb[0].mxu0
      %v7419 = vpop.f32.mrb[0].mxu0
      %v7420 = vadd.f32 0.0, %v7419
      %v7421 = vpop.f32.mrb[0].mxu0
      %7422 = vmatprep.mubr.bf16.mxu0 0
      %7423 = vmatmul.mubr.bf16.gmra.mrb[0].mxu0 %v7326
      %v7424 = vpop.f32.mrb[0].mxu0
      %v7425 = vadd.f32 0.0, %v7424
      %v7426 = vpop.f32.mrb[0].mxu0
      %v7427 = vpop.f32.mrb[0].mxu0
      %v7428 = vadd.f32 0.0, %v7427
      %v7429 = vpop.f32.mrb[0].mxu0
      %7430 = vmatprep.mubr.bf16.mxu0 0
      %7431 = vmatmul.mubr.bf16.gmra.mrb[0].mxu0 %v7329
      %v7432 = vpop.f32.mrb[0].mxu0
      %v7433 = vadd.f32 0.0, %v7432
      %v7434 = vpop.f32.mrb[0].mxu0
      %v7435 = vpop.f32.mrb[0].mxu0
      %v7436 = vadd.f32 0.0, %v7435
      %v7437 = vpop.f32.mrb[0].mxu0
      %7438 = vmatprep.mubr.bf16.mxu0 0
      %7439 = vmatmul.mubr.bf16.gmra.mrb[0].mxu0 %v7332
      %v7440 = vpop.f32.mrb[0].mxu0
      %v7441 = vadd.f32 0.0, %v7440
      %v7442 = vpop.f32.mrb[0].mxu0
      %v7443 = vpop.f32.mrb[0].mxu0
      %v7444 = vadd.f32 0.0, %v7443
      %v7445 = vpop.f32.mrb[0].mxu0
      %7446 = vdwg.mxu0
      %v7447 = vadd.f32 %v7169, %v7369
      %v7448 = vadd.f32 %v7172, %v7372
      %v7449 = vadd.f32 %v7177, %v7377
      %v7450 = vadd.f32 %v7180, %v7380
      %v7451 = vadd.f32 %v7185, %v7385
      %v7452 = vadd.f32 %v7188, %v7388
      %v7453 = vadd.f32 %v7193, %v7393
      %v7454 = vadd.f32 %v7196, %v7396
      %v7455 = vadd.f32 %v7201, %v7401
      %v7456 = vadd.f32 %v7204, %v7404
      %v7457 = vadd.f32 %v7209, %v7409
      %v7458 = vadd.f32 %v7212, %v7412
      %v7459 = vadd.f32 %v7217, %v7417
      %v7460 = vadd.f32 %v7220, %v7420
      %v7461 = vadd.f32 %v7225, %v7425
      %v7462 = vadd.f32 %v7228, %v7428
      %v7463 = vadd.f32 %v7233, %v7433
      %v7464 = vadd.f32 %v7236, %v7436
      %v7465 = vadd.f32 %v7241, %v7441
      %v7466 = vadd.f32 %v7244, %v7444
      %v7467 = vld [vmem:[%s352 + $0x8] sm:$0xf]
      %v7468 = vld [vmem:[%s352 + $0xc] sm:$0xf]
      %v7469 = vld [vmem:[%s352 + $0x10] sm:$0xf]
      %v7470 = vld [vmem:[%s352 + $0x14] sm:$0xf]
      %v7471 = vld [vmem:[%s352 + $0x18] sm:$0xf]
      %v7472 = vld [vmem:[%s352 + $0x1c] sm:$0xf]
      %v7473 = vld [vmem:[%s352 + $0x20] sm:$0xf]
      %v7474 = vld [vmem:[%s352 + $0x24] sm:$0xf]
      %v7475 = vld [vmem:[%s352 + $0x28] sm:$0xf]
      %v7476 = vld [vmem:[%s352 + $0x2c] sm:$0xf]
      %v7477 = vld [vmem:[%s352 + $0x30] sm:$0xf]
      %v7478 = vld [vmem:[%s352 + $0x34] sm:$0xf]
      %v7479 = vld [vmem:[%s352 + $0x38] sm:$0xf]
      %v7480 = vld [vmem:[%s352 + $0x3c] sm:$0xf]
      %v7481 = vld [vmem:[%s352 + $0x40] sm:$0xf]
      %v7482 = vld [vmem:[%s352 + $0x44] sm:$0xf]
      %v7483 = vld [vmem:[%s352 + $0x48] sm:$0xf]
      %v7484 = vld [vmem:[%s352 + $0x4c] sm:$0xf]
      %v7485 = vld [vmem:[%s352 + $0x50] sm:$0xf]
      %v7486 = vld [vmem:[%s352 + $0x54] sm:$0xf]
      %v7487 = vld [vmem:[%s5 + $0x60] sm:$0xf]
      %v7488 = vld [vmem:[%s5 + $0x64] sm:$0xf]
      %v7489 = vld [vmem:[%s5 + $0x68] sm:$0xf]
      %v7490 = vld [vmem:[%s5 + $0x6c] sm:$0xf]
      %v7491 = vld [vmem:[%s5 + $0x70] sm:$0xf]
      %v7492 = vld [vmem:[%s5 + $0x74] sm:$0xf]
      %v7493 = vld [vmem:[%s5 + $0x78] sm:$0xf]
      %v7494 = vld [vmem:[%s5 + $0x7c] sm:$0xf]
      %v7515 = vunpack.c.l.b16 %v7467
      %v7516 = vunpack.c.l.b16 %v7468
      %v7517 = vunpack.c.l.b16 %v7469
      %v7518 = vunpack.c.l.b16 %v7470
      %v7519 = vunpack.c.l.b16 %v7471
      %v7520 = vunpack.c.l.b16 %v7472
      %v7521 = vunpack.c.l.b16 %v7473
      %v7522 = vunpack.c.l.b16 %v7474
      %v7523 = vunpack.c.l.b16 %v7475
      %v7524 = vunpack.c.l.b16 %v7476
      %v7525 = vunpack.c.l.b16 %v7477
      %v7526 = vunpack.c.l.b16 %v7478
      %v7527 = vunpack.c.l.b16 %v7479
      %v7528 = vunpack.c.l.b16 %v7480
      %v7529 = vunpack.c.l.b16 %v7481
      %v7530 = vunpack.c.l.b16 %v7482
      %v7531 = vunpack.c.l.b16 %v7483
      %v7532 = vunpack.c.l.b16 %v7484
      %v7533 = vunpack.c.l.b16 %v7485
      %v7534 = vunpack.c.l.b16 %v7486
      %v7535 = vpack.c.b16 %v7516, %v7515
      %v7536 = vpack.c.b16 %v7518, %v7517
      %v7537 = vpack.c.b16 %v7520, %v7519
      %v7538 = vpack.c.b16 %v7522, %v7521
      %v7539 = vpack.c.b16 %v7524, %v7523
      %v7540 = vpack.c.b16 %v7526, %v7525
      %v7541 = vpack.c.b16 %v7528, %v7527
      %v7542 = vpack.c.b16 %v7530, %v7529
      %v7543 = vpack.c.b16 %v7532, %v7531
      %v7544 = vpack.c.b16 %v7534, %v7533
      %v7553 = vunpack.c.l.b16 %v7487
      %v7554 = vunpack.c.l.b16 %v7488
      %v7555 = vunpack.c.l.b16 %v7489
      %v7556 = vunpack.c.l.b16 %v7490
      %v7557 = vunpack.c.l.b16 %v7491
      %v7558 = vunpack.c.l.b16 %v7492
      %v7559 = vunpack.c.l.b16 %v7493
      %v7560 = vunpack.c.l.b16 %v7494
      %v7561 = vpack.c.b16 %v7554, %v7553
      %v7562 = vpack.c.b16 %v7556, %v7555
      %v7563 = vpack.c.b16 %v7558, %v7557
      %v7564 = vpack.c.b16 %v7560, %v7559
      %v7570 = vsel %vm6946, %v7535, 0
      %v7573 = vsel %vm6946, %v7536, 0
      %v7576 = vsel %vm6946, %v7537, 0
      %v7579 = vsel %vm6946, %v7538, 0
      %v7582 = vsel %vm6946, %v7539, 0
      %v7585 = vsel %vm6946, %v7540, 0
      %v7588 = vsel %vm6946, %v7541, 0
      %v7591 = vsel %vm6946, %v7542, 0
      %v7594 = vsel %vm6946, %v7543, 0
      %v7597 = vsel %vm6946, %v7544, 0
      %7599 = vmatprep.subr.bf16.mxu0 0
      %7600 = vmatpush1.bf16.msra.mxu0 %v7561
      %7601 = vmatprep.subr.bf16.mxu0 0
      %7602 = vmatpush1.bf16.msra.mxu0 %v7562
      %7603 = vmatprep.subr.bf16.mxu0 0
      %7604 = vmatpush1.bf16.msra.mxu0 %v7563
      %7605 = vmatprep.subr.bf16.mxu0 0
      %7606 = vmatpush1.bf16.msra.mxu0 %v7564
      %7607 = vmatprep.subr.bf16.mxu0 0
      %7608 = vmatpush1.bf16.msra.mxu0 0
      %7609 = vmatprep.subr.bf16.mxu0 0
      %7610 = vmatpush1.bf16.msra.mxu0 0
      %7611 = vmatprep.subr.bf16.mxu0 0
      %7612 = vmatpush1.bf16.msra.mxu0 0
      %7613 = vmatprep.subr.bf16.mxu0 0
      %7614 = vmatpush1.bf16.msra.mxu0 0
      %7615 = vmatprep.subr.bf16.mxu0 0
      %7616 = vmatpush1.bf16.msra.mxu0 0
      %7617 = vmatprep.subr.bf16.mxu0 0
      %7618 = vmatpush1.bf16.msra.mxu0 0
      %7619 = vmatprep.subr.bf16.mxu0 0
      %7620 = vmatpush1.bf16.msra.mxu0 0
      %7621 = vmatprep.subr.bf16.mxu0 0
      %7622 = vmatpush1.bf16.msra.mxu0 0
      %7623 = vmatprep.subr.bf16.mxu0 0
      %7624 = vmatpush1.bf16.msra.mxu0 0
      %7625 = vmatprep.subr.bf16.mxu0 0
      %7626 = vmatpush1.bf16.msra.mxu0 0
      %7627 = vmatprep.subr.bf16.mxu0 0
      %7628 = vmatpush1.bf16.msra.mxu0 0
      %7629 = vmatprep.subr.bf16.mxu0 0
      %7630 = vmatpush1.bf16.msra.mxu0 0
      %7631 = vmatprep.mubr.bf16.mxu0 0
      %7632 = vmatmul.mubr.bf16.gmra.mrb[0].mxu0 %v7570
      %v7633 = vpop.f32.mrb[0].mxu0
      %v7634 = vadd.f32 0.0, %v7633
      %v7635 = vpop.f32.mrb[0].mxu0
      %v7636 = vpop.f32.mrb[0].mxu0
      %v7637 = vadd.f32 0.0, %v7636
      %v7638 = vpop.f32.mrb[0].mxu0
      %7639 = vmatprep.mubr.bf16.mxu0 0
      %7640 = vmatmul.mubr.bf16.gmra.mrb[0].mxu0 %v7573
      %v7641 = vpop.f32.mrb[0].mxu0
      %v7642 = vadd.f32 0.0, %v7641
      %v7643 = vpop.f32.mrb[0].mxu0
      %v7644 = vpop.f32.mrb[0].mxu0
      %v7645 = vadd.f32 0.0, %v7644
      %v7646 = vpop.f32.mrb[0].mxu0
      %7647 = vmatprep.mubr.bf16.mxu0 0
      %7648 = vmatmul.mubr.bf16.gmra.mrb[0].mxu0 %v7576
      %v7649 = vpop.f32.mrb[0].mxu0
      %v7650 = vadd.f32 0.0, %v7649
      %v7651 = vpop.f32.mrb[0].mxu0
      %v7652 = vpop.f32.mrb[0].mxu0
      %v7653 = vadd.f32 0.0, %v7652
      %v7654 = vpop.f32.mrb[0].mxu0
      %7655 = vmatprep.mubr.bf16.mxu0 0
      %7656 = vmatmul.mubr.bf16.gmra.mrb[0].mxu0 %v7579
      %v7657 = vpop.f32.mrb[0].mxu0
      %v7658 = vadd.f32 0.0, %v7657
      %v7659 = vpop.f32.mrb[0].mxu0
      %v7660 = vpop.f32.mrb[0].mxu0
      %v7661 = vadd.f32 0.0, %v7660
      %v7662 = vpop.f32.mrb[0].mxu0
      %7663 = vmatprep.mubr.bf16.mxu0 0
      %7664 = vmatmul.mubr.bf16.gmra.mrb[0].mxu0 %v7582
      %v7665 = vpop.f32.mrb[0].mxu0
      %v7666 = vadd.f32 0.0, %v7665
      %v7667 = vpop.f32.mrb[0].mxu0
      %v7668 = vpop.f32.mrb[0].mxu0
      %v7669 = vadd.f32 0.0, %v7668
      %v7670 = vpop.f32.mrb[0].mxu0
      %7671 = vmatprep.mubr.bf16.mxu0 0
      %7672 = vmatmul.mubr.bf16.gmra.mrb[0].mxu0 %v7585
      %v7673 = vpop.f32.mrb[0].mxu0
      %v7674 = vadd.f32 0.0, %v7673
      %v7675 = vpop.f32.mrb[0].mxu0
      %v7676 = vpop.f32.mrb[0].mxu0
      %v7677 = vadd.f32 0.0, %v7676
      %v7678 = vpop.f32.mrb[0].mxu0
      %7679 = vmatprep.mubr.bf16.mxu0 0
      %7680 = vmatmul.mubr.bf16.gmra.mrb[0].mxu0 %v7588
      %v7681 = vpop.f32.mrb[0].mxu0
      %v7682 = vadd.f32 0.0, %v7681
      %v7683 = vpop.f32.mrb[0].mxu0
      %v7684 = vpop.f32.mrb[0].mxu0
      %v7685 = vadd.f32 0.0, %v7684
      %v7686 = vpop.f32.mrb[0].mxu0
      %7687 = vmatprep.mubr.bf16.mxu0 0
      %7688 = vmatmul.mubr.bf16.gmra.mrb[0].mxu0 %v7591
      %v7689 = vpop.f32.mrb[0].mxu0
      %v7690 = vadd.f32 0.0, %v7689
      %v7691 = vpop.f32.mrb[0].mxu0
      %v7692 = vpop.f32.mrb[0].mxu0
      %v7693 = vadd.f32 0.0, %v7692
      %v7694 = vpop.f32.mrb[0].mxu0
      %7695 = vmatprep.mubr.bf16.mxu0 0
      %7696 = vmatmul.mubr.bf16.gmra.mrb[0].mxu0 %v7594
      %v7697 = vpop.f32.mrb[0].mxu0
      %v7698 = vadd.f32 0.0, %v7697
      %v7699 = vpop.f32.mrb[0].mxu0
      %v7700 = vpop.f32.mrb[0].mxu0
      %v7701 = vadd.f32 0.0, %v7700
      %v7702 = vpop.f32.mrb[0].mxu0
      %7703 = vmatprep.mubr.bf16.mxu0 0
      %7704 = vmatmul.mubr.bf16.gmra.mrb[0].mxu0 %v7597
      %v7705 = vpop.f32.mrb[0].mxu0
      %v7706 = vadd.f32 0.0, %v7705
      %v7707 = vpop.f32.mrb[0].mxu0
      %v7708 = vpop.f32.mrb[0].mxu0
      %v7709 = vadd.f32 0.0, %v7708
      %v7710 = vpop.f32.mrb[0].mxu0
      %7711 = vdwg.mxu0
      %v7712 = vadd.f32 %v7447, %v7634
      %v7713 = vadd.f32 %v7448, %v7637
      %v7714 = vadd.f32 %v7449, %v7642
      %v7715 = vadd.f32 %v7450, %v7645
      %v7716 = vadd.f32 %v7451, %v7650
      %v7717 = vadd.f32 %v7452, %v7653
      %v7718 = vadd.f32 %v7453, %v7658
      %v7719 = vadd.f32 %v7454, %v7661
      %v7720 = vadd.f32 %v7455, %v7666
      %v7721 = vadd.f32 %v7456, %v7669
      %v7722 = vadd.f32 %v7457, %v7674
      %v7723 = vadd.f32 %v7458, %v7677
      %v7724 = vadd.f32 %v7459, %v7682
      %v7725 = vadd.f32 %v7460, %v7685
      %v7726 = vadd.f32 %v7461, %v7690
      %v7727 = vadd.f32 %v7462, %v7693
      %v7728 = vadd.f32 %v7463, %v7698
      %v7729 = vadd.f32 %v7464, %v7701
      %v7730 = vadd.f32 %v7465, %v7706
      %v7731 = vadd.f32 %v7466, %v7709
      %v7732 = vld [vmem:[%s352 + $0x8] sm:$0xf]
      %v7733 = vld [vmem:[%s352 + $0xc] sm:$0xf]
      %v7734 = vld [vmem:[%s352 + $0x10] sm:$0xf]
      %v7735 = vld [vmem:[%s352 + $0x14] sm:$0xf]
      %v7736 = vld [vmem:[%s352 + $0x18] sm:$0xf]
      %v7737 = vld [vmem:[%s352 + $0x1c] sm:$0xf]
      %v7738 = vld [vmem:[%s352 + $0x20] sm:$0xf]
      %v7739 = vld [vmem:[%s352 + $0x24] sm:$0xf]
      %v7740 = vld [vmem:[%s352 + $0x28] sm:$0xf]
      %v7741 = vld [vmem:[%s352 + $0x2c] sm:$0xf]
      %v7742 = vld [vmem:[%s352 + $0x30] sm:$0xf]
      %v7743 = vld [vmem:[%s352 + $0x34] sm:$0xf]
      %v7744 = vld [vmem:[%s352 + $0x38] sm:$0xf]
      %v7745 = vld [vmem:[%s352 + $0x3c] sm:$0xf]
      %v7746 = vld [vmem:[%s352 + $0x40] sm:$0xf]
      %v7747 = vld [vmem:[%s352 + $0x44] sm:$0xf]
      %v7748 = vld [vmem:[%s352 + $0x48] sm:$0xf]
      %v7749 = vld [vmem:[%s352 + $0x4c] sm:$0xf]
      %v7750 = vld [vmem:[%s352 + $0x50] sm:$0xf]
      %v7751 = vld [vmem:[%s352 + $0x54] sm:$0xf]
      %v7752 = vld [vmem:[%s352 + $0x58] sm:$0x1]
      %v7753 = vld [vmem:[%s5 + $0x80] sm:$0xf]
      %v7754 = vld [vmem:[%s5 + $0x84] sm:$0xf]
      %v7755 = vld [vmem:[%s5 + $0x88] sm:$0xf]
      %v7756 = vld [vmem:[%s5 + $0x8c] sm:$0xf]
      %v7757 = vld [vmem:[%s5 + $0x90] sm:$0xf]
      %v7758 = vld [vmem:[%s5 + $0x94] sm:$0xf]
      %v7759 = vld [vmem:[%s5 + $0x98] sm:$0xf]
      %v7760 = vld [vmem:[%s5 + $0x9c] sm:$0xf]
      %v7782 = vunpack.c.l.b16 %v7732
      %v7783 = vunpack.c.l.b16 %v7733
      %v7784 = vunpack.c.l.b16 %v7734
      %v7785 = vunpack.c.l.b16 %v7735
      %v7786 = vunpack.c.l.b16 %v7736
      %v7787 = vunpack.c.l.b16 %v7737
      %v7788 = vunpack.c.l.b16 %v7738
      %v7789 = vunpack.c.l.b16 %v7739
      %v7790 = vunpack.c.l.b16 %v7740
      %v7791 = vunpack.c.l.b16 %v7741
      %v7792 = vunpack.c.l.b16 %v7742
      %v7793 = vunpack.c.l.b16 %v7743
      %v7794 = vunpack.c.l.b16 %v7744
      %v7795 = vunpack.c.l.b16 %v7745
      %v7796 = vunpack.c.l.b16 %v7746
      %v7797 = vunpack.c.l.b16 %v7747
      %v7798 = vunpack.c.l.b16 %v7748
      %v7799 = vunpack.c.l.b16 %v7749
      %v7800 = vunpack.c.l.b16 %v7750
      %v7801 = vunpack.c.l.b16 %v7751
      %v7802 = vunpack.c.l.b16 %v7752
      %v7803 = vpack.c.b16 %v7783, %v7782
      %v7804 = vpack.c.b16 %v7785, %v7784
      %v7805 = vpack.c.b16 %v7787, %v7786
      %v7806 = vpack.c.b16 %v7789, %v7788
      %v7807 = vpack.c.b16 %v7791, %v7790
      %v7808 = vpack.c.b16 %v7793, %v7792
      %v7809 = vpack.c.b16 %v7795, %v7794
      %v7810 = vpack.c.b16 %v7797, %v7796
      %v7811 = vpack.c.b16 %v7799, %v7798
      %v7812 = vpack.c.b16 %v7801, %v7800
      %v7813 = vpack.c.b16 %v7802, %v7802
      %v7815 = vshrl.u32 %v7803, 16
      %v7817 = vshll.u32 %v7803, 16
      %v7819 = vrot.slane %v7817, 1
      %v7820 = vor.u32 %v7815, %v7819
      %v7822 = vshll.u32 %v7804, 16
      %v7824 = vrot.slane %v7822, 1
      %v7825 = vsel %vm479, %v7820, %v7824
      %v7826 = vshrl.u32 %v7804, 16
      %v7828 = vor.u32 %v7826, %v7824
      %v7830 = vshll.u32 %v7805, 16
      %v7832 = vrot.slane %v7830, 1
      %v7833 = vsel %vm479, %v7828, %v7832
      %v7834 = vshrl.u32 %v7805, 16
      %v7836 = vor.u32 %v7834, %v7832
      %v7838 = vshll.u32 %v7806, 16
      %v7840 = vrot.slane %v7838, 1
      %v7841 = vsel %vm479, %v7836, %v7840
      %v7842 = vshrl.u32 %v7806, 16
      %v7844 = vor.u32 %v7842, %v7840
      %v7846 = vshll.u32 %v7807, 16
      %v7848 = vrot.slane %v7846, 1
      %v7849 = vsel %vm479, %v7844, %v7848
      %v7850 = vshrl.u32 %v7807, 16
      %v7852 = vor.u32 %v7850, %v7848
      %v7854 = vshll.u32 %v7808, 16
      %v7856 = vrot.slane %v7854, 1
      %v7857 = vsel %vm479, %v7852, %v7856
      %v7858 = vshrl.u32 %v7808, 16
      %v7860 = vor.u32 %v7858, %v7856
      %v7862 = vshll.u32 %v7809, 16
      %v7864 = vrot.slane %v7862, 1
      %v7865 = vsel %vm479, %v7860, %v7864
      %v7866 = vshrl.u32 %v7809, 16
      %v7868 = vor.u32 %v7866, %v7864
      %v7870 = vshll.u32 %v7810, 16
      %v7872 = vrot.slane %v7870, 1
      %v7873 = vsel %vm479, %v7868, %v7872
      %v7874 = vshrl.u32 %v7810, 16
      %v7876 = vor.u32 %v7874, %v7872
      %v7878 = vshll.u32 %v7811, 16
      %v7880 = vrot.slane %v7878, 1
      %v7881 = vsel %vm479, %v7876, %v7880
      %v7882 = vshrl.u32 %v7811, 16
      %v7884 = vor.u32 %v7882, %v7880
      %v7886 = vshll.u32 %v7812, 16
      %v7888 = vrot.slane %v7886, 1
      %v7889 = vsel %vm479, %v7884, %v7888
      %v7890 = vshrl.u32 %v7812, 16
      %v7892 = vor.u32 %v7890, %v7888
      %v7894 = vshll.u32 %v7813, 16
      %v7896 = vrot.slane %v7894, 1
      %v7897 = vsel %vm479, %v7892, %v7896
      %v7906 = vunpack.c.l.b16 %v7753
      %v7907 = vunpack.c.l.b16 %v7754
      %v7908 = vunpack.c.l.b16 %v7755
      %v7909 = vunpack.c.l.b16 %v7756
      %v7910 = vunpack.c.l.b16 %v7757
      %v7911 = vunpack.c.l.b16 %v7758
      %v7912 = vunpack.c.l.b16 %v7759
      %v7913 = vunpack.c.l.b16 %v7760
      %v7914 = vpack.c.b16 %v7907, %v7906
      %v7915 = vpack.c.b16 %v7909, %v7908
      %v7916 = vpack.c.b16 %v7911, %v7910
      %v7917 = vpack.c.b16 %v7913, %v7912
      %v7923 = vsel %vm6946, %v7825, 0
      %v7926 = vsel %vm6946, %v7833, 0
      %v7929 = vsel %vm6946, %v7841, 0
      %v7932 = vsel %vm6946, %v7849, 0
      %v7935 = vsel %vm6946, %v7857, 0
      %v7938 = vsel %vm6946, %v7865, 0
      %v7941 = vsel %vm6946, %v7873, 0
      %v7944 = vsel %vm6946, %v7881, 0
      %v7947 = vsel %vm6946, %v7889, 0
      %v7950 = vsel %vm6946, %v7897, 0
      %7952 = vmatprep.subr.bf16.mxu0 0
      %7953 = vmatpush1.bf16.msra.mxu0 %v7914
      %7954 = vmatprep.subr.bf16.mxu0 0
      %7955 = vmatpush1.bf16.msra.mxu0 %v7915
      %7956 = vmatprep.subr.bf16.mxu0 0
      %7957 = vmatpush1.bf16.msra.mxu0 %v7916
      %7958 = vmatprep.subr.bf16.mxu0 0
      %7959 = vmatpush1.bf16.msra.mxu0 %v7917
      %7960 = vmatprep.subr.bf16.mxu0 0
      %7961 = vmatpush1.bf16.msra.mxu0 0
      %7962 = vmatprep.subr.bf16.mxu0 0
      %7963 = vmatpush1.bf16.msra.mxu0 0
      %7964 = vmatprep.subr.bf16.mxu0 0
      %7965 = vmatpush1.bf16.msra.mxu0 0
      %7966 = vmatprep.subr.bf16.mxu0 0
      %7967 = vmatpush1.bf16.msra.mxu0 0
      %7968 = vmatprep.subr.bf16.mxu0 0
      %7969 = vmatpush1.bf16.msra.mxu0 0
      %7970 = vmatprep.subr.bf16.mxu0 0
      %7971 = vmatpush1.bf16.msra.mxu0 0
      %7972 = vmatprep.subr.bf16.mxu0 0
      %7973 = vmatpush1.bf16.msra.mxu0 0
      %7974 = vmatprep.subr.bf16.mxu0 0
      %7975 = vmatpush1.bf16.msra.mxu0 0
      %7976 = vmatprep.subr.bf16.mxu0 0
      %7977 = vmatpush1.bf16.msra.mxu0 0
      %7978 = vmatprep.subr.bf16.mxu0 0
      %7979 = vmatpush1.bf16.msra.mxu0 0
      %7980 = vmatprep.subr.bf16.mxu0 0
      %7981 = vmatpush1.bf16.msra.mxu0 0
      %7982 = vmatprep.subr.bf16.mxu0 0
      %7983 = vmatpush1.bf16.msra.mxu0 0
      %7984 = vmatprep.mubr.bf16.mxu0 0
      %7985 = vmatmul.mubr.bf16.gmra.mrb[0].mxu0 %v7923
      %v7986 = vpop.f32.mrb[0].mxu0
      %v7987 = vadd.f32 0.0, %v7986
      %v7988 = vpop.f32.mrb[0].mxu0
      %v7989 = vpop.f32.mrb[0].mxu0
      %v7990 = vadd.f32 0.0, %v7989
      %v7991 = vpop.f32.mrb[0].mxu0
      %7992 = vmatprep.mubr.bf16.mxu0 0
      %7993 = vmatmul.mubr.bf16.gmra.mrb[0].mxu0 %v7926
      %v7994 = vpop.f32.mrb[0].mxu0
      %v7995 = vadd.f32 0.0, %v7994
      %v7996 = vpop.f32.mrb[0].mxu0
      %v7997 = vpop.f32.mrb[0].mxu0
      %v7998 = vadd.f32 0.0, %v7997
      %v7999 = vpop.f32.mrb[0].mxu0
      %8000 = vmatprep.mubr.bf16.mxu0 0
      %8001 = vmatmul.mubr.bf16.gmra.mrb[0].mxu0 %v7929
      %v8002 = vpop.f32.mrb[0].mxu0
      %v8003 = vadd.f32 0.0, %v8002
      %v8004 = vpop.f32.mrb[0].mxu0
      %v8005 = vpop.f32.mrb[0].mxu0
      %v8006 = vadd.f32 0.0, %v8005
      %v8007 = vpop.f32.mrb[0].mxu0
      %8008 = vmatprep.mubr.bf16.mxu0 0
      %8009 = vmatmul.mubr.bf16.gmra.mrb[0].mxu0 %v7932
      %v8010 = vpop.f32.mrb[0].mxu0
      %v8011 = vadd.f32 0.0, %v8010
      %v8012 = vpop.f32.mrb[0].mxu0
      %v8013 = vpop.f32.mrb[0].mxu0
      %v8014 = vadd.f32 0.0, %v8013
      %v8015 = vpop.f32.mrb[0].mxu0
      %8016 = vmatprep.mubr.bf16.mxu0 0
      %8017 = vmatmul.mubr.bf16.gmra.mrb[0].mxu0 %v7935
      %v8018 = vpop.f32.mrb[0].mxu0
      %v8019 = vadd.f32 0.0, %v8018
      %v8020 = vpop.f32.mrb[0].mxu0
      %v8021 = vpop.f32.mrb[0].mxu0
      %v8022 = vadd.f32 0.0, %v8021
      %v8023 = vpop.f32.mrb[0].mxu0
      %8024 = vmatprep.mubr.bf16.mxu0 0
      %8025 = vmatmul.mubr.bf16.gmra.mrb[0].mxu0 %v7938
      %v8026 = vpop.f32.mrb[0].mxu0
      %v8027 = vadd.f32 0.0, %v8026
      %v8028 = vpop.f32.mrb[0].mxu0
      %v8029 = vpop.f32.mrb[0].mxu0
      %v8030 = vadd.f32 0.0, %v8029
      %v8031 = vpop.f32.mrb[0].mxu0
      %8032 = vmatprep.mubr.bf16.mxu0 0
      %8033 = vmatmul.mubr.bf16.gmra.mrb[0].mxu0 %v7941
      %v8034 = vpop.f32.mrb[0].mxu0
      %v8035 = vadd.f32 0.0, %v8034
      %v8036 = vpop.f32.mrb[0].mxu0
      %v8037 = vpop.f32.mrb[0].mxu0
      %v8038 = vadd.f32 0.0, %v8037
      %v8039 = vpop.f32.mrb[0].mxu0
      %8040 = vmatprep.mubr.bf16.mxu0 0
      %8041 = vmatmul.mubr.bf16.gmra.mrb[0].mxu0 %v7944
      %v8042 = vpop.f32.mrb[0].mxu0
      %v8043 = vadd.f32 0.0, %v8042
      %v8044 = vpop.f32.mrb[0].mxu0
      %v8045 = vpop.f32.mrb[0].mxu0
      %v8046 = vadd.f32 0.0, %v8045
      %v8047 = vpop.f32.mrb[0].mxu0
      %8048 = vmatprep.mubr.bf16.mxu0 0
      %8049 = vmatmul.mubr.bf16.gmra.mrb[0].mxu0 %v7947
      %v8050 = vpop.f32.mrb[0].mxu0
      %v8051 = vadd.f32 0.0, %v8050
      %v8052 = vpop.f32.mrb[0].mxu0
      %v8053 = vpop.f32.mrb[0].mxu0
      %v8054 = vadd.f32 0.0, %v8053
      %v8055 = vpop.f32.mrb[0].mxu0
      %8056 = vmatprep.mubr.bf16.mxu0 0
      %8057 = vmatmul.mubr.bf16.gmra.mrb[0].mxu0 %v7950
      %v8058 = vpop.f32.mrb[0].mxu0
      %v8059 = vadd.f32 0.0, %v8058
      %v8060 = vpop.f32.mrb[0].mxu0
      %v8061 = vpop.f32.mrb[0].mxu0
      %v8062 = vadd.f32 0.0, %v8061
      %v8063 = vpop.f32.mrb[0].mxu0
      %8064 = vdwg.mxu0
      %v8065 = vadd.f32 %v7712, %v7987
      %v8066 = vadd.f32 %v7713, %v7990
      %v8067 = vadd.f32 %v7714, %v7995
      %v8068 = vadd.f32 %v7715, %v7998
      %v8069 = vadd.f32 %v7716, %v8003
      %v8070 = vadd.f32 %v7717, %v8006
      %v8071 = vadd.f32 %v7718, %v8011
      %v8072 = vadd.f32 %v7719, %v8014
      %v8073 = vadd.f32 %v7720, %v8019
      %v8074 = vadd.f32 %v7721, %v8022
      %v8075 = vadd.f32 %v7722, %v8027
      %v8076 = vadd.f32 %v7723, %v8030
      %v8077 = vadd.f32 %v7724, %v8035
      %v8078 = vadd.f32 %v7725, %v8038
      %v8079 = vadd.f32 %v7726, %v8043
      %v8080 = vadd.f32 %v7727, %v8046
      %v8081 = vadd.f32 %v7728, %v8051
      %v8082 = vadd.f32 %v7729, %v8054
      %v8083 = vadd.f32 %v7730, %v8059
      %v8084 = vadd.f32 %v7731, %v8062
      %v8085 = vld [vmem:[%s352 + $0x8] sm:$0xe]
      %v8086 = vld [vmem:[%s5 + $0xa0] sm:$0xf]
      %v8087 = vld [vmem:[%s5 + $0xa4] sm:$0xf]
      %v8088 = vld [vmem:[%s5 + $0xa8] sm:$0xf]
      %v8089 = vld [vmem:[%s5 + $0xac] sm:$0xf]
      %v8090 = vld [vmem:[%s5 + $0xb0] sm:$0xf]
      %v8091 = vld [vmem:[%s5 + $0xb4] sm:$0xf]
      %v8092 = vld [vmem:[%s5 + $0xb8] sm:$0xf]
      %v8093 = vld [vmem:[%s5 + $0xbc] sm:$0xf]
      %v8095 = vunpack.c.l.b16 %v8085
      %v8096 = vpack.c.b16 %v7783, %v8095
      %v8097 = vrot.slane %v8096, 1
      %v8098 = vrot.slane %v7804, 1
      %v8099 = vsel %vm1033, %v8097, %v8098
      %v8100 = vrot.slane %v7805, 1
      %v8101 = vsel %vm1033, %v8098, %v8100
      %v8102 = vrot.slane %v7806, 1
      %v8103 = vsel %vm1033, %v8100, %v8102
      %v8104 = vrot.slane %v7807, 1
      %v8105 = vsel %vm1033, %v8102, %v8104
      %v8106 = vrot.slane %v7808, 1
      %v8107 = vsel %vm1033, %v8104, %v8106
      %v8108 = vrot.slane %v7809, 1
      %v8109 = vsel %vm1033, %v8106, %v8108
      %v8110 = vrot.slane %v7810, 1
      %v8111 = vsel %vm1033, %v8108, %v8110
      %v8112 = vrot.slane %v7811, 1
      %v8113 = vsel %vm1033, %v8110, %v8112
      %v8114 = vrot.slane %v7812, 1
      %v8115 = vsel %vm1033, %v8112, %v8114
      %v8116 = vrot.slane %v7813, 1
      %v8117 = vsel %vm1033, %v8114, %v8116
      %v8126 = vunpack.c.l.b16 %v8086
      %v8127 = vunpack.c.l.b16 %v8087
      %v8128 = vunpack.c.l.b16 %v8088
      %v8129 = vunpack.c.l.b16 %v8089
      %v8130 = vunpack.c.l.b16 %v8090
      %v8131 = vunpack.c.l.b16 %v8091
      %v8132 = vunpack.c.l.b16 %v8092
      %v8133 = vunpack.c.l.b16 %v8093
      %v8134 = vpack.c.b16 %v8127, %v8126
      %v8135 = vpack.c.b16 %v8129, %v8128
      %v8136 = vpack.c.b16 %v8131, %v8130
      %v8137 = vpack.c.b16 %v8133, %v8132
      %v8143 = vsel %vm6946, %v8099, 0
      %v8146 = vsel %vm6946, %v8101, 0
      %v8149 = vsel %vm6946, %v8103, 0
      %v8152 = vsel %vm6946, %v8105, 0
      %v8155 = vsel %vm6946, %v8107, 0
      %v8158 = vsel %vm6946, %v8109, 0
      %v8161 = vsel %vm6946, %v8111, 0
      %v8164 = vsel %vm6946, %v8113, 0
      %v8167 = vsel %vm6946, %v8115, 0
      %v8170 = vsel %vm6946, %v8117, 0
      %8172 = vmatprep.subr.bf16.mxu0 0
      %8173 = vmatpush1.bf16.msra.mxu0 %v8134
      %8174 = vmatprep.subr.bf16.mxu0 0
      %8175 = vmatpush1.bf16.msra.mxu0 %v8135
      %8176 = vmatprep.subr.bf16.mxu0 0
      %8177 = vmatpush1.bf16.msra.mxu0 %v8136
      %8178 = vmatprep.subr.bf16.mxu0 0
      %8179 = vmatpush1.bf16.msra.mxu0 %v8137
      %8180 = vmatprep.subr.bf16.mxu0 0
      %8181 = vmatpush1.bf16.msra.mxu0 0
      %8182 = vmatprep.subr.bf16.mxu0 0
      %8183 = vmatpush1.bf16.msra.mxu0 0
      %8184 = vmatprep.subr.bf16.mxu0 0
      %8185 = vmatpush1.bf16.msra.mxu0 0
      %8186 = vmatprep.subr.bf16.mxu0 0
      %8187 = vmatpush1.bf16.msra.mxu0 0
      %8188 = vmatprep.subr.bf16.mxu0 0
      %8189 = vmatpush1.bf16.msra.mxu0 0
      %8190 = vmatprep.subr.bf16.mxu0 0
      %8191 = vmatpush1.bf16.msra.mxu0 0
      %8192 = vmatprep.subr.bf16.mxu0 0
      %8193 = vmatpush1.bf16.msra.mxu0 0
      %8194 = vmatprep.subr.bf16.mxu0 0
      %8195 = vmatpush1.bf16.msra.mxu0 0
      %8196 = vmatprep.subr.bf16.mxu0 0
      %8197 = vmatpush1.bf16.msra.mxu0 0
      %8198 = vmatprep.subr.bf16.mxu0 0
      %8199 = vmatpush1.bf16.msra.mxu0 0
      %8200 = vmatprep.subr.bf16.mxu0 0
      %8201 = vmatpush1.bf16.msra.mxu0 0
      %8202 = vmatprep.subr.bf16.mxu0 0
      %8203 = vmatpush1.bf16.msra.mxu0 0
      %8204 = vmatprep.mubr.bf16.mxu0 0
      %8205 = vmatmul.mubr.bf16.gmra.mrb[0].mxu0 %v8143
      %v8206 = vpop.f32.mrb[0].mxu0
      %v8207 = vadd.f32 0.0, %v8206
      %v8208 = vpop.f32.mrb[0].mxu0
      %v8209 = vpop.f32.mrb[0].mxu0
      %v8210 = vadd.f32 0.0, %v8209
      %v8211 = vpop.f32.mrb[0].mxu0
      %8212 = vmatprep.mubr.bf16.mxu0 0
      %8213 = vmatmul.mubr.bf16.gmra.mrb[0].mxu0 %v8146
      %v8214 = vpop.f32.mrb[0].mxu0
      %v8215 = vadd.f32 0.0, %v8214
      %v8216 = vpop.f32.mrb[0].mxu0
      %v8217 = vpop.f32.mrb[0].mxu0
      %v8218 = vadd.f32 0.0, %v8217
      %v8219 = vpop.f32.mrb[0].mxu0
      %8220 = vmatprep.mubr.bf16.mxu0 0
      %8221 = vmatmul.mubr.bf16.gmra.mrb[0].mxu0 %v8149
      %v8222 = vpop.f32.mrb[0].mxu0
      %v8223 = vadd.f32 0.0, %v8222
      %v8224 = vpop.f32.mrb[0].mxu0
      %v8225 = vpop.f32.mrb[0].mxu0
      %v8226 = vadd.f32 0.0, %v8225
      %v8227 = vpop.f32.mrb[0].mxu0
      %8228 = vmatprep.mubr.bf16.mxu0 0
      %8229 = vmatmul.mubr.bf16.gmra.mrb[0].mxu0 %v8152
      %v8230 = vpop.f32.mrb[0].mxu0
      %v8231 = vadd.f32 0.0, %v8230
      %v8232 = vpop.f32.mrb[0].mxu0
      %v8233 = vpop.f32.mrb[0].mxu0
      %v8234 = vadd.f32 0.0, %v8233
      %v8235 = vpop.f32.mrb[0].mxu0
      %8236 = vmatprep.mubr.bf16.mxu0 0
      %8237 = vmatmul.mubr.bf16.gmra.mrb[0].mxu0 %v8155
      %v8238 = vpop.f32.mrb[0].mxu0
      %v8239 = vadd.f32 0.0, %v8238
      %v8240 = vpop.f32.mrb[0].mxu0
      %v8241 = vpop.f32.mrb[0].mxu0
      %v8242 = vadd.f32 0.0, %v8241
      %v8243 = vpop.f32.mrb[0].mxu0
      %8244 = vmatprep.mubr.bf16.mxu0 0
      %8245 = vmatmul.mubr.bf16.gmra.mrb[0].mxu0 %v8158
      %v8246 = vpop.f32.mrb[0].mxu0
      %v8247 = vadd.f32 0.0, %v8246
      %v8248 = vpop.f32.mrb[0].mxu0
      %v8249 = vpop.f32.mrb[0].mxu0
      %v8250 = vadd.f32 0.0, %v8249
      %v8251 = vpop.f32.mrb[0].mxu0
      %8252 = vmatprep.mubr.bf16.mxu0 0
      %8253 = vmatmul.mubr.bf16.gmra.mrb[0].mxu0 %v8161
      %v8254 = vpop.f32.mrb[0].mxu0
      %v8255 = vadd.f32 0.0, %v8254
      %v8256 = vpop.f32.mrb[0].mxu0
      %v8257 = vpop.f32.mrb[0].mxu0
      %v8258 = vadd.f32 0.0, %v8257
      %v8259 = vpop.f32.mrb[0].mxu0
      %8260 = vmatprep.mubr.bf16.mxu0 0
      %8261 = vmatmul.mubr.bf16.gmra.mrb[0].mxu0 %v8164
      %v8262 = vpop.f32.mrb[0].mxu0
      %v8263 = vadd.f32 0.0, %v8262
      %v8264 = vpop.f32.mrb[0].mxu0
      %v8265 = vpop.f32.mrb[0].mxu0
      %v8266 = vadd.f32 0.0, %v8265
      %v8267 = vpop.f32.mrb[0].mxu0
      %8268 = vmatprep.mubr.bf16.mxu0 0
      %8269 = vmatmul.mubr.bf16.gmra.mrb[0].mxu0 %v8167
      %v8270 = vpop.f32.mrb[0].mxu0
      %v8271 = vadd.f32 0.0, %v8270
      %v8272 = vpop.f32.mrb[0].mxu0
      %v8273 = vpop.f32.mrb[0].mxu0
      %v8274 = vadd.f32 0.0, %v8273
      %v8275 = vpop.f32.mrb[0].mxu0
      %8276 = vmatprep.mubr.bf16.mxu0 0
      %8277 = vmatmul.mubr.bf16.gmra.mrb[0].mxu0 %v8170
      %v8278 = vpop.f32.mrb[0].mxu0
      %v8279 = vadd.f32 0.0, %v8278
      %v8280 = vpop.f32.mrb[0].mxu0
      %v8281 = vpop.f32.mrb[0].mxu0
      %v8282 = vadd.f32 0.0, %v8281
      %v8283 = vpop.f32.mrb[0].mxu0
      %8284 = vdwg.mxu0
      %v8285 = vadd.f32 %v8065, %v8207
      %v8286 = vadd.f32 %v8066, %v8210
      %v8287 = vadd.f32 %v8067, %v8215
      %v8288 = vadd.f32 %v8068, %v8218
      %v8289 = vadd.f32 %v8069, %v8223
      %v8290 = vadd.f32 %v8070, %v8226
      %v8291 = vadd.f32 %v8071, %v8231
      %v8292 = vadd.f32 %v8072, %v8234
      %v8293 = vadd.f32 %v8073, %v8239
      %v8294 = vadd.f32 %v8074, %v8242
      %v8295 = vadd.f32 %v8075, %v8247
      %v8296 = vadd.f32 %v8076, %v8250
      %v8297 = vadd.f32 %v8077, %v8255
      %v8298 = vadd.f32 %v8078, %v8258
      %v8299 = vadd.f32 %v8079, %v8263
      %v8300 = vadd.f32 %v8080, %v8266
      %v8301 = vadd.f32 %v8081, %v8271
      %v8302 = vadd.f32 %v8082, %v8274
      %v8303 = vadd.f32 %v8083, %v8279
      %v8304 = vadd.f32 %v8084, %v8282
      %v8305 = vld [vmem:[%s352 + $0x10] sm:$0xf]
      %v8306 = vld [vmem:[%s352 + $0x14] sm:$0xf]
      %v8307 = vld [vmem:[%s352 + $0x18] sm:$0xf]
      %v8308 = vld [vmem:[%s352 + $0x1c] sm:$0xf]
      %v8309 = vld [vmem:[%s352 + $0x20] sm:$0xf]
      %v8310 = vld [vmem:[%s352 + $0x24] sm:$0xf]
      %v8311 = vld [vmem:[%s352 + $0x28] sm:$0xf]
      %v8312 = vld [vmem:[%s352 + $0x2c] sm:$0xf]
      %v8313 = vld [vmem:[%s352 + $0x30] sm:$0xf]
      %v8314 = vld [vmem:[%s352 + $0x34] sm:$0xf]
      %v8315 = vld [vmem:[%s352 + $0x38] sm:$0xf]
      %v8316 = vld [vmem:[%s352 + $0x3c] sm:$0xf]
      %v8317 = vld [vmem:[%s352 + $0x40] sm:$0xf]
      %v8318 = vld [vmem:[%s352 + $0x44] sm:$0xf]
      %v8319 = vld [vmem:[%s352 + $0x48] sm:$0xf]
      %v8320 = vld [vmem:[%s352 + $0x4c] sm:$0xf]
      %v8321 = vld [vmem:[%s352 + $0x50] sm:$0xf]
      %v8322 = vld [vmem:[%s352 + $0x54] sm:$0xf]
      %v8323 = vld [vmem:[%s352 + $0x58] sm:$0xf]
      %v8324 = vld [vmem:[%s352 + $0x5c] sm:$0xf]
      %v8325 = vld [vmem:[%s5 + $0xc0] sm:$0xf]
      %v8326 = vld [vmem:[%s5 + $0xc4] sm:$0xf]
      %v8327 = vld [vmem:[%s5 + $0xc8] sm:$0xf]
      %v8328 = vld [vmem:[%s5 + $0xcc] sm:$0xf]
      %v8329 = vld [vmem:[%s5 + $0xd0] sm:$0xf]
      %v8330 = vld [vmem:[%s5 + $0xd4] sm:$0xf]
      %v8331 = vld [vmem:[%s5 + $0xd8] sm:$0xf]
      %v8332 = vld [vmem:[%s5 + $0xdc] sm:$0xf]
      %v8353 = vunpack.c.l.b16 %v8305
      %v8354 = vunpack.c.l.b16 %v8306
      %v8355 = vunpack.c.l.b16 %v8307
      %v8356 = vunpack.c.l.b16 %v8308
      %v8357 = vunpack.c.l.b16 %v8309
      %v8358 = vunpack.c.l.b16 %v8310
      %v8359 = vunpack.c.l.b16 %v8311
      %v8360 = vunpack.c.l.b16 %v8312
      %v8361 = vunpack.c.l.b16 %v8313
      %v8362 = vunpack.c.l.b16 %v8314
      %v8363 = vunpack.c.l.b16 %v8315
      %v8364 = vunpack.c.l.b16 %v8316
      %v8365 = vunpack.c.l.b16 %v8317
      %v8366 = vunpack.c.l.b16 %v8318
      %v8367 = vunpack.c.l.b16 %v8319
      %v8368 = vunpack.c.l.b16 %v8320
      %v8369 = vunpack.c.l.b16 %v8321
      %v8370 = vunpack.c.l.b16 %v8322
      %v8371 = vunpack.c.l.b16 %v8323
      %v8372 = vunpack.c.l.b16 %v8324
      %v8373 = vpack.c.b16 %v8354, %v8353
      %v8374 = vpack.c.b16 %v8356, %v8355
      %v8375 = vpack.c.b16 %v8358, %v8357
      %v8376 = vpack.c.b16 %v8360, %v8359
      %v8377 = vpack.c.b16 %v8362, %v8361
      %v8378 = vpack.c.b16 %v8364, %v8363
      %v8379 = vpack.c.b16 %v8366, %v8365
      %v8380 = vpack.c.b16 %v8368, %v8367
      %v8381 = vpack.c.b16 %v8370, %v8369
      %v8382 = vpack.c.b16 %v8372, %v8371
      %v8391 = vunpack.c.l.b16 %v8325
      %v8392 = vunpack.c.l.b16 %v8326
      %v8393 = vunpack.c.l.b16 %v8327
      %v8394 = vunpack.c.l.b16 %v8328
      %v8395 = vunpack.c.l.b16 %v8329
      %v8396 = vunpack.c.l.b16 %v8330
      %v8397 = vunpack.c.l.b16 %v8331
      %v8398 = vunpack.c.l.b16 %v8332
      %v8399 = vpack.c.b16 %v8392, %v8391
      %v8400 = vpack.c.b16 %v8394, %v8393
      %v8401 = vpack.c.b16 %v8396, %v8395
      %v8402 = vpack.c.b16 %v8398, %v8397
      %v8408 = vsel %vm6946, %v8373, 0
      %v8411 = vsel %vm6946, %v8374, 0
      %v8414 = vsel %vm6946, %v8375, 0
      %v8417 = vsel %vm6946, %v8376, 0
      %v8420 = vsel %vm6946, %v8377, 0
      %v8423 = vsel %vm6946, %v8378, 0
      %v8426 = vsel %vm6946, %v8379, 0
      %v8429 = vsel %vm6946, %v8380, 0
      %v8432 = vsel %vm6946, %v8381, 0
      %v8435 = vsel %vm6946, %v8382, 0
      %8437 = vmatprep.subr.bf16.mxu0 0
      %8438 = vmatpush1.bf16.msra.mxu0 %v8399
      %8439 = vmatprep.subr.bf16.mxu0 0
      %8440 = vmatpush1.bf16.msra.mxu0 %v8400
      %8441 = vmatprep.subr.bf16.mxu0 0
      %8442 = vmatpush1.bf16.msra.mxu0 %v8401
      %8443 = vmatprep.subr.bf16.mxu0 0
      %8444 = vmatpush1.bf16.msra.mxu0 %v8402
      %8445 = vmatprep.subr.bf16.mxu0 0
      %8446 = vmatpush1.bf16.msra.mxu0 0
      %8447 = vmatprep.subr.bf16.mxu0 0
      %8448 = vmatpush1.bf16.msra.mxu0 0
      %8449 = vmatprep.subr.bf16.mxu0 0
      %8450 = vmatpush1.bf16.msra.mxu0 0
      %8451 = vmatprep.subr.bf16.mxu0 0
      %8452 = vmatpush1.bf16.msra.mxu0 0
      %8453 = vmatprep.subr.bf16.mxu0 0
      %8454 = vmatpush1.bf16.msra.mxu0 0
      %8455 = vmatprep.subr.bf16.mxu0 0
      %8456 = vmatpush1.bf16.msra.mxu0 0
      %8457 = vmatprep.subr.bf16.mxu0 0
      %8458 = vmatpush1.bf16.msra.mxu0 0
      %8459 = vmatprep.subr.bf16.mxu0 0
      %8460 = vmatpush1.bf16.msra.mxu0 0
      %8461 = vmatprep.subr.bf16.mxu0 0
      %8462 = vmatpush1.bf16.msra.mxu0 0
      %8463 = vmatprep.subr.bf16.mxu0 0
      %8464 = vmatpush1.bf16.msra.mxu0 0
      %8465 = vmatprep.subr.bf16.mxu0 0
      %8466 = vmatpush1.bf16.msra.mxu0 0
      %8467 = vmatprep.subr.bf16.mxu0 0
      %8468 = vmatpush1.bf16.msra.mxu0 0
      %8469 = vmatprep.mubr.bf16.mxu0 0
      %8470 = vmatmul.mubr.bf16.gmra.mrb[0].mxu0 %v8408
      %v8471 = vpop.f32.mrb[0].mxu0
      %v8472 = vadd.f32 0.0, %v8471
      %v8473 = vpop.f32.mrb[0].mxu0
      %v8474 = vpop.f32.mrb[0].mxu0
      %v8475 = vadd.f32 0.0, %v8474
      %v8476 = vpop.f32.mrb[0].mxu0
      %8477 = vmatprep.mubr.bf16.mxu0 0
      %8478 = vmatmul.mubr.bf16.gmra.mrb[0].mxu0 %v8411
      %v8479 = vpop.f32.mrb[0].mxu0
      %v8480 = vadd.f32 0.0, %v8479
      %v8481 = vpop.f32.mrb[0].mxu0
      %v8482 = vpop.f32.mrb[0].mxu0
      %v8483 = vadd.f32 0.0, %v8482
      %v8484 = vpop.f32.mrb[0].mxu0
      %8485 = vmatprep.mubr.bf16.mxu0 0
      %8486 = vmatmul.mubr.bf16.gmra.mrb[0].mxu0 %v8414
      %v8487 = vpop.f32.mrb[0].mxu0
      %v8488 = vadd.f32 0.0, %v8487
      %v8489 = vpop.f32.mrb[0].mxu0
      %v8490 = vpop.f32.mrb[0].mxu0
      %v8491 = vadd.f32 0.0, %v8490
      %v8492 = vpop.f32.mrb[0].mxu0
      %8493 = vmatprep.mubr.bf16.mxu0 0
      %8494 = vmatmul.mubr.bf16.gmra.mrb[0].mxu0 %v8417
      %v8495 = vpop.f32.mrb[0].mxu0
      %v8496 = vadd.f32 0.0, %v8495
      %v8497 = vpop.f32.mrb[0].mxu0
      %v8498 = vpop.f32.mrb[0].mxu0
      %v8499 = vadd.f32 0.0, %v8498
      %v8500 = vpop.f32.mrb[0].mxu0
      %8501 = vmatprep.mubr.bf16.mxu0 0
      %8502 = vmatmul.mubr.bf16.gmra.mrb[0].mxu0 %v8420
      %v8503 = vpop.f32.mrb[0].mxu0
      %v8504 = vadd.f32 0.0, %v8503
      %v8505 = vpop.f32.mrb[0].mxu0
      %v8506 = vpop.f32.mrb[0].mxu0
      %v8507 = vadd.f32 0.0, %v8506
      %v8508 = vpop.f32.mrb[0].mxu0
      %8509 = vmatprep.mubr.bf16.mxu0 0
      %8510 = vmatmul.mubr.bf16.gmra.mrb[0].mxu0 %v8423
      %v8511 = vpop.f32.mrb[0].mxu0
      %v8512 = vadd.f32 0.0, %v8511
      %v8513 = vpop.f32.mrb[0].mxu0
      %v8514 = vpop.f32.mrb[0].mxu0
      %v8515 = vadd.f32 0.0, %v8514
      %v8516 = vpop.f32.mrb[0].mxu0
      %8517 = vmatprep.mubr.bf16.mxu0 0
      %8518 = vmatmul.mubr.bf16.gmra.mrb[0].mxu0 %v8426
      %v8519 = vpop.f32.mrb[0].mxu0
      %v8520 = vadd.f32 0.0, %v8519
      %v8521 = vpop.f32.mrb[0].mxu0
      %v8522 = vpop.f32.mrb[0].mxu0
      %v8523 = vadd.f32 0.0, %v8522
      %v8524 = vpop.f32.mrb[0].mxu0
      %8525 = vmatprep.mubr.bf16.mxu0 0
      %8526 = vmatmul.mubr.bf16.gmra.mrb[0].mxu0 %v8429
      %v8527 = vpop.f32.mrb[0].mxu0
      %v8528 = vadd.f32 0.0, %v8527
      %v8529 = vpop.f32.mrb[0].mxu0
      %v8530 = vpop.f32.mrb[0].mxu0
      %v8531 = vadd.f32 0.0, %v8530
      %v8532 = vpop.f32.mrb[0].mxu0
      %8533 = vmatprep.mubr.bf16.mxu0 0
      %8534 = vmatmul.mubr.bf16.gmra.mrb[0].mxu0 %v8432
      %v8535 = vpop.f32.mrb[0].mxu0
      %v8536 = vadd.f32 0.0, %v8535
      %v8537 = vpop.f32.mrb[0].mxu0
      %v8538 = vpop.f32.mrb[0].mxu0
      %v8539 = vadd.f32 0.0, %v8538
      %v8540 = vpop.f32.mrb[0].mxu0
      %8541 = vmatprep.mubr.bf16.mxu0 0
      %8542 = vmatmul.mubr.bf16.gmra.mrb[0].mxu0 %v8435
      %v8543 = vpop.f32.mrb[0].mxu0
      %v8544 = vadd.f32 0.0, %v8543
      %v8545 = vpop.f32.mrb[0].mxu0
      %v8546 = vpop.f32.mrb[0].mxu0
      %v8547 = vadd.f32 0.0, %v8546
      %v8548 = vpop.f32.mrb[0].mxu0
      %8549 = vdwg.mxu0
      %v8550 = vadd.f32 %v8285, %v8472
      %v8551 = vadd.f32 %v8286, %v8475
      %v8552 = vadd.f32 %v8287, %v8480
      %v8553 = vadd.f32 %v8288, %v8483
      %v8554 = vadd.f32 %v8289, %v8488
      %v8555 = vadd.f32 %v8290, %v8491
      %v8556 = vadd.f32 %v8291, %v8496
      %v8557 = vadd.f32 %v8292, %v8499
      %v8558 = vadd.f32 %v8293, %v8504
      %v8559 = vadd.f32 %v8294, %v8507
      %v8560 = vadd.f32 %v8295, %v8512
      %v8561 = vadd.f32 %v8296, %v8515
      %v8562 = vadd.f32 %v8297, %v8520
      %v8563 = vadd.f32 %v8298, %v8523
      %v8564 = vadd.f32 %v8299, %v8528
      %v8565 = vadd.f32 %v8300, %v8531
      %v8566 = vadd.f32 %v8301, %v8536
      %v8567 = vadd.f32 %v8302, %v8539
      %v8568 = vadd.f32 %v8303, %v8544
      %v8569 = vadd.f32 %v8304, %v8547
      %v8570 = vld [vmem:[%s352 + $0x10] sm:$0xf]
      %v8571 = vld [vmem:[%s352 + $0x14] sm:$0xf]
      %v8572 = vld [vmem:[%s352 + $0x18] sm:$0xf]
      %v8573 = vld [vmem:[%s352 + $0x1c] sm:$0xf]
      %v8574 = vld [vmem:[%s352 + $0x20] sm:$0xf]
      %v8575 = vld [vmem:[%s352 + $0x24] sm:$0xf]
      %v8576 = vld [vmem:[%s352 + $0x28] sm:$0xf]
      %v8577 = vld [vmem:[%s352 + $0x2c] sm:$0xf]
      %v8578 = vld [vmem:[%s352 + $0x30] sm:$0xf]
      %v8579 = vld [vmem:[%s352 + $0x34] sm:$0xf]
      %v8580 = vld [vmem:[%s352 + $0x38] sm:$0xf]
      %v8581 = vld [vmem:[%s352 + $0x3c] sm:$0xf]
      %v8582 = vld [vmem:[%s352 + $0x40] sm:$0xf]
      %v8583 = vld [vmem:[%s352 + $0x44] sm:$0xf]
      %v8584 = vld [vmem:[%s352 + $0x48] sm:$0xf]
      %v8585 = vld [vmem:[%s352 + $0x4c] sm:$0xf]
      %v8586 = vld [vmem:[%s352 + $0x50] sm:$0xf]
      %v8587 = vld [vmem:[%s352 + $0x54] sm:$0xf]
      %v8588 = vld [vmem:[%s352 + $0x58] sm:$0xf]
      %v8589 = vld [vmem:[%s352 + $0x5c] sm:$0xf]
      %v8590 = vld [vmem:[%s352 + $0x60] sm:$0x1]
      %v8591 = vld [vmem:[%s5 + $0xe0] sm:$0xf]
      %v8592 = vld [vmem:[%s5 + $0xe4] sm:$0xf]
      %v8593 = vld [vmem:[%s5 + $0xe8] sm:$0xf]
      %v8594 = vld [vmem:[%s5 + $0xec] sm:$0xf]
      %v8595 = vld [vmem:[%s5 + $0xf0] sm:$0xf]
      %v8596 = vld [vmem:[%s5 + $0xf4] sm:$0xf]
      %v8597 = vld [vmem:[%s5 + $0xf8] sm:$0xf]
      %v8598 = vld [vmem:[%s5 + $0xfc] sm:$0xf]
      %v8620 = vunpack.c.l.b16 %v8570
      %v8621 = vunpack.c.l.b16 %v8571
      %v8622 = vunpack.c.l.b16 %v8572
      %v8623 = vunpack.c.l.b16 %v8573
      %v8624 = vunpack.c.l.b16 %v8574
      %v8625 = vunpack.c.l.b16 %v8575
      %v8626 = vunpack.c.l.b16 %v8576
      %v8627 = vunpack.c.l.b16 %v8577
      %v8628 = vunpack.c.l.b16 %v8578
      %v8629 = vunpack.c.l.b16 %v8579
      %v8630 = vunpack.c.l.b16 %v8580
      %v8631 = vunpack.c.l.b16 %v8581
      %v8632 = vunpack.c.l.b16 %v8582
      %v8633 = vunpack.c.l.b16 %v8583
      %v8634 = vunpack.c.l.b16 %v8584
      %v8635 = vunpack.c.l.b16 %v8585
      %v8636 = vunpack.c.l.b16 %v8586
      %v8637 = vunpack.c.l.b16 %v8587
      %v8638 = vunpack.c.l.b16 %v8588
      %v8639 = vunpack.c.l.b16 %v8589
      %v8640 = vunpack.c.l.b16 %v8590
      %v8641 = vpack.c.b16 %v8621, %v8620
      %v8642 = vpack.c.b16 %v8623, %v8622
      %v8643 = vpack.c.b16 %v8625, %v8624
      %v8644 = vpack.c.b16 %v8627, %v8626
      %v8645 = vpack.c.b16 %v8629, %v8628
      %v8646 = vpack.c.b16 %v8631, %v8630
      %v8647 = vpack.c.b16 %v8633, %v8632
      %v8648 = vpack.c.b16 %v8635, %v8634
      %v8649 = vpack.c.b16 %v8637, %v8636
      %v8650 = vpack.c.b16 %v8639, %v8638
      %v8651 = vpack.c.b16 %v8640, %v8640
      %v8653 = vshrl.u32 %v8641, 16
      %v8655 = vshll.u32 %v8641, 16
      %v8657 = vrot.slane %v8655, 1
      %v8658 = vor.u32 %v8653, %v8657
      %v8660 = vshll.u32 %v8642, 16
      %v8662 = vrot.slane %v8660, 1
      %v8663 = vsel %vm479, %v8658, %v8662
      %v8664 = vshrl.u32 %v8642, 16
      %v8666 = vor.u32 %v8664, %v8662
      %v8668 = vshll.u32 %v8643, 16
      %v8670 = vrot.slane %v8668, 1
      %v8671 = vsel %vm479, %v8666, %v8670
      %v8672 = vshrl.u32 %v8643, 16
      %v8674 = vor.u32 %v8672, %v8670
      %v8676 = vshll.u32 %v8644, 16
      %v8678 = vrot.slane %v8676, 1
      %v8679 = vsel %vm479, %v8674, %v8678
      %v8680 = vshrl.u32 %v8644, 16
      %v8682 = vor.u32 %v8680, %v8678
      %v8684 = vshll.u32 %v8645, 16
      %v8686 = vrot.slane %v8684, 1
      %v8687 = vsel %vm479, %v8682, %v8686
      %v8688 = vshrl.u32 %v8645, 16
      %v8690 = vor.u32 %v8688, %v8686
      %v8692 = vshll.u32 %v8646, 16
      %v8694 = vrot.slane %v8692, 1
      %v8695 = vsel %vm479, %v8690, %v8694
      %v8696 = vshrl.u32 %v8646, 16
      %v8698 = vor.u32 %v8696, %v8694
      %v8700 = vshll.u32 %v8647, 16
      %v8702 = vrot.slane %v8700, 1
      %v8703 = vsel %vm479, %v8698, %v8702
      %v8704 = vshrl.u32 %v8647, 16
      %v8706 = vor.u32 %v8704, %v8702
      %v8708 = vshll.u32 %v8648, 16
      %v8710 = vrot.slane %v8708, 1
      %v8711 = vsel %vm479, %v8706, %v8710
      %v8712 = vshrl.u32 %v8648, 16
      %v8714 = vor.u32 %v8712, %v8710
      %v8716 = vshll.u32 %v8649, 16
      %v8718 = vrot.slane %v8716, 1
      %v8719 = vsel %vm479, %v8714, %v8718
      %v8720 = vshrl.u32 %v8649, 16
      %v8722 = vor.u32 %v8720, %v8718
      %v8724 = vshll.u32 %v8650, 16
      %v8726 = vrot.slane %v8724, 1
      %v8727 = vsel %vm479, %v8722, %v8726
      %v8728 = vshrl.u32 %v8650, 16
      %v8730 = vor.u32 %v8728, %v8726
      %v8732 = vshll.u32 %v8651, 16
      %v8734 = vrot.slane %v8732, 1
      %v8735 = vsel %vm479, %v8730, %v8734
      %v8744 = vunpack.c.l.b16 %v8591
      %v8745 = vunpack.c.l.b16 %v8592
      %v8746 = vunpack.c.l.b16 %v8593
      %v8747 = vunpack.c.l.b16 %v8594
      %v8748 = vunpack.c.l.b16 %v8595
      %v8749 = vunpack.c.l.b16 %v8596
      %v8750 = vunpack.c.l.b16 %v8597
      %v8751 = vunpack.c.l.b16 %v8598
      %v8752 = vpack.c.b16 %v8745, %v8744
      %v8753 = vpack.c.b16 %v8747, %v8746
      %v8754 = vpack.c.b16 %v8749, %v8748
      %v8755 = vpack.c.b16 %v8751, %v8750
      %v8761 = vsel %vm6946, %v8663, 0
      %v8764 = vsel %vm6946, %v8671, 0
      %v8767 = vsel %vm6946, %v8679, 0
      %v8770 = vsel %vm6946, %v8687, 0
      %v8773 = vsel %vm6946, %v8695, 0
      %v8776 = vsel %vm6946, %v8703, 0
      %v8779 = vsel %vm6946, %v8711, 0
      %v8782 = vsel %vm6946, %v8719, 0
      %v8785 = vsel %vm6946, %v8727, 0
      %v8788 = vsel %vm6946, %v8735, 0
      %8790 = vmatprep.subr.bf16.mxu0 0
      %8791 = vmatpush1.bf16.msra.mxu0 %v8752
      %8792 = vmatprep.subr.bf16.mxu0 0
      %8793 = vmatpush1.bf16.msra.mxu0 %v8753
      %8794 = vmatprep.subr.bf16.mxu0 0
      %8795 = vmatpush1.bf16.msra.mxu0 %v8754
      %8796 = vmatprep.subr.bf16.mxu0 0
      %8797 = vmatpush1.bf16.msra.mxu0 %v8755
      %8798 = vmatprep.subr.bf16.mxu0 0
      %8799 = vmatpush1.bf16.msra.mxu0 0
      %8800 = vmatprep.subr.bf16.mxu0 0
      %8801 = vmatpush1.bf16.msra.mxu0 0
      %8802 = vmatprep.subr.bf16.mxu0 0
      %8803 = vmatpush1.bf16.msra.mxu0 0
      %8804 = vmatprep.subr.bf16.mxu0 0
      %8805 = vmatpush1.bf16.msra.mxu0 0
      %8806 = vmatprep.subr.bf16.mxu0 0
      %8807 = vmatpush1.bf16.msra.mxu0 0
      %8808 = vmatprep.subr.bf16.mxu0 0
      %8809 = vmatpush1.bf16.msra.mxu0 0
      %8810 = vmatprep.subr.bf16.mxu0 0
      %8811 = vmatpush1.bf16.msra.mxu0 0
      %8812 = vmatprep.subr.bf16.mxu0 0
      %8813 = vmatpush1.bf16.msra.mxu0 0
      %8814 = vmatprep.subr.bf16.mxu0 0
      %8815 = vmatpush1.bf16.msra.mxu0 0
      %8816 = vmatprep.subr.bf16.mxu0 0
      %8817 = vmatpush1.bf16.msra.mxu0 0
      %8818 = vmatprep.subr.bf16.mxu0 0
      %8819 = vmatpush1.bf16.msra.mxu0 0
      %8820 = vmatprep.subr.bf16.mxu0 0
      %8821 = vmatpush1.bf16.msra.mxu0 0
      %8822 = vmatprep.mubr.bf16.mxu0 0
      %8823 = vmatmul.mubr.bf16.gmra.mrb[0].mxu0 %v8761
      %v8824 = vpop.f32.mrb[0].mxu0
      %v8825 = vadd.f32 0.0, %v8824
      %v8826 = vpop.f32.mrb[0].mxu0
      %v8827 = vpop.f32.mrb[0].mxu0
      %v8828 = vadd.f32 0.0, %v8827
      %v8829 = vpop.f32.mrb[0].mxu0
      %8830 = vmatprep.mubr.bf16.mxu0 0
      %8831 = vmatmul.mubr.bf16.gmra.mrb[0].mxu0 %v8764
      %v8832 = vpop.f32.mrb[0].mxu0
      %v8833 = vadd.f32 0.0, %v8832
      %v8834 = vpop.f32.mrb[0].mxu0
      %v8835 = vpop.f32.mrb[0].mxu0
      %v8836 = vadd.f32 0.0, %v8835
      %v8837 = vpop.f32.mrb[0].mxu0
      %8838 = vmatprep.mubr.bf16.mxu0 0
      %8839 = vmatmul.mubr.bf16.gmra.mrb[0].mxu0 %v8767
      %v8840 = vpop.f32.mrb[0].mxu0
      %v8841 = vadd.f32 0.0, %v8840
      %v8842 = vpop.f32.mrb[0].mxu0
      %v8843 = vpop.f32.mrb[0].mxu0
      %v8844 = vadd.f32 0.0, %v8843
      %v8845 = vpop.f32.mrb[0].mxu0
      %8846 = vmatprep.mubr.bf16.mxu0 0
      %8847 = vmatmul.mubr.bf16.gmra.mrb[0].mxu0 %v8770
      %v8848 = vpop.f32.mrb[0].mxu0
      %v8849 = vadd.f32 0.0, %v8848
      %v8850 = vpop.f32.mrb[0].mxu0
      %v8851 = vpop.f32.mrb[0].mxu0
      %v8852 = vadd.f32 0.0, %v8851
      %v8853 = vpop.f32.mrb[0].mxu0
      %8854 = vmatprep.mubr.bf16.mxu0 0
      %8855 = vmatmul.mubr.bf16.gmra.mrb[0].mxu0 %v8773
      %v8856 = vpop.f32.mrb[0].mxu0
      %v8857 = vadd.f32 0.0, %v8856
      %v8858 = vpop.f32.mrb[0].mxu0
      %v8859 = vpop.f32.mrb[0].mxu0
      %v8860 = vadd.f32 0.0, %v8859
      %v8861 = vpop.f32.mrb[0].mxu0
      %8862 = vmatprep.mubr.bf16.mxu0 0
      %8863 = vmatmul.mubr.bf16.gmra.mrb[0].mxu0 %v8776
      %v8864 = vpop.f32.mrb[0].mxu0
      %v8865 = vadd.f32 0.0, %v8864
      %v8866 = vpop.f32.mrb[0].mxu0
      %v8867 = vpop.f32.mrb[0].mxu0
      %v8868 = vadd.f32 0.0, %v8867
      %v8869 = vpop.f32.mrb[0].mxu0
      %8870 = vmatprep.mubr.bf16.mxu0 0
      %8871 = vmatmul.mubr.bf16.gmra.mrb[0].mxu0 %v8779
      %v8872 = vpop.f32.mrb[0].mxu0
      %v8873 = vadd.f32 0.0, %v8872
      %v8874 = vpop.f32.mrb[0].mxu0
      %v8875 = vpop.f32.mrb[0].mxu0
      %v8876 = vadd.f32 0.0, %v8875
      %v8877 = vpop.f32.mrb[0].mxu0
      %8878 = vmatprep.mubr.bf16.mxu0 0
      %8879 = vmatmul.mubr.bf16.gmra.mrb[0].mxu0 %v8782
      %v8880 = vpop.f32.mrb[0].mxu0
      %v8881 = vadd.f32 0.0, %v8880
      %v8882 = vpop.f32.mrb[0].mxu0
      %v8883 = vpop.f32.mrb[0].mxu0
      %v8884 = vadd.f32 0.0, %v8883
      %v8885 = vpop.f32.mrb[0].mxu0
      %8886 = vmatprep.mubr.bf16.mxu0 0
      %8887 = vmatmul.mubr.bf16.gmra.mrb[0].mxu0 %v8785
      %v8888 = vpop.f32.mrb[0].mxu0
      %v8889 = vadd.f32 0.0, %v8888
      %v8890 = vpop.f32.mrb[0].mxu0
      %v8891 = vpop.f32.mrb[0].mxu0
      %v8892 = vadd.f32 0.0, %v8891
      %v8893 = vpop.f32.mrb[0].mxu0
      %8894 = vmatprep.mubr.bf16.mxu0 0
      %8895 = vmatmul.mubr.bf16.gmra.mrb[0].mxu0 %v8788
      %v8896 = vpop.f32.mrb[0].mxu0
      %v8897 = vadd.f32 0.0, %v8896
      %v8898 = vpop.f32.mrb[0].mxu0
      %v8899 = vpop.f32.mrb[0].mxu0
      %v8900 = vadd.f32 0.0, %v8899
      %v8901 = vpop.f32.mrb[0].mxu0
      %8902 = vdwg.mxu0
      %v8903 = vadd.f32 %v8550, %v8825
      %v8904 = vadd.f32 %v8551, %v8828
      %v8905 = vadd.f32 %v8552, %v8833
      %v8906 = vadd.f32 %v8553, %v8836
      %v8907 = vadd.f32 %v8554, %v8841
      %v8908 = vadd.f32 %v8555, %v8844
      %v8909 = vadd.f32 %v8556, %v8849
      %v8910 = vadd.f32 %v8557, %v8852
      %v8911 = vadd.f32 %v8558, %v8857
      %v8912 = vadd.f32 %v8559, %v8860
      %v8913 = vadd.f32 %v8560, %v8865
      %v8914 = vadd.f32 %v8561, %v8868
      %v8915 = vadd.f32 %v8562, %v8873
      %v8916 = vadd.f32 %v8563, %v8876
      %v8917 = vadd.f32 %v8564, %v8881
      %v8918 = vadd.f32 %v8565, %v8884
      %v8919 = vadd.f32 %v8566, %v8889
      %v8920 = vadd.f32 %v8567, %v8892
      %v8921 = vadd.f32 %v8568, %v8897
      %v8922 = vadd.f32 %v8569, %v8900
      %v8923 = vld [vmem:[%s352 + $0x10] sm:$0xe]
      %v8924 = vld [vmem:[%s5 + $0x100] sm:$0xf]
      %v8925 = vld [vmem:[%s5 + $0x104] sm:$0xf]
      %v8926 = vld [vmem:[%s5 + $0x108] sm:$0xf]
      %v8927 = vld [vmem:[%s5 + $0x10c] sm:$0xf]
      %v8928 = vld [vmem:[%s5 + $0x110] sm:$0xf]
      %v8929 = vld [vmem:[%s5 + $0x114] sm:$0xf]
      %v8930 = vld [vmem:[%s5 + $0x118] sm:$0xf]
      %v8931 = vld [vmem:[%s5 + $0x11c] sm:$0xf]
      %v8933 = vunpack.c.l.b16 %v8923
      %v8934 = vpack.c.b16 %v8621, %v8933
      %v8935 = vrot.slane %v8934, 1
      %v8936 = vrot.slane %v8642, 1
      %v8937 = vsel %vm1033, %v8935, %v8936
      %v8938 = vrot.slane %v8643, 1
      %v8939 = vsel %vm1033, %v8936, %v8938
      %v8940 = vrot.slane %v8644, 1
      %v8941 = vsel %vm1033, %v8938, %v8940
      %v8942 = vrot.slane %v8645, 1
      %v8943 = vsel %vm1033, %v8940, %v8942
      %v8944 = vrot.slane %v8646, 1
      %v8945 = vsel %vm1033, %v8942, %v8944
      %v8946 = vrot.slane %v8647, 1
      %v8947 = vsel %vm1033, %v8944, %v8946
      %v8948 = vrot.slane %v8648, 1
      %v8949 = vsel %vm1033, %v8946, %v8948
      %v8950 = vrot.slane %v8649, 1
      %v8951 = vsel %vm1033, %v8948, %v8950
      %v8952 = vrot.slane %v8650, 1
      %v8953 = vsel %vm1033, %v8950, %v8952
      %v8954 = vrot.slane %v8651, 1
      %v8955 = vsel %vm1033, %v8952, %v8954
      %v8964 = vunpack.c.l.b16 %v8924
      %v8965 = vunpack.c.l.b16 %v8925
      %v8966 = vunpack.c.l.b16 %v8926
      %v8967 = vunpack.c.l.b16 %v8927
      %v8968 = vunpack.c.l.b16 %v8928
      %v8969 = vunpack.c.l.b16 %v8929
      %v8970 = vunpack.c.l.b16 %v8930
      %v8971 = vunpack.c.l.b16 %v8931
      %v8972 = vpack.c.b16 %v8965, %v8964
      %v8973 = vpack.c.b16 %v8967, %v8966
      %v8974 = vpack.c.b16 %v8969, %v8968
      %v8975 = vpack.c.b16 %v8971, %v8970
      %v8981 = vsel %vm6946, %v8937, 0
      %v8984 = vsel %vm6946, %v8939, 0
      %v8987 = vsel %vm6946, %v8941, 0
      %v8990 = vsel %vm6946, %v8943, 0
      %v8993 = vsel %vm6946, %v8945, 0
      %v8996 = vsel %vm6946, %v8947, 0
      %v8999 = vsel %vm6946, %v8949, 0
      %v9002 = vsel %vm6946, %v8951, 0
      %v9005 = vsel %vm6946, %v8953, 0
      %v9008 = vsel %vm6946, %v8955, 0
      %9010 = vmatprep.subr.bf16.mxu0 0
      %9011 = vmatpush1.bf16.msra.mxu0 %v8972
      %9012 = vmatprep.subr.bf16.mxu0 0
      %9013 = vmatpush1.bf16.msra.mxu0 %v8973
      %9014 = vmatprep.subr.bf16.mxu0 0
      %9015 = vmatpush1.bf16.msra.mxu0 %v8974
      %9016 = vmatprep.subr.bf16.mxu0 0
      %9017 = vmatpush1.bf16.msra.mxu0 %v8975
      %9018 = vmatprep.subr.bf16.mxu0 0
      %9019 = vmatpush1.bf16.msra.mxu0 0
      %9020 = vmatprep.subr.bf16.mxu0 0
      %9021 = vmatpush1.bf16.msra.mxu0 0
      %9022 = vmatprep.subr.bf16.mxu0 0
      %9023 = vmatpush1.bf16.msra.mxu0 0
      %9024 = vmatprep.subr.bf16.mxu0 0
      %9025 = vmatpush1.bf16.msra.mxu0 0
      %9026 = vmatprep.subr.bf16.mxu0 0
      %9027 = vmatpush1.bf16.msra.mxu0 0
      %9028 = vmatprep.subr.bf16.mxu0 0
      %9029 = vmatpush1.bf16.msra.mxu0 0
      %9030 = vmatprep.subr.bf16.mxu0 0
      %9031 = vmatpush1.bf16.msra.mxu0 0
      %9032 = vmatprep.subr.bf16.mxu0 0
      %9033 = vmatpush1.bf16.msra.mxu0 0
      %9034 = vmatprep.subr.bf16.mxu0 0
      %9035 = vmatpush1.bf16.msra.mxu0 0
      %9036 = vmatprep.subr.bf16.mxu0 0
      %9037 = vmatpush1.bf16.msra.mxu0 0
      %9038 = vmatprep.subr.bf16.mxu0 0
      %9039 = vmatpush1.bf16.msra.mxu0 0
      %9040 = vmatprep.subr.bf16.mxu0 0
      %9041 = vmatpush1.bf16.msra.mxu0 0
      %9042 = vmatprep.mubr.bf16.mxu0 0
      %9043 = vmatmul.mubr.bf16.gmra.mrb[0].mxu0 %v8981
      %v9044 = vpop.f32.mrb[0].mxu0
      %v9045 = vadd.f32 0.0, %v9044
      %v9046 = vpop.f32.mrb[0].mxu0
      %v9047 = vpop.f32.mrb[0].mxu0
      %v9048 = vadd.f32 0.0, %v9047
      %v9049 = vpop.f32.mrb[0].mxu0
      %9050 = vmatprep.mubr.bf16.mxu0 0
      %9051 = vmatmul.mubr.bf16.gmra.mrb[0].mxu0 %v8984
      %v9052 = vpop.f32.mrb[0].mxu0
      %v9053 = vadd.f32 0.0, %v9052
      %v9054 = vpop.f32.mrb[0].mxu0
      %v9055 = vpop.f32.mrb[0].mxu0
      %v9056 = vadd.f32 0.0, %v9055
      %v9057 = vpop.f32.mrb[0].mxu0
      %9058 = vmatprep.mubr.bf16.mxu0 0
      %9059 = vmatmul.mubr.bf16.gmra.mrb[0].mxu0 %v8987
      %v9060 = vpop.f32.mrb[0].mxu0
      %v9061 = vadd.f32 0.0, %v9060
      %v9062 = vpop.f32.mrb[0].mxu0
      %v9063 = vpop.f32.mrb[0].mxu0
      %v9064 = vadd.f32 0.0, %v9063
      %v9065 = vpop.f32.mrb[0].mxu0
      %9066 = vmatprep.mubr.bf16.mxu0 0
      %9067 = vmatmul.mubr.bf16.gmra.mrb[0].mxu0 %v8990
      %v9068 = vpop.f32.mrb[0].mxu0
      %v9069 = vadd.f32 0.0, %v9068
      %v9070 = vpop.f32.mrb[0].mxu0
      %v9071 = vpop.f32.mrb[0].mxu0
      %v9072 = vadd.f32 0.0, %v9071
      %v9073 = vpop.f32.mrb[0].mxu0
      %9074 = vmatprep.mubr.bf16.mxu0 0
      %9075 = vmatmul.mubr.bf16.gmra.mrb[0].mxu0 %v8993
      %v9076 = vpop.f32.mrb[0].mxu0
      %v9077 = vadd.f32 0.0, %v9076
      %v9078 = vpop.f32.mrb[0].mxu0
      %v9079 = vpop.f32.mrb[0].mxu0
      %v9080 = vadd.f32 0.0, %v9079
      %v9081 = vpop.f32.mrb[0].mxu0
      %9082 = vmatprep.mubr.bf16.mxu0 0
      %9083 = vmatmul.mubr.bf16.gmra.mrb[0].mxu0 %v8996
      %v9084 = vpop.f32.mrb[0].mxu0
      %v9085 = vadd.f32 0.0, %v9084
      %v9086 = vpop.f32.mrb[0].mxu0
      %v9087 = vpop.f32.mrb[0].mxu0
      %v9088 = vadd.f32 0.0, %v9087
      %v9089 = vpop.f32.mrb[0].mxu0
      %9090 = vmatprep.mubr.bf16.mxu0 0
      %9091 = vmatmul.mubr.bf16.gmra.mrb[0].mxu0 %v8999
      %v9092 = vpop.f32.mrb[0].mxu0
      %v9093 = vadd.f32 0.0, %v9092
      %v9094 = vpop.f32.mrb[0].mxu0
      %v9095 = vpop.f32.mrb[0].mxu0
      %v9096 = vadd.f32 0.0, %v9095
      %v9097 = vpop.f32.mrb[0].mxu0
      %9098 = vmatprep.mubr.bf16.mxu0 0
      %9099 = vmatmul.mubr.bf16.gmra.mrb[0].mxu0 %v9002
      %v9100 = vpop.f32.mrb[0].mxu0
      %v9101 = vadd.f32 0.0, %v9100
      %v9102 = vpop.f32.mrb[0].mxu0
      %v9103 = vpop.f32.mrb[0].mxu0
      %v9104 = vadd.f32 0.0, %v9103
      %v9105 = vpop.f32.mrb[0].mxu0
      %9106 = vmatprep.mubr.bf16.mxu0 0
      %9107 = vmatmul.mubr.bf16.gmra.mrb[0].mxu0 %v9005
      %v9108 = vpop.f32.mrb[0].mxu0
      %v9109 = vadd.f32 0.0, %v9108
      %v9110 = vpop.f32.mrb[0].mxu0
      %v9111 = vpop.f32.mrb[0].mxu0
      %v9112 = vadd.f32 0.0, %v9111
      %v9113 = vpop.f32.mrb[0].mxu0
      %9114 = vmatprep.mubr.bf16.mxu0 0
      %9115 = vmatmul.mubr.bf16.gmra.mrb[0].mxu0 %v9008
      %v9116 = vpop.f32.mrb[0].mxu0
      %v9117 = vadd.f32 0.0, %v9116
      %v9118 = vpop.f32.mrb[0].mxu0
      %v9119 = vpop.f32.mrb[0].mxu0
      %v9120 = vadd.f32 0.0, %v9119
      %v9121 = vpop.f32.mrb[0].mxu0
      %9122 = vdwg.mxu0
      %v9123 = vadd.f32 %v8903, %v9045
      %v9124 = vadd.f32 %v8904, %v9048
      %v9125 = vadd.f32 %v8905, %v9053
      %v9126 = vadd.f32 %v8906, %v9056
      %v9127 = vadd.f32 %v8907, %v9061
      %v9128 = vadd.f32 %v8908, %v9064
      %v9129 = vadd.f32 %v8909, %v9069
      %v9130 = vadd.f32 %v8910, %v9072
      %v9131 = vadd.f32 %v8911, %v9077
      %v9132 = vadd.f32 %v8912, %v9080
      %v9133 = vadd.f32 %v8913, %v9085
      %v9134 = vadd.f32 %v8914, %v9088
      %v9135 = vadd.f32 %v8915, %v9093
      %v9136 = vadd.f32 %v8916, %v9096
      %v9137 = vadd.f32 %v8917, %v9101
      %v9138 = vadd.f32 %v8918, %v9104
      %v9139 = vadd.f32 %v8919, %v9109
      %v9140 = vadd.f32 %v8920, %v9112
      %v9141 = vadd.f32 %v8921, %v9117
      %v9142 = vadd.f32 %v8922, %v9120
      %v9143 = vld [vmem:[%s6] sm:$0x1]
      %v9145 = vlaneseq
      %v9146 = vshrl.u32 %v9145, 7
      %v9147 = vsub.s32 0, %v9146
      %v9148 = vrot.slane %v9143, %v9147
      %v9150 = vadd.f32 %v9123, %v9148
      %v9151 = vadd.f32 %v9124, %v9148
      %v9152 = vadd.f32 %v9125, %v9148
      %v9153 = vadd.f32 %v9126, %v9148
      %v9154 = vadd.f32 %v9127, %v9148
      %v9155 = vadd.f32 %v9128, %v9148
      %v9156 = vadd.f32 %v9129, %v9148
      %v9157 = vadd.f32 %v9130, %v9148
      %v9158 = vadd.f32 %v9131, %v9148
      %v9159 = vadd.f32 %v9132, %v9148
      %v9160 = vadd.f32 %v9133, %v9148
      %v9161 = vadd.f32 %v9134, %v9148
      %v9162 = vadd.f32 %v9135, %v9148
      %v9163 = vadd.f32 %v9136, %v9148
      %v9164 = vadd.f32 %v9137, %v9148
      %v9165 = vadd.f32 %v9138, %v9148
      %v9166 = vadd.f32 %v9139, %v9148
      %v9167 = vadd.f32 %v9140, %v9148
      %v9168 = vadd.f32 %v9141, %v9148
      %v9169 = vadd.f32 %v9142, %v9148
      %9170 = vst [vmem:[%s357] sm:$0xff] %v9150
      %9171 = vst [vmem:[%s357 + $0x8] sm:$0xff] %v9151
      %9172 = vst [vmem:[%s357 + $0x10] sm:$0xff] %v9152
      %9173 = vst [vmem:[%s357 + $0x18] sm:$0xff] %v9153
      %9174 = vst [vmem:[%s357 + $0x20] sm:$0xff] %v9154
      %9175 = vst [vmem:[%s357 + $0x28] sm:$0xff] %v9155
      %9176 = vst [vmem:[%s357 + $0x30] sm:$0xff] %v9156
      %9177 = vst [vmem:[%s357 + $0x38] sm:$0xff] %v9157
      %9178 = vst [vmem:[%s357 + $0x40] sm:$0xff] %v9158
      %9179 = vst [vmem:[%s357 + $0x48] sm:$0xff] %v9159
      %9180 = vst [vmem:[%s357 + $0x50] sm:$0xff] %v9160
      %9181 = vst [vmem:[%s357 + $0x58] sm:$0xff] %v9161
      %9182 = vst [vmem:[%s357 + $0x60] sm:$0xff] %v9162
      %9183 = vst [vmem:[%s357 + $0x68] sm:$0xff] %v9163
      %9184 = vst [vmem:[%s357 + $0x70] sm:$0xff] %v9164
      %9185 = vst [vmem:[%s357 + $0x78] sm:$0xff] %v9165
      %9186 = vst [vmem:[%s357 + $0x80] sm:$0xff] %v9166
      %9187 = vst [vmem:[%s357 + $0x88] sm:$0xff] %v9167
      %9188 = vst [vmem:[%s357 + $0x90] sm:$0xff] %v9168
      %9189 = vst [vmem:[%s357 + $0x98] sm:$0xff] %v9169
      %p9190 = scmp.lt.s32.totalorder %s21, 1
      %s9191 = scalar_select %p9190, %s21, 1
      %s9192 = smul.addr %s9191, 32
      %s9193 = smul.addr %s9192, 4
      %s9194 = scalar_lea.vmem %s7, %s9193
      %p9195 = scmp.lt.s32.totalorder %s21, 1
      %s9196 = scalar_select %p9195, %s21, 1
      %s9197 = smul.addr %s9196, 26
      %s9198 = smul.addr %s9197, 4
      %s9199 = scalar_lea.vmem %s8, %s9198
      %p9200 = scmp.lt.s32.totalorder %s21, 1
      %s9201 = scalar_select %p9200, %s21, 1
      %s9202 = smul.addr %s9201, 20
      %s9203 = smul.addr %s9202, 8
      %s9204 = scalar_lea.vmem %s9, %s9203
      // Predicated region
      $region49: #{encoder_forward.1} parent=47 // pred_check
        %p9205 = pneg %p191
      $region50: #{encoder_forward.1} parent=47 // pred_check_branch
        %9207 = sbr.rel (%p9205) target = $region52
      $region51: #{encoder_forward.1} parent=47 // pred_region
        _
      $region52: #{encoder_forward.1} parent=47 // pred_fallthru
        _
      // Predicated region
      $region53: #{encoder_forward.1} parent=47 // pred_check
        %p9208 = pneg %p217
      $region54: #{encoder_forward.1} parent=47 // pred_check_branch
        %9210 = sbr.rel (%p9208) target = $region56
      $region55: #{encoder_forward.1} parent=47 // pred_region
        _
      $region56: #{encoder_forward.1} parent=47 // pred_fallthru
        _
      // Predicated region
      $region57: #{encoder_forward.1} parent=47 // pred_check
        %p9211 = pneg %p243
      $region58: #{encoder_forward.1} parent=47 // pred_check_branch
        %9213 = sbr.rel (%p9211) target = $region60
      $region59: #{encoder_forward.1} parent=47 // pred_region
        _
      $region60: #{encoder_forward.1} parent=47 // pred_fallthru
        _
    $region48: #{encoder_forward.1} parent=5 // pred_fallthru
      _
    %p9214 = scmp.le.s32.totalorder 2, %s16
    // Predicated region
    $region61: #{encoder_forward.1} parent=5 // pred_check
      %p9215 = pneg %p9214
    $region62: #{encoder_forward.1} parent=5 // pred_check_branch
      %9217 = sbr.rel (%p9215) target = $region64
    $region63: #{encoder_forward.1} parent=5 // pred_region
      %s9218 = ssub.s32 %s16, 2
      // Predicated region
      $region65: #{encoder_forward.1} parent=63 // pred_check
        %p9219 = pneg %p197
      $region66: #{encoder_forward.1} parent=63 // pred_check_branch
        %9221 = sbr.rel (%p9219) target = $region68
      $region67: #{encoder_forward.1} parent=63 // pred_region
        %p9222 = scmp.lt.s32.totalorder %s22, 1
        %s9223 = scalar_select %p9222, %s22, 1
        %s9224 = smul.addr %s9223, 32
        %s9225 = smul.addr %s9224, 4
        %s9226 = scalar_lea.vmem %s7, %s9225
      $region68: #{encoder_forward.1} parent=63 // pred_fallthru
        _
      // Predicated region
      $region69: #{encoder_forward.1} parent=63 // pred_check
        %p9227 = pneg %p223
      $region70: #{encoder_forward.1} parent=63 // pred_check_branch
        %9229 = sbr.rel (%p9227) target = $region72
      $region71: #{encoder_forward.1} parent=63 // pred_region
        %p9230 = scmp.lt.s32.totalorder %s22, 1
        %s9231 = scalar_select %p9230, %s22, 1
        %s9232 = smul.addr %s9231, 26
        %s9233 = smul.addr %s9232, 4
        %s9234 = scalar_lea.vmem %s8, %s9233
      $region72: #{encoder_forward.1} parent=63 // pred_fallthru
        _
      // Predicated region
      $region73: #{encoder_forward.1} parent=63 // pred_check
        %p9235 = pneg %p249
      $region74: #{encoder_forward.1} parent=63 // pred_check_branch
        %9237 = sbr.rel (%p9235) target = $region76
      $region75: #{encoder_forward.1} parent=63 // pred_region
        %p9238 = scmp.lt.s32.totalorder %s22, 1
        %s9239 = scalar_select %p9238, %s22, 1
        %s9240 = smul.addr %s9239, 20
        %s9241 = smul.addr %s9240, 8
        %s9242 = scalar_lea.vmem %s9, %s9241
      $region76: #{encoder_forward.1} parent=63 // pred_fallthru
        _
    $region64: #{encoder_forward.1} parent=5 // pred_fallthru
      _
  $region6: #{encoder_forward.1} parent=0 // loop_footer
    %s20 = sadd.s32 1, %s16
  $region7: #{encoder_forward.1} parent=0 // loop_footer_branch
    %15 = sbr.rel target = $region3
  $region8: #{encoder_forward.1} parent=0 // loop_exit
    _

</llo_original>
